<compile_context>
chip_gen: v6e
topology: v6e:2x2x1
jax: 0.10.0
libtpu: 0.0.40
codegen_flags: <defaults>
</compile_context>

<pallas_src>
import jax
import jax.numpy as jnp
from jax import lax
from jax.experimental import pallas as pl
from jax.experimental.pallas import tpu as pltpu

NEG_SLOPE = 0.2  # LeakyReLU(0.2) used throughout G_Block


def _leaky(v):
    return jnp.where(v >= 0, v, NEG_SLOPE * v)


# --------------------------------------------------------------------------
# Kernel 1: all 8 affine MLPs (4 `affine` modules x {gamma, beta}) in one call.
#   layer 1: y (B,256) @ W1 (256, 8*256)     -> one dense matmul
#   layer 2: per-head (B,256) @ (256, Cmax)  -> 8 small matmuls; no 7/8-zero
#            block-diagonal weight is DMA'd anymore.
# Head order: [g0, b0, g1, b1, g2, b2, g3, b3]; heads 0-3 are in_ch wide,
# heads 4-7 are out_ch wide (stored in the first columns of Cmax).
# --------------------------------------------------------------------------
def _affine_pack_call(y, w1, b1, w2, b2):
    Bsz = y.shape[0]
    Cmax = w2.shape[2]

    def kernel(y_ref, w1_ref, b1_ref, w2_ref, b2_ref, o_ref):
        yb = y_ref[...].astype(jnp.bfloat16)
        h = jnp.dot(yb, w1_ref[...], preferred_element_type=jnp.float32)
        h = jnp.maximum(h + b1_ref[...], 0.0).astype(jnp.bfloat16)   # (B, 2048)
        outs = []
        for j in range(8):
            hj = h[:, 256 * j:256 * (j + 1)]
            outs.append(jnp.dot(hj, w2_ref[j],
                                preferred_element_type=jnp.float32) + b2_ref[j])
        o_ref[...] = jnp.stack(outs, axis=1)                          # (B, 8, Cmax)

    return pl.pallas_call(
        kernel,
        out_shape=jax.ShapeDtypeStruct((Bsz, 8, Cmax), jnp.float32),
        grid=(1,),
        in_specs=[
            pl.BlockSpec(y.shape, lambda i: (0, 0)),
            pl.BlockSpec(w1.shape, lambda i: (0, 0)),
            pl.BlockSpec(b1.shape, lambda i: (0, 0)),
            pl.BlockSpec(w2.shape, lambda i: (0, 0, 0)),
            pl.BlockSpec(b2.shape, lambda i: (0, 0)),
        ],
        out_specs=pl.BlockSpec((Bsz, 8, Cmax), lambda i: (0, 0, 0)),
    )(y, w1, b1, w2, b2)


# --------------------------------------------------------------------------
# Kernel 2: fully fused residual path, one grid step per batch element:
#   leaky(aff1(leaky(aff0(x)))) -> conv3x3 (c1) ->
#   leaky(aff3(leaky(aff2(.)))) -> conv3x3 (c2) ->
#   out = shortcut(x) + gamma * residual
# Both 3x3 convs are single im2col matmuls (M = H*W, K = 9*C) on bf16 operands
# with f32 accumulation; the padded images and patches stay in VMEM.
# --------------------------------------------------------------------------
def _fused_vmem_bytes(H, W, Cin, Cout, Cmax):
    f32, bf16 = 4, 2
    io = 2 * f32 * (H * W * Cin + H * W * Cout + 8 * Cmax)            # dbl-buffered I/O
    weights = 2 * bf16 * (9 * Cin * Cout + 9 * Cout * Cout + Cin * Cout) \
        + 2 * f32 * 3 * Cout
    temps = bf16 * (H * W * 9 * (Cin + Cout)                          # im2col patches
                    + (H + 2) * (W + 2) * (Cin + Cout))               # padded images
    temps += f32 * H * W * (Cin + 2 * Cout)                           # f32 intermediates
    return io + weights + temps


def _fused_residual_call(x, ab, c1_w, c1_b, c2_w, c2_b, csc_w, csc_b, gamma,
                         *, learnable):
    Bsz, H, W, Cin = x.shape
    Cout = c1_b.shape[1]
    Cmax = ab.shape[2]

    est = _fused_vmem_bytes(H, W, Cin, Cout, Cmax)
    if est > 24 * 1024 * 1024:
        # TODO(synk): add a row-tiled (per-tile halo) variant for large DF-GAN
        # stages; the fused whole-image kernel targets small/medium images.
        raise NotImplementedError(
            f"G_Block image too large for the fused VMEM-resident kernel (~{est} B)")

    def body(x_ref, ab_ref, w1_ref, b1_ref, w2_ref, b2_ref, scw_ref, scb_ref,
             g_ref, o_ref):
        x_img = x_ref[0]                                       # (H, W, Cin) f32

        def vec(j, C):                                         # affine head j
            return ab_ref[0, j, :C].reshape(1, 1, C)

        def pad_and_im2col(h, C):
            # bf16 zero-halo image; 3 sublane (dx) shifts, reused for the three
            # dy row offsets (rows live on the cheap leading axis).  Column
            # order matches the (kx, ky, cin) weight packing in pack_g_block.
            hb = h.astype(jnp.bfloat16)
            zc = jnp.zeros((H, 1, C), jnp.bfloat16)
            zr = jnp.zeros((1, W + 2, C), jnp.bfloat16)
            hp = jnp.concatenate(
                [zr, jnp.concatenate([zc, hb, zc], axis=1), zr], axis=0)
            cols = [hp[:, dx:dx + W, :] for dx in range(3)]          # (H+2, W, C)
            taps = [cols[dx][dy:dy + H] for dx in range(3) for dy in range(3)]
            return jnp.concatenate(taps, axis=-1).reshape(H * W, 9 * C)

        # stage 1: leaky(aff1(leaky(aff0(x))))
        h = _leaky(x_img * vec(0, Cin) + vec(1, Cin))
        h = _leaky(h * vec(2, Cin) + vec(3, Cin))

        # stage 2: c1 = conv3x3(h)  (im2col matmul, M = H*W)
        t = jnp.dot(pad_and_im2col(h, Cin), w1_ref[...],
                    preferred_element_type=jnp.float32) + b1_ref[...]
        t = t.reshape(H, W, Cout)

        # stage 3: leaky(aff3(leaky(aff2(t))))
        h2 = _leaky(t * vec(4, Cout) + vec(5, Cout))
        h2 = _leaky(h2 * vec(6, Cout) + vec(7, Cout))

        # stage 4: residual = conv3x3(h2)
        res = jnp.dot(pad_and_im2col(h2, Cout), w2_ref[...],
                      preferred_element_type=jnp.float32) + b2_ref[...]

        # stage 5: out = shortcut(x) + gamma * residual
        xf = x_img.reshape(H * W, Cin)
        if learnable:
            sc = jnp.dot(xf.astype(jnp.bfloat16), scw_ref[...],
                         preferred_element_type=jnp.float32) + scb_ref[...]
        else:
            sc = xf                                            # Cin == Cout (asserted)
        o_ref[...] = (sc + g_ref[0] * res).reshape(1, H, W, Cout)

    if learnable:
        def kernel(x_ref, ab_ref, w1_ref, b1_ref, w2_ref, b2_ref,
                   scw_ref, scb_ref, g_ref, o_ref):
            body(x_ref, ab_ref, w1_ref, b1_ref, w2_ref, b2_ref,
                 scw_ref, scb_ref, g_ref, o_ref)
    else:
        def kernel(x_ref, ab_ref, w1_ref, b1_ref, w2_ref, b2_ref, g_ref, o_ref):
            body(x_ref, ab_ref, w1_ref, b1_ref, w2_ref, b2_ref,
                 None, None, g_ref, o_ref)

    in_specs = [
        pl.BlockSpec((1, H, W, Cin), lambda b: (b, 0, 0, 0)),     # x
        pl.BlockSpec((1, 8, Cmax), lambda b: (b, 0, 0)),          # affine gammas/betas
        pl.BlockSpec((9 * Cin, Cout), lambda b: (0, 0)),          # c1 weight (kx,ky,cin)
        pl.BlockSpec((1, Cout), lambda b: (0, 0)),                # c1 bias
        pl.BlockSpec((9 * Cout, Cout), lambda b: (0, 0)),         # c2 weight
        pl.BlockSpec((1, Cout), lambda b: (0, 0)),                # c2 bias
    ]
    args = [x, ab, c1_w, c1_b, c2_w, c2_b]
    if learnable:
        in_specs += [pl.BlockSpec((Cin, Cout), lambda b: (0, 0)),
                     pl.BlockSpec((1, Cout), lambda b: (0, 0))]
        args += [csc_w, csc_b]
    in_specs.append(pl.BlockSpec(memory_space=pltpu.MemorySpace.SMEM))  # gamma (1,)
    args.append(gamma)

    # NOTE: batch is the only grid axis; on v7x megacore needs B >= 2 (for B == 1
    # a leading row-split axis would be required to occupy both TensorCores).
    return pl.pallas_call(
        kernel,
        out_shape=jax.ShapeDtypeStruct((Bsz, H, W, Cout), jnp.float32),
        grid=(Bsz,),
        in_specs=in_specs,
        out_specs=pl.BlockSpec((1, H, W, Cout), lambda b: (b, 0, 0, 0)),
        compiler_params=pltpu.CompilerParams(dimension_semantics=("parallel",)),
    )(*args)


# ------------------------------ parameters ---------------------------------

def _aff_init(key, C, scale=0.05):
    ks = jax.random.split(key, 8)
    n = lambda k, s: scale * jax.random.normal(k, s, jnp.float32)
    # NOTE: torch's affine._initialize zero-inits linear2 weights (gamma bias=1,
    # beta bias=0); random values are used here so every path is numerically
    # exercised by the self-check below.
    return {"gw1": n(ks[0], (256, 256)), "gb1": n(ks[1], (256,)),
            "gw2": n(ks[2], (256, C)),   "gb2": n(ks[3], (C,)),
            "bw1": n(ks[4], (256, 256)), "bb1": n(ks[5], (256,)),
            "bw2": n(ks[6], (256, C)),   "bb2": n(ks[7], (C,))}


def init_g_block(key, in_ch, out_ch, scale=0.05):
    ks = jax.random.split(key, 8)
    n = lambda k, s: scale * jax.random.normal(k, s, jnp.float32)
    nat = {"affine0": _aff_init(ks[0], in_ch),
           "affine1": _aff_init(ks[1], in_ch),
           "affine2": _aff_init(ks[2], out_ch),
           "affine3": _aff_init(ks[3], out_ch),
           "c1_w": n(ks[4], (3, 3, in_ch, out_ch)), "c1_b": n(ks[5], (out_ch,)),
           "c2_w": n(ks[6], (3, 3, out_ch, out_ch)), "c2_b": n(ks[7], (out_ch,)),
           # torch zero-inits G_Block.gamma; nonzero exercises the residual path.
           "gamma": jnp.array([0.7], jnp.float32)}
    if in_ch != out_ch:
        k1, k2 = jax.random.split(jax.random.fold_in(key, 99))
        nat["csc_w"] = n(k1, (in_ch, out_ch))
        nat["csc_b"] = n(k2, (out_ch,))
    return nat


def _conv_w_pack(w):
    """(ky, kx, cin, cout) HWIO -> (9*cin, cout), rows ordered (kx, ky, cin)."""
    kh, kw, ci, co = w.shape
    return jnp.transpose(w, (1, 0, 2, 3)).reshape(kh * kw * ci, co)


def pack_g_block(nat):
    """Repack torch-style params into the fused Pallas layout (bf16 matmul weights)."""
    affs = [nat["affine0"], nat["affine1"], nat["affine2"], nat["affine3"]]
    heads = []
    for a in affs:
        heads.append((a["gw1"], a["gb1"], a["gw2"], a["gb2"]))   # gamma head
        heads.append((a["bw1"], a["bb1"], a["bw2"], a["bb2"]))   # beta head
    Cmax = max(h[2].shape[1] for h in heads)
    aff_w1 = jnp.concatenate([h[0] for h in heads], axis=1)                # (256, 2048)
    aff_b1 = jnp.concatenate([h[1] for h in heads], axis=0).reshape(1, -1)
    aff_w2 = jnp.stack(
        [jnp.zeros((256, Cmax), jnp.float32).at[:, :h[2].shape[1]].set(h[2])
         for h in heads], axis=0)                                          # (8, 256, Cmax)
    aff_b2 = jnp.stack(
        [jnp.zeros((Cmax,), jnp.float32).at[:h[3].shape[0]].set(h[3])
         for h in heads], axis=0)                                          # (8, Cmax)

    out_ch = nat["c1_w"].shape[3]
    p = {"aff_w1": aff_w1.astype(jnp.bfloat16), "aff_b1": aff_b1,
         "aff_w2": aff_w2.astype(jnp.bfloat16), "aff_b2": aff_b2,
         "c1_w": _conv_w_pack(nat["c1_w"]).astype(jnp.bfloat16),
         "c1_b": nat["c1_b"].reshape(1, out_ch),
         "c2_w": _conv_w_pack(nat["c2_w"]).astype(jnp.bfloat16),
         "c2_b": nat["c2_b"].reshape(1, out_ch),
         "gamma": nat["gamma"]}
    if "csc_w" in nat:
        p["csc_w"] = nat["csc_w"].astype(jnp.bfloat16)
        p["csc_b"] = nat["csc_b"].reshape(1, out_ch)
    return p


# ------------------------------- forward -----------------------------------

def g_block_pallas(p, x_nchw, y):
    """G_Block forward: x (B, in_ch, H, W) NCHW, y (B, 256).  Returns NCHW f32."""
    Bsz, Cin, H, W = x_nchw.shape
    Cout = p["c1_b"].shape[1]
    learnable = "csc_w" in p
    if not learnable:
        assert Cin == Cout, (
            f"identity shortcut requires in_ch == out_ch, got {Cin} vs {Cout}")
    x = jnp.transpose(x_nchw, (0, 2, 3, 1)).astype(jnp.float32)            # NHWC
    ab = _affine_pack_call(y, p["aff_w1"], p["aff_b1"], p["aff_w2"], p["aff_b2"])
    out = _fused_residual_call(x, ab, p["c1_w"], p["c1_b"], p["c2_w"], p["c2_b"],
                               p.get("csc_w"), p.get("csc_b"), p["gamma"],
                               learnable=learnable)
    return jnp.transpose(out, (0, 3, 1, 2))


# ------------------------- pure-JAX reference -------------------------------

def _mlp_ref(y, w1, b1, w2, b2):
    h = jnp.dot(y.astype(jnp.bfloat16), w1.astype(jnp.bfloat16),
                preferred_element_type=jnp.float32) + b1
    h = jnp.maximum(h, 0.0).astype(jnp.bfloat16)
    return jnp.dot(h, w2.astype(jnp.bfloat16),
                   preferred_element_type=jnp.float32) + b2


def _conv3x3_ref(h, w, b):
    out = lax.conv_general_dilated(
        h.astype(jnp.bfloat16), w.astype(jnp.bfloat16),
        window_strides=(1, 1), padding="SAME",
        dimension_numbers=("NHWC", "HWIO", "NHWC"),
        preferred_element_type=jnp.float32)
    return out + b.reshape(1, 1, 1, -1)


def g_block_reference(nat, x_nchw, y):
    x = jnp.transpose(x_nchw, (0, 2, 3, 1)).astype(jnp.float32)

    def apply_affine(h, a):
        g = _mlp_ref(y, a["gw1"], a["gb1"], a["gw2"], a["gb2"])
        be = _mlp_ref(y, a["bw1"], a["bb1"], a["bw2"], a["bb2"])
        return _leaky(h * g[:, None, None, :] + be[:, None, None, :])

    h = apply_affine(x, nat["affine0"])
    h = apply_affine(h, nat["affine1"])
    t = _conv3x3_ref(h, nat["c1_w"], nat["c1_b"])
    h = apply_affine(t, nat["affine2"])
    h = apply_affine(h, nat["affine3"])
    res = _conv3x3_ref(h, nat["c2_w"], nat["c2_b"])
    if "csc_w" in nat:
        Bsz, H, W, Cin = x.shape
        sc = jnp.dot(x.reshape(Bsz * H * W, Cin).astype(jnp.bfloat16),
                     nat["csc_w"].astype(jnp.bfloat16),
                     preferred_element_type=jnp.float32)
        sc = sc.reshape(Bsz, H, W, -1) + nat["csc_b"].reshape(1, 1, 1, -1)
    else:
        sc = x
    out = sc + nat["gamma"][0] * res
    return jnp.transpose(out, (0, 3, 1, 2))


# --------------------------------- demo -------------------------------------

if __name__ == "__main__":
    key = jax.random.PRNGKey(0)
    kb1, kb2, kx, ky = jax.random.split(key, 4)

    B, H, W = 2, 16, 16
    in_ch, out_ch = 64, 128                      # learnable 1x1 shortcut path

    nat1 = init_g_block(kb1, in_ch, out_ch)      # in_ch != out_ch
    nat2 = init_g_block(kb2, out_ch, out_ch)     # identity shortcut path
    p1, p2 = pack_g_block(nat1), pack_g_block(nat2)

    x = jax.random.normal(kx, (B, in_ch, H, W), jnp.float32)   # NCHW, like torch
    y = jax.random.normal(ky, (B, 256), jnp.float32)           # text condition

    run = jax.jit(g_block_pallas)
    out1 = run(p1, x, y)
    out2 = run(p2, out1, y)
    jax.block_until_ready((out1, out2))

    assert out1.shape == (B, out_ch, H, W), out1.shape
    assert out2.shape == (B, out_ch, H, W), out2.shape
    assert bool(jnp.all(jnp.isfinite(out1))) and bool(jnp.all(jnp.isfinite(out2)))

    ref1 = g_block_reference(nat1, x, y)
    ref2 = g_block_reference(nat2, out1, y)

    def rel_err(a, r):
        return float(jnp.max(jnp.abs(a - r)) / (jnp.max(jnp.abs(r)) + 1e-6))

    e1, e2 = rel_err(out1, ref1), rel_err(out2, ref2)
    assert e1 < 5e-3 and e2 < 5e-3, (e1, e2)

    # Structured check: gamma = 0 on the identity-shortcut block must return the
    # input exactly (catches swapped shortcut/residual or halo indexing bugs
    # independent of bf16 rounding).
    p2_zero = dict(p2, gamma=jnp.zeros((1,), jnp.float32))
    out2_zero = run(p2_zero, out1, y)
    assert float(jnp.max(jnp.abs(out2_zero - out1))) < 1e-6

    print("KERNEL_OK")
</pallas_src>

<mosaic_0001>
module attributes {stable_mosaic.version = 11 : i64} {
  func.func @kernel(%arg0: i32, %arg1: memref<2x256xf32, #tpu.memory_space<vmem>>, %arg2: memref<256x2048xbf16, #tpu.memory_space<vmem>>, %arg3: memref<1x2048xf32, #tpu.memory_space<vmem>>, %arg4: memref<8x256x128xbf16, #tpu.memory_space<vmem>>, %arg5: memref<8x128xf32, #tpu.memory_space<vmem>>, %arg6: memref<2x8x128xf32, #tpu.memory_space<vmem>>) attributes {dimension_semantics = [#tpu.dimension_semantics<arbitrary>], iteration_bounds = array<i64: 1>, scalar_prefetch = 0 : i64, scratch_operands = 0 : i64, tpu.core_type = #tpu.core_type<tc>, window_params = [{pipeline_mode = #tpu.pipeline_mode<synchronous>, transform_indices = @transform_0, window_bounds = array<i64: 2, 256>}, {pipeline_mode = #tpu.pipeline_mode<synchronous>, transform_indices = @transform_1, window_bounds = array<i64: 256, 2048>}, {pipeline_mode = #tpu.pipeline_mode<synchronous>, transform_indices = @transform_2, window_bounds = array<i64: 1, 2048>}, {pipeline_mode = #tpu.pipeline_mode<synchronous>, transform_indices = @transform_3, window_bounds = array<i64: 8, 256, 128>}, {pipeline_mode = #tpu.pipeline_mode<synchronous>, transform_indices = @transform_4, window_bounds = array<i64: 8, 128>}, {pipeline_mode = #tpu.pipeline_mode<synchronous>, transform_indices = @transform_5, window_bounds = array<i64: 2, 8, 128>}]} {
    %c0 = arith.constant 0 : index
    %c0_0 = arith.constant 0 : index
    %0 = vector.load %arg1[%c0, %c0_0] : memref<2x256xf32, #tpu.memory_space<vmem>>, vector<2x256xf32>
    %1 = arith.truncf %0 : vector<2x256xf32> to vector<2x256xbf16>
    %c0_1 = arith.constant 0 : index
    %c0_2 = arith.constant 0 : index
    %2 = vector.load %arg2[%c0_1, %c0_2] : memref<256x2048xbf16, #tpu.memory_space<vmem>>, vector<256x2048xbf16>
    %cst = arith.constant dense<0.000000e+00> : vector<2x2048xf32>
    %3 = tpu.matmul %1, %2, %cst {dimension_numbers = #tpu.dot_dimension_numbers<[1], [0], [0], [1], [0, 0, 1, 1], [], []>} : vector<2x256xbf16>, vector<256x2048xbf16>, vector<2x2048xf32> -> vector<2x2048xf32>
    %c0_3 = arith.constant 0 : index
    %c0_4 = arith.constant 0 : index
    %4 = vector.load %arg3[%c0_3, %c0_4] : memref<1x2048xf32, #tpu.memory_space<vmem>>, vector<1x2048xf32>
    %5 = vector.broadcast %4 : vector<1x2048xf32> to vector<2x2048xf32>
    %6 = arith.addf %3, %5 : vector<2x2048xf32>
    %cst_5 = arith.constant 0.000000e+00 : f32
    %7 = vector.broadcast %cst_5 : f32 to vector<2x2048xf32>
    %8 = arith.maximumf %6, %7 : vector<2x2048xf32>
    %9 = arith.truncf %8 : vector<2x2048xf32> to vector<2x2048xbf16>
    %10 = vector.extract_strided_slice %9 {offsets = [0, 0], sizes = [2, 256], strides = [1, 1]} : vector<2x2048xbf16> to vector<2x256xbf16>
    %c0_6 = arith.constant 0 : index
    %c0_7 = arith.constant 0 : index
    %c0_8 = arith.constant 0 : index
    %11 = vector.load %arg4[%c0_6, %c0_7, %c0_8] : memref<8x256x128xbf16, #tpu.memory_space<vmem>>, vector<1x256x128xbf16>
    %12 = vector.shape_cast %11 : vector<1x256x128xbf16> to vector<256x128xbf16>
    %cst_9 = arith.constant dense<0.000000e+00> : vector<2x128xf32>
    %13 = tpu.matmul %10, %12, %cst_9 {dimension_numbers = #tpu.dot_dimension_numbers<[1], [0], [0], [1], [0, 0, 1, 1], [], []>} : vector<2x256xbf16>, vector<256x128xbf16>, vector<2x128xf32> -> vector<2x128xf32>
    %c0_10 = arith.constant 0 : index
    %c0_11 = arith.constant 0 : index
    %14 = vector.load %arg5[%c0_10, %c0_11] : memref<8x128xf32, #tpu.memory_space<vmem>>, vector<1x128xf32>
    %15 = vector.shape_cast %14 : vector<1x128xf32> to vector<128xf32>
    %16 = vector.shape_cast %15 : vector<128xf32> to vector<1x128xf32>
    %17 = vector.broadcast %16 : vector<1x128xf32> to vector<2x128xf32>
    %18 = arith.addf %13, %17 : vector<2x128xf32>
    %19 = vector.extract_strided_slice %9 {offsets = [0, 256], sizes = [2, 256], strides = [1, 1]} : vector<2x2048xbf16> to vector<2x256xbf16>
    %c1 = arith.constant 1 : index
    %c0_12 = arith.constant 0 : index
    %c0_13 = arith.constant 0 : index
    %20 = vector.load %arg4[%c1, %c0_12, %c0_13] : memref<8x256x128xbf16, #tpu.memory_space<vmem>>, vector<1x256x128xbf16>
    %21 = vector.shape_cast %20 : vector<1x256x128xbf16> to vector<256x128xbf16>
    %cst_14 = arith.constant dense<0.000000e+00> : vector<2x128xf32>
    %22 = tpu.matmul %19, %21, %cst_14 {dimension_numbers = #tpu.dot_dimension_numbers<[1], [0], [0], [1], [0, 0, 1, 1], [], []>} : vector<2x256xbf16>, vector<256x128xbf16>, vector<2x128xf32> -> vector<2x128xf32>
    %c1_15 = arith.constant 1 : index
    %c0_16 = arith.constant 0 : index
    %23 = vector.load %arg5[%c1_15, %c0_16] : memref<8x128xf32, #tpu.memory_space<vmem>>, vector<1x128xf32>
    %24 = vector.shape_cast %23 : vector<1x128xf32> to vector<128xf32>
    %25 = vector.shape_cast %24 : vector<128xf32> to vector<1x128xf32>
    %26 = vector.broadcast %25 : vector<1x128xf32> to vector<2x128xf32>
    %27 = arith.addf %22, %26 : vector<2x128xf32>
    %28 = vector.extract_strided_slice %9 {offsets = [0, 512], sizes = [2, 256], strides = [1, 1]} : vector<2x2048xbf16> to vector<2x256xbf16>
    %c2 = arith.constant 2 : index
    %c0_17 = arith.constant 0 : index
    %c0_18 = arith.constant 0 : index
    %29 = vector.load %arg4[%c2, %c0_17, %c0_18] : memref<8x256x128xbf16, #tpu.memory_space<vmem>>, vector<1x256x128xbf16>
    %30 = vector.shape_cast %29 : vector<1x256x128xbf16> to vector<256x128xbf16>
    %cst_19 = arith.constant dense<0.000000e+00> : vector<2x128xf32>
    %31 = tpu.matmul %28, %30, %cst_19 {dimension_numbers = #tpu.dot_dimension_numbers<[1], [0], [0], [1], [0, 0, 1, 1], [], []>} : vector<2x256xbf16>, vector<256x128xbf16>, vector<2x128xf32> -> vector<2x128xf32>
    %c2_20 = arith.constant 2 : index
    %c0_21 = arith.constant 0 : index
    %32 = vector.load %arg5[%c2_20, %c0_21] : memref<8x128xf32, #tpu.memory_space<vmem>>, vector<1x128xf32>
    %33 = vector.shape_cast %32 : vector<1x128xf32> to vector<128xf32>
    %34 = vector.shape_cast %33 : vector<128xf32> to vector<1x128xf32>
    %35 = vector.broadcast %34 : vector<1x128xf32> to vector<2x128xf32>
    %36 = arith.addf %31, %35 : vector<2x128xf32>
    %37 = vector.extract_strided_slice %9 {offsets = [0, 768], sizes = [2, 256], strides = [1, 1]} : vector<2x2048xbf16> to vector<2x256xbf16>
    %c3 = arith.constant 3 : index
    %c0_22 = arith.constant 0 : index
    %c0_23 = arith.constant 0 : index
    %38 = vector.load %arg4[%c3, %c0_22, %c0_23] : memref<8x256x128xbf16, #tpu.memory_space<vmem>>, vector<1x256x128xbf16>
    %39 = vector.shape_cast %38 : vector<1x256x128xbf16> to vector<256x128xbf16>
    %cst_24 = arith.constant dense<0.000000e+00> : vector<2x128xf32>
    %40 = tpu.matmul %37, %39, %cst_24 {dimension_numbers = #tpu.dot_dimension_numbers<[1], [0], [0], [1], [0, 0, 1, 1], [], []>} : vector<2x256xbf16>, vector<256x128xbf16>, vector<2x128xf32> -> vector<2x128xf32>
    %c3_25 = arith.constant 3 : index
    %c0_26 = arith.constant 0 : index
    %41 = vector.load %arg5[%c3_25, %c0_26] : memref<8x128xf32, #tpu.memory_space<vmem>>, vector<1x128xf32>
    %42 = vector.shape_cast %41 : vector<1x128xf32> to vector<128xf32>
    %43 = vector.shape_cast %42 : vector<128xf32> to vector<1x128xf32>
    %44 = vector.broadcast %43 : vector<1x128xf32> to vector<2x128xf32>
    %45 = arith.addf %40, %44 : vector<2x128xf32>
    %46 = vector.extract_strided_slice %9 {offsets = [0, 1024], sizes = [2, 256], strides = [1, 1]} : vector<2x2048xbf16> to vector<2x256xbf16>
    %c4 = arith.constant 4 : index
    %c0_27 = arith.constant 0 : index
    %c0_28 = arith.constant 0 : index
    %47 = vector.load %arg4[%c4, %c0_27, %c0_28] : memref<8x256x128xbf16, #tpu.memory_space<vmem>>, vector<1x256x128xbf16>
    %48 = vector.shape_cast %47 : vector<1x256x128xbf16> to vector<256x128xbf16>
    %cst_29 = arith.constant dense<0.000000e+00> : vector<2x128xf32>
    %49 = tpu.matmul %46, %48, %cst_29 {dimension_numbers = #tpu.dot_dimension_numbers<[1], [0], [0], [1], [0, 0, 1, 1], [], []>} : vector<2x256xbf16>, vector<256x128xbf16>, vector<2x128xf32> -> vector<2x128xf32>
    %c4_30 = arith.constant 4 : index
    %c0_31 = arith.constant 0 : index
    %50 = vector.load %arg5[%c4_30, %c0_31] : memref<8x128xf32, #tpu.memory_space<vmem>>, vector<1x128xf32>
    %51 = vector.shape_cast %50 : vector<1x128xf32> to vector<128xf32>
    %52 = vector.shape_cast %51 : vector<128xf32> to vector<1x128xf32>
    %53 = vector.broadcast %52 : vector<1x128xf32> to vector<2x128xf32>
    %54 = arith.addf %49, %53 : vector<2x128xf32>
    %55 = vector.extract_strided_slice %9 {offsets = [0, 1280], sizes = [2, 256], strides = [1, 1]} : vector<2x2048xbf16> to vector<2x256xbf16>
    %c5 = arith.constant 5 : index
    %c0_32 = arith.constant 0 : index
    %c0_33 = arith.constant 0 : index
    %56 = vector.load %arg4[%c5, %c0_32, %c0_33] : memref<8x256x128xbf16, #tpu.memory_space<vmem>>, vector<1x256x128xbf16>
    %57 = vector.shape_cast %56 : vector<1x256x128xbf16> to vector<256x128xbf16>
    %cst_34 = arith.constant dense<0.000000e+00> : vector<2x128xf32>
    %58 = tpu.matmul %55, %57, %cst_34 {dimension_numbers = #tpu.dot_dimension_numbers<[1], [0], [0], [1], [0, 0, 1, 1], [], []>} : vector<2x256xbf16>, vector<256x128xbf16>, vector<2x128xf32> -> vector<2x128xf32>
    %c5_35 = arith.constant 5 : index
    %c0_36 = arith.constant 0 : index
    %59 = vector.load %arg5[%c5_35, %c0_36] : memref<8x128xf32, #tpu.memory_space<vmem>>, vector<1x128xf32>
    %60 = vector.shape_cast %59 : vector<1x128xf32> to vector<128xf32>
    %61 = vector.shape_cast %60 : vector<128xf32> to vector<1x128xf32>
    %62 = vector.broadcast %61 : vector<1x128xf32> to vector<2x128xf32>
    %63 = arith.addf %58, %62 : vector<2x128xf32>
    %64 = vector.extract_strided_slice %9 {offsets = [0, 1536], sizes = [2, 256], strides = [1, 1]} : vector<2x2048xbf16> to vector<2x256xbf16>
    %c6 = arith.constant 6 : index
    %c0_37 = arith.constant 0 : index
    %c0_38 = arith.constant 0 : index
    %65 = vector.load %arg4[%c6, %c0_37, %c0_38] : memref<8x256x128xbf16, #tpu.memory_space<vmem>>, vector<1x256x128xbf16>
    %66 = vector.shape_cast %65 : vector<1x256x128xbf16> to vector<256x128xbf16>
    %cst_39 = arith.constant dense<0.000000e+00> : vector<2x128xf32>
    %67 = tpu.matmul %64, %66, %cst_39 {dimension_numbers = #tpu.dot_dimension_numbers<[1], [0], [0], [1], [0, 0, 1, 1], [], []>} : vector<2x256xbf16>, vector<256x128xbf16>, vector<2x128xf32> -> vector<2x128xf32>
    %c6_40 = arith.constant 6 : index
    %c0_41 = arith.constant 0 : index
    %68 = vector.load %arg5[%c6_40, %c0_41] : memref<8x128xf32, #tpu.memory_space<vmem>>, vector<1x128xf32>
    %69 = vector.shape_cast %68 : vector<1x128xf32> to vector<128xf32>
    %70 = vector.shape_cast %69 : vector<128xf32> to vector<1x128xf32>
    %71 = vector.broadcast %70 : vector<1x128xf32> to vector<2x128xf32>
    %72 = arith.addf %67, %71 : vector<2x128xf32>
    %73 = vector.extract_strided_slice %9 {offsets = [0, 1792], sizes = [2, 256], strides = [1, 1]} : vector<2x2048xbf16> to vector<2x256xbf16>
    %c7 = arith.constant 7 : index
    %c0_42 = arith.constant 0 : index
    %c0_43 = arith.constant 0 : index
    %74 = vector.load %arg4[%c7, %c0_42, %c0_43] : memref<8x256x128xbf16, #tpu.memory_space<vmem>>, vector<1x256x128xbf16>
    %75 = vector.shape_cast %74 : vector<1x256x128xbf16> to vector<256x128xbf16>
    %cst_44 = arith.constant dense<0.000000e+00> : vector<2x128xf32>
    %76 = tpu.matmul %73, %75, %cst_44 {dimension_numbers = #tpu.dot_dimension_numbers<[1], [0], [0], [1], [0, 0, 1, 1], [], []>} : vector<2x256xbf16>, vector<256x128xbf16>, vector<2x128xf32> -> vector<2x128xf32>
    %c7_45 = arith.constant 7 : index
    %c0_46 = arith.constant 0 : index
    %77 = vector.load %arg5[%c7_45, %c0_46] : memref<8x128xf32, #tpu.memory_space<vmem>>, vector<1x128xf32>
    %78 = vector.shape_cast %77 : vector<1x128xf32> to vector<128xf32>
    %79 = vector.shape_cast %78 : vector<128xf32> to vector<1x128xf32>
    %80 = vector.broadcast %79 : vector<1x128xf32> to vector<2x128xf32>
    %81 = arith.addf %76, %80 : vector<2x128xf32>
    %82 = vector.shape_cast %18 : vector<2x128xf32> to vector<2x1x128xf32>
    %83 = vector.shape_cast %27 : vector<2x128xf32> to vector<2x1x128xf32>
    %84 = vector.shape_cast %36 : vector<2x128xf32> to vector<2x1x128xf32>
    %85 = vector.shape_cast %45 : vector<2x128xf32> to vector<2x1x128xf32>
    %86 = vector.shape_cast %54 : vector<2x128xf32> to vector<2x1x128xf32>
    %87 = vector.shape_cast %63 : vector<2x128xf32> to vector<2x1x128xf32>
    %88 = vector.shape_cast %72 : vector<2x128xf32> to vector<2x1x128xf32>
    %89 = vector.shape_cast %81 : vector<2x128xf32> to vector<2x1x128xf32>
    %90 = tpu.concatenate %82, %83, %84, %85, %86, %87, %88, %89 in 1 : vector<2x1x128xf32>, vector<2x1x128xf32>, vector<2x1x128xf32>, vector<2x1x128xf32>, vector<2x1x128xf32>, vector<2x1x128xf32>, vector<2x1x128xf32>, vector<2x1x128xf32> -> vector<2x8x128xf32>
    %c0_47 = arith.constant 0 : index
    %c0_48 = arith.constant 0 : index
    %c0_49 = arith.constant 0 : index
    %91 = vector.load %arg6[%c0_47, %c0_48, %c0_49] : memref<2x8x128xf32, #tpu.memory_space<vmem>>, vector<2x8x128xf32>
    tpu.vector_store %arg6[%c0_47, %c0_48, %c0_49], %90 {strides = array<i32>} : memref<2x8x128xf32, #tpu.memory_space<vmem>>, vector<2x8x128xf32>,
    return
  }
  func.func @transform_0(%arg0: i32) -> (i32, i32) {
    %c0_i32 = arith.constant 0 : i32
    %c0_i32_0 = arith.constant 0 : i32
    %c0_i32_1 = arith.constant 0 : i32
    return %c0_i32, %c0_i32_0 : i32, i32
  }
  func.func @transform_1(%arg0: i32) -> (i32, i32) {
    %c0_i32 = arith.constant 0 : i32
    %c0_i32_0 = arith.constant 0 : i32
    %c0_i32_1 = arith.constant 0 : i32
    return %c0_i32, %c0_i32_0 : i32, i32
  }
  func.func @transform_2(%arg0: i32) -> (i32, i32) {
    %c0_i32 = arith.constant 0 : i32
    %c0_i32_0 = arith.constant 0 : i32
    %c0_i32_1 = arith.constant 0 : i32
    return %c0_i32, %c0_i32_0 : i32, i32
  }
  func.func @transform_3(%arg0: i32) -> (i32, i32, i32) {
    %c0_i32 = arith.constant 0 : i32
    %c0_i32_0 = arith.constant 0 : i32
    %c0_i32_1 = arith.constant 0 : i32
    %c0_i32_2 = arith.constant 0 : i32
    return %c0_i32, %c0_i32_0, %c0_i32_1 : i32, i32, i32
  }
  func.func @transform_4(%arg0: i32) -> (i32, i32) {
    %c0_i32 = arith.constant 0 : i32
    %c0_i32_0 = arith.constant 0 : i32
    %c0_i32_1 = arith.constant 0 : i32
    return %c0_i32, %c0_i32_0 : i32, i32
  }
  func.func @transform_5(%arg0: i32) -> (i32, i32, i32) {
    %c0_i32 = arith.constant 0 : i32
    %c0_i32_0 = arith.constant 0 : i32
    %c0_i32_1 = arith.constant 0 : i32
    %c0_i32_2 = arith.constant 0 : i32
    return %c0_i32, %c0_i32_0, %c0_i32_1 : i32, i32, i32
  }
}

module attributes {stable_mosaic.version = 11 : i64} {
  func.func @kernel(%arg0: i32, %arg1: memref<1x16x16x64xf32, #tpu.memory_space<vmem>>, %arg2: memref<1x8x128xf32, #tpu.memory_space<vmem>>, %arg3: memref<576x128xbf16, #tpu.memory_space<vmem>>, %arg4: memref<1x128xf32, #tpu.memory_space<vmem>>, %arg5: memref<1152x128xbf16, #tpu.memory_space<vmem>>, %arg6: memref<1x128xf32, #tpu.memory_space<vmem>>, %arg7: memref<64x128xbf16, #tpu.memory_space<vmem>>, %arg8: memref<1x128xf32, #tpu.memory_space<vmem>>, %arg9: memref<1xf32, #tpu.memory_space<smem>>, %arg10: memref<1x16x16x128xf32, #tpu.memory_space<vmem>>) attributes {dimension_semantics = [#tpu.dimension_semantics<parallel>], iteration_bounds = array<i64: 2>, scalar_prefetch = 0 : i64, scratch_operands = 0 : i64, tpu.core_type = #tpu.core_type<tc>, window_params = [{transform_indices = @transform_0, window_bounds = array<i64: 1, 16, 16, 64>}, {transform_indices = @transform_1, window_bounds = array<i64: 1, 8, 128>}, {pipeline_mode = #tpu.pipeline_mode<synchronous>, transform_indices = @transform_2, window_bounds = array<i64: 576, 128>}, {pipeline_mode = #tpu.pipeline_mode<synchronous>, transform_indices = @transform_3, window_bounds = array<i64: 1, 128>}, {pipeline_mode = #tpu.pipeline_mode<synchronous>, transform_indices = @transform_4, window_bounds = array<i64: 1152, 128>}, {pipeline_mode = #tpu.pipeline_mode<synchronous>, transform_indices = @transform_5, window_bounds = array<i64: 1, 128>}, {pipeline_mode = #tpu.pipeline_mode<synchronous>, transform_indices = @transform_6, window_bounds = array<i64: 64, 128>}, {pipeline_mode = #tpu.pipeline_mode<synchronous>, transform_indices = @transform_7, window_bounds = array<i64: 1, 128>}, {transform_indices = @transform_8, window_bounds = array<i64: 1>}, {transform_indices = @transform_9, window_bounds = array<i64: 1, 16, 16, 128>}]} {
    %c0 = arith.constant 0 : index
    %c0_0 = arith.constant 0 : index
    %c0_1 = arith.constant 0 : index
    %c0_2 = arith.constant 0 : index
    %0 = vector.load %arg1[%c0, %c0_0, %c0_1, %c0_2] : memref<1x16x16x64xf32, #tpu.memory_space<vmem>>, vector<1x16x16x64xf32>
    %1 = vector.shape_cast %0 : vector<1x16x16x64xf32> to vector<16x16x64xf32>
    %c0_3 = arith.constant 0 : index
    %c0_4 = arith.constant 0 : index
    %c0_5 = arith.constant 0 : index
    %2 = vector.load %arg2[%c0_3, %c0_4, %c0_5] : memref<1x8x128xf32, #tpu.memory_space<vmem>>, vector<1x1x64xf32>
    %3 = vector.shape_cast %2 : vector<1x1x64xf32> to vector<64xf32>
    %4 = vector.shape_cast %3 : vector<64xf32> to vector<1x1x64xf32>
    %5 = vector.broadcast %4 : vector<1x1x64xf32> to vector<16x16x64xf32>
    %6 = arith.mulf %1, %5 : vector<16x16x64xf32>
    %c0_6 = arith.constant 0 : index
    %c1 = arith.constant 1 : index
    %c0_7 = arith.constant 0 : index
    %7 = vector.load %arg2[%c0_6, %c1, %c0_7] : memref<1x8x128xf32, #tpu.memory_space<vmem>>, vector<1x1x64xf32>
    %8 = vector.shape_cast %7 : vector<1x1x64xf32> to vector<64xf32>
    %9 = vector.shape_cast %8 : vector<64xf32> to vector<1x1x64xf32>
    %10 = vector.broadcast %9 : vector<1x1x64xf32> to vector<16x16x64xf32>
    %11 = arith.addf %6, %10 : vector<16x16x64xf32>
    %cst = arith.constant 0.000000e+00 : f32
    %12 = vector.broadcast %cst : f32 to vector<16x16x64xf32>
    %13 = arith.cmpf oge, %11, %12 : vector<16x16x64xf32>
    %cst_8 = arith.constant 2.000000e-01 : f32
    %14 = vector.broadcast %cst_8 : f32 to vector<16x16x64xf32>
    %15 = arith.mulf %14, %11 : vector<16x16x64xf32>
    %16 = arith.select %13, %11, %15 : vector<16x16x64xi1>, vector<16x16x64xf32>
    %c0_9 = arith.constant 0 : index
    %c2 = arith.constant 2 : index
    %c0_10 = arith.constant 0 : index
    %17 = vector.load %arg2[%c0_9, %c2, %c0_10] : memref<1x8x128xf32, #tpu.memory_space<vmem>>, vector<1x1x64xf32>
    %18 = vector.shape_cast %17 : vector<1x1x64xf32> to vector<64xf32>
    %19 = vector.shape_cast %18 : vector<64xf32> to vector<1x1x64xf32>
    %20 = vector.broadcast %19 : vector<1x1x64xf32> to vector<16x16x64xf32>
    %21 = arith.mulf %16, %20 : vector<16x16x64xf32>
    %c0_11 = arith.constant 0 : index
    %c3 = arith.constant 3 : index
    %c0_12 = arith.constant 0 : index
    %22 = vector.load %arg2[%c0_11, %c3, %c0_12] : memref<1x8x128xf32, #tpu.memory_space<vmem>>, vector<1x1x64xf32>
    %23 = vector.shape_cast %22 : vector<1x1x64xf32> to vector<64xf32>
    %24 = vector.shape_cast %23 : vector<64xf32> to vector<1x1x64xf32>
    %25 = vector.broadcast %24 : vector<1x1x64xf32> to vector<16x16x64xf32>
    %26 = arith.addf %21, %25 : vector<16x16x64xf32>
    %cst_13 = arith.constant 0.000000e+00 : f32
    %27 = vector.broadcast %cst_13 : f32 to vector<16x16x64xf32>
    %28 = arith.cmpf oge, %26, %27 : vector<16x16x64xf32>
    %cst_14 = arith.constant 2.000000e-01 : f32
    %29 = vector.broadcast %cst_14 : f32 to vector<16x16x64xf32>
    %30 = arith.mulf %29, %26 : vector<16x16x64xf32>
    %31 = arith.select %28, %26, %30 : vector<16x16x64xi1>, vector<16x16x64xf32>
    %32 = arith.truncf %31 : vector<16x16x64xf32> to vector<16x16x64xbf16>
    %cst_15 = arith.constant 0.000000e+00 : bf16
    %33 = vector.broadcast %cst_15 : bf16 to vector<16x1x64xbf16>
    %cst_16 = arith.constant 0.000000e+00 : bf16
    %34 = vector.broadcast %cst_16 : bf16 to vector<1x18x64xbf16>
    %35 = tpu.concatenate %33, %32, %33 in 1 : vector<16x1x64xbf16>, vector<16x16x64xbf16>, vector<16x1x64xbf16> -> vector<16x18x64xbf16>
    %36 = tpu.concatenate %34, %35, %34 in 0 : vector<1x18x64xbf16>, vector<16x18x64xbf16>, vector<1x18x64xbf16> -> vector<18x18x64xbf16>
    %37 = vector.extract_strided_slice %36 {offsets = [0, 0, 0], sizes = [18, 16, 64], strides = [1, 1, 1]} : vector<18x18x64xbf16> to vector<18x16x64xbf16>
    %38 = vector.extract_strided_slice %36 {offsets = [0, 1, 0], sizes = [18, 16, 64], strides = [1, 1, 1]} : vector<18x18x64xbf16> to vector<18x16x64xbf16>
    %39 = vector.extract_strided_slice %36 {offsets = [0, 2, 0], sizes = [18, 16, 64], strides = [1, 1, 1]} : vector<18x18x64xbf16> to vector<18x16x64xbf16>
    %40 = vector.extract_strided_slice %37 {offsets = [0, 0, 0], sizes = [16, 16, 64], strides = [1, 1, 1]} : vector<18x16x64xbf16> to vector<16x16x64xbf16>
    %41 = vector.extract_strided_slice %37 {offsets = [1, 0, 0], sizes = [16, 16, 64], strides = [1, 1, 1]} : vector<18x16x64xbf16> to vector<16x16x64xbf16>
    %42 = vector.extract_strided_slice %37 {offsets = [2, 0, 0], sizes = [16, 16, 64], strides = [1, 1, 1]} : vector<18x16x64xbf16> to vector<16x16x64xbf16>
    %43 = vector.extract_strided_slice %38 {offsets = [0, 0, 0], sizes = [16, 16, 64], strides = [1, 1, 1]} : vector<18x16x64xbf16> to vector<16x16x64xbf16>
    %44 = vector.extract_strided_slice %38 {offsets = [1, 0, 0], sizes = [16, 16, 64], strides = [1, 1, 1]} : vector<18x16x64xbf16> to vector<16x16x64xbf16>
    %45 = vector.extract_strided_slice %38 {offsets = [2, 0, 0], sizes = [16, 16, 64], strides = [1, 1, 1]} : vector<18x16x64xbf16> to vector<16x16x64xbf16>
    %46 = vector.extract_strided_slice %39 {offsets = [0, 0, 0], sizes = [16, 16, 64], strides = [1, 1, 1]} : vector<18x16x64xbf16> to vector<16x16x64xbf16>
    %47 = vector.extract_strided_slice %39 {offsets = [1, 0, 0], sizes = [16, 16, 64], strides = [1, 1, 1]} : vector<18x16x64xbf16> to vector<16x16x64xbf16>
    %48 = vector.extract_strided_slice %39 {offsets = [2, 0, 0], sizes = [16, 16, 64], strides = [1, 1, 1]} : vector<18x16x64xbf16> to vector<16x16x64xbf16>
    %49 = tpu.concatenate %40, %41, %42, %43, %44, %45, %46, %47, %48 in 2 : vector<16x16x64xbf16>, vector<16x16x64xbf16>, vector<16x16x64xbf16>, vector<16x16x64xbf16>, vector<16x16x64xbf16>, vector<16x16x64xbf16>, vector<16x16x64xbf16>, vector<16x16x64xbf16>, vector<16x16x64xbf16> -> vector<16x16x576xbf16>
    %50 = vector.shape_cast %49 : vector<16x16x576xbf16> to vector<256x576xbf16>
    %c0_17 = arith.constant 0 : index
    %c0_18 = arith.constant 0 : index
    %51 = vector.load %arg3[%c0_17, %c0_18] : memref<576x128xbf16, #tpu.memory_space<vmem>>, vector<576x128xbf16>
    %cst_19 = arith.constant dense<0.000000e+00> : vector<256x128xf32>
    %52 = tpu.matmul %50, %51, %cst_19 {dimension_numbers = #tpu.dot_dimension_numbers<[1], [0], [0], [1], [0, 0, 1, 1], [], []>} : vector<256x576xbf16>, vector<576x128xbf16>, vector<256x128xf32> -> vector<256x128xf32>
    %c0_20 = arith.constant 0 : index
    %c0_21 = arith.constant 0 : index
    %53 = vector.load %arg4[%c0_20, %c0_21] : memref<1x128xf32, #tpu.memory_space<vmem>>, vector<1x128xf32>
    %54 = vector.broadcast %53 : vector<1x128xf32> to vector<256x128xf32>
    %55 = arith.addf %52, %54 : vector<256x128xf32>
    %56 = vector.shape_cast %55 : vector<256x128xf32> to vector<16x16x128xf32>
    %c0_22 = arith.constant 0 : index
    %c4 = arith.constant 4 : index
    %c0_23 = arith.constant 0 : index
    %57 = vector.load %arg2[%c0_22, %c4, %c0_23] : memref<1x8x128xf32, #tpu.memory_space<vmem>>, vector<1x1x128xf32>
    %58 = vector.shape_cast %57 : vector<1x1x128xf32> to vector<128xf32>
    %59 = vector.shape_cast %58 : vector<128xf32> to vector<1x1x128xf32>
    %60 = vector.broadcast %59 : vector<1x1x128xf32> to vector<16x16x128xf32>
    %61 = arith.mulf %56, %60 : vector<16x16x128xf32>
    %c0_24 = arith.constant 0 : index
    %c5 = arith.constant 5 : index
    %c0_25 = arith.constant 0 : index
    %62 = vector.load %arg2[%c0_24, %c5, %c0_25] : memref<1x8x128xf32, #tpu.memory_space<vmem>>, vector<1x1x128xf32>
    %63 = vector.shape_cast %62 : vector<1x1x128xf32> to vector<128xf32>
    %64 = vector.shape_cast %63 : vector<128xf32> to vector<1x1x128xf32>
    %65 = vector.broadcast %64 : vector<1x1x128xf32> to vector<16x16x128xf32>
    %66 = arith.addf %61, %65 : vector<16x16x128xf32>
    %cst_26 = arith.constant 0.000000e+00 : f32
    %67 = vector.broadcast %cst_26 : f32 to vector<16x16x128xf32>
    %68 = arith.cmpf oge, %66, %67 : vector<16x16x128xf32>
    %cst_27 = arith.constant 2.000000e-01 : f32
    %69 = vector.broadcast %cst_27 : f32 to vector<16x16x128xf32>
    %70 = arith.mulf %69, %66 : vector<16x16x128xf32>
    %71 = arith.select %68, %66, %70 : vector<16x16x128xi1>, vector<16x16x128xf32>
    %c0_28 = arith.constant 0 : index
    %c6 = arith.constant 6 : index
    %c0_29 = arith.constant 0 : index
    %72 = vector.load %arg2[%c0_28, %c6, %c0_29] : memref<1x8x128xf32, #tpu.memory_space<vmem>>, vector<1x1x128xf32>
    %73 = vector.shape_cast %72 : vector<1x1x128xf32> to vector<128xf32>
    %74 = vector.shape_cast %73 : vector<128xf32> to vector<1x1x128xf32>
    %75 = vector.broadcast %74 : vector<1x1x128xf32> to vector<16x16x128xf32>
    %76 = arith.mulf %71, %75 : vector<16x16x128xf32>
    %c0_30 = arith.constant 0 : index
    %c7 = arith.constant 7 : index
    %c0_31 = arith.constant 0 : index
    %77 = vector.load %arg2[%c0_30, %c7, %c0_31] : memref<1x8x128xf32, #tpu.memory_space<vmem>>, vector<1x1x128xf32>
    %78 = vector.shape_cast %77 : vector<1x1x128xf32> to vector<128xf32>
    %79 = vector.shape_cast %78 : vector<128xf32> to vector<1x1x128xf32>
    %80 = vector.broadcast %79 : vector<1x1x128xf32> to vector<16x16x128xf32>
    %81 = arith.addf %76, %80 : vector<16x16x128xf32>
    %cst_32 = arith.constant 0.000000e+00 : f32
    %82 = vector.broadcast %cst_32 : f32 to vector<16x16x128xf32>
    %83 = arith.cmpf oge, %81, %82 : vector<16x16x128xf32>
    %cst_33 = arith.constant 2.000000e-01 : f32
    %84 = vector.broadcast %cst_33 : f32 to vector<16x16x128xf32>
    %85 = arith.mulf %84, %81 : vector<16x16x128xf32>
    %86 = arith.select %83, %81, %85 : vector<16x16x128xi1>, vector<16x16x128xf32>
    %87 = arith.truncf %86 : vector<16x16x128xf32> to vector<16x16x128xbf16>
    %cst_34 = arith.constant 0.000000e+00 : bf16
    %88 = vector.broadcast %cst_34 : bf16 to vector<16x1x128xbf16>
    %cst_35 = arith.constant 0.000000e+00 : bf16
    %89 = vector.broadcast %cst_35 : bf16 to vector<1x18x128xbf16>
    %90 = tpu.concatenate %88, %87, %88 in 1 : vector<16x1x128xbf16>, vector<16x16x128xbf16>, vector<16x1x128xbf16> -> vector<16x18x128xbf16>
    %91 = tpu.concatenate %89, %90, %89 in 0 : vector<1x18x128xbf16>, vector<16x18x128xbf16>, vector<1x18x128xbf16> -> vector<18x18x128xbf16>
    %92 = vector.extract_strided_slice %91 {offsets = [0, 0, 0], sizes = [18, 16, 128], strides = [1, 1, 1]} : vector<18x18x128xbf16> to vector<18x16x128xbf16>
    %93 = vector.extract_strided_slice %91 {offsets = [0, 1, 0], sizes = [18, 16, 128], strides = [1, 1, 1]} : vector<18x18x128xbf16> to vector<18x16x128xbf16>
    %94 = vector.extract_strided_slice %91 {offsets = [0, 2, 0], sizes = [18, 16, 128], strides = [1, 1, 1]} : vector<18x18x128xbf16> to vector<18x16x128xbf16>
    %95 = vector.extract_strided_slice %92 {offsets = [0, 0, 0], sizes = [16, 16, 128], strides = [1, 1, 1]} : vector<18x16x128xbf16> to vector<16x16x128xbf16>
    %96 = vector.extract_strided_slice %92 {offsets = [1, 0, 0], sizes = [16, 16, 128], strides = [1, 1, 1]} : vector<18x16x128xbf16> to vector<16x16x128xbf16>
    %97 = vector.extract_strided_slice %92 {offsets = [2, 0, 0], sizes = [16, 16, 128], strides = [1, 1, 1]} : vector<18x16x128xbf16> to vector<16x16x128xbf16>
    %98 = vector.extract_strided_slice %93 {offsets = [0, 0, 0], sizes = [16, 16, 128], strides = [1, 1, 1]} : vector<18x16x128xbf16> to vector<16x16x128xbf16>
    %99 = vector.extract_strided_slice %93 {offsets = [1, 0, 0], sizes = [16, 16, 128], strides = [1, 1, 1]} : vector<18x16x128xbf16> to vector<16x16x128xbf16>
    %100 = vector.extract_strided_slice %93 {offsets = [2, 0, 0], sizes = [16, 16, 128], strides = [1, 1, 1]} : vector<18x16x128xbf16> to vector<16x16x128xbf16>
    %101 = vector.extract_strided_slice %94 {offsets = [0, 0, 0], sizes = [16, 16, 128], strides = [1, 1, 1]} : vector<18x16x128xbf16> to vector<16x16x128xbf16>
    %102 = vector.extract_strided_slice %94 {offsets = [1, 0, 0], sizes = [16, 16, 128], strides = [1, 1, 1]} : vector<18x16x128xbf16> to vector<16x16x128xbf16>
    %103 = vector.extract_strided_slice %94 {offsets = [2, 0, 0], sizes = [16, 16, 128], strides = [1, 1, 1]} : vector<18x16x128xbf16> to vector<16x16x128xbf16>
    %104 = tpu.concatenate %95, %96, %97, %98, %99, %100, %101, %102, %103 in 2 : vector<16x16x128xbf16>, vector<16x16x128xbf16>, vector<16x16x128xbf16>, vector<16x16x128xbf16>, vector<16x16x128xbf16>, vector<16x16x128xbf16>, vector<16x16x128xbf16>, vector<16x16x128xbf16>, vector<16x16x128xbf16> -> vector<16x16x1152xbf16>
    %105 = vector.shape_cast %104 : vector<16x16x1152xbf16> to vector<256x1152xbf16>
    %c0_36 = arith.constant 0 : index
    %c0_37 = arith.constant 0 : index
    %106 = vector.load %arg5[%c0_36, %c0_37] : memref<1152x128xbf16, #tpu.memory_space<vmem>>, vector<1152x128xbf16>
    %cst_38 = arith.constant dense<0.000000e+00> : vector<256x128xf32>
    %107 = tpu.matmul %105, %106, %cst_38 {dimension_numbers = #tpu.dot_dimension_numbers<[1], [0], [0], [1], [0, 0, 1, 1], [], []>} : vector<256x1152xbf16>, vector<1152x128xbf16>, vector<256x128xf32> -> vector<256x128xf32>
    %c0_39 = arith.constant 0 : index
    %c0_40 = arith.constant 0 : index
    %108 = vector.load %arg6[%c0_39, %c0_40] : memref<1x128xf32, #tpu.memory_space<vmem>>, vector<1x128xf32>
    %109 = vector.broadcast %108 : vector<1x128xf32> to vector<256x128xf32>
    %110 = arith.addf %107, %109 : vector<256x128xf32>
    %111 = vector.shape_cast %1 : vector<16x16x64xf32> to vector<256x64xf32>
    %112 = arith.truncf %111 : vector<256x64xf32> to vector<256x64xbf16>
    %c0_41 = arith.constant 0 : index
    %c0_42 = arith.constant 0 : index
    %113 = vector.load %arg7[%c0_41, %c0_42] : memref<64x128xbf16, #tpu.memory_space<vmem>>, vector<64x128xbf16>
    %cst_43 = arith.constant dense<0.000000e+00> : vector<256x128xf32>
    %114 = tpu.matmul %112, %113, %cst_43 {dimension_numbers = #tpu.dot_dimension_numbers<[1], [0], [0], [1], [0, 0, 1, 1], [], []>} : vector<256x64xbf16>, vector<64x128xbf16>, vector<256x128xf32> -> vector<256x128xf32>
    %c0_44 = arith.constant 0 : index
    %c0_45 = arith.constant 0 : index
    %115 = vector.load %arg8[%c0_44, %c0_45] : memref<1x128xf32, #tpu.memory_space<vmem>>, vector<1x128xf32>
    %116 = vector.broadcast %115 : vector<1x128xf32> to vector<256x128xf32>
    %117 = arith.addf %114, %116 : vector<256x128xf32>
    %c0_46 = arith.constant 0 : index
    %118 = memref.load %arg9[%c0_46] : memref<1xf32, #tpu.memory_space<smem>>
    %119 = vector.broadcast %118 : f32 to vector<256x128xf32>
    %120 = arith.mulf %119, %110 : vector<256x128xf32>
    %121 = arith.addf %117, %120 : vector<256x128xf32>
    %122 = vector.shape_cast %121 : vector<256x128xf32> to vector<1x16x16x128xf32>
    %c0_47 = arith.constant 0 : index
    %c0_48 = arith.constant 0 : index
    %c0_49 = arith.constant 0 : index
    %c0_50 = arith.constant 0 : index
    %123 = vector.load %arg10[%c0_47, %c0_48, %c0_49, %c0_50] : memref<1x16x16x128xf32, #tpu.memory_space<vmem>>, vector<1x16x16x128xf32>
    tpu.vector_store %arg10[%c0_47, %c0_48, %c0_49, %c0_50], %122 {strides = array<i32>} : memref<1x16x16x128xf32, #tpu.memory_space<vmem>>, vector<1x16x16x128xf32>,
    return
  }
  func.func @transform_0(%arg0: i32) -> (i32, i32, i32, i32) {
    %c0_i32 = arith.constant 0 : i32
    %c0_i32_0 = arith.constant 0 : i32
    %c0_i32_1 = arith.constant 0 : i32
    %c0_i32_2 = arith.constant 0 : i32
    return %arg0, %c0_i32, %c0_i32_0, %c0_i32_1 : i32, i32, i32, i32
  }
  func.func @transform_1(%arg0: i32) -> (i32, i32, i32) {
    %c0_i32 = arith.constant 0 : i32
    %c0_i32_0 = arith.constant 0 : i32
    %c0_i32_1 = arith.constant 0 : i32
    return %arg0, %c0_i32, %c0_i32_0 : i32, i32, i32
  }
  func.func @transform_2(%arg0: i32) -> (i32, i32) {
    %c0_i32 = arith.constant 0 : i32
    %c0_i32_0 = arith.constant 0 : i32
    %c0_i32_1 = arith.constant 0 : i32
    return %c0_i32, %c0_i32_0 : i32, i32
  }
  func.func @transform_3(%arg0: i32) -> (i32, i32) {
    %c0_i32 = arith.constant 0 : i32
    %c0_i32_0 = arith.constant 0 : i32
    %c0_i32_1 = arith.constant 0 : i32
    return %c0_i32, %c0_i32_0 : i32, i32
  }
  func.func @transform_4(%arg0: i32) -> (i32, i32) {
    %c0_i32 = arith.constant 0 : i32
    %c0_i32_0 = arith.constant 0 : i32
    %c0_i32_1 = arith.constant 0 : i32
    return %c0_i32, %c0_i32_0 : i32, i32
  }
  func.func @transform_5(%arg0: i32) -> (i32, i32) {
    %c0_i32 = arith.constant 0 : i32
    %c0_i32_0 = arith.constant 0 : i32
    %c0_i32_1 = arith.constant 0 : i32
    return %c0_i32, %c0_i32_0 : i32, i32
  }
  func.func @transform_6(%arg0: i32) -> (i32, i32) {
    %c0_i32 = arith.constant 0 : i32
    %c0_i32_0 = arith.constant 0 : i32
    %c0_i32_1 = arith.constant 0 : i32
    return %c0_i32, %c0_i32_0 : i32, i32
  }
  func.func @transform_7(%arg0: i32) -> (i32, i32) {
    %c0_i32 = arith.constant 0 : i32
    %c0_i32_0 = arith.constant 0 : i32
    %c0_i32_1 = arith.constant 0 : i32
    return %c0_i32, %c0_i32_0 : i32, i32
  }
  func.func @transform_8(%arg0: i32) -> i32 {
    %c0_i32 = arith.constant 0 : i32
    %c0_i32_0 = arith.constant 0 : i32
    return %c0_i32 : i32
  }
  func.func @transform_9(%arg0: i32) -> (i32, i32, i32, i32) {
    %c0_i32 = arith.constant 0 : i32
    %c0_i32_0 = arith.constant 0 : i32
    %c0_i32_1 = arith.constant 0 : i32
    %c0_i32_2 = arith.constant 0 : i32
    return %arg0, %c0_i32, %c0_i32_0, %c0_i32_1 : i32, i32, i32, i32
  }
}

</mosaic_0001>

<llo_original>
// kernel: g_block_pallas.3
$region0: #{g_block_pallas.3}
  #allocation0 [shape = 'u32[]', space=smem, size = 0x4, offset = 0x4, fixed_abs, tag = 'smem constant byte address 0x4 - core index']
  #allocation1 [shape = 'u32[144,128]{1,0:T(1,128)}', space=vmem, size = 0x12000, scoped, tag = 'internal scratch']
  #allocation2 [shape = 'f32[1]{0:T(128)S(6)}', space=smem, size = 0x200, scoped, tag = 'scoped memory for g_block_pallas.3']
  %s0 = inlined_call_operand.vmem [shape: f32[2,16,16,64], index: 0, kind: input, shape index: {}]
  %s1 = inlined_call_operand.vmem [shape: f32[2,8,128], index: 1, kind: input, shape index: {}]
  %s2 = inlined_call_operand.vmem [shape: bf16[576,128], index: 2, kind: input, shape index: {}]
  %s3 = inlined_call_operand.vmem [shape: f32[1,128], index: 3, kind: input, shape index: {}]
  %s4 = inlined_call_operand.vmem [shape: bf16[1152,128], index: 4, kind: input, shape index: {}]
  %s5 = inlined_call_operand.vmem [shape: f32[1,128], index: 5, kind: input, shape index: {}]
  %s6 = inlined_call_operand.vmem [shape: bf16[64,128], index: 6, kind: input, shape index: {}]
  %s7 = inlined_call_operand.vmem [shape: f32[1,128], index: 7, kind: input, shape index: {}]
  %s8 = inlined_call_operand.<no memory space> [shape: f32[1], index: 8, kind: input, shape index: {}]
  %s9 = inlined_call_operand.hbm [shape: f32[2,16,16,128], index: 9, kind: output, shape index: {}]
  %s10 = sld [smem:[#allocation0]]
  $region69: #{g_block_pallas.3} parent=0
    _
  %s12 = ssub.s32 1, %s10
  %s13 = scalar_select 0, %s12, %s10
  %14 = sst [smem:[#allocation2]] %s8
  $region1: #{g_block_pallas.3} parent=0
    #allocation3 [shape = 'u8[262144]{0}', space=vmem, size = 0x40000, scoped, tag = 'output window, operand 0']
    #allocation4 [shape = 's32[2]{0}', space=sflag, size = 0x8, scoped, tag = 'scoped memory for g_block_pallas.3']
    %15 = vsyncpa [#allocation4], 0
    %s16 = scalar_lea.sflag [#allocation4], 1
    %17 = vsyncpa %s16, 0
    loop: start=0, step=1, limit=4
    $region2: #{g_block_pallas.3} parent=1 // loop_pre_header
      _
    $region3: #{g_block_pallas.3} parent=1 // loop_header
      %s19 = sphi 0, %s23
      %p20 = scmp.ge.s32.totalorder %s19, 4
      %s29 = sphi 0, %s31
      %s32 = sphi 0, %s29
      %s33 = sphi 0, %s32
      %s49 = sphi 0, %s33
      %s55 = sphi 0, %s57
      %s58 = sphi 0, %s55
      %s59 = sphi 0, %s58
      %s75 = sphi 0, %s59
      %s79 = sphi 0, %s79
      %s81 = sphi 0, %s79
      %s82 = sphi 0, %s81
      %s96 = sphi 0, %s82
      %s100 = sphi 0, %s100
      %s102 = sphi 0, %s100
      %s103 = sphi 0, %s102
      %s117 = sphi 0, %s103
      %s121 = sphi 0, %s121
      %s123 = sphi 0, %s121
      %s124 = sphi 0, %s123
      %s138 = sphi 0, %s124
      %s142 = sphi 0, %s142
      %s144 = sphi 0, %s142
      %s145 = sphi 0, %s144
      %s159 = sphi 0, %s145
      %s163 = sphi 0, %s163
      %s165 = sphi 0, %s163
      %s166 = sphi 0, %s165
      %s180 = sphi 0, %s166
      %s184 = sphi 0, %s184
      %s186 = sphi 0, %s184
      %s187 = sphi 0, %s186
      %s201 = sphi 0, %s187
      %s205 = sphi 0, %s205
      %s207 = sphi 0, %s205
      %s208 = sphi 0, %s207
      %s222 = sphi 0, %s208
      %s228 = sphi 0, %s230
      %s231 = sphi 0, %s228
      %s232 = sphi 0, %s231
      %s248 = sphi 0, %s232
    $region4: #{g_block_pallas.3} parent=1 // loop_header_branch
      %22 = sbr.rel (%p20) target = $region8
    $region5: #{g_block_pallas.3} parent=1 // loop_body
      %s24 = ssub.s32 %s19, 1
      %s25 = ssub.s32 %s19, 2
      %s26 = sadd.s32 %s19, 1
      %s27 = ssub.s32 %s19, %s26
      %p28 = scmp.eq.s32.totalorder %s27, 0
      %s30 = sadd.s32 %s29, 1
      %s31 = scalar_select %p28, %s29, %s30
      %p34 = pneg %p28
      %p35 = scmp.eq.s32.totalorder %s19, 1
      %p36 = por %p34, %p35
      %p37 = scmp.ne.s32.totalorder %s29, %s32
      %p38 = scmp.eq.s32.totalorder %s19, 0
      %p39 = por %p37, %p38
      %p40 = scmp.ne.s32.totalorder %s29, %s32
      %p41 = scmp.eq.s32.totalorder %s24, 1
      %p42 = por %p40, %p41
      %p43 = scmp.ne.s32.totalorder %s32, %s33
      %p44 = scmp.eq.s32.totalorder %s24, 0
      %p45 = por %p43, %p44
      %p46 = scmp.ne.s32.totalorder %s32, %s33
      %p47 = scmp.eq.s32.totalorder %s25, 1
      %p48 = por %p46, %p47
      %p50 = scmp.ne.s32.totalorder %s33, %s49
      %p51 = scmp.eq.s32.totalorder %s25, 0
      %p52 = por %p50, %p51
      %s53 = ssub.s32 %s19, %s26
      %p54 = scmp.eq.s32.totalorder %s53, 0
      %s56 = sadd.s32 %s55, 1
      %s57 = scalar_select %p54, %s55, %s56
      %p60 = pneg %p54
      %p61 = scmp.eq.s32.totalorder %s19, 1
      %p62 = por %p60, %p61
      %p63 = scmp.ne.s32.totalorder %s55, %s58
      %p64 = scmp.eq.s32.totalorder %s19, 0
      %p65 = por %p63, %p64
      %p66 = scmp.ne.s32.totalorder %s55, %s58
      %p67 = scmp.eq.s32.totalorder %s24, 1
      %p68 = por %p66, %p67
      %p69 = scmp.ne.s32.totalorder %s58, %s59
      %p70 = scmp.eq.s32.totalorder %s24, 0
      %p71 = por %p69, %p70
      %p72 = scmp.ne.s32.totalorder %s58, %s59
      %p73 = scmp.eq.s32.totalorder %s25, 1
      %p74 = por %p72, %p73
      %p76 = scmp.ne.s32.totalorder %s59, %s75
      %p77 = scmp.eq.s32.totalorder %s25, 0
      %p78 = por %p76, %p77
      %s80 = sadd.s32 %s79, 1
      %p83 = scmp.eq.s32.totalorder %s19, 1
      %p84 = scmp.ne.s32.totalorder %s79, %s81
      %p85 = scmp.eq.s32.totalorder %s19, 0
      %p86 = por %p84, %p85
      %p87 = scmp.ne.s32.totalorder %s79, %s81
      %p88 = scmp.eq.s32.totalorder %s24, 1
      %p89 = por %p87, %p88
      %p90 = scmp.ne.s32.totalorder %s81, %s82
      %p91 = scmp.eq.s32.totalorder %s24, 0
      %p92 = por %p90, %p91
      %p93 = scmp.ne.s32.totalorder %s81, %s82
      %p94 = scmp.eq.s32.totalorder %s25, 1
      %p95 = por %p93, %p94
      %p97 = scmp.ne.s32.totalorder %s82, %s96
      %p98 = scmp.eq.s32.totalorder %s25, 0
      %p99 = por %p97, %p98
      %s101 = sadd.s32 %s100, 1
      %p104 = scmp.eq.s32.totalorder %s19, 1
      %p105 = scmp.ne.s32.totalorder %s100, %s102
      %p106 = scmp.eq.s32.totalorder %s19, 0
      %p107 = por %p105, %p106
      %p108 = scmp.ne.s32.totalorder %s100, %s102
      %p109 = scmp.eq.s32.totalorder %s24, 1
      %p110 = por %p108, %p109
      %p111 = scmp.ne.s32.totalorder %s102, %s103
      %p112 = scmp.eq.s32.totalorder %s24, 0
      %p113 = por %p111, %p112
      %p114 = scmp.ne.s32.totalorder %s102, %s103
      %p115 = scmp.eq.s32.totalorder %s25, 1
      %p116 = por %p114, %p115
      %p118 = scmp.ne.s32.totalorder %s103, %s117
      %p119 = scmp.eq.s32.totalorder %s25, 0
      %p120 = por %p118, %p119
      %s122 = sadd.s32 %s121, 1
      %p125 = scmp.eq.s32.totalorder %s19, 1
      %p126 = scmp.ne.s32.totalorder %s121, %s123
      %p127 = scmp.eq.s32.totalorder %s19, 0
      %p128 = por %p126, %p127
      %p129 = scmp.ne.s32.totalorder %s121, %s123
      %p130 = scmp.eq.s32.totalorder %s24, 1
      %p131 = por %p129, %p130
      %p132 = scmp.ne.s32.totalorder %s123, %s124
      %p133 = scmp.eq.s32.totalorder %s24, 0
      %p134 = por %p132, %p133
      %p135 = scmp.ne.s32.totalorder %s123, %s124
      %p136 = scmp.eq.s32.totalorder %s25, 1
      %p137 = por %p135, %p136
      %p139 = scmp.ne.s32.totalorder %s124, %s138
      %p140 = scmp.eq.s32.totalorder %s25, 0
      %p141 = por %p139, %p140
      %s143 = sadd.s32 %s142, 1
      %p146 = scmp.eq.s32.totalorder %s19, 1
      %p147 = scmp.ne.s32.totalorder %s142, %s144
      %p148 = scmp.eq.s32.totalorder %s19, 0
      %p149 = por %p147, %p148
      %p150 = scmp.ne.s32.totalorder %s142, %s144
      %p151 = scmp.eq.s32.totalorder %s24, 1
      %p152 = por %p150, %p151
      %p153 = scmp.ne.s32.totalorder %s144, %s145
      %p154 = scmp.eq.s32.totalorder %s24, 0
      %p155 = por %p153, %p154
      %p156 = scmp.ne.s32.totalorder %s144, %s145
      %p157 = scmp.eq.s32.totalorder %s25, 1
      %p158 = por %p156, %p157
      %p160 = scmp.ne.s32.totalorder %s145, %s159
      %p161 = scmp.eq.s32.totalorder %s25, 0
      %p162 = por %p160, %p161
      %s164 = sadd.s32 %s163, 1
      %p167 = scmp.eq.s32.totalorder %s19, 1
      %p168 = scmp.ne.s32.totalorder %s163, %s165
      %p169 = scmp.eq.s32.totalorder %s19, 0
      %p170 = por %p168, %p169
      %p171 = scmp.ne.s32.totalorder %s163, %s165
      %p172 = scmp.eq.s32.totalorder %s24, 1
      %p173 = por %p171, %p172
      %p174 = scmp.ne.s32.totalorder %s165, %s166
      %p175 = scmp.eq.s32.totalorder %s24, 0
      %p176 = por %p174, %p175
      %p177 = scmp.ne.s32.totalorder %s165, %s166
      %p178 = scmp.eq.s32.totalorder %s25, 1
      %p179 = por %p177, %p178
      %p181 = scmp.ne.s32.totalorder %s166, %s180
      %p182 = scmp.eq.s32.totalorder %s25, 0
      %p183 = por %p181, %p182
      %s185 = sadd.s32 %s184, 1
      %p188 = scmp.eq.s32.totalorder %s19, 1
      %p189 = scmp.ne.s32.totalorder %s184, %s186
      %p190 = scmp.eq.s32.totalorder %s19, 0
      %p191 = por %p189, %p190
      %p192 = scmp.ne.s32.totalorder %s184, %s186
      %p193 = scmp.eq.s32.totalorder %s24, 1
      %p194 = por %p192, %p193
      %p195 = scmp.ne.s32.totalorder %s186, %s187
      %p196 = scmp.eq.s32.totalorder %s24, 0
      %p197 = por %p195, %p196
      %p198 = scmp.ne.s32.totalorder %s186, %s187
      %p199 = scmp.eq.s32.totalorder %s25, 1
      %p200 = por %p198, %p199
      %p202 = scmp.ne.s32.totalorder %s187, %s201
      %p203 = scmp.eq.s32.totalorder %s25, 0
      %p204 = por %p202, %p203
      %s206 = sadd.s32 %s205, 1
      %p209 = scmp.eq.s32.totalorder %s19, 1
      %p210 = scmp.ne.s32.totalorder %s205, %s207
      %p211 = scmp.eq.s32.totalorder %s19, 0
      %p212 = por %p210, %p211
      %p213 = scmp.ne.s32.totalorder %s205, %s207
      %p214 = scmp.eq.s32.totalorder %s24, 1
      %p215 = por %p213, %p214
      %p216 = scmp.ne.s32.totalorder %s207, %s208
      %p217 = scmp.eq.s32.totalorder %s24, 0
      %p218 = por %p216, %p217
      %p219 = scmp.ne.s32.totalorder %s207, %s208
      %p220 = scmp.eq.s32.totalorder %s25, 1
      %p221 = por %p219, %p220
      %p223 = scmp.ne.s32.totalorder %s208, %s222
      %p224 = scmp.eq.s32.totalorder %s25, 0
      %p225 = por %p223, %p224
      %s226 = ssub.s32 %s19, %s26
      %p227 = scmp.eq.s32.totalorder %s226, 0
      %s229 = sadd.s32 %s228, 1
      %s230 = scalar_select %p227, %s228, %s229
      %p233 = pneg %p227
      %p234 = scmp.eq.s32.totalorder %s19, 1
      %p235 = por %p233, %p234
      %p236 = scmp.ne.s32.totalorder %s228, %s231
      %p237 = scmp.eq.s32.totalorder %s19, 0
      %p238 = por %p236, %p237
      %p239 = scmp.ne.s32.totalorder %s228, %s231
      %p240 = scmp.eq.s32.totalorder %s24, 1
      %p241 = por %p239, %p240
      %p242 = scmp.ne.s32.totalorder %s231, %s232
      %p243 = scmp.eq.s32.totalorder %s24, 0
      %p244 = por %p242, %p243
      %p245 = scmp.ne.s32.totalorder %s231, %s232
      %p246 = scmp.eq.s32.totalorder %s25, 1
      %p247 = por %p245, %p246
      %p249 = scmp.ne.s32.totalorder %s232, %s248
      %p250 = scmp.eq.s32.totalorder %s25, 0
      %p251 = por %p249, %p250
      %p252 = scmp.le.s32.totalorder 1, %s19
      %p253 = scmp.lt.s32.totalorder %s19, 3
      %p254 = pnand %p252, %p253
      %p255 = pneg %p254
      // Predicated region
      $region9: #{g_block_pallas.3} parent=5 // pred_check
        _
      $region10: #{g_block_pallas.3} parent=5 // pred_check_branch
        %257 = sbr.rel (%p254) target = $region12
      $region11: #{g_block_pallas.3} parent=5 // pred_region
        %s258 = ssub.s32 %s19, 1
        // Predicated region
        $region13: #{g_block_pallas.3} parent=11 // pred_check
          %p259 = pneg %p92
        $region14: #{g_block_pallas.3} parent=11 // pred_check_branch
          %261 = sbr.rel (%p259) target = $region16
        $region15: #{g_block_pallas.3} parent=11 // pred_region
          _
        $region16: #{g_block_pallas.3} parent=11 // pred_fallthru
          _
        // Predicated region
        $region17: #{g_block_pallas.3} parent=11 // pred_check
          %p262 = pneg %p113
        $region18: #{g_block_pallas.3} parent=11 // pred_check_branch
          %264 = sbr.rel (%p262) target = $region20
        $region19: #{g_block_pallas.3} parent=11 // pred_region
          _
        $region20: #{g_block_pallas.3} parent=11 // pred_fallthru
          _
        // Predicated region
        $region21: #{g_block_pallas.3} parent=11 // pred_check
          %p265 = pneg %p134
        $region22: #{g_block_pallas.3} parent=11 // pred_check_branch
          %267 = sbr.rel (%p265) target = $region24
        $region23: #{g_block_pallas.3} parent=11 // pred_region
          _
        $region24: #{g_block_pallas.3} parent=11 // pred_fallthru
          _
        // Predicated region
        $region25: #{g_block_pallas.3} parent=11 // pred_check
          %p268 = pneg %p155
        $region26: #{g_block_pallas.3} parent=11 // pred_check_branch
          %270 = sbr.rel (%p268) target = $region28
        $region27: #{g_block_pallas.3} parent=11 // pred_region
          _
        $region28: #{g_block_pallas.3} parent=11 // pred_fallthru
          _
        // Predicated region
        $region29: #{g_block_pallas.3} parent=11 // pred_check
          %p271 = pneg %p176
        $region30: #{g_block_pallas.3} parent=11 // pred_check_branch
          %273 = sbr.rel (%p271) target = $region32
        $region31: #{g_block_pallas.3} parent=11 // pred_region
          _
        $region32: #{g_block_pallas.3} parent=11 // pred_fallthru
          _
        // Predicated region
        $region33: #{g_block_pallas.3} parent=11 // pred_check
          %p274 = pneg %p197
        $region34: #{g_block_pallas.3} parent=11 // pred_check_branch
          %276 = sbr.rel (%p274) target = $region36
        $region35: #{g_block_pallas.3} parent=11 // pred_region
          _
        $region36: #{g_block_pallas.3} parent=11 // pred_fallthru
          _
        // Predicated region
        $region37: #{g_block_pallas.3} parent=11 // pred_check
          %p277 = pneg %p218
        $region38: #{g_block_pallas.3} parent=11 // pred_check_branch
          %279 = sbr.rel (%p277) target = $region40
        $region39: #{g_block_pallas.3} parent=11 // pred_region
          _
        $region40: #{g_block_pallas.3} parent=11 // pred_fallthru
          _
      $region12: #{g_block_pallas.3} parent=5 // pred_fallthru
        _
      %p280 = scmp.lt.s32.totalorder %s19, 2
      // Predicated region
      $region41: #{g_block_pallas.3} parent=5 // pred_check
        %p281 = pneg %p280
      $region42: #{g_block_pallas.3} parent=5 // pred_check_branch
        %283 = sbr.rel (%p281) target = $region44
      $region43: #{g_block_pallas.3} parent=5 // pred_region
        // Predicated region
        $region45: #{g_block_pallas.3} parent=43 // pred_check
          %p284 = pneg %p39
        $region46: #{g_block_pallas.3} parent=43 // pred_check_branch
          %286 = sbr.rel (%p284) target = $region48
        $region47: #{g_block_pallas.3} parent=43 // pred_region
          %p287 = scmp.lt.s32.totalorder %s19, 1
          %s288 = scalar_select %p287, %s19, 1
          %s289 = smul.addr %s288, 32
          %s290 = smul.addr %s289, 8
          %s291 = scalar_lea.vmem %s0, %s290
        $region48: #{g_block_pallas.3} parent=43 // pred_fallthru
          _
        // Predicated region
        $region49: #{g_block_pallas.3} parent=43 // pred_check
          %p292 = pneg %p65
        $region50: #{g_block_pallas.3} parent=43 // pred_check_branch
          %294 = sbr.rel (%p292) target = $region52
        $region51: #{g_block_pallas.3} parent=43 // pred_region
          %p295 = scmp.lt.s32.totalorder %s19, 1
          %s296 = scalar_select %p295, %s19, 1
          %s297 = smul.addr %s296, 8
          %s298 = scalar_lea.vmem %s1, %s297
        $region52: #{g_block_pallas.3} parent=43 // pred_fallthru
          _
      $region44: #{g_block_pallas.3} parent=5 // pred_fallthru
        _
      %p299 = scmp.le.s32.totalorder 1, %s19
      %p300 = scmp.lt.s32.totalorder %s19, 3
      %p301 = pnand %p299, %p300
      %p302 = pneg %p301
      // Predicated region
      $region53: #{g_block_pallas.3} parent=5 // pred_check
        _
      $region54: #{g_block_pallas.3} parent=5 // pred_check_branch
        %304 = sbr.rel (%p301) target = $region56
      $region55: #{g_block_pallas.3} parent=5 // pred_region
        %s305 = ssub.s32 %s19, 1
        %p306 = scmp.lt.s32.totalorder %s24, 1
        %s307 = scalar_select %p306, %s24, 1
        %s308 = smul.addr %s307, 32
        %s309 = smul.addr %s308, 8
        %s310 = scalar_lea.vmem %s0, %s309
        %p311 = pneg %p45
        %p312 = pneg %p42
        %p313 = scmp.lt.s32.totalorder %s24, 1
        %s314 = scalar_select %p313, %s24, 1
        %s315 = smul.addr %s314, 8
        %s316 = scalar_lea.vmem %s1, %s315
        %p317 = pneg %p71
        %p318 = pneg %p68
        %p319 = pneg %p92
        %p320 = pneg %p89
        %p321 = pneg %p113
        %p322 = pneg %p110
        %p323 = pneg %p134
        %p324 = pneg %p131
        %p325 = pneg %p155
        %p326 = pneg %p152
        %p327 = pneg %p176
        %p328 = pneg %p173
        %p329 = pneg %p197
        %p330 = pneg %p194
        %p331 = pneg %p218
        %p332 = pneg %p215
        %p333 = pneg %p244
        %p334 = pneg %p241
        %s335 = sand.u32 %s231, 1
        %s336 = scalar_lea.sflag [#allocation4], %s335
        %s337 = sand.u32 %s231, 1
        %s338 = smul.addr %s337, 256
        %s339 = scalar_lea.vmem [#allocation3], %s338
        %p340 = scmp.lt.s32.totalorder %s24, 1
        %s341 = scalar_select %p340, %s24, 1
        %s342 = smul.addr %s341, 32
        %s343 = smul.addr %s342, 8
        %s344 = scalar_lea.vmem %s0, %s343
        %p345 = scmp.lt.s32.totalorder %s24, 1
        %s346 = scalar_select %p345, %s24, 1
        %s347 = smul.addr %s346, 8
        %s348 = scalar_lea.vmem %s1, %s347
        %v350 = vld [vmem:[%s344] sm:$0xff]
        %v351 = vld [vmem:[%s344 + $0x8] sm:$0xff]
        %v352 = vld [vmem:[%s344 + $0x10] sm:$0xff]
        %v353 = vld [vmem:[%s344 + $0x18] sm:$0xff]
        %v354 = vld [vmem:[%s344 + $0x20] sm:$0xff]
        %v355 = vld [vmem:[%s344 + $0x28] sm:$0xff]
        %v356 = vld [vmem:[%s344 + $0x30] sm:$0xff]
        %v357 = vld [vmem:[%s344 + $0x38] sm:$0xff]
        %v358 = vld [vmem:[%s344 + $0x40] sm:$0xff]
        %v359 = vld [vmem:[%s344 + $0x48] sm:$0xff]
        %v360 = vld [vmem:[%s344 + $0x50] sm:$0xff]
        %v361 = vld [vmem:[%s344 + $0x58] sm:$0xff]
        %v362 = vld [vmem:[%s344 + $0x60] sm:$0xff]
        %v363 = vld [vmem:[%s344 + $0x68] sm:$0xff]
        %v364 = vld [vmem:[%s344 + $0x70] sm:$0xff]
        %v365 = vld [vmem:[%s344 + $0x78] sm:$0xff]
        %v366 = vld [vmem:[%s344 + $0x80] sm:$0xff]
        %v367 = vld [vmem:[%s344 + $0x88] sm:$0xff]
        %v368 = vld [vmem:[%s344 + $0x90] sm:$0xff]
        %v369 = vld [vmem:[%s344 + $0x98] sm:$0xff]
        %v370 = vld [vmem:[%s344 + $0xa0] sm:$0xff]
        %v371 = vld [vmem:[%s344 + $0xa8] sm:$0xff]
        %v372 = vld [vmem:[%s344 + $0xb0] sm:$0xff]
        %v373 = vld [vmem:[%s344 + $0xb8] sm:$0xff]
        %v374 = vld [vmem:[%s344 + $0xc0] sm:$0xff]
        %v375 = vld [vmem:[%s344 + $0xc8] sm:$0xff]
        %v376 = vld [vmem:[%s344 + $0xd0] sm:$0xff]
        %v377 = vld [vmem:[%s344 + $0xd8] sm:$0xff]
        %v378 = vld [vmem:[%s344 + $0xe0] sm:$0xff]
        %v379 = vld [vmem:[%s344 + $0xe8] sm:$0xff]
        %v380 = vld [vmem:[%s344 + $0xf0] sm:$0xff]
        %v381 = vld [vmem:[%s344 + $0xf8] sm:$0xff]
        %v382 = vld [vmem:[%s348] sm:$0x1]
        %v383 = vlaneseq
        %v384 = vshrl.u32 %v383, 7
        %v385 = vsub.s32 0, %v384
        %v386 = vrot.slane %v382, %v385
        %v387 = vmul.f32 %v350, %v386
        %v388 = vmul.f32 %v351, %v386
        %v389 = vmul.f32 %v352, %v386
        %v390 = vmul.f32 %v353, %v386
        %v391 = vmul.f32 %v354, %v386
        %v392 = vmul.f32 %v355, %v386
        %v393 = vmul.f32 %v356, %v386
        %v394 = vmul.f32 %v357, %v386
        %v395 = vmul.f32 %v358, %v386
        %v396 = vmul.f32 %v359, %v386
        %v397 = vmul.f32 %v360, %v386
        %v398 = vmul.f32 %v361, %v386
        %v399 = vmul.f32 %v362, %v386
        %v400 = vmul.f32 %v363, %v386
        %v401 = vmul.f32 %v364, %v386
        %v402 = vmul.f32 %v365, %v386
        %v403 = vmul.f32 %v366, %v386
        %v404 = vmul.f32 %v367, %v386
        %v405 = vmul.f32 %v368, %v386
        %v406 = vmul.f32 %v369, %v386
        %v407 = vmul.f32 %v370, %v386
        %v408 = vmul.f32 %v371, %v386
        %v409 = vmul.f32 %v372, %v386
        %v410 = vmul.f32 %v373, %v386
        %v411 = vmul.f32 %v374, %v386
        %v412 = vmul.f32 %v375, %v386
        %v413 = vmul.f32 %v376, %v386
        %v414 = vmul.f32 %v377, %v386
        %v415 = vmul.f32 %v378, %v386
        %v416 = vmul.f32 %v379, %v386
        %v417 = vmul.f32 %v380, %v386
        %v418 = vmul.f32 %v381, %v386
        %v419 = vld [vmem:[%s348 + $0x1] sm:$0x1]
        %v420 = vlaneseq
        %v421 = vshrl.u32 %v420, 7
        %v422 = vsub.s32 0, %v421
        %v423 = vrot.slane %v419, %v422
        %v424 = vadd.f32 %v387, %v423
        %v425 = vadd.f32 %v388, %v423
        %v426 = vadd.f32 %v389, %v423
        %v427 = vadd.f32 %v390, %v423
        %v428 = vadd.f32 %v391, %v423
        %v429 = vadd.f32 %v392, %v423
        %v430 = vadd.f32 %v393, %v423
        %v431 = vadd.f32 %v394, %v423
        %v432 = vadd.f32 %v395, %v423
        %v433 = vadd.f32 %v396, %v423
        %v434 = vadd.f32 %v397, %v423
        %v435 = vadd.f32 %v398, %v423
        %v436 = vadd.f32 %v399, %v423
        %v437 = vadd.f32 %v400, %v423
        %v438 = vadd.f32 %v401, %v423
        %v439 = vadd.f32 %v402, %v423
        %v440 = vadd.f32 %v403, %v423
        %v441 = vadd.f32 %v404, %v423
        %v442 = vadd.f32 %v405, %v423
        %v443 = vadd.f32 %v406, %v423
        %v444 = vadd.f32 %v407, %v423
        %v445 = vadd.f32 %v408, %v423
        %v446 = vadd.f32 %v409, %v423
        %v447 = vadd.f32 %v410, %v423
        %v448 = vadd.f32 %v411, %v423
        %v449 = vadd.f32 %v412, %v423
        %v450 = vadd.f32 %v413, %v423
        %v451 = vadd.f32 %v414, %v423
        %v452 = vadd.f32 %v415, %v423
        %v453 = vadd.f32 %v416, %v423
        %v454 = vadd.f32 %v417, %v423
        %v455 = vadd.f32 %v418, %v423
        %vm456 = vcmp.ge.f32.partialorder %v424, 0.0
        %vm457 = vcmp.ge.f32.partialorder %v425, 0.0
        %vm458 = vcmp.ge.f32.partialorder %v426, 0.0
        %vm459 = vcmp.ge.f32.partialorder %v427, 0.0
        %vm460 = vcmp.ge.f32.partialorder %v428, 0.0
        %vm461 = vcmp.ge.f32.partialorder %v429, 0.0
        %vm462 = vcmp.ge.f32.partialorder %v430, 0.0
        %vm463 = vcmp.ge.f32.partialorder %v431, 0.0
        %vm464 = vcmp.ge.f32.partialorder %v432, 0.0
        %vm465 = vcmp.ge.f32.partialorder %v433, 0.0
        %vm466 = vcmp.ge.f32.partialorder %v434, 0.0
        %vm467 = vcmp.ge.f32.partialorder %v435, 0.0
        %vm468 = vcmp.ge.f32.partialorder %v436, 0.0
        %vm469 = vcmp.ge.f32.partialorder %v437, 0.0
        %vm470 = vcmp.ge.f32.partialorder %v438, 0.0
        %vm471 = vcmp.ge.f32.partialorder %v439, 0.0
        %vm472 = vcmp.ge.f32.partialorder %v440, 0.0
        %vm473 = vcmp.ge.f32.partialorder %v441, 0.0
        %vm474 = vcmp.ge.f32.partialorder %v442, 0.0
        %vm475 = vcmp.ge.f32.partialorder %v443, 0.0
        %vm476 = vcmp.ge.f32.partialorder %v444, 0.0
        %vm477 = vcmp.ge.f32.partialorder %v445, 0.0
        %vm478 = vcmp.ge.f32.partialorder %v446, 0.0
        %vm479 = vcmp.ge.f32.partialorder %v447, 0.0
        %vm480 = vcmp.ge.f32.partialorder %v448, 0.0
        %vm481 = vcmp.ge.f32.partialorder %v449, 0.0
        %vm482 = vcmp.ge.f32.partialorder %v450, 0.0
        %vm483 = vcmp.ge.f32.partialorder %v451, 0.0
        %vm484 = vcmp.ge.f32.partialorder %v452, 0.0
        %vm485 = vcmp.ge.f32.partialorder %v453, 0.0
        %vm486 = vcmp.ge.f32.partialorder %v454, 0.0
        %vm487 = vcmp.ge.f32.partialorder %v455, 0.0
        %v488 = vmul.f32 %v424, 0.2
        %v489 = vmul.f32 %v425, 0.2
        %v490 = vmul.f32 %v426, 0.2
        %v491 = vmul.f32 %v427, 0.2
        %v492 = vmul.f32 %v428, 0.2
        %v493 = vmul.f32 %v429, 0.2
        %v494 = vmul.f32 %v430, 0.2
        %v495 = vmul.f32 %v431, 0.2
        %v496 = vmul.f32 %v432, 0.2
        %v497 = vmul.f32 %v433, 0.2
        %v498 = vmul.f32 %v434, 0.2
        %v499 = vmul.f32 %v435, 0.2
        %v500 = vmul.f32 %v436, 0.2
        %v501 = vmul.f32 %v437, 0.2
        %v502 = vmul.f32 %v438, 0.2
        %v503 = vmul.f32 %v439, 0.2
        %v504 = vmul.f32 %v440, 0.2
        %v505 = vmul.f32 %v441, 0.2
        %v506 = vmul.f32 %v442, 0.2
        %v507 = vmul.f32 %v443, 0.2
        %v508 = vmul.f32 %v444, 0.2
        %v509 = vmul.f32 %v445, 0.2
        %v510 = vmul.f32 %v446, 0.2
        %v511 = vmul.f32 %v447, 0.2
        %v512 = vmul.f32 %v448, 0.2
        %v513 = vmul.f32 %v449, 0.2
        %v514 = vmul.f32 %v450, 0.2
        %v515 = vmul.f32 %v451, 0.2
        %v516 = vmul.f32 %v452, 0.2
        %v517 = vmul.f32 %v453, 0.2
        %v518 = vmul.f32 %v454, 0.2
        %v519 = vmul.f32 %v455, 0.2
        %v520 = vsel %vm456, %v424, %v488
        %v521 = vsel %vm457, %v425, %v489
        %v522 = vsel %vm458, %v426, %v490
        %v523 = vsel %vm459, %v427, %v491
        %v524 = vsel %vm460, %v428, %v492
        %v525 = vsel %vm461, %v429, %v493
        %v526 = vsel %vm462, %v430, %v494
        %v527 = vsel %vm463, %v431, %v495
        %v528 = vsel %vm464, %v432, %v496
        %v529 = vsel %vm465, %v433, %v497
        %v530 = vsel %vm466, %v434, %v498
        %v531 = vsel %vm467, %v435, %v499
        %v532 = vsel %vm468, %v436, %v500
        %v533 = vsel %vm469, %v437, %v501
        %v534 = vsel %vm470, %v438, %v502
        %v535 = vsel %vm471, %v439, %v503
        %v536 = vsel %vm472, %v440, %v504
        %v537 = vsel %vm473, %v441, %v505
        %v538 = vsel %vm474, %v442, %v506
        %v539 = vsel %vm475, %v443, %v507
        %v540 = vsel %vm476, %v444, %v508
        %v541 = vsel %vm477, %v445, %v509
        %v542 = vsel %vm478, %v446, %v510
        %v543 = vsel %vm479, %v447, %v511
        %v544 = vsel %vm480, %v448, %v512
        %v545 = vsel %vm481, %v449, %v513
        %v546 = vsel %vm482, %v450, %v514
        %v547 = vsel %vm483, %v451, %v515
        %v548 = vsel %vm484, %v452, %v516
        %v549 = vsel %vm485, %v453, %v517
        %v550 = vsel %vm486, %v454, %v518
        %v551 = vsel %vm487, %v455, %v519
        %v552 = vld [vmem:[%s348 + $0x2] sm:$0x1]
        %v553 = vlaneseq
        %v554 = vshrl.u32 %v553, 7
        %v555 = vsub.s32 0, %v554
        %v556 = vrot.slane %v552, %v555
        %v557 = vmul.f32 %v520, %v556
        %v558 = vmul.f32 %v521, %v556
        %v559 = vmul.f32 %v522, %v556
        %v560 = vmul.f32 %v523, %v556
        %v561 = vmul.f32 %v524, %v556
        %v562 = vmul.f32 %v525, %v556
        %v563 = vmul.f32 %v526, %v556
        %v564 = vmul.f32 %v527, %v556
        %v565 = vmul.f32 %v528, %v556
        %v566 = vmul.f32 %v529, %v556
        %v567 = vmul.f32 %v530, %v556
        %v568 = vmul.f32 %v531, %v556
        %v569 = vmul.f32 %v532, %v556
        %v570 = vmul.f32 %v533, %v556
        %v571 = vmul.f32 %v534, %v556
        %v572 = vmul.f32 %v535, %v556
        %v573 = vmul.f32 %v536, %v556
        %v574 = vmul.f32 %v537, %v556
        %v575 = vmul.f32 %v538, %v556
        %v576 = vmul.f32 %v539, %v556
        %v577 = vmul.f32 %v540, %v556
        %v578 = vmul.f32 %v541, %v556
        %v579 = vmul.f32 %v542, %v556
        %v580 = vmul.f32 %v543, %v556
        %v581 = vmul.f32 %v544, %v556
        %v582 = vmul.f32 %v545, %v556
        %v583 = vmul.f32 %v546, %v556
        %v584 = vmul.f32 %v547, %v556
        %v585 = vmul.f32 %v548, %v556
        %v586 = vmul.f32 %v549, %v556
        %v587 = vmul.f32 %v550, %v556
        %v588 = vmul.f32 %v551, %v556
        %v589 = vld [vmem:[%s348 + $0x3] sm:$0x1]
        %v590 = vlaneseq
        %v591 = vshrl.u32 %v590, 7
        %v592 = vsub.s32 0, %v591
        %v593 = vrot.slane %v589, %v592
        %v594 = vadd.f32 %v557, %v593
        %v595 = vadd.f32 %v558, %v593
        %v596 = vadd.f32 %v559, %v593
        %v597 = vadd.f32 %v560, %v593
        %v598 = vadd.f32 %v561, %v593
        %v599 = vadd.f32 %v562, %v593
        %v600 = vadd.f32 %v563, %v593
        %v601 = vadd.f32 %v564, %v593
        %v602 = vadd.f32 %v565, %v593
        %v603 = vadd.f32 %v566, %v593
        %v604 = vadd.f32 %v567, %v593
        %v605 = vadd.f32 %v568, %v593
        %v606 = vadd.f32 %v569, %v593
        %v607 = vadd.f32 %v570, %v593
        %v608 = vadd.f32 %v571, %v593
        %v609 = vadd.f32 %v572, %v593
        %v610 = vadd.f32 %v573, %v593
        %v611 = vadd.f32 %v574, %v593
        %v612 = vadd.f32 %v575, %v593
        %v613 = vadd.f32 %v576, %v593
        %v614 = vadd.f32 %v577, %v593
        %v615 = vadd.f32 %v578, %v593
        %v616 = vadd.f32 %v579, %v593
        %v617 = vadd.f32 %v580, %v593
        %v618 = vadd.f32 %v581, %v593
        %v619 = vadd.f32 %v582, %v593
        %v620 = vadd.f32 %v583, %v593
        %v621 = vadd.f32 %v584, %v593
        %v622 = vadd.f32 %v585, %v593
        %v623 = vadd.f32 %v586, %v593
        %v624 = vadd.f32 %v587, %v593
        %v625 = vadd.f32 %v588, %v593
        %vm626 = vcmp.ge.f32.partialorder %v594, 0.0
        %vm627 = vcmp.ge.f32.partialorder %v595, 0.0
        %vm628 = vcmp.ge.f32.partialorder %v596, 0.0
        %vm629 = vcmp.ge.f32.partialorder %v597, 0.0
        %vm630 = vcmp.ge.f32.partialorder %v598, 0.0
        %vm631 = vcmp.ge.f32.partialorder %v599, 0.0
        %vm632 = vcmp.ge.f32.partialorder %v600, 0.0
        %vm633 = vcmp.ge.f32.partialorder %v601, 0.0
        %vm634 = vcmp.ge.f32.partialorder %v602, 0.0
        %vm635 = vcmp.ge.f32.partialorder %v603, 0.0
        %vm636 = vcmp.ge.f32.partialorder %v604, 0.0
        %vm637 = vcmp.ge.f32.partialorder %v605, 0.0
        %vm638 = vcmp.ge.f32.partialorder %v606, 0.0
        %vm639 = vcmp.ge.f32.partialorder %v607, 0.0
        %vm640 = vcmp.ge.f32.partialorder %v608, 0.0
        %vm641 = vcmp.ge.f32.partialorder %v609, 0.0
        %vm642 = vcmp.ge.f32.partialorder %v610, 0.0
        %vm643 = vcmp.ge.f32.partialorder %v611, 0.0
        %vm644 = vcmp.ge.f32.partialorder %v612, 0.0
        %vm645 = vcmp.ge.f32.partialorder %v613, 0.0
        %vm646 = vcmp.ge.f32.partialorder %v614, 0.0
        %vm647 = vcmp.ge.f32.partialorder %v615, 0.0
        %vm648 = vcmp.ge.f32.partialorder %v616, 0.0
        %vm649 = vcmp.ge.f32.partialorder %v617, 0.0
        %vm650 = vcmp.ge.f32.partialorder %v618, 0.0
        %vm651 = vcmp.ge.f32.partialorder %v619, 0.0
        %vm652 = vcmp.ge.f32.partialorder %v620, 0.0
        %vm653 = vcmp.ge.f32.partialorder %v621, 0.0
        %vm654 = vcmp.ge.f32.partialorder %v622, 0.0
        %vm655 = vcmp.ge.f32.partialorder %v623, 0.0
        %vm656 = vcmp.ge.f32.partialorder %v624, 0.0
        %vm657 = vcmp.ge.f32.partialorder %v625, 0.0
        %v658 = vmul.f32 %v594, 0.2
        %v659 = vmul.f32 %v595, 0.2
        %v660 = vmul.f32 %v596, 0.2
        %v661 = vmul.f32 %v597, 0.2
        %v662 = vmul.f32 %v598, 0.2
        %v663 = vmul.f32 %v599, 0.2
        %v664 = vmul.f32 %v600, 0.2
        %v665 = vmul.f32 %v601, 0.2
        %v666 = vmul.f32 %v602, 0.2
        %v667 = vmul.f32 %v603, 0.2
        %v668 = vmul.f32 %v604, 0.2
        %v669 = vmul.f32 %v605, 0.2
        %v670 = vmul.f32 %v606, 0.2
        %v671 = vmul.f32 %v607, 0.2
        %v672 = vmul.f32 %v608, 0.2
        %v673 = vmul.f32 %v609, 0.2
        %v674 = vmul.f32 %v610, 0.2
        %v675 = vmul.f32 %v611, 0.2
        %v676 = vmul.f32 %v612, 0.2
        %v677 = vmul.f32 %v613, 0.2
        %v678 = vmul.f32 %v614, 0.2
        %v679 = vmul.f32 %v615, 0.2
        %v680 = vmul.f32 %v616, 0.2
        %v681 = vmul.f32 %v617, 0.2
        %v682 = vmul.f32 %v618, 0.2
        %v683 = vmul.f32 %v619, 0.2
        %v684 = vmul.f32 %v620, 0.2
        %v685 = vmul.f32 %v621, 0.2
        %v686 = vmul.f32 %v622, 0.2
        %v687 = vmul.f32 %v623, 0.2
        %v688 = vmul.f32 %v624, 0.2
        %v689 = vmul.f32 %v625, 0.2
        %v690 = vsel %vm626, %v594, %v658
        %v691 = vsel %vm627, %v595, %v659
        %v692 = vsel %vm628, %v596, %v660
        %v693 = vsel %vm629, %v597, %v661
        %v694 = vsel %vm630, %v598, %v662
        %v695 = vsel %vm631, %v599, %v663
        %v696 = vsel %vm632, %v600, %v664
        %v697 = vsel %vm633, %v601, %v665
        %v698 = vsel %vm634, %v602, %v666
        %v699 = vsel %vm635, %v603, %v667
        %v700 = vsel %vm636, %v604, %v668
        %v701 = vsel %vm637, %v605, %v669
        %v702 = vsel %vm638, %v606, %v670
        %v703 = vsel %vm639, %v607, %v671
        %v704 = vsel %vm640, %v608, %v672
        %v705 = vsel %vm641, %v609, %v673
        %v706 = vsel %vm642, %v610, %v674
        %v707 = vsel %vm643, %v611, %v675
        %v708 = vsel %vm644, %v612, %v676
        %v709 = vsel %vm645, %v613, %v677
        %v710 = vsel %vm646, %v614, %v678
        %v711 = vsel %vm647, %v615, %v679
        %v712 = vsel %vm648, %v616, %v680
        %v713 = vsel %vm649, %v617, %v681
        %v714 = vsel %vm650, %v618, %v682
        %v715 = vsel %vm651, %v619, %v683
        %v716 = vsel %vm652, %v620, %v684
        %v717 = vsel %vm653, %v621, %v685
        %v718 = vsel %vm654, %v622, %v686
        %v719 = vsel %vm655, %v623, %v687
        %v720 = vsel %vm656, %v624, %v688
        %v721 = vsel %vm657, %v625, %v689
        %v722 = vpack.c.bf16 %v691, %v690
        %v723 = vpack.c.bf16 %v693, %v692
        %v724 = vpack.c.bf16 %v695, %v694
        %v725 = vpack.c.bf16 %v697, %v696
        %v726 = vpack.c.bf16 %v699, %v698
        %v727 = vpack.c.bf16 %v701, %v700
        %v728 = vpack.c.bf16 %v703, %v702
        %v729 = vpack.c.bf16 %v705, %v704
        %v730 = vpack.c.bf16 %v707, %v706
        %v731 = vpack.c.bf16 %v709, %v708
        %v732 = vpack.c.bf16 %v711, %v710
        %v733 = vpack.c.bf16 %v713, %v712
        %v734 = vpack.c.bf16 %v715, %v714
        %v735 = vpack.c.bf16 %v717, %v716
        %v736 = vpack.c.bf16 %v719, %v718
        %v737 = vpack.c.bf16 %v721, %v720
        %v739 = vshrl.u32 %v722, 16
        %v741 = vrot.slane %v739, 7
        %v742 = vshll.u32 %v722, 16
        %v744 = vor.u32 %v741, %v742
        %v746 = vshrl.u32 %v723, 16
        %v748 = vrot.slane %v746, 7
        %v749 = vshll.u32 %v723, 16
        %v751 = vor.u32 %v748, %v749
        %v753 = vshrl.u32 %v724, 16
        %v755 = vrot.slane %v753, 7
        %v756 = vshll.u32 %v724, 16
        %v758 = vor.u32 %v755, %v756
        %v760 = vshrl.u32 %v725, 16
        %v762 = vrot.slane %v760, 7
        %v763 = vshll.u32 %v725, 16
        %v765 = vor.u32 %v762, %v763
        %v767 = vshrl.u32 %v726, 16
        %v769 = vrot.slane %v767, 7
        %v770 = vshll.u32 %v726, 16
        %v772 = vor.u32 %v769, %v770
        %v774 = vshrl.u32 %v727, 16
        %v776 = vrot.slane %v774, 7
        %v777 = vshll.u32 %v727, 16
        %v779 = vor.u32 %v776, %v777
        %v781 = vshrl.u32 %v728, 16
        %v783 = vrot.slane %v781, 7
        %v784 = vshll.u32 %v728, 16
        %v786 = vor.u32 %v783, %v784
        %v788 = vshrl.u32 %v729, 16
        %v790 = vrot.slane %v788, 7
        %v791 = vshll.u32 %v729, 16
        %v793 = vor.u32 %v790, %v791
        %v795 = vshrl.u32 %v730, 16
        %v797 = vrot.slane %v795, 7
        %v798 = vshll.u32 %v730, 16
        %v800 = vor.u32 %v797, %v798
        %v802 = vshrl.u32 %v731, 16
        %v804 = vrot.slane %v802, 7
        %v805 = vshll.u32 %v731, 16
        %v807 = vor.u32 %v804, %v805
        %v809 = vshrl.u32 %v732, 16
        %v811 = vrot.slane %v809, 7
        %v812 = vshll.u32 %v732, 16
        %v814 = vor.u32 %v811, %v812
        %v816 = vshrl.u32 %v733, 16
        %v818 = vrot.slane %v816, 7
        %v819 = vshll.u32 %v733, 16
        %v821 = vor.u32 %v818, %v819
        %v823 = vshrl.u32 %v734, 16
        %v825 = vrot.slane %v823, 7
        %v826 = vshll.u32 %v734, 16
        %v828 = vor.u32 %v825, %v826
        %v830 = vshrl.u32 %v735, 16
        %v832 = vrot.slane %v830, 7
        %v833 = vshll.u32 %v735, 16
        %v835 = vor.u32 %v832, %v833
        %v837 = vshrl.u32 %v736, 16
        %v839 = vrot.slane %v837, 7
        %v840 = vshll.u32 %v736, 16
        %v842 = vor.u32 %v839, %v840
        %v844 = vshrl.u32 %v737, 16
        %v846 = vrot.slane %v844, 7
        %v847 = vshll.u32 %v737, 16
        %v849 = vor.u32 %v846, %v847
        %vm882 = vcmask 1040384
        %vm883 = vsmask.f32 256
        %vm884 = vmand %vm882, %vm883
        %v885 = vsel %vm884, 0, %v744
        %v886 = vsel %vm884, 0, %v751
        %v887 = vsel %vm884, 0, %v758
        %v888 = vsel %vm884, 0, %v765
        %v889 = vsel %vm884, 0, %v772
        %v890 = vsel %vm884, 0, %v779
        %v891 = vsel %vm884, 0, %v786
        %v892 = vsel %vm884, 0, %v793
        %v893 = vsel %vm884, 0, %v800
        %v894 = vsel %vm884, 0, %v807
        %v895 = vsel %vm884, 0, %v814
        %v896 = vsel %vm884, 0, %v821
        %v897 = vsel %vm884, 0, %v828
        %v898 = vsel %vm884, 0, %v835
        %v899 = vsel %vm884, 0, %v842
        %v900 = vsel %vm884, 0, %v849
        %v901 = vsel %vm884, %v741, 0
        %v902 = vsel %vm884, %v748, 0
        %v903 = vsel %vm884, %v755, 0
        %v904 = vsel %vm884, %v762, 0
        %v905 = vsel %vm884, %v769, 0
        %v906 = vsel %vm884, %v776, 0
        %v907 = vsel %vm884, %v783, 0
        %v908 = vsel %vm884, %v790, 0
        %v909 = vsel %vm884, %v797, 0
        %v910 = vsel %vm884, %v804, 0
        %v911 = vsel %vm884, %v811, 0
        %v912 = vsel %vm884, %v818, 0
        %v913 = vsel %vm884, %v825, 0
        %v914 = vsel %vm884, %v832, 0
        %v915 = vsel %vm884, %v839, 0
        %v916 = vsel %vm884, %v846, 0
        %933 = vrot.lane.b32.xlu0 %v885, 64
        %v934 = vpop.permute.xlu0 %933
        %935 = vrot.lane.b32.xlu0 %v886, 64
        %v936 = vpop.permute.xlu0 %935
        %937 = vrot.lane.b32.xlu0 %v887, 64
        %v938 = vpop.permute.xlu0 %937
        %939 = vrot.lane.b32.xlu0 %v888, 64
        %v940 = vpop.permute.xlu0 %939
        %941 = vrot.lane.b32.xlu0 %v889, 64
        %v942 = vpop.permute.xlu0 %941
        %943 = vrot.lane.b32.xlu0 %v890, 64
        %v944 = vpop.permute.xlu0 %943
        %945 = vrot.lane.b32.xlu0 %v891, 64
        %v946 = vpop.permute.xlu0 %945
        %947 = vrot.lane.b32.xlu0 %v892, 64
        %v948 = vpop.permute.xlu0 %947
        %949 = vrot.lane.b32.xlu0 %v893, 64
        %v950 = vpop.permute.xlu0 %949
        %951 = vrot.lane.b32.xlu0 %v894, 64
        %v952 = vpop.permute.xlu0 %951
        %953 = vrot.lane.b32.xlu0 %v895, 64
        %v954 = vpop.permute.xlu0 %953
        %955 = vrot.lane.b32.xlu0 %v896, 64
        %v956 = vpop.permute.xlu0 %955
        %957 = vrot.lane.b32.xlu0 %v897, 64
        %v958 = vpop.permute.xlu0 %957
        %959 = vrot.lane.b32.xlu0 %v898, 64
        %v960 = vpop.permute.xlu0 %959
        %961 = vrot.lane.b32.xlu0 %v899, 64
        %v962 = vpop.permute.xlu0 %961
        %963 = vrot.lane.b32.xlu0 %v900, 64
        %v964 = vpop.permute.xlu0 %963
        %vm965 = vsmask.f32 7424
        %v967 = vshrl.u32 0, 16
        %v969 = vshll.u32 0, 16
        %v971 = vrot.slane %v969, 1
        %v972 = vor.u32 %v967, %v971
        %v973 = vsel %vm965, %v972, %v971
        %v975 = vshrl.u32 %v885, 16
        %v977 = vshll.u32 %v885, 16
        %v979 = vrot.slane %v977, 1
        %v980 = vor.u32 %v975, %v979
        %v982 = vshll.u32 %v901, 16
        %v984 = vrot.slane %v982, 1
        %v985 = vsel %vm965, %v980, %v984
        %v987 = vshrl.u32 %v886, 16
        %v989 = vshll.u32 %v886, 16
        %v991 = vrot.slane %v989, 1
        %v992 = vor.u32 %v987, %v991
        %v994 = vshll.u32 %v902, 16
        %v996 = vrot.slane %v994, 1
        %v997 = vsel %vm965, %v992, %v996
        %v999 = vshrl.u32 %v887, 16
        %v1001 = vshll.u32 %v887, 16
        %v1003 = vrot.slane %v1001, 1
        %v1004 = vor.u32 %v999, %v1003
        %v1006 = vshll.u32 %v903, 16
        %v1008 = vrot.slane %v1006, 1
        %v1009 = vsel %vm965, %v1004, %v1008
        %v1011 = vshrl.u32 %v888, 16
        %v1013 = vshll.u32 %v888, 16
        %v1015 = vrot.slane %v1013, 1
        %v1016 = vor.u32 %v1011, %v1015
        %v1018 = vshll.u32 %v904, 16
        %v1020 = vrot.slane %v1018, 1
        %v1021 = vsel %vm965, %v1016, %v1020
        %v1023 = vshrl.u32 %v889, 16
        %v1025 = vshll.u32 %v889, 16
        %v1027 = vrot.slane %v1025, 1
        %v1028 = vor.u32 %v1023, %v1027
        %v1030 = vshll.u32 %v905, 16
        %v1032 = vrot.slane %v1030, 1
        %v1033 = vsel %vm965, %v1028, %v1032
        %v1035 = vshrl.u32 %v890, 16
        %v1037 = vshll.u32 %v890, 16
        %v1039 = vrot.slane %v1037, 1
        %v1040 = vor.u32 %v1035, %v1039
        %v1042 = vshll.u32 %v906, 16
        %v1044 = vrot.slane %v1042, 1
        %v1045 = vsel %vm965, %v1040, %v1044
        %v1047 = vshrl.u32 %v891, 16
        %v1049 = vshll.u32 %v891, 16
        %v1051 = vrot.slane %v1049, 1
        %v1052 = vor.u32 %v1047, %v1051
        %v1054 = vshll.u32 %v907, 16
        %v1056 = vrot.slane %v1054, 1
        %v1057 = vsel %vm965, %v1052, %v1056
        %v1059 = vshrl.u32 %v892, 16
        %v1061 = vshll.u32 %v892, 16
        %v1063 = vrot.slane %v1061, 1
        %v1064 = vor.u32 %v1059, %v1063
        %v1066 = vshll.u32 %v908, 16
        %v1068 = vrot.slane %v1066, 1
        %v1069 = vsel %vm965, %v1064, %v1068
        %v1071 = vshrl.u32 %v893, 16
        %v1073 = vshll.u32 %v893, 16
        %v1075 = vrot.slane %v1073, 1
        %v1076 = vor.u32 %v1071, %v1075
        %v1078 = vshll.u32 %v909, 16
        %v1080 = vrot.slane %v1078, 1
        %v1081 = vsel %vm965, %v1076, %v1080
        %v1083 = vshrl.u32 %v894, 16
        %v1085 = vshll.u32 %v894, 16
        %v1087 = vrot.slane %v1085, 1
        %v1088 = vor.u32 %v1083, %v1087
        %v1090 = vshll.u32 %v910, 16
        %v1092 = vrot.slane %v1090, 1
        %v1093 = vsel %vm965, %v1088, %v1092
        %v1095 = vshrl.u32 %v895, 16
        %v1097 = vshll.u32 %v895, 16
        %v1099 = vrot.slane %v1097, 1
        %v1100 = vor.u32 %v1095, %v1099
        %v1102 = vshll.u32 %v911, 16
        %v1104 = vrot.slane %v1102, 1
        %v1105 = vsel %vm965, %v1100, %v1104
        %v1107 = vshrl.u32 %v896, 16
        %v1109 = vshll.u32 %v896, 16
        %v1111 = vrot.slane %v1109, 1
        %v1112 = vor.u32 %v1107, %v1111
        %v1114 = vshll.u32 %v912, 16
        %v1116 = vrot.slane %v1114, 1
        %v1117 = vsel %vm965, %v1112, %v1116
        %v1119 = vshrl.u32 %v897, 16
        %v1121 = vshll.u32 %v897, 16
        %v1123 = vrot.slane %v1121, 1
        %v1124 = vor.u32 %v1119, %v1123
        %v1126 = vshll.u32 %v913, 16
        %v1128 = vrot.slane %v1126, 1
        %v1129 = vsel %vm965, %v1124, %v1128
        %v1131 = vshrl.u32 %v898, 16
        %v1133 = vshll.u32 %v898, 16
        %v1135 = vrot.slane %v1133, 1
        %v1136 = vor.u32 %v1131, %v1135
        %v1138 = vshll.u32 %v914, 16
        %v1140 = vrot.slane %v1138, 1
        %v1141 = vsel %vm965, %v1136, %v1140
        %v1143 = vshrl.u32 %v899, 16
        %v1145 = vshll.u32 %v899, 16
        %v1147 = vrot.slane %v1145, 1
        %v1148 = vor.u32 %v1143, %v1147
        %v1150 = vshll.u32 %v915, 16
        %v1152 = vrot.slane %v1150, 1
        %v1153 = vsel %vm965, %v1148, %v1152
        %1154 = vrot.lane.b32.xlu0 %v973, 64
        %v1155 = vpop.permute.xlu0 %1154
        %1156 = vrot.lane.b32.xlu0 %v985, 64
        %v1157 = vpop.permute.xlu0 %1156
        %1158 = vrot.lane.b32.xlu0 %v997, 64
        %v1159 = vpop.permute.xlu0 %1158
        %1160 = vrot.lane.b32.xlu0 %v1009, 64
        %v1161 = vpop.permute.xlu0 %1160
        %1162 = vrot.lane.b32.xlu0 %v1021, 64
        %v1163 = vpop.permute.xlu0 %1162
        %1164 = vrot.lane.b32.xlu0 %v1033, 64
        %v1165 = vpop.permute.xlu0 %1164
        %1166 = vrot.lane.b32.xlu0 %v1045, 64
        %v1167 = vpop.permute.xlu0 %1166
        %1168 = vrot.lane.b32.xlu0 %v1057, 64
        %v1169 = vpop.permute.xlu0 %1168
        %1170 = vrot.lane.b32.xlu0 %v1069, 64
        %v1171 = vpop.permute.xlu0 %1170
        %1172 = vrot.lane.b32.xlu0 %v1081, 64
        %v1173 = vpop.permute.xlu0 %1172
        %1174 = vrot.lane.b32.xlu0 %v1093, 64
        %v1175 = vpop.permute.xlu0 %1174
        %1176 = vrot.lane.b32.xlu0 %v1105, 64
        %v1177 = vpop.permute.xlu0 %1176
        %1178 = vrot.lane.b32.xlu0 %v1117, 64
        %v1179 = vpop.permute.xlu0 %1178
        %1180 = vrot.lane.b32.xlu0 %v1129, 64
        %v1181 = vpop.permute.xlu0 %1180
        %1182 = vrot.lane.b32.xlu0 %v1141, 64
        %v1183 = vpop.permute.xlu0 %1182
        %1184 = vrot.lane.b32.xlu0 %v1153, 64
        %v1185 = vpop.permute.xlu0 %1184
        %v1187 = vshrl.u32 %v900, 16
        %v1189 = vshll.u32 %v900, 16
        %v1191 = vrot.slane %v1189, 1
        %v1192 = vor.u32 %v1187, %v1191
        %v1194 = vshll.u32 %v916, 16
        %v1196 = vrot.slane %v1194, 1
        %v1197 = vsel %vm965, %v1192, %v1196
        %1198 = vrot.lane.b32.xlu0 %v1197, 64
        %v1199 = vpop.permute.xlu0 %1198
        %vm1216 = vcmask 1046528
        %v1217 = vrot.slane 0, 1
        %v1218 = vsel %vm1216, %v1217, %v1217
        %v1219 = vrot.slane %v885, 1
        %v1220 = vrot.slane %v901, 1
        %v1221 = vsel %vm1216, %v1219, %v1220
        %v1222 = vrot.slane %v886, 1
        %v1223 = vrot.slane %v902, 1
        %v1224 = vsel %vm1216, %v1222, %v1223
        %v1225 = vrot.slane %v887, 1
        %v1226 = vrot.slane %v903, 1
        %v1227 = vsel %vm1216, %v1225, %v1226
        %v1228 = vrot.slane %v888, 1
        %v1229 = vrot.slane %v904, 1
        %v1230 = vsel %vm1216, %v1228, %v1229
        %v1231 = vrot.slane %v889, 1
        %v1232 = vrot.slane %v905, 1
        %v1233 = vsel %vm1216, %v1231, %v1232
        %v1234 = vrot.slane %v890, 1
        %v1235 = vrot.slane %v906, 1
        %v1236 = vsel %vm1216, %v1234, %v1235
        %v1237 = vrot.slane %v891, 1
        %v1238 = vrot.slane %v907, 1
        %v1239 = vsel %vm1216, %v1237, %v1238
        %v1240 = vrot.slane %v892, 1
        %v1241 = vrot.slane %v908, 1
        %v1242 = vsel %vm1216, %v1240, %v1241
        %v1243 = vrot.slane %v893, 1
        %v1244 = vrot.slane %v909, 1
        %v1245 = vsel %vm1216, %v1243, %v1244
        %v1246 = vrot.slane %v894, 1
        %v1247 = vrot.slane %v910, 1
        %v1248 = vsel %vm1216, %v1246, %v1247
        %v1249 = vrot.slane %v895, 1
        %v1250 = vrot.slane %v911, 1
        %v1251 = vsel %vm1216, %v1249, %v1250
        %v1252 = vrot.slane %v896, 1
        %v1253 = vrot.slane %v912, 1
        %v1254 = vsel %vm1216, %v1252, %v1253
        %v1255 = vrot.slane %v897, 1
        %v1256 = vrot.slane %v913, 1
        %v1257 = vsel %vm1216, %v1255, %v1256
        %v1258 = vrot.slane %v898, 1
        %v1259 = vrot.slane %v914, 1
        %v1260 = vsel %vm1216, %v1258, %v1259
        %v1261 = vrot.slane %v899, 1
        %v1262 = vrot.slane %v915, 1
        %v1263 = vsel %vm1216, %v1261, %v1262
        %v1265 = vrot.slane %v900, 1
        %v1266 = vrot.slane %v916, 1
        %v1267 = vsel %vm1216, %v1265, %v1266
        %1268 = vrot.lane.b32.xlu0 %v1221, 64
        %v1269 = vpop.permute.xlu0 %1268
        %1270 = vrot.lane.b32.xlu0 %v1224, 64
        %v1271 = vpop.permute.xlu0 %1270
        %1272 = vrot.lane.b32.xlu0 %v1227, 64
        %v1273 = vpop.permute.xlu0 %1272
        %1274 = vrot.lane.b32.xlu0 %v1230, 64
        %v1275 = vpop.permute.xlu0 %1274
        %1276 = vrot.lane.b32.xlu0 %v1233, 64
        %v1277 = vpop.permute.xlu0 %1276
        %1278 = vrot.lane.b32.xlu0 %v1236, 64
        %v1279 = vpop.permute.xlu0 %1278
        %1280 = vrot.lane.b32.xlu0 %v1239, 64
        %v1281 = vpop.permute.xlu0 %1280
        %1282 = vrot.lane.b32.xlu0 %v1242, 64
        %v1283 = vpop.permute.xlu0 %1282
        %1284 = vrot.lane.b32.xlu0 %v1245, 64
        %v1285 = vpop.permute.xlu0 %1284
        %1286 = vrot.lane.b32.xlu0 %v1248, 64
        %v1287 = vpop.permute.xlu0 %1286
        %1288 = vrot.lane.b32.xlu0 %v1251, 64
        %v1289 = vpop.permute.xlu0 %1288
        %1290 = vrot.lane.b32.xlu0 %v1254, 64
        %v1291 = vpop.permute.xlu0 %1290
        %1292 = vrot.lane.b32.xlu0 %v1257, 64
        %v1293 = vpop.permute.xlu0 %1292
        %1294 = vrot.lane.b32.xlu0 %v1260, 64
        %v1295 = vpop.permute.xlu0 %1294
        %1296 = vrot.lane.b32.xlu0 %v1263, 64
        %v1297 = vpop.permute.xlu0 %1296
        %1298 = vrot.lane.b32.xlu0 %v1267, 64
        %v1299 = vpop.permute.xlu0 %1298
        %vm1300 = vcmask 523264
        %v1302 = vsel %vm1300, 0, %v934
        %v1305 = vsel %vm1300, %v885, %v936
        %v1308 = vsel %vm1300, %v886, %v938
        %v1311 = vsel %vm1300, %v887, %v940
        %v1314 = vsel %vm1300, %v888, %v942
        %v1317 = vsel %vm1300, %v889, %v944
        %v1320 = vsel %vm1300, %v890, %v946
        %v1323 = vsel %vm1300, %v891, %v948
        %v1326 = vsel %vm1300, %v892, %v950
        %v1329 = vsel %vm1300, %v893, %v952
        %v1332 = vsel %vm1300, %v894, %v954
        %v1335 = vsel %vm1300, %v895, %v956
        %v1338 = vsel %vm1300, %v896, %v958
        %v1341 = vsel %vm1300, %v897, %v960
        %v1344 = vsel %vm1300, %v898, %v962
        %v1347 = vsel %vm1300, %v899, %v964
        %v1350 = vsel %vm1300, %v886, %v1155
        %v1353 = vsel %vm1300, %v887, %v1157
        %v1356 = vsel %vm1300, %v888, %v1159
        %v1359 = vsel %vm1300, %v889, %v1161
        %v1362 = vsel %vm1300, %v890, %v1163
        %v1365 = vsel %vm1300, %v891, %v1165
        %v1368 = vsel %vm1300, %v892, %v1167
        %v1371 = vsel %vm1300, %v893, %v1169
        %v1374 = vsel %vm1300, %v894, %v1171
        %v1377 = vsel %vm1300, %v895, %v1173
        %v1380 = vsel %vm1300, %v896, %v1175
        %v1383 = vsel %vm1300, %v897, %v1177
        %v1386 = vsel %vm1300, %v898, %v1179
        %v1389 = vsel %vm1300, %v899, %v1181
        %v1392 = vsel %vm1300, %v900, %v1183
        %v1395 = vsel %vm1300, 0, %v1185
        %v1398 = vsel %vm1300, %v985, %v1159
        %v1401 = vsel %vm1300, %v997, %v1161
        %v1404 = vsel %vm1300, %v1009, %v1163
        %v1407 = vsel %vm1300, %v1021, %v1165
        %v1410 = vsel %vm1300, %v1033, %v1167
        %v1413 = vsel %vm1300, %v1045, %v1169
        %v1416 = vsel %vm1300, %v1057, %v1171
        %v1419 = vsel %vm1300, %v1069, %v1173
        %v1422 = vsel %vm1300, %v1081, %v1175
        %v1425 = vsel %vm1300, %v1093, %v1177
        %v1428 = vsel %vm1300, %v1105, %v1179
        %v1431 = vsel %vm1300, %v1117, %v1181
        %v1434 = vsel %vm1300, %v1129, %v1183
        %v1437 = vsel %vm1300, %v1141, %v1185
        %v1441 = vsel %vm1300, %v1153, %v1199
        %v1444 = vsel %vm1300, %v1197, %v1155
        %v1448 = vsel %vm1300, %v1218, %v1269
        %v1452 = vsel %vm1300, %v1221, %v1271
        %v1456 = vsel %vm1300, %v1224, %v1273
        %v1460 = vsel %vm1300, %v1227, %v1275
        %v1464 = vsel %vm1300, %v1230, %v1277
        %v1468 = vsel %vm1300, %v1233, %v1279
        %v1472 = vsel %vm1300, %v1236, %v1281
        %v1476 = vsel %vm1300, %v1239, %v1283
        %v1480 = vsel %vm1300, %v1242, %v1285
        %v1484 = vsel %vm1300, %v1245, %v1287
        %v1488 = vsel %vm1300, %v1248, %v1289
        %v1492 = vsel %vm1300, %v1251, %v1291
        %v1496 = vsel %vm1300, %v1254, %v1293
        %v1500 = vsel %vm1300, %v1257, %v1295
        %v1504 = vsel %vm1300, %v1260, %v1297
        %v1508 = vsel %vm1300, %v1263, %v1299
        %v1510 = vld [vmem:[%s2] sm:$0xf]
        %v1511 = vld [vmem:[%s2 + $0x4] sm:$0xf]
        %v1512 = vld [vmem:[%s2 + $0x8] sm:$0xf]
        %v1513 = vld [vmem:[%s2 + $0xc] sm:$0xf]
        %v1514 = vld [vmem:[%s2 + $0x10] sm:$0xf]
        %v1515 = vld [vmem:[%s2 + $0x14] sm:$0xf]
        %v1516 = vld [vmem:[%s2 + $0x18] sm:$0xf]
        %v1517 = vld [vmem:[%s2 + $0x1c] sm:$0xf]
        %v1518 = vld [vmem:[%s2 + $0x20] sm:$0xf]
        %v1519 = vld [vmem:[%s2 + $0x24] sm:$0xf]
        %v1520 = vld [vmem:[%s2 + $0x28] sm:$0xf]
        %v1521 = vld [vmem:[%s2 + $0x2c] sm:$0xf]
        %v1522 = vld [vmem:[%s2 + $0x30] sm:$0xf]
        %v1523 = vld [vmem:[%s2 + $0x34] sm:$0xf]
        %v1524 = vld [vmem:[%s2 + $0x38] sm:$0xf]
        %v1525 = vld [vmem:[%s2 + $0x3c] sm:$0xf]
        %v1526 = vld [vmem:[%s2 + $0x40] sm:$0xf]
        %v1527 = vld [vmem:[%s2 + $0x44] sm:$0xf]
        %v1528 = vld [vmem:[%s2 + $0x48] sm:$0xf]
        %v1529 = vld [vmem:[%s2 + $0x4c] sm:$0xf]
        %v1530 = vld [vmem:[%s2 + $0x50] sm:$0xf]
        %v1531 = vld [vmem:[%s2 + $0x54] sm:$0xf]
        %v1532 = vld [vmem:[%s2 + $0x58] sm:$0xf]
        %v1533 = vld [vmem:[%s2 + $0x5c] sm:$0xf]
        %v1534 = vld [vmem:[%s2 + $0x60] sm:$0xf]
        %v1535 = vld [vmem:[%s2 + $0x64] sm:$0xf]
        %v1536 = vld [vmem:[%s2 + $0x68] sm:$0xf]
        %v1537 = vld [vmem:[%s2 + $0x6c] sm:$0xf]
        %v1538 = vld [vmem:[%s2 + $0x70] sm:$0xf]
        %v1539 = vld [vmem:[%s2 + $0x74] sm:$0xf]
        %v1540 = vld [vmem:[%s2 + $0x78] sm:$0xf]
        %v1541 = vld [vmem:[%s2 + $0x7c] sm:$0xf]
        %v1542 = vld [vmem:[%s2 + $0x80] sm:$0xf]
        %v1543 = vld [vmem:[%s2 + $0x84] sm:$0xf]
        %v1544 = vld [vmem:[%s2 + $0x88] sm:$0xf]
        %v1545 = vld [vmem:[%s2 + $0x8c] sm:$0xf]
        %v1546 = vld [vmem:[%s2 + $0x90] sm:$0xf]
        %v1547 = vld [vmem:[%s2 + $0x94] sm:$0xf]
        %v1548 = vld [vmem:[%s2 + $0x98] sm:$0xf]
        %v1549 = vld [vmem:[%s2 + $0x9c] sm:$0xf]
        %v1550 = vld [vmem:[%s2 + $0xa0] sm:$0xf]
        %v1551 = vld [vmem:[%s2 + $0xa4] sm:$0xf]
        %v1552 = vld [vmem:[%s2 + $0xa8] sm:$0xf]
        %v1553 = vld [vmem:[%s2 + $0xac] sm:$0xf]
        %v1554 = vld [vmem:[%s2 + $0xb0] sm:$0xf]
        %v1555 = vld [vmem:[%s2 + $0xb4] sm:$0xf]
        %v1556 = vld [vmem:[%s2 + $0xb8] sm:$0xf]
        %v1557 = vld [vmem:[%s2 + $0xbc] sm:$0xf]
        %v1558 = vld [vmem:[%s2 + $0xc0] sm:$0xf]
        %v1559 = vld [vmem:[%s2 + $0xc4] sm:$0xf]
        %v1560 = vld [vmem:[%s2 + $0xc8] sm:$0xf]
        %v1561 = vld [vmem:[%s2 + $0xcc] sm:$0xf]
        %v1562 = vld [vmem:[%s2 + $0xd0] sm:$0xf]
        %v1563 = vld [vmem:[%s2 + $0xd4] sm:$0xf]
        %v1564 = vld [vmem:[%s2 + $0xd8] sm:$0xf]
        %v1565 = vld [vmem:[%s2 + $0xdc] sm:$0xf]
        %v1566 = vld [vmem:[%s2 + $0xe0] sm:$0xf]
        %v1567 = vld [vmem:[%s2 + $0xe4] sm:$0xf]
        %v1568 = vld [vmem:[%s2 + $0xe8] sm:$0xf]
        %v1569 = vld [vmem:[%s2 + $0xec] sm:$0xf]
        %v1570 = vld [vmem:[%s2 + $0xf0] sm:$0xf]
        %v1571 = vld [vmem:[%s2 + $0xf4] sm:$0xf]
        %v1572 = vld [vmem:[%s2 + $0xf8] sm:$0xf]
        %v1573 = vld [vmem:[%s2 + $0xfc] sm:$0xf]
        %v1574 = vld [vmem:[%s2 + $0x100] sm:$0xf]
        %v1575 = vld [vmem:[%s2 + $0x104] sm:$0xf]
        %v1576 = vld [vmem:[%s2 + $0x108] sm:$0xf]
        %v1577 = vld [vmem:[%s2 + $0x10c] sm:$0xf]
        %v1578 = vld [vmem:[%s2 + $0x110] sm:$0xf]
        %v1579 = vld [vmem:[%s2 + $0x114] sm:$0xf]
        %v1580 = vld [vmem:[%s2 + $0x118] sm:$0xf]
        %v1581 = vld [vmem:[%s2 + $0x11c] sm:$0xf]
        %v1582 = vld [vmem:[%s3] sm:$0x1]
        %v1584 = vlaneseq
        %v1585 = vshrl.u32 %v1584, 7
        %v1586 = vsub.s32 0, %v1585
        %v1587 = vrot.slane %v1582, %v1586
        %v1661 = vunpack.c.l.b16 %v1510
        %v1662 = vunpack.c.l.b16 %v1511
        %v1663 = vunpack.c.l.b16 %v1512
        %v1664 = vunpack.c.l.b16 %v1513
        %v1665 = vunpack.c.l.b16 %v1514
        %v1666 = vunpack.c.l.b16 %v1515
        %v1667 = vunpack.c.l.b16 %v1516
        %v1668 = vunpack.c.l.b16 %v1517
        %v1669 = vunpack.c.l.b16 %v1518
        %v1670 = vunpack.c.l.b16 %v1519
        %v1671 = vunpack.c.l.b16 %v1520
        %v1672 = vunpack.c.l.b16 %v1521
        %v1673 = vunpack.c.l.b16 %v1522
        %v1674 = vunpack.c.l.b16 %v1523
        %v1675 = vunpack.c.l.b16 %v1524
        %v1676 = vunpack.c.l.b16 %v1525
        %v1677 = vunpack.c.l.b16 %v1526
        %v1678 = vunpack.c.l.b16 %v1527
        %v1679 = vunpack.c.l.b16 %v1528
        %v1680 = vunpack.c.l.b16 %v1529
        %v1681 = vunpack.c.l.b16 %v1530
        %v1682 = vunpack.c.l.b16 %v1531
        %v1683 = vunpack.c.l.b16 %v1532
        %v1684 = vunpack.c.l.b16 %v1533
        %v1685 = vunpack.c.l.b16 %v1534
        %v1686 = vunpack.c.l.b16 %v1535
        %v1687 = vunpack.c.l.b16 %v1536
        %v1688 = vunpack.c.l.b16 %v1537
        %v1689 = vunpack.c.l.b16 %v1538
        %v1690 = vunpack.c.l.b16 %v1539
        %v1691 = vunpack.c.l.b16 %v1540
        %v1692 = vunpack.c.l.b16 %v1541
        %v1693 = vunpack.c.l.b16 %v1542
        %v1694 = vunpack.c.l.b16 %v1543
        %v1695 = vunpack.c.l.b16 %v1544
        %v1696 = vunpack.c.l.b16 %v1545
        %v1697 = vunpack.c.l.b16 %v1546
        %v1698 = vunpack.c.l.b16 %v1547
        %v1699 = vunpack.c.l.b16 %v1548
        %v1700 = vunpack.c.l.b16 %v1549
        %v1701 = vunpack.c.l.b16 %v1550
        %v1702 = vunpack.c.l.b16 %v1551
        %v1703 = vunpack.c.l.b16 %v1552
        %v1704 = vunpack.c.l.b16 %v1553
        %v1705 = vunpack.c.l.b16 %v1554
        %v1706 = vunpack.c.l.b16 %v1555
        %v1707 = vunpack.c.l.b16 %v1556
        %v1708 = vunpack.c.l.b16 %v1557
        %v1709 = vunpack.c.l.b16 %v1558
        %v1710 = vunpack.c.l.b16 %v1559
        %v1711 = vunpack.c.l.b16 %v1560
        %v1712 = vunpack.c.l.b16 %v1561
        %v1713 = vunpack.c.l.b16 %v1562
        %v1714 = vunpack.c.l.b16 %v1563
        %v1715 = vunpack.c.l.b16 %v1564
        %v1716 = vunpack.c.l.b16 %v1565
        %v1717 = vunpack.c.l.b16 %v1566
        %v1718 = vunpack.c.l.b16 %v1567
        %v1719 = vunpack.c.l.b16 %v1568
        %v1720 = vunpack.c.l.b16 %v1569
        %v1721 = vunpack.c.l.b16 %v1570
        %v1722 = vunpack.c.l.b16 %v1571
        %v1723 = vunpack.c.l.b16 %v1572
        %v1724 = vunpack.c.l.b16 %v1573
        %v1725 = vunpack.c.l.b16 %v1574
        %v1726 = vunpack.c.l.b16 %v1575
        %v1727 = vunpack.c.l.b16 %v1576
        %v1728 = vunpack.c.l.b16 %v1577
        %v1729 = vunpack.c.l.b16 %v1578
        %v1730 = vunpack.c.l.b16 %v1579
        %v1731 = vunpack.c.l.b16 %v1580
        %v1732 = vunpack.c.l.b16 %v1581
        %v1733 = vpack.c.b16 %v1662, %v1661
        %v1734 = vpack.c.b16 %v1664, %v1663
        %v1735 = vpack.c.b16 %v1666, %v1665
        %v1736 = vpack.c.b16 %v1668, %v1667
        %v1737 = vpack.c.b16 %v1670, %v1669
        %v1738 = vpack.c.b16 %v1672, %v1671
        %v1739 = vpack.c.b16 %v1674, %v1673
        %v1740 = vpack.c.b16 %v1676, %v1675
        %v1741 = vpack.c.b16 %v1678, %v1677
        %v1742 = vpack.c.b16 %v1680, %v1679
        %v1743 = vpack.c.b16 %v1682, %v1681
        %v1744 = vpack.c.b16 %v1684, %v1683
        %v1745 = vpack.c.b16 %v1686, %v1685
        %v1746 = vpack.c.b16 %v1688, %v1687
        %v1747 = vpack.c.b16 %v1690, %v1689
        %v1748 = vpack.c.b16 %v1692, %v1691
        %v1749 = vpack.c.b16 %v1694, %v1693
        %v1750 = vpack.c.b16 %v1696, %v1695
        %v1751 = vpack.c.b16 %v1698, %v1697
        %v1752 = vpack.c.b16 %v1700, %v1699
        %v1753 = vpack.c.b16 %v1702, %v1701
        %v1754 = vpack.c.b16 %v1704, %v1703
        %v1755 = vpack.c.b16 %v1706, %v1705
        %v1756 = vpack.c.b16 %v1708, %v1707
        %v1757 = vpack.c.b16 %v1710, %v1709
        %v1758 = vpack.c.b16 %v1712, %v1711
        %v1759 = vpack.c.b16 %v1714, %v1713
        %v1760 = vpack.c.b16 %v1716, %v1715
        %v1761 = vpack.c.b16 %v1718, %v1717
        %v1762 = vpack.c.b16 %v1720, %v1719
        %v1763 = vpack.c.b16 %v1722, %v1721
        %v1764 = vpack.c.b16 %v1724, %v1723
        %v1765 = vpack.c.b16 %v1726, %v1725
        %v1766 = vpack.c.b16 %v1728, %v1727
        %v1767 = vpack.c.b16 %v1730, %v1729
        %v1768 = vpack.c.b16 %v1732, %v1731
        %v1805 = vsel %vm1300, %v1224, 0
        %v1807 = vsel %vm1300, %v1227, 0
        %v1809 = vsel %vm1300, %v1230, 0
        %v1811 = vsel %vm1300, %v1233, 0
        %v1813 = vsel %vm1300, %v1236, 0
        %v1815 = vsel %vm1300, %v1239, 0
        %v1817 = vsel %vm1300, %v1242, 0
        %v1819 = vsel %vm1300, %v1245, 0
        %v1821 = vsel %vm1300, %v1248, 0
        %v1823 = vsel %vm1300, %v1251, 0
        %v1825 = vsel %vm1300, %v1254, 0
        %v1827 = vsel %vm1300, %v1257, 0
        %v1829 = vsel %vm1300, %v1260, 0
        %v1831 = vsel %vm1300, %v1263, 0
        %v1834 = vsel %vm1300, %v1267, 0
        %v1836 = vsel %vm1300, %v1218, 0
        %1838 = vmatprep.subr.bf16.mxu0 0
        %1839 = vmatpush1.bf16.msra.mxu0 %v1740
        %1840 = vmatprep.subr.bf16.mxu0 0
        %1841 = vmatpush1.bf16.msra.mxu0 %v1739
        %1842 = vmatprep.subr.bf16.mxu0 0
        %1843 = vmatpush1.bf16.msra.mxu0 %v1738
        %1844 = vmatprep.subr.bf16.mxu0 0
        %1845 = vmatpush1.bf16.msra.mxu0 %v1737
        %1846 = vmatprep.subr.bf16.mxu0 0
        %1847 = vmatpush1.bf16.msra.mxu0 %v1736
        %1848 = vmatprep.subr.bf16.mxu0 0
        %1849 = vmatpush1.bf16.msra.mxu0 %v1735
        %1850 = vmatprep.subr.bf16.mxu0 0
        %1851 = vmatpush1.bf16.msra.mxu0 %v1734
        %1852 = vmatprep.subr.bf16.mxu0 0
        %1853 = vmatpush1.bf16.msra.mxu0 %v1733
        %1854 = vmatprep.subr.bf16.mxu0 0
        %1855 = vmatpush2.bf16.msra.mxu0 %v1748
        %1856 = vmatprep.subr.bf16.mxu0 0
        %1857 = vmatpush2.bf16.msra.mxu0 %v1747
        %1858 = vmatprep.subr.bf16.mxu0 0
        %1859 = vmatpush2.bf16.msra.mxu0 %v1746
        %1860 = vmatprep.subr.bf16.mxu0 0
        %1861 = vmatpush2.bf16.msra.mxu0 %v1745
        %1862 = vmatprep.subr.bf16.mxu0 0
        %1863 = vmatpush2.bf16.msra.mxu0 %v1744
        %1864 = vmatprep.subr.bf16.mxu0 0
        %1865 = vmatpush2.bf16.msra.mxu0 %v1743
        %1866 = vmatprep.subr.bf16.mxu0 0
        %1867 = vmatpush2.bf16.msra.mxu0 %v1742
        %1868 = vmatprep.subr.bf16.mxu0 0
        %1869 = vmatpush2.bf16.msra.mxu0 %v1741
        %1870 = vmatprep.mubr.bf16.mxu0 %v1350
        %1871 = vmatmul.mubr.bf16.gmra.mxu0 %v1302
        %v1872 = vpop.f32.mrf.mxu0
        %v1873 = vadd.f32 %v1587, %v1872
        %v1874 = vpop.f32.mrf.mxu0
        %v1875 = vpop.f32.mrf.mxu0
        %v1876 = vadd.f32 %v1587, %v1875
        %v1877 = vpop.f32.mrf.mxu0
        %1878 = vmatprep.mubr.bf16.mxu0 %v1353
        %1879 = vmatmul.mubr.bf16.gmra.mxu0 %v1305
        %v1880 = vpop.f32.mrf.mxu0
        %v1881 = vadd.f32 %v1587, %v1880
        %v1882 = vpop.f32.mrf.mxu0
        %v1883 = vpop.f32.mrf.mxu0
        %v1884 = vadd.f32 %v1587, %v1883
        %v1885 = vpop.f32.mrf.mxu0
        %1886 = vmatprep.mubr.bf16.mxu0 %v1356
        %1887 = vmatmul.mubr.bf16.gmra.mxu0 %v1308
        %v1888 = vpop.f32.mrf.mxu0
        %v1889 = vadd.f32 %v1587, %v1888
        %v1890 = vpop.f32.mrf.mxu0
        %v1891 = vpop.f32.mrf.mxu0
        %v1892 = vadd.f32 %v1587, %v1891
        %v1893 = vpop.f32.mrf.mxu0
        %1894 = vmatprep.mubr.bf16.mxu0 %v1359
        %1895 = vmatmul.mubr.bf16.gmra.mxu0 %v1311
        %v1896 = vpop.f32.mrf.mxu0
        %v1897 = vadd.f32 %v1587, %v1896
        %v1898 = vpop.f32.mrf.mxu0
        %v1899 = vpop.f32.mrf.mxu0
        %v1900 = vadd.f32 %v1587, %v1899
        %v1901 = vpop.f32.mrf.mxu0
        %1902 = vmatprep.mubr.bf16.mxu0 %v1362
        %1903 = vmatmul.mubr.bf16.gmra.mxu0 %v1314
        %v1904 = vpop.f32.mrf.mxu0
        %v1905 = vadd.f32 %v1587, %v1904
        %v1906 = vpop.f32.mrf.mxu0
        %v1907 = vpop.f32.mrf.mxu0
        %v1908 = vadd.f32 %v1587, %v1907
        %v1909 = vpop.f32.mrf.mxu0
        %1910 = vmatprep.mubr.bf16.mxu0 %v1365
        %1911 = vmatmul.mubr.bf16.gmra.mxu0 %v1317
        %v1912 = vpop.f32.mrf.mxu0
        %v1913 = vadd.f32 %v1587, %v1912
        %v1914 = vpop.f32.mrf.mxu0
        %v1915 = vpop.f32.mrf.mxu0
        %v1916 = vadd.f32 %v1587, %v1915
        %v1917 = vpop.f32.mrf.mxu0
        %1918 = vmatprep.mubr.bf16.mxu0 %v1368
        %1919 = vmatmul.mubr.bf16.gmra.mxu0 %v1320
        %v1920 = vpop.f32.mrf.mxu0
        %v1921 = vadd.f32 %v1587, %v1920
        %v1922 = vpop.f32.mrf.mxu0
        %v1923 = vpop.f32.mrf.mxu0
        %v1924 = vadd.f32 %v1587, %v1923
        %v1925 = vpop.f32.mrf.mxu0
        %1926 = vmatprep.mubr.bf16.mxu0 %v1371
        %1927 = vmatmul.mubr.bf16.gmra.mxu0 %v1323
        %v1928 = vpop.f32.mrf.mxu0
        %v1929 = vadd.f32 %v1587, %v1928
        %v1930 = vpop.f32.mrf.mxu0
        %v1931 = vpop.f32.mrf.mxu0
        %v1932 = vadd.f32 %v1587, %v1931
        %v1933 = vpop.f32.mrf.mxu0
        %1934 = vmatprep.mubr.bf16.mxu0 %v1374
        %1935 = vmatmul.mubr.bf16.gmra.mxu0 %v1326
        %v1936 = vpop.f32.mrf.mxu0
        %v1937 = vadd.f32 %v1587, %v1936
        %v1938 = vpop.f32.mrf.mxu0
        %v1939 = vpop.f32.mrf.mxu0
        %v1940 = vadd.f32 %v1587, %v1939
        %v1941 = vpop.f32.mrf.mxu0
        %1942 = vmatprep.mubr.bf16.mxu0 %v1377
        %1943 = vmatmul.mubr.bf16.gmra.mxu0 %v1329
        %v1944 = vpop.f32.mrf.mxu0
        %v1945 = vadd.f32 %v1587, %v1944
        %v1946 = vpop.f32.mrf.mxu0
        %v1947 = vpop.f32.mrf.mxu0
        %v1948 = vadd.f32 %v1587, %v1947
        %v1949 = vpop.f32.mrf.mxu0
        %1950 = vmatprep.mubr.bf16.mxu0 %v1380
        %1951 = vmatmul.mubr.bf16.gmra.mxu0 %v1332
        %v1952 = vpop.f32.mrf.mxu0
        %v1953 = vadd.f32 %v1587, %v1952
        %v1954 = vpop.f32.mrf.mxu0
        %v1955 = vpop.f32.mrf.mxu0
        %v1956 = vadd.f32 %v1587, %v1955
        %v1957 = vpop.f32.mrf.mxu0
        %1958 = vmatprep.mubr.bf16.mxu0 %v1383
        %1959 = vmatmul.mubr.bf16.gmra.mxu0 %v1335
        %v1960 = vpop.f32.mrf.mxu0
        %v1961 = vadd.f32 %v1587, %v1960
        %v1962 = vpop.f32.mrf.mxu0
        %v1963 = vpop.f32.mrf.mxu0
        %v1964 = vadd.f32 %v1587, %v1963
        %v1965 = vpop.f32.mrf.mxu0
        %1966 = vmatprep.mubr.bf16.mxu0 %v1386
        %1967 = vmatmul.mubr.bf16.gmra.mxu0 %v1338
        %v1968 = vpop.f32.mrf.mxu0
        %v1969 = vadd.f32 %v1587, %v1968
        %v1970 = vpop.f32.mrf.mxu0
        %v1971 = vpop.f32.mrf.mxu0
        %v1972 = vadd.f32 %v1587, %v1971
        %v1973 = vpop.f32.mrf.mxu0
        %1974 = vmatprep.mubr.bf16.mxu0 %v1389
        %1975 = vmatmul.mubr.bf16.gmra.mxu0 %v1341
        %v1976 = vpop.f32.mrf.mxu0
        %v1977 = vadd.f32 %v1587, %v1976
        %v1978 = vpop.f32.mrf.mxu0
        %v1979 = vpop.f32.mrf.mxu0
        %v1980 = vadd.f32 %v1587, %v1979
        %v1981 = vpop.f32.mrf.mxu0
        %1982 = vmatprep.mubr.bf16.mxu0 %v1392
        %1983 = vmatmul.mubr.bf16.gmra.mxu0 %v1344
        %v1984 = vpop.f32.mrf.mxu0
        %v1985 = vadd.f32 %v1587, %v1984
        %v1986 = vpop.f32.mrf.mxu0
        %v1987 = vpop.f32.mrf.mxu0
        %v1988 = vadd.f32 %v1587, %v1987
        %v1989 = vpop.f32.mrf.mxu0
        %1990 = vmatprep.mubr.bf16.mxu0 %v1395
        %1991 = vmatmul.mubr.bf16.gmra.mxu0 %v1347
        %v1992 = vpop.f32.mrf.mxu0
        %v1993 = vadd.f32 %v1587, %v1992
        %v1994 = vpop.f32.mrf.mxu0
        %v1995 = vpop.f32.mrf.mxu0
        %v1996 = vadd.f32 %v1587, %v1995
        %v1997 = vpop.f32.mrf.mxu0
        %1998 = vdwg.mxu0
        %1999 = vmatprep.subr.bf16.mxu0 0
        %2000 = vmatpush1.bf16.msra.mxu0 %v1756
        %2001 = vmatprep.subr.bf16.mxu0 0
        %2002 = vmatpush1.bf16.msra.mxu0 %v1755
        %2003 = vmatprep.subr.bf16.mxu0 0
        %2004 = vmatpush1.bf16.msra.mxu0 %v1754
        %2005 = vmatprep.subr.bf16.mxu0 0
        %2006 = vmatpush1.bf16.msra.mxu0 %v1753
        %2007 = vmatprep.subr.bf16.mxu0 0
        %2008 = vmatpush1.bf16.msra.mxu0 %v1752
        %2009 = vmatprep.subr.bf16.mxu0 0
        %2010 = vmatpush1.bf16.msra.mxu0 %v1751
        %2011 = vmatprep.subr.bf16.mxu0 0
        %2012 = vmatpush1.bf16.msra.mxu0 %v1750
        %2013 = vmatprep.subr.bf16.mxu0 0
        %2014 = vmatpush1.bf16.msra.mxu0 %v1749
        %2015 = vmatprep.subr.bf16.mxu0 0
        %2016 = vmatpush2.bf16.msra.mxu0 %v1764
        %2017 = vmatprep.subr.bf16.mxu0 0
        %2018 = vmatpush2.bf16.msra.mxu0 %v1763
        %2019 = vmatprep.subr.bf16.mxu0 0
        %2020 = vmatpush2.bf16.msra.mxu0 %v1762
        %2021 = vmatprep.subr.bf16.mxu0 0
        %2022 = vmatpush2.bf16.msra.mxu0 %v1761
        %2023 = vmatprep.subr.bf16.mxu0 0
        %2024 = vmatpush2.bf16.msra.mxu0 %v1760
        %2025 = vmatprep.subr.bf16.mxu0 0
        %2026 = vmatpush2.bf16.msra.mxu0 %v1759
        %2027 = vmatprep.subr.bf16.mxu0 0
        %2028 = vmatpush2.bf16.msra.mxu0 %v1758
        %2029 = vmatprep.subr.bf16.mxu0 0
        %2030 = vmatpush2.bf16.msra.mxu0 %v1757
        %2031 = vmatprep.mubr.bf16.mxu0 %v1448
        %2032 = vmatmul.mubr.bf16.gmra.mxu0 %v1398
        %v2033 = vpop.f32.mrf.mxu0
        %v2034 = vadd.f32 %v1873, %v2033
        %v2035 = vpop.f32.mrf.mxu0
        %v2036 = vpop.f32.mrf.mxu0
        %v2037 = vadd.f32 %v1876, %v2036
        %v2038 = vpop.f32.mrf.mxu0
        %2039 = vmatprep.mubr.bf16.mxu0 %v1452
        %2040 = vmatmul.mubr.bf16.gmra.mxu0 %v1401
        %v2041 = vpop.f32.mrf.mxu0
        %v2042 = vadd.f32 %v1881, %v2041
        %v2043 = vpop.f32.mrf.mxu0
        %v2044 = vpop.f32.mrf.mxu0
        %v2045 = vadd.f32 %v1884, %v2044
        %v2046 = vpop.f32.mrf.mxu0
        %2047 = vmatprep.mubr.bf16.mxu0 %v1456
        %2048 = vmatmul.mubr.bf16.gmra.mxu0 %v1404
        %v2049 = vpop.f32.mrf.mxu0
        %v2050 = vadd.f32 %v1889, %v2049
        %v2051 = vpop.f32.mrf.mxu0
        %v2052 = vpop.f32.mrf.mxu0
        %v2053 = vadd.f32 %v1892, %v2052
        %v2054 = vpop.f32.mrf.mxu0
        %2055 = vmatprep.mubr.bf16.mxu0 %v1460
        %2056 = vmatmul.mubr.bf16.gmra.mxu0 %v1407
        %v2057 = vpop.f32.mrf.mxu0
        %v2058 = vadd.f32 %v1897, %v2057
        %v2059 = vpop.f32.mrf.mxu0
        %v2060 = vpop.f32.mrf.mxu0
        %v2061 = vadd.f32 %v1900, %v2060
        %v2062 = vpop.f32.mrf.mxu0
        %2063 = vmatprep.mubr.bf16.mxu0 %v1464
        %2064 = vmatmul.mubr.bf16.gmra.mxu0 %v1410
        %v2065 = vpop.f32.mrf.mxu0
        %v2066 = vadd.f32 %v1905, %v2065
        %v2067 = vpop.f32.mrf.mxu0
        %v2068 = vpop.f32.mrf.mxu0
        %v2069 = vadd.f32 %v1908, %v2068
        %v2070 = vpop.f32.mrf.mxu0
        %2071 = vmatprep.mubr.bf16.mxu0 %v1468
        %2072 = vmatmul.mubr.bf16.gmra.mxu0 %v1413
        %v2073 = vpop.f32.mrf.mxu0
        %v2074 = vadd.f32 %v1913, %v2073
        %v2075 = vpop.f32.mrf.mxu0
        %v2076 = vpop.f32.mrf.mxu0
        %v2077 = vadd.f32 %v1916, %v2076
        %v2078 = vpop.f32.mrf.mxu0
        %2079 = vmatprep.mubr.bf16.mxu0 %v1472
        %2080 = vmatmul.mubr.bf16.gmra.mxu0 %v1416
        %v2081 = vpop.f32.mrf.mxu0
        %v2082 = vadd.f32 %v1921, %v2081
        %v2083 = vpop.f32.mrf.mxu0
        %v2084 = vpop.f32.mrf.mxu0
        %v2085 = vadd.f32 %v1924, %v2084
        %v2086 = vpop.f32.mrf.mxu0
        %2087 = vmatprep.mubr.bf16.mxu0 %v1476
        %2088 = vmatmul.mubr.bf16.gmra.mxu0 %v1419
        %v2089 = vpop.f32.mrf.mxu0
        %v2090 = vadd.f32 %v1929, %v2089
        %v2091 = vpop.f32.mrf.mxu0
        %v2092 = vpop.f32.mrf.mxu0
        %v2093 = vadd.f32 %v1932, %v2092
        %v2094 = vpop.f32.mrf.mxu0
        %2095 = vmatprep.mubr.bf16.mxu0 %v1480
        %2096 = vmatmul.mubr.bf16.gmra.mxu0 %v1422
        %v2097 = vpop.f32.mrf.mxu0
        %v2098 = vadd.f32 %v1937, %v2097
        %v2099 = vpop.f32.mrf.mxu0
        %v2100 = vpop.f32.mrf.mxu0
        %v2101 = vadd.f32 %v1940, %v2100
        %v2102 = vpop.f32.mrf.mxu0
        %2103 = vmatprep.mubr.bf16.mxu0 %v1484
        %2104 = vmatmul.mubr.bf16.gmra.mxu0 %v1425
        %v2105 = vpop.f32.mrf.mxu0
        %v2106 = vadd.f32 %v1945, %v2105
        %v2107 = vpop.f32.mrf.mxu0
        %v2108 = vpop.f32.mrf.mxu0
        %v2109 = vadd.f32 %v1948, %v2108
        %v2110 = vpop.f32.mrf.mxu0
        %2111 = vmatprep.mubr.bf16.mxu0 %v1488
        %2112 = vmatmul.mubr.bf16.gmra.mxu0 %v1428
        %v2113 = vpop.f32.mrf.mxu0
        %v2114 = vadd.f32 %v1953, %v2113
        %v2115 = vpop.f32.mrf.mxu0
        %v2116 = vpop.f32.mrf.mxu0
        %v2117 = vadd.f32 %v1956, %v2116
        %v2118 = vpop.f32.mrf.mxu0
        %2119 = vmatprep.mubr.bf16.mxu0 %v1492
        %2120 = vmatmul.mubr.bf16.gmra.mxu0 %v1431
        %v2121 = vpop.f32.mrf.mxu0
        %v2122 = vadd.f32 %v1961, %v2121
        %v2123 = vpop.f32.mrf.mxu0
        %v2124 = vpop.f32.mrf.mxu0
        %v2125 = vadd.f32 %v1964, %v2124
        %v2126 = vpop.f32.mrf.mxu0
        %2127 = vmatprep.mubr.bf16.mxu0 %v1496
        %2128 = vmatmul.mubr.bf16.gmra.mxu0 %v1434
        %v2129 = vpop.f32.mrf.mxu0
        %v2130 = vadd.f32 %v1969, %v2129
        %v2131 = vpop.f32.mrf.mxu0
        %v2132 = vpop.f32.mrf.mxu0
        %v2133 = vadd.f32 %v1972, %v2132
        %v2134 = vpop.f32.mrf.mxu0
        %2135 = vmatprep.mubr.bf16.mxu0 %v1500
        %2136 = vmatmul.mubr.bf16.gmra.mxu0 %v1437
        %v2137 = vpop.f32.mrf.mxu0
        %v2138 = vadd.f32 %v1977, %v2137
        %v2139 = vpop.f32.mrf.mxu0
        %v2140 = vpop.f32.mrf.mxu0
        %v2141 = vadd.f32 %v1980, %v2140
        %v2142 = vpop.f32.mrf.mxu0
        %2143 = vmatprep.mubr.bf16.mxu0 %v1504
        %2144 = vmatmul.mubr.bf16.gmra.mxu0 %v1441
        %v2145 = vpop.f32.mrf.mxu0
        %v2146 = vadd.f32 %v1985, %v2145
        %v2147 = vpop.f32.mrf.mxu0
        %v2148 = vpop.f32.mrf.mxu0
        %v2149 = vadd.f32 %v1988, %v2148
        %v2150 = vpop.f32.mrf.mxu0
        %2151 = vmatprep.mubr.bf16.mxu0 %v1508
        %2152 = vmatmul.mubr.bf16.gmra.mxu0 %v1444
        %v2153 = vpop.f32.mrf.mxu0
        %v2154 = vadd.f32 %v1993, %v2153
        %v2155 = vpop.f32.mrf.mxu0
        %v2156 = vpop.f32.mrf.mxu0
        %v2157 = vadd.f32 %v1996, %v2156
        %v2158 = vpop.f32.mrf.mxu0
        %2159 = vdwg.mxu0
        %2160 = vmatprep.subr.bf16.mxu0 0
        %2161 = vmatpush1.bf16.msra.mxu0 0
        %2162 = vmatprep.subr.bf16.mxu0 0
        %2163 = vmatpush1.bf16.msra.mxu0 0
        %2164 = vmatprep.subr.bf16.mxu0 0
        %2165 = vmatpush1.bf16.msra.mxu0 0
        %2166 = vmatprep.subr.bf16.mxu0 0
        %2167 = vmatpush1.bf16.msra.mxu0 0
        %2168 = vmatprep.subr.bf16.mxu0 0
        %2169 = vmatpush1.bf16.msra.mxu0 %v1768
        %2170 = vmatprep.subr.bf16.mxu0 0
        %2171 = vmatpush1.bf16.msra.mxu0 %v1767
        %2172 = vmatprep.subr.bf16.mxu0 0
        %2173 = vmatpush1.bf16.msra.mxu0 %v1766
        %2174 = vmatprep.subr.bf16.mxu0 0
        %2175 = vmatpush1.bf16.msra.mxu0 %v1765
        %2176 = vmatprep.subr.bf16.mxu0 0
        %2177 = vmatpush2.bf16.msra.mxu0 0
        %2178 = vmatprep.subr.bf16.mxu0 0
        %2179 = vmatpush2.bf16.msra.mxu0 0
        %2180 = vmatprep.subr.bf16.mxu0 0
        %2181 = vmatpush2.bf16.msra.mxu0 0
        %2182 = vmatprep.subr.bf16.mxu0 0
        %2183 = vmatpush2.bf16.msra.mxu0 0
        %2184 = vmatprep.subr.bf16.mxu0 0
        %2185 = vmatpush2.bf16.msra.mxu0 0
        %2186 = vmatprep.subr.bf16.mxu0 0
        %2187 = vmatpush2.bf16.msra.mxu0 0
        %2188 = vmatprep.subr.bf16.mxu0 0
        %2189 = vmatpush2.bf16.msra.mxu0 0
        %2190 = vmatprep.subr.bf16.mxu0 0
        %2191 = vmatpush2.bf16.msra.mxu0 0
        %2192 = vmatprep.mubr.bf16.mxu0 0
        %2193 = vmatmul.mubr.bf16.gmra.mxu0 %v1805
        %v2194 = vpop.f32.mrf.mxu0
        %v2195 = vadd.f32 %v2034, %v2194
        %v2196 = vpop.f32.mrf.mxu0
        %v2197 = vpop.f32.mrf.mxu0
        %v2198 = vadd.f32 %v2037, %v2197
        %v2199 = vpop.f32.mrf.mxu0
        %2200 = vmatprep.mubr.bf16.mxu0 0
        %2201 = vmatmul.mubr.bf16.gmra.mxu0 %v1807
        %v2202 = vpop.f32.mrf.mxu0
        %v2203 = vadd.f32 %v2042, %v2202
        %v2204 = vpop.f32.mrf.mxu0
        %v2205 = vpop.f32.mrf.mxu0
        %v2206 = vadd.f32 %v2045, %v2205
        %v2207 = vpop.f32.mrf.mxu0
        %2208 = vmatprep.mubr.bf16.mxu0 0
        %2209 = vmatmul.mubr.bf16.gmra.mxu0 %v1809
        %v2210 = vpop.f32.mrf.mxu0
        %v2211 = vadd.f32 %v2050, %v2210
        %v2212 = vpop.f32.mrf.mxu0
        %v2213 = vpop.f32.mrf.mxu0
        %v2214 = vadd.f32 %v2053, %v2213
        %v2215 = vpop.f32.mrf.mxu0
        %2216 = vmatprep.mubr.bf16.mxu0 0
        %2217 = vmatmul.mubr.bf16.gmra.mxu0 %v1811
        %v2218 = vpop.f32.mrf.mxu0
        %v2219 = vadd.f32 %v2058, %v2218
        %v2220 = vpop.f32.mrf.mxu0
        %v2221 = vpop.f32.mrf.mxu0
        %v2222 = vadd.f32 %v2061, %v2221
        %v2223 = vpop.f32.mrf.mxu0
        %2224 = vmatprep.mubr.bf16.mxu0 0
        %2225 = vmatmul.mubr.bf16.gmra.mxu0 %v1813
        %v2226 = vpop.f32.mrf.mxu0
        %v2227 = vadd.f32 %v2066, %v2226
        %v2228 = vpop.f32.mrf.mxu0
        %v2229 = vpop.f32.mrf.mxu0
        %v2230 = vadd.f32 %v2069, %v2229
        %v2231 = vpop.f32.mrf.mxu0
        %2232 = vmatprep.mubr.bf16.mxu0 0
        %2233 = vmatmul.mubr.bf16.gmra.mxu0 %v1815
        %v2234 = vpop.f32.mrf.mxu0
        %v2235 = vadd.f32 %v2074, %v2234
        %v2236 = vpop.f32.mrf.mxu0
        %v2237 = vpop.f32.mrf.mxu0
        %v2238 = vadd.f32 %v2077, %v2237
        %v2239 = vpop.f32.mrf.mxu0
        %2240 = vmatprep.mubr.bf16.mxu0 0
        %2241 = vmatmul.mubr.bf16.gmra.mxu0 %v1817
        %v2242 = vpop.f32.mrf.mxu0
        %v2243 = vadd.f32 %v2082, %v2242
        %v2244 = vpop.f32.mrf.mxu0
        %v2245 = vpop.f32.mrf.mxu0
        %v2246 = vadd.f32 %v2085, %v2245
        %v2247 = vpop.f32.mrf.mxu0
        %2248 = vmatprep.mubr.bf16.mxu0 0
        %2249 = vmatmul.mubr.bf16.gmra.mxu0 %v1819
        %v2250 = vpop.f32.mrf.mxu0
        %v2251 = vadd.f32 %v2090, %v2250
        %v2252 = vpop.f32.mrf.mxu0
        %v2253 = vpop.f32.mrf.mxu0
        %v2254 = vadd.f32 %v2093, %v2253
        %v2255 = vpop.f32.mrf.mxu0
        %2256 = vmatprep.mubr.bf16.mxu0 0
        %2257 = vmatmul.mubr.bf16.gmra.mxu0 %v1821
        %v2258 = vpop.f32.mrf.mxu0
        %v2259 = vadd.f32 %v2098, %v2258
        %v2260 = vpop.f32.mrf.mxu0
        %v2261 = vpop.f32.mrf.mxu0
        %v2262 = vadd.f32 %v2101, %v2261
        %v2263 = vpop.f32.mrf.mxu0
        %2264 = vmatprep.mubr.bf16.mxu0 0
        %2265 = vmatmul.mubr.bf16.gmra.mxu0 %v1823
        %v2266 = vpop.f32.mrf.mxu0
        %v2267 = vadd.f32 %v2106, %v2266
        %v2268 = vpop.f32.mrf.mxu0
        %v2269 = vpop.f32.mrf.mxu0
        %v2270 = vadd.f32 %v2109, %v2269
        %v2271 = vpop.f32.mrf.mxu0
        %2272 = vmatprep.mubr.bf16.mxu0 0
        %2273 = vmatmul.mubr.bf16.gmra.mxu0 %v1825
        %v2274 = vpop.f32.mrf.mxu0
        %v2275 = vadd.f32 %v2114, %v2274
        %v2276 = vpop.f32.mrf.mxu0
        %v2277 = vpop.f32.mrf.mxu0
        %v2278 = vadd.f32 %v2117, %v2277
        %v2279 = vpop.f32.mrf.mxu0
        %2280 = vmatprep.mubr.bf16.mxu0 0
        %2281 = vmatmul.mubr.bf16.gmra.mxu0 %v1827
        %v2282 = vpop.f32.mrf.mxu0
        %v2283 = vadd.f32 %v2122, %v2282
        %v2284 = vpop.f32.mrf.mxu0
        %v2285 = vpop.f32.mrf.mxu0
        %v2286 = vadd.f32 %v2125, %v2285
        %v2287 = vpop.f32.mrf.mxu0
        %2288 = vmatprep.mubr.bf16.mxu0 0
        %2289 = vmatmul.mubr.bf16.gmra.mxu0 %v1829
        %v2290 = vpop.f32.mrf.mxu0
        %v2291 = vadd.f32 %v2130, %v2290
        %v2292 = vpop.f32.mrf.mxu0
        %v2293 = vpop.f32.mrf.mxu0
        %v2294 = vadd.f32 %v2133, %v2293
        %v2295 = vpop.f32.mrf.mxu0
        %2296 = vmatprep.mubr.bf16.mxu0 0
        %2297 = vmatmul.mubr.bf16.gmra.mxu0 %v1831
        %v2298 = vpop.f32.mrf.mxu0
        %v2299 = vadd.f32 %v2138, %v2298
        %v2300 = vpop.f32.mrf.mxu0
        %v2301 = vpop.f32.mrf.mxu0
        %v2302 = vadd.f32 %v2141, %v2301
        %v2303 = vpop.f32.mrf.mxu0
        %2304 = vmatprep.mubr.bf16.mxu0 0
        %2305 = vmatmul.mubr.bf16.gmra.mxu0 %v1834
        %v2306 = vpop.f32.mrf.mxu0
        %v2307 = vadd.f32 %v2146, %v2306
        %v2308 = vpop.f32.mrf.mxu0
        %v2309 = vpop.f32.mrf.mxu0
        %v2310 = vadd.f32 %v2149, %v2309
        %v2311 = vpop.f32.mrf.mxu0
        %2312 = vmatprep.mubr.bf16.mxu0 0
        %2313 = vmatmul.mubr.bf16.gmra.mxu0 %v1836
        %v2314 = vpop.f32.mrf.mxu0
        %v2315 = vadd.f32 %v2154, %v2314
        %v2316 = vpop.f32.mrf.mxu0
        %v2317 = vpop.f32.mrf.mxu0
        %v2318 = vadd.f32 %v2157, %v2317
        %v2319 = vpop.f32.mrf.mxu0
        %2320 = vdwg.mxu0
        %v2321 = vld [vmem:[%s348 + $0x4] sm:$0x1]
        %v2322 = vlaneseq
        %v2323 = vshrl.u32 %v2322, 7
        %v2324 = vsub.s32 0, %v2323
        %v2325 = vrot.slane %v2321, %v2324
        %v2326 = vmul.f32 %v2195, %v2325
        %v2327 = vmul.f32 %v2198, %v2325
        %v2328 = vmul.f32 %v2203, %v2325
        %v2329 = vmul.f32 %v2206, %v2325
        %v2330 = vmul.f32 %v2211, %v2325
        %v2331 = vmul.f32 %v2214, %v2325
        %v2332 = vmul.f32 %v2219, %v2325
        %v2333 = vmul.f32 %v2222, %v2325
        %v2334 = vmul.f32 %v2227, %v2325
        %v2335 = vmul.f32 %v2230, %v2325
        %v2336 = vmul.f32 %v2235, %v2325
        %v2337 = vmul.f32 %v2238, %v2325
        %v2338 = vmul.f32 %v2243, %v2325
        %v2339 = vmul.f32 %v2246, %v2325
        %v2340 = vmul.f32 %v2251, %v2325
        %v2341 = vmul.f32 %v2254, %v2325
        %v2342 = vmul.f32 %v2259, %v2325
        %v2343 = vmul.f32 %v2262, %v2325
        %v2344 = vmul.f32 %v2267, %v2325
        %v2345 = vmul.f32 %v2270, %v2325
        %v2346 = vmul.f32 %v2275, %v2325
        %v2347 = vmul.f32 %v2278, %v2325
        %v2348 = vmul.f32 %v2283, %v2325
        %v2349 = vmul.f32 %v2286, %v2325
        %v2350 = vmul.f32 %v2291, %v2325
        %v2351 = vmul.f32 %v2294, %v2325
        %v2352 = vmul.f32 %v2299, %v2325
        %v2353 = vmul.f32 %v2302, %v2325
        %v2354 = vmul.f32 %v2307, %v2325
        %v2355 = vmul.f32 %v2310, %v2325
        %v2356 = vmul.f32 %v2315, %v2325
        %v2357 = vmul.f32 %v2318, %v2325
        %v2358 = vld [vmem:[%s348 + $0x5] sm:$0x1]
        %v2359 = vlaneseq
        %v2360 = vshrl.u32 %v2359, 7
        %v2361 = vsub.s32 0, %v2360
        %v2362 = vrot.slane %v2358, %v2361
        %v2363 = vadd.f32 %v2326, %v2362
        %v2364 = vadd.f32 %v2327, %v2362
        %v2365 = vadd.f32 %v2328, %v2362
        %v2366 = vadd.f32 %v2329, %v2362
        %v2367 = vadd.f32 %v2330, %v2362
        %v2368 = vadd.f32 %v2331, %v2362
        %v2369 = vadd.f32 %v2332, %v2362
        %v2370 = vadd.f32 %v2333, %v2362
        %v2371 = vadd.f32 %v2334, %v2362
        %v2372 = vadd.f32 %v2335, %v2362
        %v2373 = vadd.f32 %v2336, %v2362
        %v2374 = vadd.f32 %v2337, %v2362
        %v2375 = vadd.f32 %v2338, %v2362
        %v2376 = vadd.f32 %v2339, %v2362
        %v2377 = vadd.f32 %v2340, %v2362
        %v2378 = vadd.f32 %v2341, %v2362
        %v2379 = vadd.f32 %v2342, %v2362
        %v2380 = vadd.f32 %v2343, %v2362
        %v2381 = vadd.f32 %v2344, %v2362
        %v2382 = vadd.f32 %v2345, %v2362
        %v2383 = vadd.f32 %v2346, %v2362
        %v2384 = vadd.f32 %v2347, %v2362
        %v2385 = vadd.f32 %v2348, %v2362
        %v2386 = vadd.f32 %v2349, %v2362
        %v2387 = vadd.f32 %v2350, %v2362
        %v2388 = vadd.f32 %v2351, %v2362
        %v2389 = vadd.f32 %v2352, %v2362
        %v2390 = vadd.f32 %v2353, %v2362
        %v2391 = vadd.f32 %v2354, %v2362
        %v2392 = vadd.f32 %v2355, %v2362
        %v2393 = vadd.f32 %v2356, %v2362
        %v2394 = vadd.f32 %v2357, %v2362
        %vm2395 = vcmp.ge.f32.partialorder %v2363, 0.0
        %vm2396 = vcmp.ge.f32.partialorder %v2364, 0.0
        %vm2397 = vcmp.ge.f32.partialorder %v2365, 0.0
        %vm2398 = vcmp.ge.f32.partialorder %v2366, 0.0
        %vm2399 = vcmp.ge.f32.partialorder %v2367, 0.0
        %vm2400 = vcmp.ge.f32.partialorder %v2368, 0.0
        %vm2401 = vcmp.ge.f32.partialorder %v2369, 0.0
        %vm2402 = vcmp.ge.f32.partialorder %v2370, 0.0
        %vm2403 = vcmp.ge.f32.partialorder %v2371, 0.0
        %vm2404 = vcmp.ge.f32.partialorder %v2372, 0.0
        %vm2405 = vcmp.ge.f32.partialorder %v2373, 0.0
        %vm2406 = vcmp.ge.f32.partialorder %v2374, 0.0
        %vm2407 = vcmp.ge.f32.partialorder %v2375, 0.0
        %vm2408 = vcmp.ge.f32.partialorder %v2376, 0.0
        %vm2409 = vcmp.ge.f32.partialorder %v2377, 0.0
        %vm2410 = vcmp.ge.f32.partialorder %v2378, 0.0
        %vm2411 = vcmp.ge.f32.partialorder %v2379, 0.0
        %vm2412 = vcmp.ge.f32.partialorder %v2380, 0.0
        %vm2413 = vcmp.ge.f32.partialorder %v2381, 0.0
        %vm2414 = vcmp.ge.f32.partialorder %v2382, 0.0
        %vm2415 = vcmp.ge.f32.partialorder %v2383, 0.0
        %vm2416 = vcmp.ge.f32.partialorder %v2384, 0.0
        %vm2417 = vcmp.ge.f32.partialorder %v2385, 0.0
        %vm2418 = vcmp.ge.f32.partialorder %v2386, 0.0
        %vm2419 = vcmp.ge.f32.partialorder %v2387, 0.0
        %vm2420 = vcmp.ge.f32.partialorder %v2388, 0.0
        %vm2421 = vcmp.ge.f32.partialorder %v2389, 0.0
        %vm2422 = vcmp.ge.f32.partialorder %v2390, 0.0
        %vm2423 = vcmp.ge.f32.partialorder %v2391, 0.0
        %vm2424 = vcmp.ge.f32.partialorder %v2392, 0.0
        %vm2425 = vcmp.ge.f32.partialorder %v2393, 0.0
        %vm2426 = vcmp.ge.f32.partialorder %v2394, 0.0
        %v2427 = vmul.f32 %v2363, 0.2
        %v2428 = vmul.f32 %v2364, 0.2
        %v2429 = vmul.f32 %v2365, 0.2
        %v2430 = vmul.f32 %v2366, 0.2
        %v2431 = vmul.f32 %v2367, 0.2
        %v2432 = vmul.f32 %v2368, 0.2
        %v2433 = vmul.f32 %v2369, 0.2
        %v2434 = vmul.f32 %v2370, 0.2
        %v2435 = vmul.f32 %v2371, 0.2
        %v2436 = vmul.f32 %v2372, 0.2
        %v2437 = vmul.f32 %v2373, 0.2
        %v2438 = vmul.f32 %v2374, 0.2
        %v2439 = vmul.f32 %v2375, 0.2
        %v2440 = vmul.f32 %v2376, 0.2
        %v2441 = vmul.f32 %v2377, 0.2
        %v2442 = vmul.f32 %v2378, 0.2
        %v2443 = vmul.f32 %v2379, 0.2
        %v2444 = vmul.f32 %v2380, 0.2
        %v2445 = vmul.f32 %v2381, 0.2
        %v2446 = vmul.f32 %v2382, 0.2
        %v2447 = vmul.f32 %v2383, 0.2
        %v2448 = vmul.f32 %v2384, 0.2
        %v2449 = vmul.f32 %v2385, 0.2
        %v2450 = vmul.f32 %v2386, 0.2
        %v2451 = vmul.f32 %v2387, 0.2
        %v2452 = vmul.f32 %v2388, 0.2
        %v2453 = vmul.f32 %v2389, 0.2
        %v2454 = vmul.f32 %v2390, 0.2
        %v2455 = vmul.f32 %v2391, 0.2
        %v2456 = vmul.f32 %v2392, 0.2
        %v2457 = vmul.f32 %v2393, 0.2
        %v2458 = vmul.f32 %v2394, 0.2
        %v2459 = vsel %vm2395, %v2363, %v2427
        %v2460 = vsel %vm2396, %v2364, %v2428
        %v2461 = vsel %vm2397, %v2365, %v2429
        %v2462 = vsel %vm2398, %v2366, %v2430
        %v2463 = vsel %vm2399, %v2367, %v2431
        %v2464 = vsel %vm2400, %v2368, %v2432
        %v2465 = vsel %vm2401, %v2369, %v2433
        %v2466 = vsel %vm2402, %v2370, %v2434
        %v2467 = vsel %vm2403, %v2371, %v2435
        %v2468 = vsel %vm2404, %v2372, %v2436
        %v2469 = vsel %vm2405, %v2373, %v2437
        %v2470 = vsel %vm2406, %v2374, %v2438
        %v2471 = vsel %vm2407, %v2375, %v2439
        %v2472 = vsel %vm2408, %v2376, %v2440
        %v2473 = vsel %vm2409, %v2377, %v2441
        %v2474 = vsel %vm2410, %v2378, %v2442
        %v2475 = vsel %vm2411, %v2379, %v2443
        %v2476 = vsel %vm2412, %v2380, %v2444
        %v2477 = vsel %vm2413, %v2381, %v2445
        %v2478 = vsel %vm2414, %v2382, %v2446
        %v2479 = vsel %vm2415, %v2383, %v2447
        %v2480 = vsel %vm2416, %v2384, %v2448
        %v2481 = vsel %vm2417, %v2385, %v2449
        %v2482 = vsel %vm2418, %v2386, %v2450
        %v2483 = vsel %vm2419, %v2387, %v2451
        %v2484 = vsel %vm2420, %v2388, %v2452
        %v2485 = vsel %vm2421, %v2389, %v2453
        %v2486 = vsel %vm2422, %v2390, %v2454
        %v2487 = vsel %vm2423, %v2391, %v2455
        %v2488 = vsel %vm2424, %v2392, %v2456
        %v2489 = vsel %vm2425, %v2393, %v2457
        %v2490 = vsel %vm2426, %v2394, %v2458
        %v2491 = vld [vmem:[%s348 + $0x6] sm:$0x1]
        %v2492 = vlaneseq
        %v2493 = vshrl.u32 %v2492, 7
        %v2494 = vsub.s32 0, %v2493
        %v2495 = vrot.slane %v2491, %v2494
        %v2496 = vmul.f32 %v2459, %v2495
        %v2497 = vmul.f32 %v2460, %v2495
        %v2498 = vmul.f32 %v2461, %v2495
        %v2499 = vmul.f32 %v2462, %v2495
        %v2500 = vmul.f32 %v2463, %v2495
        %v2501 = vmul.f32 %v2464, %v2495
        %v2502 = vmul.f32 %v2465, %v2495
        %v2503 = vmul.f32 %v2466, %v2495
        %v2504 = vmul.f32 %v2467, %v2495
        %v2505 = vmul.f32 %v2468, %v2495
        %v2506 = vmul.f32 %v2469, %v2495
        %v2507 = vmul.f32 %v2470, %v2495
        %v2508 = vmul.f32 %v2471, %v2495
        %v2509 = vmul.f32 %v2472, %v2495
        %v2510 = vmul.f32 %v2473, %v2495
        %v2511 = vmul.f32 %v2474, %v2495
        %v2512 = vmul.f32 %v2475, %v2495
        %v2513 = vmul.f32 %v2476, %v2495
        %v2514 = vmul.f32 %v2477, %v2495
        %v2515 = vmul.f32 %v2478, %v2495
        %v2516 = vmul.f32 %v2479, %v2495
        %v2517 = vmul.f32 %v2480, %v2495
        %v2518 = vmul.f32 %v2481, %v2495
        %v2519 = vmul.f32 %v2482, %v2495
        %v2520 = vmul.f32 %v2483, %v2495
        %v2521 = vmul.f32 %v2484, %v2495
        %v2522 = vmul.f32 %v2485, %v2495
        %v2523 = vmul.f32 %v2486, %v2495
        %v2524 = vmul.f32 %v2487, %v2495
        %v2525 = vmul.f32 %v2488, %v2495
        %v2526 = vmul.f32 %v2489, %v2495
        %v2527 = vmul.f32 %v2490, %v2495
        %v2528 = vld [vmem:[%s348 + $0x7] sm:$0x1]
        %v2529 = vlaneseq
        %v2530 = vshrl.u32 %v2529, 7
        %v2531 = vsub.s32 0, %v2530
        %v2532 = vrot.slane %v2528, %v2531
        %v2533 = vadd.f32 %v2496, %v2532
        %v2534 = vadd.f32 %v2497, %v2532
        %v2535 = vadd.f32 %v2498, %v2532
        %v2536 = vadd.f32 %v2499, %v2532
        %v2537 = vadd.f32 %v2500, %v2532
        %v2538 = vadd.f32 %v2501, %v2532
        %v2539 = vadd.f32 %v2502, %v2532
        %v2540 = vadd.f32 %v2503, %v2532
        %v2541 = vadd.f32 %v2504, %v2532
        %v2542 = vadd.f32 %v2505, %v2532
        %v2543 = vadd.f32 %v2506, %v2532
        %v2544 = vadd.f32 %v2507, %v2532
        %v2545 = vadd.f32 %v2508, %v2532
        %v2546 = vadd.f32 %v2509, %v2532
        %v2547 = vadd.f32 %v2510, %v2532
        %v2548 = vadd.f32 %v2511, %v2532
        %v2549 = vadd.f32 %v2512, %v2532
        %v2550 = vadd.f32 %v2513, %v2532
        %v2551 = vadd.f32 %v2514, %v2532
        %v2552 = vadd.f32 %v2515, %v2532
        %v2553 = vadd.f32 %v2516, %v2532
        %v2554 = vadd.f32 %v2517, %v2532
        %v2555 = vadd.f32 %v2518, %v2532
        %v2556 = vadd.f32 %v2519, %v2532
        %v2557 = vadd.f32 %v2520, %v2532
        %v2558 = vadd.f32 %v2521, %v2532
        %v2559 = vadd.f32 %v2522, %v2532
        %v2560 = vadd.f32 %v2523, %v2532
        %v2561 = vadd.f32 %v2524, %v2532
        %v2562 = vadd.f32 %v2525, %v2532
        %v2563 = vadd.f32 %v2526, %v2532
        %v2564 = vadd.f32 %v2527, %v2532
        %vm2565 = vcmp.ge.f32.partialorder %v2533, 0.0
        %vm2566 = vcmp.ge.f32.partialorder %v2534, 0.0
        %vm2567 = vcmp.ge.f32.partialorder %v2535, 0.0
        %vm2568 = vcmp.ge.f32.partialorder %v2536, 0.0
        %vm2569 = vcmp.ge.f32.partialorder %v2537, 0.0
        %vm2570 = vcmp.ge.f32.partialorder %v2538, 0.0
        %vm2571 = vcmp.ge.f32.partialorder %v2539, 0.0
        %vm2572 = vcmp.ge.f32.partialorder %v2540, 0.0
        %vm2573 = vcmp.ge.f32.partialorder %v2541, 0.0
        %vm2574 = vcmp.ge.f32.partialorder %v2542, 0.0
        %vm2575 = vcmp.ge.f32.partialorder %v2543, 0.0
        %vm2576 = vcmp.ge.f32.partialorder %v2544, 0.0
        %vm2577 = vcmp.ge.f32.partialorder %v2545, 0.0
        %vm2578 = vcmp.ge.f32.partialorder %v2546, 0.0
        %vm2579 = vcmp.ge.f32.partialorder %v2547, 0.0
        %vm2580 = vcmp.ge.f32.partialorder %v2548, 0.0
        %vm2581 = vcmp.ge.f32.partialorder %v2549, 0.0
        %vm2582 = vcmp.ge.f32.partialorder %v2550, 0.0
        %vm2583 = vcmp.ge.f32.partialorder %v2551, 0.0
        %vm2584 = vcmp.ge.f32.partialorder %v2552, 0.0
        %vm2585 = vcmp.ge.f32.partialorder %v2553, 0.0
        %vm2586 = vcmp.ge.f32.partialorder %v2554, 0.0
        %vm2587 = vcmp.ge.f32.partialorder %v2555, 0.0
        %vm2588 = vcmp.ge.f32.partialorder %v2556, 0.0
        %vm2589 = vcmp.ge.f32.partialorder %v2557, 0.0
        %vm2590 = vcmp.ge.f32.partialorder %v2558, 0.0
        %vm2591 = vcmp.ge.f32.partialorder %v2559, 0.0
        %vm2592 = vcmp.ge.f32.partialorder %v2560, 0.0
        %vm2593 = vcmp.ge.f32.partialorder %v2561, 0.0
        %vm2594 = vcmp.ge.f32.partialorder %v2562, 0.0
        %vm2595 = vcmp.ge.f32.partialorder %v2563, 0.0
        %vm2596 = vcmp.ge.f32.partialorder %v2564, 0.0
        %v2597 = vmul.f32 %v2533, 0.2
        %v2598 = vmul.f32 %v2534, 0.2
        %v2599 = vmul.f32 %v2535, 0.2
        %v2600 = vmul.f32 %v2536, 0.2
        %v2601 = vmul.f32 %v2537, 0.2
        %v2602 = vmul.f32 %v2538, 0.2
        %v2603 = vmul.f32 %v2539, 0.2
        %v2604 = vmul.f32 %v2540, 0.2
        %v2605 = vmul.f32 %v2541, 0.2
        %v2606 = vmul.f32 %v2542, 0.2
        %v2607 = vmul.f32 %v2543, 0.2
        %v2608 = vmul.f32 %v2544, 0.2
        %v2609 = vmul.f32 %v2545, 0.2
        %v2610 = vmul.f32 %v2546, 0.2
        %v2611 = vmul.f32 %v2547, 0.2
        %v2612 = vmul.f32 %v2548, 0.2
        %v2613 = vmul.f32 %v2549, 0.2
        %v2614 = vmul.f32 %v2550, 0.2
        %v2615 = vmul.f32 %v2551, 0.2
        %v2616 = vmul.f32 %v2552, 0.2
        %v2617 = vmul.f32 %v2553, 0.2
        %v2618 = vmul.f32 %v2554, 0.2
        %v2619 = vmul.f32 %v2555, 0.2
        %v2620 = vmul.f32 %v2556, 0.2
        %v2621 = vmul.f32 %v2557, 0.2
        %v2622 = vmul.f32 %v2558, 0.2
        %v2623 = vmul.f32 %v2559, 0.2
        %v2624 = vmul.f32 %v2560, 0.2
        %v2625 = vmul.f32 %v2561, 0.2
        %v2626 = vmul.f32 %v2562, 0.2
        %v2627 = vmul.f32 %v2563, 0.2
        %v2628 = vmul.f32 %v2564, 0.2
        %v2629 = vsel %vm2565, %v2533, %v2597
        %v2630 = vsel %vm2566, %v2534, %v2598
        %v2631 = vsel %vm2567, %v2535, %v2599
        %v2632 = vsel %vm2568, %v2536, %v2600
        %v2633 = vsel %vm2569, %v2537, %v2601
        %v2634 = vsel %vm2570, %v2538, %v2602
        %v2635 = vsel %vm2571, %v2539, %v2603
        %v2636 = vsel %vm2572, %v2540, %v2604
        %v2637 = vsel %vm2573, %v2541, %v2605
        %v2638 = vsel %vm2574, %v2542, %v2606
        %v2639 = vsel %vm2575, %v2543, %v2607
        %v2640 = vsel %vm2576, %v2544, %v2608
        %v2641 = vsel %vm2577, %v2545, %v2609
        %v2642 = vsel %vm2578, %v2546, %v2610
        %v2643 = vsel %vm2579, %v2547, %v2611
        %v2644 = vsel %vm2580, %v2548, %v2612
        %v2645 = vsel %vm2581, %v2549, %v2613
        %v2646 = vsel %vm2582, %v2550, %v2614
        %v2647 = vsel %vm2583, %v2551, %v2615
        %v2648 = vsel %vm2584, %v2552, %v2616
        %v2649 = vsel %vm2585, %v2553, %v2617
        %v2650 = vsel %vm2586, %v2554, %v2618
        %v2651 = vsel %vm2587, %v2555, %v2619
        %v2652 = vsel %vm2588, %v2556, %v2620
        %v2653 = vsel %vm2589, %v2557, %v2621
        %v2654 = vsel %vm2590, %v2558, %v2622
        %v2655 = vsel %vm2591, %v2559, %v2623
        %v2656 = vsel %vm2592, %v2560, %v2624
        %v2657 = vsel %vm2593, %v2561, %v2625
        %v2658 = vsel %vm2594, %v2562, %v2626
        %v2659 = vsel %vm2595, %v2563, %v2627
        %v2660 = vsel %vm2596, %v2564, %v2628
        %v2661 = vpack.c.bf16 %v2630, %v2629
        %v2662 = vpack.c.bf16 %v2632, %v2631
        %v2663 = vpack.c.bf16 %v2634, %v2633
        %v2664 = vpack.c.bf16 %v2636, %v2635
        %v2665 = vpack.c.bf16 %v2638, %v2637
        %v2666 = vpack.c.bf16 %v2640, %v2639
        %v2667 = vpack.c.bf16 %v2642, %v2641
        %v2668 = vpack.c.bf16 %v2644, %v2643
        %v2669 = vpack.c.bf16 %v2646, %v2645
        %v2670 = vpack.c.bf16 %v2648, %v2647
        %v2671 = vpack.c.bf16 %v2650, %v2649
        %v2672 = vpack.c.bf16 %v2652, %v2651
        %v2673 = vpack.c.bf16 %v2654, %v2653
        %v2674 = vpack.c.bf16 %v2656, %v2655
        %v2675 = vpack.c.bf16 %v2658, %v2657
        %v2676 = vpack.c.bf16 %v2660, %v2659
        %v2678 = vshrl.u32 %v2661, 16
        %v2680 = vrot.slane %v2678, 7
        %v2681 = vshll.u32 %v2661, 16
        %v2683 = vor.u32 %v2680, %v2681
        %v2685 = vshrl.u32 %v2662, 16
        %v2687 = vrot.slane %v2685, 7
        %v2688 = vshll.u32 %v2662, 16
        %v2690 = vor.u32 %v2687, %v2688
        %v2692 = vshrl.u32 %v2663, 16
        %v2694 = vrot.slane %v2692, 7
        %v2695 = vshll.u32 %v2663, 16
        %v2697 = vor.u32 %v2694, %v2695
        %v2699 = vshrl.u32 %v2664, 16
        %v2701 = vrot.slane %v2699, 7
        %v2702 = vshll.u32 %v2664, 16
        %v2704 = vor.u32 %v2701, %v2702
        %v2706 = vshrl.u32 %v2665, 16
        %v2708 = vrot.slane %v2706, 7
        %v2709 = vshll.u32 %v2665, 16
        %v2711 = vor.u32 %v2708, %v2709
        %v2713 = vshrl.u32 %v2666, 16
        %v2715 = vrot.slane %v2713, 7
        %v2716 = vshll.u32 %v2666, 16
        %v2718 = vor.u32 %v2715, %v2716
        %v2720 = vshrl.u32 %v2667, 16
        %v2722 = vrot.slane %v2720, 7
        %v2723 = vshll.u32 %v2667, 16
        %v2725 = vor.u32 %v2722, %v2723
        %v2727 = vshrl.u32 %v2668, 16
        %v2729 = vrot.slane %v2727, 7
        %v2730 = vshll.u32 %v2668, 16
        %v2732 = vor.u32 %v2729, %v2730
        %v2734 = vshrl.u32 %v2669, 16
        %v2736 = vrot.slane %v2734, 7
        %v2737 = vshll.u32 %v2669, 16
        %v2739 = vor.u32 %v2736, %v2737
        %v2741 = vshrl.u32 %v2670, 16
        %v2743 = vrot.slane %v2741, 7
        %v2744 = vshll.u32 %v2670, 16
        %v2746 = vor.u32 %v2743, %v2744
        %v2748 = vshrl.u32 %v2671, 16
        %v2750 = vrot.slane %v2748, 7
        %v2751 = vshll.u32 %v2671, 16
        %v2753 = vor.u32 %v2750, %v2751
        %v2755 = vshrl.u32 %v2672, 16
        %v2757 = vrot.slane %v2755, 7
        %v2758 = vshll.u32 %v2672, 16
        %v2760 = vor.u32 %v2757, %v2758
        %v2762 = vshrl.u32 %v2673, 16
        %v2764 = vrot.slane %v2762, 7
        %v2765 = vshll.u32 %v2673, 16
        %v2767 = vor.u32 %v2764, %v2765
        %v2769 = vshrl.u32 %v2674, 16
        %v2771 = vrot.slane %v2769, 7
        %v2772 = vshll.u32 %v2674, 16
        %v2774 = vor.u32 %v2771, %v2772
        %v2776 = vshrl.u32 %v2675, 16
        %v2778 = vrot.slane %v2776, 7
        %v2779 = vshll.u32 %v2675, 16
        %v2781 = vor.u32 %v2778, %v2779
        %v2783 = vshrl.u32 %v2676, 16
        %v2785 = vrot.slane %v2783, 7
        %v2786 = vshll.u32 %v2676, 16
        %v2788 = vor.u32 %v2785, %v2786
        %v2821 = vsel %vm884, 0, %v2683
        %v2822 = vsel %vm884, 0, %v2690
        %v2823 = vsel %vm884, 0, %v2697
        %v2824 = vsel %vm884, 0, %v2704
        %v2825 = vsel %vm884, 0, %v2711
        %v2826 = vsel %vm884, 0, %v2718
        %v2827 = vsel %vm884, 0, %v2725
        %v2828 = vsel %vm884, 0, %v2732
        %v2829 = vsel %vm884, 0, %v2739
        %v2830 = vsel %vm884, 0, %v2746
        %v2831 = vsel %vm884, 0, %v2753
        %v2832 = vsel %vm884, 0, %v2760
        %v2833 = vsel %vm884, 0, %v2767
        %v2834 = vsel %vm884, 0, %v2774
        %v2835 = vsel %vm884, 0, %v2781
        %v2836 = vsel %vm884, 0, %v2788
        %v2837 = vsel %vm884, %v2680, 0
        %v2838 = vsel %vm884, %v2687, 0
        %v2839 = vsel %vm884, %v2694, 0
        %v2840 = vsel %vm884, %v2701, 0
        %v2841 = vsel %vm884, %v2708, 0
        %v2842 = vsel %vm884, %v2715, 0
        %v2843 = vsel %vm884, %v2722, 0
        %v2844 = vsel %vm884, %v2729, 0
        %v2845 = vsel %vm884, %v2736, 0
        %v2846 = vsel %vm884, %v2743, 0
        %v2847 = vsel %vm884, %v2750, 0
        %v2848 = vsel %vm884, %v2757, 0
        %v2849 = vsel %vm884, %v2764, 0
        %v2850 = vsel %vm884, %v2771, 0
        %v2851 = vsel %vm884, %v2778, 0
        %v2852 = vsel %vm884, %v2785, 0
        %v2854 = vshrl.u32 %v2821, 16
        %v2856 = vshll.u32 %v2821, 16
        %v2858 = vrot.slane %v2856, 1
        %v2859 = vor.u32 %v2854, %v2858
        %v2861 = vshll.u32 %v2837, 16
        %v2863 = vrot.slane %v2861, 1
        %v2864 = vsel %vm965, %v2859, %v2863
        %v2866 = vshrl.u32 %v2822, 16
        %v2868 = vshll.u32 %v2822, 16
        %v2870 = vrot.slane %v2868, 1
        %v2871 = vor.u32 %v2866, %v2870
        %v2873 = vshll.u32 %v2838, 16
        %v2875 = vrot.slane %v2873, 1
        %v2876 = vsel %vm965, %v2871, %v2875
        %v2878 = vshrl.u32 %v2823, 16
        %v2880 = vshll.u32 %v2823, 16
        %v2882 = vrot.slane %v2880, 1
        %v2883 = vor.u32 %v2878, %v2882
        %v2885 = vshll.u32 %v2839, 16
        %v2887 = vrot.slane %v2885, 1
        %v2888 = vsel %vm965, %v2883, %v2887
        %v2890 = vshrl.u32 %v2824, 16
        %v2892 = vshll.u32 %v2824, 16
        %v2894 = vrot.slane %v2892, 1
        %v2895 = vor.u32 %v2890, %v2894
        %v2897 = vshll.u32 %v2840, 16
        %v2899 = vrot.slane %v2897, 1
        %v2900 = vsel %vm965, %v2895, %v2899
        %v2902 = vshrl.u32 %v2825, 16
        %v2904 = vshll.u32 %v2825, 16
        %v2906 = vrot.slane %v2904, 1
        %v2907 = vor.u32 %v2902, %v2906
        %v2909 = vshll.u32 %v2841, 16
        %v2911 = vrot.slane %v2909, 1
        %v2912 = vsel %vm965, %v2907, %v2911
        %v2914 = vshrl.u32 %v2826, 16
        %v2916 = vshll.u32 %v2826, 16
        %v2918 = vrot.slane %v2916, 1
        %v2919 = vor.u32 %v2914, %v2918
        %v2921 = vshll.u32 %v2842, 16
        %v2923 = vrot.slane %v2921, 1
        %v2924 = vsel %vm965, %v2919, %v2923
        %v2926 = vshrl.u32 %v2827, 16
        %v2928 = vshll.u32 %v2827, 16
        %v2930 = vrot.slane %v2928, 1
        %v2931 = vor.u32 %v2926, %v2930
        %v2933 = vshll.u32 %v2843, 16
        %v2935 = vrot.slane %v2933, 1
        %v2936 = vsel %vm965, %v2931, %v2935
        %v2938 = vshrl.u32 %v2828, 16
        %v2940 = vshll.u32 %v2828, 16
        %v2942 = vrot.slane %v2940, 1
        %v2943 = vor.u32 %v2938, %v2942
        %v2945 = vshll.u32 %v2844, 16
        %v2947 = vrot.slane %v2945, 1
        %v2948 = vsel %vm965, %v2943, %v2947
        %v2950 = vshrl.u32 %v2829, 16
        %v2952 = vshll.u32 %v2829, 16
        %v2954 = vrot.slane %v2952, 1
        %v2955 = vor.u32 %v2950, %v2954
        %v2957 = vshll.u32 %v2845, 16
        %v2959 = vrot.slane %v2957, 1
        %v2960 = vsel %vm965, %v2955, %v2959
        %v2962 = vshrl.u32 %v2830, 16
        %v2964 = vshll.u32 %v2830, 16
        %v2966 = vrot.slane %v2964, 1
        %v2967 = vor.u32 %v2962, %v2966
        %v2969 = vshll.u32 %v2846, 16
        %v2971 = vrot.slane %v2969, 1
        %v2972 = vsel %vm965, %v2967, %v2971
        %v2974 = vshrl.u32 %v2831, 16
        %v2976 = vshll.u32 %v2831, 16
        %v2978 = vrot.slane %v2976, 1
        %v2979 = vor.u32 %v2974, %v2978
        %v2981 = vshll.u32 %v2847, 16
        %v2983 = vrot.slane %v2981, 1
        %v2984 = vsel %vm965, %v2979, %v2983
        %v2986 = vshrl.u32 %v2832, 16
        %v2988 = vshll.u32 %v2832, 16
        %v2990 = vrot.slane %v2988, 1
        %v2991 = vor.u32 %v2986, %v2990
        %v2993 = vshll.u32 %v2848, 16
        %v2995 = vrot.slane %v2993, 1
        %v2996 = vsel %vm965, %v2991, %v2995
        %v2998 = vshrl.u32 %v2833, 16
        %v3000 = vshll.u32 %v2833, 16
        %v3002 = vrot.slane %v3000, 1
        %v3003 = vor.u32 %v2998, %v3002
        %v3005 = vshll.u32 %v2849, 16
        %v3007 = vrot.slane %v3005, 1
        %v3008 = vsel %vm965, %v3003, %v3007
        %v3010 = vshrl.u32 %v2834, 16
        %v3012 = vshll.u32 %v2834, 16
        %v3014 = vrot.slane %v3012, 1
        %v3015 = vor.u32 %v3010, %v3014
        %v3017 = vshll.u32 %v2850, 16
        %v3019 = vrot.slane %v3017, 1
        %v3020 = vsel %vm965, %v3015, %v3019
        %v3022 = vshrl.u32 %v2835, 16
        %v3024 = vshll.u32 %v2835, 16
        %v3026 = vrot.slane %v3024, 1
        %v3027 = vor.u32 %v3022, %v3026
        %v3029 = vshll.u32 %v2851, 16
        %v3031 = vrot.slane %v3029, 1
        %v3032 = vsel %vm965, %v3027, %v3031
        %v3050 = vshrl.u32 %v2836, 16
        %v3052 = vshll.u32 %v2836, 16
        %v3054 = vrot.slane %v3052, 1
        %v3055 = vor.u32 %v3050, %v3054
        %v3057 = vshll.u32 %v2852, 16
        %v3059 = vrot.slane %v3057, 1
        %v3060 = vsel %vm965, %v3055, %v3059
        %v3092 = vrot.slane %v2821, 1
        %v3093 = vrot.slane %v2837, 1
        %v3094 = vsel %vm1216, %v3092, %v3093
        %v3095 = vrot.slane %v2822, 1
        %v3096 = vrot.slane %v2838, 1
        %v3097 = vsel %vm1216, %v3095, %v3096
        %v3098 = vrot.slane %v2823, 1
        %v3099 = vrot.slane %v2839, 1
        %v3100 = vsel %vm1216, %v3098, %v3099
        %v3101 = vrot.slane %v2824, 1
        %v3102 = vrot.slane %v2840, 1
        %v3103 = vsel %vm1216, %v3101, %v3102
        %v3104 = vrot.slane %v2825, 1
        %v3105 = vrot.slane %v2841, 1
        %v3106 = vsel %vm1216, %v3104, %v3105
        %v3107 = vrot.slane %v2826, 1
        %v3108 = vrot.slane %v2842, 1
        %v3109 = vsel %vm1216, %v3107, %v3108
        %v3110 = vrot.slane %v2827, 1
        %v3111 = vrot.slane %v2843, 1
        %v3112 = vsel %vm1216, %v3110, %v3111
        %v3113 = vrot.slane %v2828, 1
        %v3114 = vrot.slane %v2844, 1
        %v3115 = vsel %vm1216, %v3113, %v3114
        %v3116 = vrot.slane %v2829, 1
        %v3117 = vrot.slane %v2845, 1
        %v3118 = vsel %vm1216, %v3116, %v3117
        %v3119 = vrot.slane %v2830, 1
        %v3120 = vrot.slane %v2846, 1
        %v3121 = vsel %vm1216, %v3119, %v3120
        %v3122 = vrot.slane %v2831, 1
        %v3123 = vrot.slane %v2847, 1
        %v3124 = vsel %vm1216, %v3122, %v3123
        %v3125 = vrot.slane %v2832, 1
        %v3126 = vrot.slane %v2848, 1
        %v3127 = vsel %vm1216, %v3125, %v3126
        %v3128 = vrot.slane %v2833, 1
        %v3129 = vrot.slane %v2849, 1
        %v3130 = vsel %vm1216, %v3128, %v3129
        %v3131 = vrot.slane %v2834, 1
        %v3132 = vrot.slane %v2850, 1
        %v3133 = vsel %vm1216, %v3131, %v3132
        %v3134 = vrot.slane %v2835, 1
        %v3135 = vrot.slane %v2851, 1
        %v3136 = vsel %vm1216, %v3134, %v3135
        %v3155 = vrot.slane %v2836, 1
        %v3156 = vrot.slane %v2852, 1
        %v3157 = vsel %vm1216, %v3155, %v3156
        %v3159 = vld [vmem:[%s4] sm:$0xf]
        %v3160 = vld [vmem:[%s4 + $0x4] sm:$0xf]
        %v3161 = vld [vmem:[%s4 + $0x8] sm:$0xf]
        %v3162 = vld [vmem:[%s4 + $0xc] sm:$0xf]
        %v3163 = vld [vmem:[%s4 + $0x10] sm:$0xf]
        %v3164 = vld [vmem:[%s4 + $0x14] sm:$0xf]
        %v3165 = vld [vmem:[%s4 + $0x18] sm:$0xf]
        %v3166 = vld [vmem:[%s4 + $0x1c] sm:$0xf]
        %v3167 = vld [vmem:[%s4 + $0x20] sm:$0xf]
        %v3168 = vld [vmem:[%s4 + $0x24] sm:$0xf]
        %v3169 = vld [vmem:[%s4 + $0x28] sm:$0xf]
        %v3170 = vld [vmem:[%s4 + $0x2c] sm:$0xf]
        %v3171 = vld [vmem:[%s4 + $0x30] sm:$0xf]
        %v3172 = vld [vmem:[%s4 + $0x34] sm:$0xf]
        %v3173 = vld [vmem:[%s4 + $0x38] sm:$0xf]
        %v3174 = vld [vmem:[%s4 + $0x3c] sm:$0xf]
        %v3175 = vld [vmem:[%s4 + $0x40] sm:$0xf]
        %v3176 = vld [vmem:[%s4 + $0x44] sm:$0xf]
        %v3177 = vld [vmem:[%s4 + $0x48] sm:$0xf]
        %v3178 = vld [vmem:[%s4 + $0x4c] sm:$0xf]
        %v3179 = vld [vmem:[%s4 + $0x50] sm:$0xf]
        %v3180 = vld [vmem:[%s4 + $0x54] sm:$0xf]
        %v3181 = vld [vmem:[%s4 + $0x58] sm:$0xf]
        %v3182 = vld [vmem:[%s4 + $0x5c] sm:$0xf]
        %v3183 = vld [vmem:[%s4 + $0x60] sm:$0xf]
        %v3184 = vld [vmem:[%s4 + $0x64] sm:$0xf]
        %v3185 = vld [vmem:[%s4 + $0x68] sm:$0xf]
        %v3186 = vld [vmem:[%s4 + $0x6c] sm:$0xf]
        %v3187 = vld [vmem:[%s4 + $0x70] sm:$0xf]
        %v3188 = vld [vmem:[%s4 + $0x74] sm:$0xf]
        %v3189 = vld [vmem:[%s4 + $0x78] sm:$0xf]
        %v3190 = vld [vmem:[%s4 + $0x7c] sm:$0xf]
        %v3191 = vld [vmem:[%s4 + $0x80] sm:$0xf]
        %v3192 = vld [vmem:[%s4 + $0x84] sm:$0xf]
        %v3193 = vld [vmem:[%s4 + $0x88] sm:$0xf]
        %v3194 = vld [vmem:[%s4 + $0x8c] sm:$0xf]
        %v3195 = vld [vmem:[%s4 + $0x90] sm:$0xf]
        %v3196 = vld [vmem:[%s4 + $0x94] sm:$0xf]
        %v3197 = vld [vmem:[%s4 + $0x98] sm:$0xf]
        %v3198 = vld [vmem:[%s4 + $0x9c] sm:$0xf]
        %v3199 = vld [vmem:[%s4 + $0xa0] sm:$0xf]
        %v3200 = vld [vmem:[%s4 + $0xa4] sm:$0xf]
        %v3201 = vld [vmem:[%s4 + $0xa8] sm:$0xf]
        %v3202 = vld [vmem:[%s4 + $0xac] sm:$0xf]
        %v3203 = vld [vmem:[%s4 + $0xb0] sm:$0xf]
        %v3204 = vld [vmem:[%s4 + $0xb4] sm:$0xf]
        %v3205 = vld [vmem:[%s4 + $0xb8] sm:$0xf]
        %v3206 = vld [vmem:[%s4 + $0xbc] sm:$0xf]
        %v3207 = vld [vmem:[%s4 + $0xc0] sm:$0xf]
        %v3208 = vld [vmem:[%s4 + $0xc4] sm:$0xf]
        %v3209 = vld [vmem:[%s4 + $0xc8] sm:$0xf]
        %v3210 = vld [vmem:[%s4 + $0xcc] sm:$0xf]
        %v3211 = vld [vmem:[%s4 + $0xd0] sm:$0xf]
        %v3212 = vld [vmem:[%s4 + $0xd4] sm:$0xf]
        %v3213 = vld [vmem:[%s4 + $0xd8] sm:$0xf]
        %v3214 = vld [vmem:[%s4 + $0xdc] sm:$0xf]
        %v3215 = vld [vmem:[%s4 + $0xe0] sm:$0xf]
        %v3216 = vld [vmem:[%s4 + $0xe4] sm:$0xf]
        %v3217 = vld [vmem:[%s4 + $0xe8] sm:$0xf]
        %v3218 = vld [vmem:[%s4 + $0xec] sm:$0xf]
        %v3219 = vld [vmem:[%s4 + $0xf0] sm:$0xf]
        %v3220 = vld [vmem:[%s4 + $0xf4] sm:$0xf]
        %v3221 = vld [vmem:[%s4 + $0xf8] sm:$0xf]
        %v3222 = vld [vmem:[%s4 + $0xfc] sm:$0xf]
        %v3223 = vld [vmem:[%s4 + $0x100] sm:$0xf]
        %v3224 = vld [vmem:[%s4 + $0x104] sm:$0xf]
        %v3225 = vld [vmem:[%s4 + $0x108] sm:$0xf]
        %v3226 = vld [vmem:[%s4 + $0x10c] sm:$0xf]
        %v3227 = vld [vmem:[%s4 + $0x110] sm:$0xf]
        %v3228 = vld [vmem:[%s4 + $0x114] sm:$0xf]
        %v3229 = vld [vmem:[%s4 + $0x118] sm:$0xf]
        %v3230 = vld [vmem:[%s4 + $0x11c] sm:$0xf]
        %v3231 = vld [vmem:[%s4 + $0x120] sm:$0xf]
        %v3232 = vld [vmem:[%s4 + $0x124] sm:$0xf]
        %v3233 = vld [vmem:[%s4 + $0x128] sm:$0xf]
        %v3234 = vld [vmem:[%s4 + $0x12c] sm:$0xf]
        %v3235 = vld [vmem:[%s4 + $0x130] sm:$0xf]
        %v3236 = vld [vmem:[%s4 + $0x134] sm:$0xf]
        %v3237 = vld [vmem:[%s4 + $0x138] sm:$0xf]
        %v3238 = vld [vmem:[%s4 + $0x13c] sm:$0xf]
        %v3239 = vld [vmem:[%s4 + $0x140] sm:$0xf]
        %v3240 = vld [vmem:[%s4 + $0x144] sm:$0xf]
        %v3241 = vld [vmem:[%s4 + $0x148] sm:$0xf]
        %v3242 = vld [vmem:[%s4 + $0x14c] sm:$0xf]
        %v3243 = vld [vmem:[%s4 + $0x150] sm:$0xf]
        %v3244 = vld [vmem:[%s4 + $0x154] sm:$0xf]
        %v3245 = vld [vmem:[%s4 + $0x158] sm:$0xf]
        %v3246 = vld [vmem:[%s4 + $0x15c] sm:$0xf]
        %v3247 = vld [vmem:[%s4 + $0x160] sm:$0xf]
        %v3248 = vld [vmem:[%s4 + $0x164] sm:$0xf]
        %v3249 = vld [vmem:[%s4 + $0x168] sm:$0xf]
        %v3250 = vld [vmem:[%s4 + $0x16c] sm:$0xf]
        %v3251 = vld [vmem:[%s4 + $0x170] sm:$0xf]
        %v3252 = vld [vmem:[%s4 + $0x174] sm:$0xf]
        %v3253 = vld [vmem:[%s4 + $0x178] sm:$0xf]
        %v3254 = vld [vmem:[%s4 + $0x17c] sm:$0xf]
        %v3255 = vld [vmem:[%s4 + $0x180] sm:$0xf]
        %v3256 = vld [vmem:[%s4 + $0x184] sm:$0xf]
        %v3257 = vld [vmem:[%s4 + $0x188] sm:$0xf]
        %v3258 = vld [vmem:[%s4 + $0x18c] sm:$0xf]
        %v3259 = vld [vmem:[%s4 + $0x190] sm:$0xf]
        %v3260 = vld [vmem:[%s4 + $0x194] sm:$0xf]
        %v3261 = vld [vmem:[%s4 + $0x198] sm:$0xf]
        %v3262 = vld [vmem:[%s4 + $0x19c] sm:$0xf]
        %v3263 = vld [vmem:[%s4 + $0x1a0] sm:$0xf]
        %v3264 = vld [vmem:[%s4 + $0x1a4] sm:$0xf]
        %v3265 = vld [vmem:[%s4 + $0x1a8] sm:$0xf]
        %v3266 = vld [vmem:[%s4 + $0x1ac] sm:$0xf]
        %v3267 = vld [vmem:[%s4 + $0x1b0] sm:$0xf]
        %v3268 = vld [vmem:[%s4 + $0x1b4] sm:$0xf]
        %v3269 = vld [vmem:[%s4 + $0x1b8] sm:$0xf]
        %v3270 = vld [vmem:[%s4 + $0x1bc] sm:$0xf]
        %v3271 = vld [vmem:[%s4 + $0x1c0] sm:$0xf]
        %v3272 = vld [vmem:[%s4 + $0x1c4] sm:$0xf]
        %v3273 = vld [vmem:[%s4 + $0x1c8] sm:$0xf]
        %v3274 = vld [vmem:[%s4 + $0x1cc] sm:$0xf]
        %v3275 = vld [vmem:[%s4 + $0x1d0] sm:$0xf]
        %v3276 = vld [vmem:[%s4 + $0x1d4] sm:$0xf]
        %v3277 = vld [vmem:[%s4 + $0x1d8] sm:$0xf]
        %v3278 = vld [vmem:[%s4 + $0x1dc] sm:$0xf]
        %v3279 = vld [vmem:[%s4 + $0x1e0] sm:$0xf]
        %v3280 = vld [vmem:[%s4 + $0x1e4] sm:$0xf]
        %v3281 = vld [vmem:[%s4 + $0x1e8] sm:$0xf]
        %v3282 = vld [vmem:[%s4 + $0x1ec] sm:$0xf]
        %v3283 = vld [vmem:[%s4 + $0x1f0] sm:$0xf]
        %v3284 = vld [vmem:[%s4 + $0x1f4] sm:$0xf]
        %v3285 = vld [vmem:[%s4 + $0x1f8] sm:$0xf]
        %v3286 = vld [vmem:[%s4 + $0x1fc] sm:$0xf]
        %v3287 = vld [vmem:[%s4 + $0x200] sm:$0xf]
        %v3288 = vld [vmem:[%s4 + $0x204] sm:$0xf]
        %v3289 = vld [vmem:[%s4 + $0x208] sm:$0xf]
        %v3290 = vld [vmem:[%s4 + $0x20c] sm:$0xf]
        %v3291 = vld [vmem:[%s4 + $0x210] sm:$0xf]
        %v3292 = vld [vmem:[%s4 + $0x214] sm:$0xf]
        %v3293 = vld [vmem:[%s4 + $0x218] sm:$0xf]
        %v3294 = vld [vmem:[%s4 + $0x21c] sm:$0xf]
        %v3295 = vld [vmem:[%s4 + $0x220] sm:$0xf]
        %v3296 = vld [vmem:[%s4 + $0x224] sm:$0xf]
        %v3297 = vld [vmem:[%s4 + $0x228] sm:$0xf]
        %v3298 = vld [vmem:[%s4 + $0x22c] sm:$0xf]
        %v3299 = vld [vmem:[%s4 + $0x230] sm:$0xf]
        %v3300 = vld [vmem:[%s4 + $0x234] sm:$0xf]
        %v3301 = vld [vmem:[%s4 + $0x238] sm:$0xf]
        %v3302 = vld [vmem:[%s4 + $0x23c] sm:$0xf]
        %v3303 = vld [vmem:[%s5] sm:$0x1]
        %v3305 = vlaneseq
        %v3306 = vshrl.u32 %v3305, 7
        %v3307 = vsub.s32 0, %v3306
        %v3308 = vrot.slane %v3303, %v3307
        %v3454 = vunpack.c.l.b16 %v3159
        %v3455 = vunpack.c.l.b16 %v3160
        %v3456 = vunpack.c.l.b16 %v3161
        %v3457 = vunpack.c.l.b16 %v3162
        %v3458 = vunpack.c.l.b16 %v3163
        %v3459 = vunpack.c.l.b16 %v3164
        %v3460 = vunpack.c.l.b16 %v3165
        %v3461 = vunpack.c.l.b16 %v3166
        %v3462 = vunpack.c.l.b16 %v3167
        %v3463 = vunpack.c.l.b16 %v3168
        %v3464 = vunpack.c.l.b16 %v3169
        %v3465 = vunpack.c.l.b16 %v3170
        %v3466 = vunpack.c.l.b16 %v3171
        %v3467 = vunpack.c.l.b16 %v3172
        %v3468 = vunpack.c.l.b16 %v3173
        %v3469 = vunpack.c.l.b16 %v3174
        %v3470 = vunpack.c.l.b16 %v3175
        %v3471 = vunpack.c.l.b16 %v3176
        %v3472 = vunpack.c.l.b16 %v3177
        %v3473 = vunpack.c.l.b16 %v3178
        %v3474 = vunpack.c.l.b16 %v3179
        %v3475 = vunpack.c.l.b16 %v3180
        %v3476 = vunpack.c.l.b16 %v3181
        %v3477 = vunpack.c.l.b16 %v3182
        %v3478 = vunpack.c.l.b16 %v3183
        %v3479 = vunpack.c.l.b16 %v3184
        %v3480 = vunpack.c.l.b16 %v3185
        %v3481 = vunpack.c.l.b16 %v3186
        %v3482 = vunpack.c.l.b16 %v3187
        %v3483 = vunpack.c.l.b16 %v3188
        %v3484 = vunpack.c.l.b16 %v3189
        %v3485 = vunpack.c.l.b16 %v3190
        %v3486 = vunpack.c.l.b16 %v3191
        %v3487 = vunpack.c.l.b16 %v3192
        %v3488 = vunpack.c.l.b16 %v3193
        %v3489 = vunpack.c.l.b16 %v3194
        %v3490 = vunpack.c.l.b16 %v3195
        %v3491 = vunpack.c.l.b16 %v3196
        %v3492 = vunpack.c.l.b16 %v3197
        %v3493 = vunpack.c.l.b16 %v3198
        %v3494 = vunpack.c.l.b16 %v3199
        %v3495 = vunpack.c.l.b16 %v3200
        %v3496 = vunpack.c.l.b16 %v3201
        %v3497 = vunpack.c.l.b16 %v3202
        %v3498 = vunpack.c.l.b16 %v3203
        %v3499 = vunpack.c.l.b16 %v3204
        %v3500 = vunpack.c.l.b16 %v3205
        %v3501 = vunpack.c.l.b16 %v3206
        %v3502 = vunpack.c.l.b16 %v3207
        %v3503 = vunpack.c.l.b16 %v3208
        %v3504 = vunpack.c.l.b16 %v3209
        %v3505 = vunpack.c.l.b16 %v3210
        %v3506 = vunpack.c.l.b16 %v3211
        %v3507 = vunpack.c.l.b16 %v3212
        %v3508 = vunpack.c.l.b16 %v3213
        %v3509 = vunpack.c.l.b16 %v3214
        %v3510 = vunpack.c.l.b16 %v3215
        %v3511 = vunpack.c.l.b16 %v3216
        %v3512 = vunpack.c.l.b16 %v3217
        %v3513 = vunpack.c.l.b16 %v3218
        %v3514 = vunpack.c.l.b16 %v3219
        %v3515 = vunpack.c.l.b16 %v3220
        %v3516 = vunpack.c.l.b16 %v3221
        %v3517 = vunpack.c.l.b16 %v3222
        %v3518 = vunpack.c.l.b16 %v3223
        %v3519 = vunpack.c.l.b16 %v3224
        %v3520 = vunpack.c.l.b16 %v3225
        %v3521 = vunpack.c.l.b16 %v3226
        %v3522 = vunpack.c.l.b16 %v3227
        %v3523 = vunpack.c.l.b16 %v3228
        %v3524 = vunpack.c.l.b16 %v3229
        %v3525 = vunpack.c.l.b16 %v3230
        %v3526 = vunpack.c.l.b16 %v3231
        %v3527 = vunpack.c.l.b16 %v3232
        %v3528 = vunpack.c.l.b16 %v3233
        %v3529 = vunpack.c.l.b16 %v3234
        %v3530 = vunpack.c.l.b16 %v3235
        %v3531 = vunpack.c.l.b16 %v3236
        %v3532 = vunpack.c.l.b16 %v3237
        %v3533 = vunpack.c.l.b16 %v3238
        %v3534 = vunpack.c.l.b16 %v3239
        %v3535 = vunpack.c.l.b16 %v3240
        %v3536 = vunpack.c.l.b16 %v3241
        %v3537 = vunpack.c.l.b16 %v3242
        %v3538 = vunpack.c.l.b16 %v3243
        %v3539 = vunpack.c.l.b16 %v3244
        %v3540 = vunpack.c.l.b16 %v3245
        %v3541 = vunpack.c.l.b16 %v3246
        %v3542 = vunpack.c.l.b16 %v3247
        %v3543 = vunpack.c.l.b16 %v3248
        %v3544 = vunpack.c.l.b16 %v3249
        %v3545 = vunpack.c.l.b16 %v3250
        %v3546 = vunpack.c.l.b16 %v3251
        %v3547 = vunpack.c.l.b16 %v3252
        %v3548 = vunpack.c.l.b16 %v3253
        %v3549 = vunpack.c.l.b16 %v3254
        %v3550 = vunpack.c.l.b16 %v3255
        %v3551 = vunpack.c.l.b16 %v3256
        %v3552 = vunpack.c.l.b16 %v3257
        %v3553 = vunpack.c.l.b16 %v3258
        %v3554 = vunpack.c.l.b16 %v3259
        %v3555 = vunpack.c.l.b16 %v3260
        %v3556 = vunpack.c.l.b16 %v3261
        %v3557 = vunpack.c.l.b16 %v3262
        %v3558 = vunpack.c.l.b16 %v3263
        %v3559 = vunpack.c.l.b16 %v3264
        %v3560 = vunpack.c.l.b16 %v3265
        %v3561 = vunpack.c.l.b16 %v3266
        %v3562 = vunpack.c.l.b16 %v3267
        %v3563 = vunpack.c.l.b16 %v3268
        %v3564 = vunpack.c.l.b16 %v3269
        %v3565 = vunpack.c.l.b16 %v3270
        %v3566 = vunpack.c.l.b16 %v3271
        %v3567 = vunpack.c.l.b16 %v3272
        %v3568 = vunpack.c.l.b16 %v3273
        %v3569 = vunpack.c.l.b16 %v3274
        %v3570 = vunpack.c.l.b16 %v3275
        %v3571 = vunpack.c.l.b16 %v3276
        %v3572 = vunpack.c.l.b16 %v3277
        %v3573 = vunpack.c.l.b16 %v3278
        %v3574 = vunpack.c.l.b16 %v3279
        %v3575 = vunpack.c.l.b16 %v3280
        %v3576 = vunpack.c.l.b16 %v3281
        %v3577 = vunpack.c.l.b16 %v3282
        %v3578 = vunpack.c.l.b16 %v3283
        %v3579 = vunpack.c.l.b16 %v3284
        %v3580 = vunpack.c.l.b16 %v3285
        %v3581 = vunpack.c.l.b16 %v3286
        %v3582 = vunpack.c.l.b16 %v3287
        %v3583 = vunpack.c.l.b16 %v3288
        %v3584 = vunpack.c.l.b16 %v3289
        %v3585 = vunpack.c.l.b16 %v3290
        %v3586 = vunpack.c.l.b16 %v3291
        %v3587 = vunpack.c.l.b16 %v3292
        %v3588 = vunpack.c.l.b16 %v3293
        %v3589 = vunpack.c.l.b16 %v3294
        %v3590 = vunpack.c.l.b16 %v3295
        %v3591 = vunpack.c.l.b16 %v3296
        %v3592 = vunpack.c.l.b16 %v3297
        %v3593 = vunpack.c.l.b16 %v3298
        %v3594 = vunpack.c.l.b16 %v3299
        %v3595 = vunpack.c.l.b16 %v3300
        %v3596 = vunpack.c.l.b16 %v3301
        %v3597 = vunpack.c.l.b16 %v3302
        %v3598 = vpack.c.b16 %v3455, %v3454
        %v3599 = vpack.c.b16 %v3457, %v3456
        %v3600 = vpack.c.b16 %v3459, %v3458
        %v3601 = vpack.c.b16 %v3461, %v3460
        %v3602 = vpack.c.b16 %v3463, %v3462
        %v3603 = vpack.c.b16 %v3465, %v3464
        %v3604 = vpack.c.b16 %v3467, %v3466
        %v3605 = vpack.c.b16 %v3469, %v3468
        %v3606 = vpack.c.b16 %v3471, %v3470
        %v3607 = vpack.c.b16 %v3473, %v3472
        %v3608 = vpack.c.b16 %v3475, %v3474
        %v3609 = vpack.c.b16 %v3477, %v3476
        %v3610 = vpack.c.b16 %v3479, %v3478
        %v3611 = vpack.c.b16 %v3481, %v3480
        %v3612 = vpack.c.b16 %v3483, %v3482
        %v3613 = vpack.c.b16 %v3485, %v3484
        %v3614 = vpack.c.b16 %v3487, %v3486
        %v3615 = vpack.c.b16 %v3489, %v3488
        %v3616 = vpack.c.b16 %v3491, %v3490
        %v3617 = vpack.c.b16 %v3493, %v3492
        %v3618 = vpack.c.b16 %v3495, %v3494
        %v3619 = vpack.c.b16 %v3497, %v3496
        %v3620 = vpack.c.b16 %v3499, %v3498
        %v3621 = vpack.c.b16 %v3501, %v3500
        %v3622 = vpack.c.b16 %v3503, %v3502
        %v3623 = vpack.c.b16 %v3505, %v3504
        %v3624 = vpack.c.b16 %v3507, %v3506
        %v3625 = vpack.c.b16 %v3509, %v3508
        %v3626 = vpack.c.b16 %v3511, %v3510
        %v3627 = vpack.c.b16 %v3513, %v3512
        %v3628 = vpack.c.b16 %v3515, %v3514
        %v3629 = vpack.c.b16 %v3517, %v3516
        %v3630 = vpack.c.b16 %v3519, %v3518
        %v3631 = vpack.c.b16 %v3521, %v3520
        %v3632 = vpack.c.b16 %v3523, %v3522
        %v3633 = vpack.c.b16 %v3525, %v3524
        %v3634 = vpack.c.b16 %v3527, %v3526
        %v3635 = vpack.c.b16 %v3529, %v3528
        %v3636 = vpack.c.b16 %v3531, %v3530
        %v3637 = vpack.c.b16 %v3533, %v3532
        %v3638 = vpack.c.b16 %v3535, %v3534
        %v3639 = vpack.c.b16 %v3537, %v3536
        %v3640 = vpack.c.b16 %v3539, %v3538
        %v3641 = vpack.c.b16 %v3541, %v3540
        %v3642 = vpack.c.b16 %v3543, %v3542
        %v3643 = vpack.c.b16 %v3545, %v3544
        %v3644 = vpack.c.b16 %v3547, %v3546
        %v3645 = vpack.c.b16 %v3549, %v3548
        %v3646 = vpack.c.b16 %v3551, %v3550
        %v3647 = vpack.c.b16 %v3553, %v3552
        %v3648 = vpack.c.b16 %v3555, %v3554
        %v3649 = vpack.c.b16 %v3557, %v3556
        %v3650 = vpack.c.b16 %v3559, %v3558
        %v3651 = vpack.c.b16 %v3561, %v3560
        %v3652 = vpack.c.b16 %v3563, %v3562
        %v3653 = vpack.c.b16 %v3565, %v3564
        %v3654 = vpack.c.b16 %v3567, %v3566
        %v3655 = vpack.c.b16 %v3569, %v3568
        %v3656 = vpack.c.b16 %v3571, %v3570
        %v3657 = vpack.c.b16 %v3573, %v3572
        %v3658 = vpack.c.b16 %v3575, %v3574
        %v3659 = vpack.c.b16 %v3577, %v3576
        %v3660 = vpack.c.b16 %v3579, %v3578
        %v3661 = vpack.c.b16 %v3581, %v3580
        %v3662 = vpack.c.b16 %v3583, %v3582
        %v3663 = vpack.c.b16 %v3585, %v3584
        %v3664 = vpack.c.b16 %v3587, %v3586
        %v3665 = vpack.c.b16 %v3589, %v3588
        %v3666 = vpack.c.b16 %v3591, %v3590
        %v3667 = vpack.c.b16 %v3593, %v3592
        %v3668 = vpack.c.b16 %v3595, %v3594
        %v3669 = vpack.c.b16 %v3597, %v3596
        %3742 = vmatprep.subr.bf16.mxu0 0
        %3743 = vmatpush1.bf16.msra.mxu0 %v3605
        %3744 = vmatprep.subr.bf16.mxu0 0
        %3745 = vmatpush1.bf16.msra.mxu0 %v3604
        %3746 = vmatprep.subr.bf16.mxu0 0
        %3747 = vmatpush1.bf16.msra.mxu0 %v3603
        %3748 = vmatprep.subr.bf16.mxu0 0
        %3749 = vmatpush1.bf16.msra.mxu0 %v3602
        %3750 = vmatprep.subr.bf16.mxu0 0
        %3751 = vmatpush1.bf16.msra.mxu0 %v3601
        %3752 = vmatprep.subr.bf16.mxu0 0
        %3753 = vmatpush1.bf16.msra.mxu0 %v3600
        %3754 = vmatprep.subr.bf16.mxu0 0
        %3755 = vmatpush1.bf16.msra.mxu0 %v3599
        %3756 = vmatprep.subr.bf16.mxu0 0
        %3757 = vmatpush1.bf16.msra.mxu0 %v3598
        %3758 = vmatprep.subr.bf16.mxu0 0
        %3759 = vmatpush2.bf16.msra.mxu0 %v3613
        %3760 = vmatprep.subr.bf16.mxu0 0
        %3761 = vmatpush2.bf16.msra.mxu0 %v3612
        %3762 = vmatprep.subr.bf16.mxu0 0
        %3763 = vmatpush2.bf16.msra.mxu0 %v3611
        %3764 = vmatprep.subr.bf16.mxu0 0
        %3765 = vmatpush2.bf16.msra.mxu0 %v3610
        %3766 = vmatprep.subr.bf16.mxu0 0
        %3767 = vmatpush2.bf16.msra.mxu0 %v3609
        %3768 = vmatprep.subr.bf16.mxu0 0
        %3769 = vmatpush2.bf16.msra.mxu0 %v3608
        %3770 = vmatprep.subr.bf16.mxu0 0
        %3771 = vmatpush2.bf16.msra.mxu0 %v3607
        %3772 = vmatprep.subr.bf16.mxu0 0
        %3773 = vmatpush2.bf16.msra.mxu0 %v3606
        %3774 = vmatprep.mubr.bf16.mxu0 %v2821
        %3775 = vmatmul.mubr.bf16.gmra.mxu0 0
        %v3776 = vpop.f32.mrf.mxu0
        %v3777 = vadd.f32 %v3308, %v3776
        %v3778 = vpop.f32.mrf.mxu0
        %v3779 = vpop.f32.mrf.mxu0
        %v3780 = vadd.f32 %v3308, %v3779
        %v3781 = vpop.f32.mrf.mxu0
        %3782 = vmatprep.mubr.bf16.mxu0 %v2822
        %3783 = vmatmul.mubr.bf16.gmra.mxu0 %v2821
        %v3784 = vpop.f32.mrf.mxu0
        %v3785 = vadd.f32 %v3308, %v3784
        %v3786 = vpop.f32.mrf.mxu0
        %v3787 = vpop.f32.mrf.mxu0
        %v3788 = vadd.f32 %v3308, %v3787
        %v3789 = vpop.f32.mrf.mxu0
        %3790 = vmatprep.mubr.bf16.mxu0 %v2823
        %3791 = vmatmul.mubr.bf16.gmra.mxu0 %v2822
        %v3792 = vpop.f32.mrf.mxu0
        %v3793 = vadd.f32 %v3308, %v3792
        %v3794 = vpop.f32.mrf.mxu0
        %v3795 = vpop.f32.mrf.mxu0
        %v3796 = vadd.f32 %v3308, %v3795
        %v3797 = vpop.f32.mrf.mxu0
        %3798 = vmatprep.mubr.bf16.mxu0 %v2824
        %3799 = vmatmul.mubr.bf16.gmra.mxu0 %v2823
        %v3800 = vpop.f32.mrf.mxu0
        %v3801 = vadd.f32 %v3308, %v3800
        %v3802 = vpop.f32.mrf.mxu0
        %v3803 = vpop.f32.mrf.mxu0
        %v3804 = vadd.f32 %v3308, %v3803
        %v3805 = vpop.f32.mrf.mxu0
        %3806 = vmatprep.mubr.bf16.mxu0 %v2825
        %3807 = vmatmul.mubr.bf16.gmra.mxu0 %v2824
        %v3808 = vpop.f32.mrf.mxu0
        %v3809 = vadd.f32 %v3308, %v3808
        %v3810 = vpop.f32.mrf.mxu0
        %v3811 = vpop.f32.mrf.mxu0
        %v3812 = vadd.f32 %v3308, %v3811
        %v3813 = vpop.f32.mrf.mxu0
        %3814 = vmatprep.mubr.bf16.mxu0 %v2826
        %3815 = vmatmul.mubr.bf16.gmra.mxu0 %v2825
        %v3816 = vpop.f32.mrf.mxu0
        %v3817 = vadd.f32 %v3308, %v3816
        %v3818 = vpop.f32.mrf.mxu0
        %v3819 = vpop.f32.mrf.mxu0
        %v3820 = vadd.f32 %v3308, %v3819
        %v3821 = vpop.f32.mrf.mxu0
        %3822 = vmatprep.mubr.bf16.mxu0 %v2827
        %3823 = vmatmul.mubr.bf16.gmra.mxu0 %v2826
        %v3824 = vpop.f32.mrf.mxu0
        %v3825 = vadd.f32 %v3308, %v3824
        %v3826 = vpop.f32.mrf.mxu0
        %v3827 = vpop.f32.mrf.mxu0
        %v3828 = vadd.f32 %v3308, %v3827
        %v3829 = vpop.f32.mrf.mxu0
        %3830 = vmatprep.mubr.bf16.mxu0 %v2828
        %3831 = vmatmul.mubr.bf16.gmra.mxu0 %v2827
        %v3832 = vpop.f32.mrf.mxu0
        %v3833 = vadd.f32 %v3308, %v3832
        %v3834 = vpop.f32.mrf.mxu0
        %v3835 = vpop.f32.mrf.mxu0
        %v3836 = vadd.f32 %v3308, %v3835
        %v3837 = vpop.f32.mrf.mxu0
        %3838 = vmatprep.mubr.bf16.mxu0 %v2829
        %3839 = vmatmul.mubr.bf16.gmra.mxu0 %v2828
        %v3840 = vpop.f32.mrf.mxu0
        %v3841 = vadd.f32 %v3308, %v3840
        %v3842 = vpop.f32.mrf.mxu0
        %v3843 = vpop.f32.mrf.mxu0
        %v3844 = vadd.f32 %v3308, %v3843
        %v3845 = vpop.f32.mrf.mxu0
        %3846 = vmatprep.mubr.bf16.mxu0 %v2830
        %3847 = vmatmul.mubr.bf16.gmra.mxu0 %v2829
        %v3848 = vpop.f32.mrf.mxu0
        %v3849 = vadd.f32 %v3308, %v3848
        %v3850 = vpop.f32.mrf.mxu0
        %v3851 = vpop.f32.mrf.mxu0
        %v3852 = vadd.f32 %v3308, %v3851
        %v3853 = vpop.f32.mrf.mxu0
        %3854 = vmatprep.mubr.bf16.mxu0 %v2831
        %3855 = vmatmul.mubr.bf16.gmra.mxu0 %v2830
        %v3856 = vpop.f32.mrf.mxu0
        %v3857 = vadd.f32 %v3308, %v3856
        %v3858 = vpop.f32.mrf.mxu0
        %v3859 = vpop.f32.mrf.mxu0
        %v3860 = vadd.f32 %v3308, %v3859
        %v3861 = vpop.f32.mrf.mxu0
        %3862 = vmatprep.mubr.bf16.mxu0 %v2832
        %3863 = vmatmul.mubr.bf16.gmra.mxu0 %v2831
        %v3864 = vpop.f32.mrf.mxu0
        %v3865 = vadd.f32 %v3308, %v3864
        %v3866 = vpop.f32.mrf.mxu0
        %v3867 = vpop.f32.mrf.mxu0
        %v3868 = vadd.f32 %v3308, %v3867
        %v3869 = vpop.f32.mrf.mxu0
        %3870 = vmatprep.mubr.bf16.mxu0 %v2833
        %3871 = vmatmul.mubr.bf16.gmra.mxu0 %v2832
        %v3872 = vpop.f32.mrf.mxu0
        %v3873 = vadd.f32 %v3308, %v3872
        %v3874 = vpop.f32.mrf.mxu0
        %v3875 = vpop.f32.mrf.mxu0
        %v3876 = vadd.f32 %v3308, %v3875
        %v3877 = vpop.f32.mrf.mxu0
        %3878 = vmatprep.mubr.bf16.mxu0 %v2834
        %3879 = vmatmul.mubr.bf16.gmra.mxu0 %v2833
        %v3880 = vpop.f32.mrf.mxu0
        %v3881 = vadd.f32 %v3308, %v3880
        %v3882 = vpop.f32.mrf.mxu0
        %v3883 = vpop.f32.mrf.mxu0
        %v3884 = vadd.f32 %v3308, %v3883
        %v3885 = vpop.f32.mrf.mxu0
        %3886 = vmatprep.mubr.bf16.mxu0 %v2835
        %3887 = vmatmul.mubr.bf16.gmra.mxu0 %v2834
        %v3888 = vpop.f32.mrf.mxu0
        %v3889 = vadd.f32 %v3308, %v3888
        %v3890 = vpop.f32.mrf.mxu0
        %v3891 = vpop.f32.mrf.mxu0
        %v3892 = vadd.f32 %v3308, %v3891
        %v3893 = vpop.f32.mrf.mxu0
        %3894 = vmatprep.mubr.bf16.mxu0 %v2836
        %3895 = vmatmul.mubr.bf16.gmra.mxu0 %v2835
        %v3896 = vpop.f32.mrf.mxu0
        %v3897 = vadd.f32 %v3308, %v3896
        %v3898 = vpop.f32.mrf.mxu0
        %v3899 = vpop.f32.mrf.mxu0
        %v3900 = vadd.f32 %v3308, %v3899
        %v3901 = vpop.f32.mrf.mxu0
        %3902 = vdwg.mxu0
        %3903 = vmatprep.subr.bf16.mxu0 0
        %3904 = vmatpush1.bf16.msra.mxu0 %v3621
        %3905 = vmatprep.subr.bf16.mxu0 0
        %3906 = vmatpush1.bf16.msra.mxu0 %v3620
        %3907 = vmatprep.subr.bf16.mxu0 0
        %3908 = vmatpush1.bf16.msra.mxu0 %v3619
        %3909 = vmatprep.subr.bf16.mxu0 0
        %3910 = vmatpush1.bf16.msra.mxu0 %v3618
        %3911 = vmatprep.subr.bf16.mxu0 0
        %3912 = vmatpush1.bf16.msra.mxu0 %v3617
        %3913 = vmatprep.subr.bf16.mxu0 0
        %3914 = vmatpush1.bf16.msra.mxu0 %v3616
        %3915 = vmatprep.subr.bf16.mxu0 0
        %3916 = vmatpush1.bf16.msra.mxu0 %v3615
        %3917 = vmatprep.subr.bf16.mxu0 0
        %3918 = vmatpush1.bf16.msra.mxu0 %v3614
        %3919 = vmatprep.subr.bf16.mxu0 0
        %3920 = vmatpush2.bf16.msra.mxu0 %v3629
        %3921 = vmatprep.subr.bf16.mxu0 0
        %3922 = vmatpush2.bf16.msra.mxu0 %v3628
        %3923 = vmatprep.subr.bf16.mxu0 0
        %3924 = vmatpush2.bf16.msra.mxu0 %v3627
        %3925 = vmatprep.subr.bf16.mxu0 0
        %3926 = vmatpush2.bf16.msra.mxu0 %v3626
        %3927 = vmatprep.subr.bf16.mxu0 0
        %3928 = vmatpush2.bf16.msra.mxu0 %v3625
        %3929 = vmatprep.subr.bf16.mxu0 0
        %3930 = vmatpush2.bf16.msra.mxu0 %v3624
        %3931 = vmatprep.subr.bf16.mxu0 0
        %3932 = vmatpush2.bf16.msra.mxu0 %v3623
        %3933 = vmatprep.subr.bf16.mxu0 0
        %3934 = vmatpush2.bf16.msra.mxu0 %v3622
        %3935 = vmatprep.mubr.bf16.mxu0 %v973
        %3936 = vmatmul.mubr.bf16.gmra.mxu0 %v2822
        %v3937 = vpop.f32.mrf.mxu0
        %v3938 = vadd.f32 %v3777, %v3937
        %v3939 = vpop.f32.mrf.mxu0
        %v3940 = vpop.f32.mrf.mxu0
        %v3941 = vadd.f32 %v3780, %v3940
        %v3942 = vpop.f32.mrf.mxu0
        %3943 = vmatprep.mubr.bf16.mxu0 %v2864
        %3944 = vmatmul.mubr.bf16.gmra.mxu0 %v2823
        %v3945 = vpop.f32.mrf.mxu0
        %v3946 = vadd.f32 %v3785, %v3945
        %v3947 = vpop.f32.mrf.mxu0
        %v3948 = vpop.f32.mrf.mxu0
        %v3949 = vadd.f32 %v3788, %v3948
        %v3950 = vpop.f32.mrf.mxu0
        %3951 = vmatprep.mubr.bf16.mxu0 %v2876
        %3952 = vmatmul.mubr.bf16.gmra.mxu0 %v2824
        %v3953 = vpop.f32.mrf.mxu0
        %v3954 = vadd.f32 %v3793, %v3953
        %v3955 = vpop.f32.mrf.mxu0
        %v3956 = vpop.f32.mrf.mxu0
        %v3957 = vadd.f32 %v3796, %v3956
        %v3958 = vpop.f32.mrf.mxu0
        %3959 = vmatprep.mubr.bf16.mxu0 %v2888
        %3960 = vmatmul.mubr.bf16.gmra.mxu0 %v2825
        %v3961 = vpop.f32.mrf.mxu0
        %v3962 = vadd.f32 %v3801, %v3961
        %v3963 = vpop.f32.mrf.mxu0
        %v3964 = vpop.f32.mrf.mxu0
        %v3965 = vadd.f32 %v3804, %v3964
        %v3966 = vpop.f32.mrf.mxu0
        %3967 = vmatprep.mubr.bf16.mxu0 %v2900
        %3968 = vmatmul.mubr.bf16.gmra.mxu0 %v2826
        %v3969 = vpop.f32.mrf.mxu0
        %v3970 = vadd.f32 %v3809, %v3969
        %v3971 = vpop.f32.mrf.mxu0
        %v3972 = vpop.f32.mrf.mxu0
        %v3973 = vadd.f32 %v3812, %v3972
        %v3974 = vpop.f32.mrf.mxu0
        %3975 = vmatprep.mubr.bf16.mxu0 %v2912
        %3976 = vmatmul.mubr.bf16.gmra.mxu0 %v2827
        %v3977 = vpop.f32.mrf.mxu0
        %v3978 = vadd.f32 %v3817, %v3977
        %v3979 = vpop.f32.mrf.mxu0
        %v3980 = vpop.f32.mrf.mxu0
        %v3981 = vadd.f32 %v3820, %v3980
        %v3982 = vpop.f32.mrf.mxu0
        %3983 = vmatprep.mubr.bf16.mxu0 %v2924
        %3984 = vmatmul.mubr.bf16.gmra.mxu0 %v2828
        %v3985 = vpop.f32.mrf.mxu0
        %v3986 = vadd.f32 %v3825, %v3985
        %v3987 = vpop.f32.mrf.mxu0
        %v3988 = vpop.f32.mrf.mxu0
        %v3989 = vadd.f32 %v3828, %v3988
        %v3990 = vpop.f32.mrf.mxu0
        %3991 = vmatprep.mubr.bf16.mxu0 %v2936
        %3992 = vmatmul.mubr.bf16.gmra.mxu0 %v2829
        %v3993 = vpop.f32.mrf.mxu0
        %v3994 = vadd.f32 %v3833, %v3993
        %v3995 = vpop.f32.mrf.mxu0
        %v3996 = vpop.f32.mrf.mxu0
        %v3997 = vadd.f32 %v3836, %v3996
        %v3998 = vpop.f32.mrf.mxu0
        %3999 = vmatprep.mubr.bf16.mxu0 %v2948
        %4000 = vmatmul.mubr.bf16.gmra.mxu0 %v2830
        %v4001 = vpop.f32.mrf.mxu0
        %v4002 = vadd.f32 %v3841, %v4001
        %v4003 = vpop.f32.mrf.mxu0
        %v4004 = vpop.f32.mrf.mxu0
        %v4005 = vadd.f32 %v3844, %v4004
        %v4006 = vpop.f32.mrf.mxu0
        %4007 = vmatprep.mubr.bf16.mxu0 %v2960
        %4008 = vmatmul.mubr.bf16.gmra.mxu0 %v2831
        %v4009 = vpop.f32.mrf.mxu0
        %v4010 = vadd.f32 %v3849, %v4009
        %v4011 = vpop.f32.mrf.mxu0
        %v4012 = vpop.f32.mrf.mxu0
        %v4013 = vadd.f32 %v3852, %v4012
        %v4014 = vpop.f32.mrf.mxu0
        %4015 = vmatprep.mubr.bf16.mxu0 %v2972
        %4016 = vmatmul.mubr.bf16.gmra.mxu0 %v2832
        %v4017 = vpop.f32.mrf.mxu0
        %v4018 = vadd.f32 %v3857, %v4017
        %v4019 = vpop.f32.mrf.mxu0
        %v4020 = vpop.f32.mrf.mxu0
        %v4021 = vadd.f32 %v3860, %v4020
        %v4022 = vpop.f32.mrf.mxu0
        %4023 = vmatprep.mubr.bf16.mxu0 %v2984
        %4024 = vmatmul.mubr.bf16.gmra.mxu0 %v2833
        %v4025 = vpop.f32.mrf.mxu0
        %v4026 = vadd.f32 %v3865, %v4025
        %v4027 = vpop.f32.mrf.mxu0
        %v4028 = vpop.f32.mrf.mxu0
        %v4029 = vadd.f32 %v3868, %v4028
        %v4030 = vpop.f32.mrf.mxu0
        %4031 = vmatprep.mubr.bf16.mxu0 %v2996
        %4032 = vmatmul.mubr.bf16.gmra.mxu0 %v2834
        %v4033 = vpop.f32.mrf.mxu0
        %v4034 = vadd.f32 %v3873, %v4033
        %v4035 = vpop.f32.mrf.mxu0
        %v4036 = vpop.f32.mrf.mxu0
        %v4037 = vadd.f32 %v3876, %v4036
        %v4038 = vpop.f32.mrf.mxu0
        %4039 = vmatprep.mubr.bf16.mxu0 %v3008
        %4040 = vmatmul.mubr.bf16.gmra.mxu0 %v2835
        %v4041 = vpop.f32.mrf.mxu0
        %v4042 = vadd.f32 %v3881, %v4041
        %v4043 = vpop.f32.mrf.mxu0
        %v4044 = vpop.f32.mrf.mxu0
        %v4045 = vadd.f32 %v3884, %v4044
        %v4046 = vpop.f32.mrf.mxu0
        %4047 = vmatprep.mubr.bf16.mxu0 %v3020
        %4048 = vmatmul.mubr.bf16.gmra.mxu0 %v2836
        %v4049 = vpop.f32.mrf.mxu0
        %v4050 = vadd.f32 %v3889, %v4049
        %v4051 = vpop.f32.mrf.mxu0
        %v4052 = vpop.f32.mrf.mxu0
        %v4053 = vadd.f32 %v3892, %v4052
        %v4054 = vpop.f32.mrf.mxu0
        %4055 = vmatprep.mubr.bf16.mxu0 %v3032
        %4056 = vmatmul.mubr.bf16.gmra.mxu0 0
        %v4057 = vpop.f32.mrf.mxu0
        %v4058 = vadd.f32 %v3897, %v4057
        %v4059 = vpop.f32.mrf.mxu0
        %v4060 = vpop.f32.mrf.mxu0
        %v4061 = vadd.f32 %v3900, %v4060
        %v4062 = vpop.f32.mrf.mxu0
        %4063 = vdwg.mxu0
        %4064 = vmatprep.subr.bf16.mxu0 0
        %4065 = vmatpush1.bf16.msra.mxu0 %v3637
        %4066 = vmatprep.subr.bf16.mxu0 0
        %4067 = vmatpush1.bf16.msra.mxu0 %v3636
        %4068 = vmatprep.subr.bf16.mxu0 0
        %4069 = vmatpush1.bf16.msra.mxu0 %v3635
        %4070 = vmatprep.subr.bf16.mxu0 0
        %4071 = vmatpush1.bf16.msra.mxu0 %v3634
        %4072 = vmatprep.subr.bf16.mxu0 0
        %4073 = vmatpush1.bf16.msra.mxu0 %v3633
        %4074 = vmatprep.subr.bf16.mxu0 0
        %4075 = vmatpush1.bf16.msra.mxu0 %v3632
        %4076 = vmatprep.subr.bf16.mxu0 0
        %4077 = vmatpush1.bf16.msra.mxu0 %v3631
        %4078 = vmatprep.subr.bf16.mxu0 0
        %4079 = vmatpush1.bf16.msra.mxu0 %v3630
        %4080 = vmatprep.subr.bf16.mxu0 0
        %4081 = vmatpush2.bf16.msra.mxu0 %v3645
        %4082 = vmatprep.subr.bf16.mxu0 0
        %4083 = vmatpush2.bf16.msra.mxu0 %v3644
        %4084 = vmatprep.subr.bf16.mxu0 0
        %4085 = vmatpush2.bf16.msra.mxu0 %v3643
        %4086 = vmatprep.subr.bf16.mxu0 0
        %4087 = vmatpush2.bf16.msra.mxu0 %v3642
        %4088 = vmatprep.subr.bf16.mxu0 0
        %4089 = vmatpush2.bf16.msra.mxu0 %v3641
        %4090 = vmatprep.subr.bf16.mxu0 0
        %4091 = vmatpush2.bf16.msra.mxu0 %v3640
        %4092 = vmatprep.subr.bf16.mxu0 0
        %4093 = vmatpush2.bf16.msra.mxu0 %v3639
        %4094 = vmatprep.subr.bf16.mxu0 0
        %4095 = vmatpush2.bf16.msra.mxu0 %v3638
        %4096 = vmatprep.mubr.bf16.mxu0 %v2876
        %4097 = vmatmul.mubr.bf16.gmra.mxu0 %v2864
        %v4098 = vpop.f32.mrf.mxu0
        %v4099 = vadd.f32 %v3938, %v4098
        %v4100 = vpop.f32.mrf.mxu0
        %v4101 = vpop.f32.mrf.mxu0
        %v4102 = vadd.f32 %v3941, %v4101
        %v4103 = vpop.f32.mrf.mxu0
        %4104 = vmatprep.mubr.bf16.mxu0 %v2888
        %4105 = vmatmul.mubr.bf16.gmra.mxu0 %v2876
        %v4106 = vpop.f32.mrf.mxu0
        %v4107 = vadd.f32 %v3946, %v4106
        %v4108 = vpop.f32.mrf.mxu0
        %v4109 = vpop.f32.mrf.mxu0
        %v4110 = vadd.f32 %v3949, %v4109
        %v4111 = vpop.f32.mrf.mxu0
        %4112 = vmatprep.mubr.bf16.mxu0 %v2900
        %4113 = vmatmul.mubr.bf16.gmra.mxu0 %v2888
        %v4114 = vpop.f32.mrf.mxu0
        %v4115 = vadd.f32 %v3954, %v4114
        %v4116 = vpop.f32.mrf.mxu0
        %v4117 = vpop.f32.mrf.mxu0
        %v4118 = vadd.f32 %v3957, %v4117
        %v4119 = vpop.f32.mrf.mxu0
        %4120 = vmatprep.mubr.bf16.mxu0 %v2912
        %4121 = vmatmul.mubr.bf16.gmra.mxu0 %v2900
        %v4122 = vpop.f32.mrf.mxu0
        %v4123 = vadd.f32 %v3962, %v4122
        %v4124 = vpop.f32.mrf.mxu0
        %v4125 = vpop.f32.mrf.mxu0
        %v4126 = vadd.f32 %v3965, %v4125
        %v4127 = vpop.f32.mrf.mxu0
        %4128 = vmatprep.mubr.bf16.mxu0 %v2924
        %4129 = vmatmul.mubr.bf16.gmra.mxu0 %v2912
        %v4130 = vpop.f32.mrf.mxu0
        %v4131 = vadd.f32 %v3970, %v4130
        %v4132 = vpop.f32.mrf.mxu0
        %v4133 = vpop.f32.mrf.mxu0
        %v4134 = vadd.f32 %v3973, %v4133
        %v4135 = vpop.f32.mrf.mxu0
        %4136 = vmatprep.mubr.bf16.mxu0 %v2936
        %4137 = vmatmul.mubr.bf16.gmra.mxu0 %v2924
        %v4138 = vpop.f32.mrf.mxu0
        %v4139 = vadd.f32 %v3978, %v4138
        %v4140 = vpop.f32.mrf.mxu0
        %v4141 = vpop.f32.mrf.mxu0
        %v4142 = vadd.f32 %v3981, %v4141
        %v4143 = vpop.f32.mrf.mxu0
        %4144 = vmatprep.mubr.bf16.mxu0 %v2948
        %4145 = vmatmul.mubr.bf16.gmra.mxu0 %v2936
        %v4146 = vpop.f32.mrf.mxu0
        %v4147 = vadd.f32 %v3986, %v4146
        %v4148 = vpop.f32.mrf.mxu0
        %v4149 = vpop.f32.mrf.mxu0
        %v4150 = vadd.f32 %v3989, %v4149
        %v4151 = vpop.f32.mrf.mxu0
        %4152 = vmatprep.mubr.bf16.mxu0 %v2960
        %4153 = vmatmul.mubr.bf16.gmra.mxu0 %v2948
        %v4154 = vpop.f32.mrf.mxu0
        %v4155 = vadd.f32 %v3994, %v4154
        %v4156 = vpop.f32.mrf.mxu0
        %v4157 = vpop.f32.mrf.mxu0
        %v4158 = vadd.f32 %v3997, %v4157
        %v4159 = vpop.f32.mrf.mxu0
        %4160 = vmatprep.mubr.bf16.mxu0 %v2972
        %4161 = vmatmul.mubr.bf16.gmra.mxu0 %v2960
        %v4162 = vpop.f32.mrf.mxu0
        %v4163 = vadd.f32 %v4002, %v4162
        %v4164 = vpop.f32.mrf.mxu0
        %v4165 = vpop.f32.mrf.mxu0
        %v4166 = vadd.f32 %v4005, %v4165
        %v4167 = vpop.f32.mrf.mxu0
        %4168 = vmatprep.mubr.bf16.mxu0 %v2984
        %4169 = vmatmul.mubr.bf16.gmra.mxu0 %v2972
        %v4170 = vpop.f32.mrf.mxu0
        %v4171 = vadd.f32 %v4010, %v4170
        %v4172 = vpop.f32.mrf.mxu0
        %v4173 = vpop.f32.mrf.mxu0
        %v4174 = vadd.f32 %v4013, %v4173
        %v4175 = vpop.f32.mrf.mxu0
        %4176 = vmatprep.mubr.bf16.mxu0 %v2996
        %4177 = vmatmul.mubr.bf16.gmra.mxu0 %v2984
        %v4178 = vpop.f32.mrf.mxu0
        %v4179 = vadd.f32 %v4018, %v4178
        %v4180 = vpop.f32.mrf.mxu0
        %v4181 = vpop.f32.mrf.mxu0
        %v4182 = vadd.f32 %v4021, %v4181
        %v4183 = vpop.f32.mrf.mxu0
        %4184 = vmatprep.mubr.bf16.mxu0 %v3008
        %4185 = vmatmul.mubr.bf16.gmra.mxu0 %v2996
        %v4186 = vpop.f32.mrf.mxu0
        %v4187 = vadd.f32 %v4026, %v4186
        %v4188 = vpop.f32.mrf.mxu0
        %v4189 = vpop.f32.mrf.mxu0
        %v4190 = vadd.f32 %v4029, %v4189
        %v4191 = vpop.f32.mrf.mxu0
        %4192 = vmatprep.mubr.bf16.mxu0 %v3020
        %4193 = vmatmul.mubr.bf16.gmra.mxu0 %v3008
        %v4194 = vpop.f32.mrf.mxu0
        %v4195 = vadd.f32 %v4034, %v4194
        %v4196 = vpop.f32.mrf.mxu0
        %v4197 = vpop.f32.mrf.mxu0
        %v4198 = vadd.f32 %v4037, %v4197
        %v4199 = vpop.f32.mrf.mxu0
        %4200 = vmatprep.mubr.bf16.mxu0 %v3032
        %4201 = vmatmul.mubr.bf16.gmra.mxu0 %v3020
        %v4202 = vpop.f32.mrf.mxu0
        %v4203 = vadd.f32 %v4042, %v4202
        %v4204 = vpop.f32.mrf.mxu0
        %v4205 = vpop.f32.mrf.mxu0
        %v4206 = vadd.f32 %v4045, %v4205
        %v4207 = vpop.f32.mrf.mxu0
        %4208 = vmatprep.mubr.bf16.mxu0 %v3060
        %4209 = vmatmul.mubr.bf16.gmra.mxu0 %v3032
        %v4210 = vpop.f32.mrf.mxu0
        %v4211 = vadd.f32 %v4050, %v4210
        %v4212 = vpop.f32.mrf.mxu0
        %v4213 = vpop.f32.mrf.mxu0
        %v4214 = vadd.f32 %v4053, %v4213
        %v4215 = vpop.f32.mrf.mxu0
        %4216 = vmatprep.mubr.bf16.mxu0 %v973
        %4217 = vmatmul.mubr.bf16.gmra.mxu0 %v3060
        %v4218 = vpop.f32.mrf.mxu0
        %v4219 = vadd.f32 %v4058, %v4218
        %v4220 = vpop.f32.mrf.mxu0
        %v4221 = vpop.f32.mrf.mxu0
        %v4222 = vadd.f32 %v4061, %v4221
        %v4223 = vpop.f32.mrf.mxu0
        %4224 = vdwg.mxu0
        %4225 = vmatprep.subr.bf16.mxu0 0
        %4226 = vmatpush1.bf16.msra.mxu0 %v3653
        %4227 = vmatprep.subr.bf16.mxu0 0
        %4228 = vmatpush1.bf16.msra.mxu0 %v3652
        %4229 = vmatprep.subr.bf16.mxu0 0
        %4230 = vmatpush1.bf16.msra.mxu0 %v3651
        %4231 = vmatprep.subr.bf16.mxu0 0
        %4232 = vmatpush1.bf16.msra.mxu0 %v3650
        %4233 = vmatprep.subr.bf16.mxu0 0
        %4234 = vmatpush1.bf16.msra.mxu0 %v3649
        %4235 = vmatprep.subr.bf16.mxu0 0
        %4236 = vmatpush1.bf16.msra.mxu0 %v3648
        %4237 = vmatprep.subr.bf16.mxu0 0
        %4238 = vmatpush1.bf16.msra.mxu0 %v3647
        %4239 = vmatprep.subr.bf16.mxu0 0
        %4240 = vmatpush1.bf16.msra.mxu0 %v3646
        %4241 = vmatprep.subr.bf16.mxu0 0
        %4242 = vmatpush2.bf16.msra.mxu0 %v3661
        %4243 = vmatprep.subr.bf16.mxu0 0
        %4244 = vmatpush2.bf16.msra.mxu0 %v3660
        %4245 = vmatprep.subr.bf16.mxu0 0
        %4246 = vmatpush2.bf16.msra.mxu0 %v3659
        %4247 = vmatprep.subr.bf16.mxu0 0
        %4248 = vmatpush2.bf16.msra.mxu0 %v3658
        %4249 = vmatprep.subr.bf16.mxu0 0
        %4250 = vmatpush2.bf16.msra.mxu0 %v3657
        %4251 = vmatprep.subr.bf16.mxu0 0
        %4252 = vmatpush2.bf16.msra.mxu0 %v3656
        %4253 = vmatprep.subr.bf16.mxu0 0
        %4254 = vmatpush2.bf16.msra.mxu0 %v3655
        %4255 = vmatprep.subr.bf16.mxu0 0
        %4256 = vmatpush2.bf16.msra.mxu0 %v3654
        %4257 = vmatprep.mubr.bf16.mxu0 %v3094
        %4258 = vmatmul.mubr.bf16.gmra.mxu0 %v1218
        %v4259 = vpop.f32.mrf.mxu0
        %v4260 = vadd.f32 %v4099, %v4259
        %v4261 = vpop.f32.mrf.mxu0
        %v4262 = vpop.f32.mrf.mxu0
        %v4263 = vadd.f32 %v4102, %v4262
        %v4264 = vpop.f32.mrf.mxu0
        %4265 = vmatprep.mubr.bf16.mxu0 %v3097
        %4266 = vmatmul.mubr.bf16.gmra.mxu0 %v3094
        %v4267 = vpop.f32.mrf.mxu0
        %v4268 = vadd.f32 %v4107, %v4267
        %v4269 = vpop.f32.mrf.mxu0
        %v4270 = vpop.f32.mrf.mxu0
        %v4271 = vadd.f32 %v4110, %v4270
        %v4272 = vpop.f32.mrf.mxu0
        %4273 = vmatprep.mubr.bf16.mxu0 %v3100
        %4274 = vmatmul.mubr.bf16.gmra.mxu0 %v3097
        %v4275 = vpop.f32.mrf.mxu0
        %v4276 = vadd.f32 %v4115, %v4275
        %v4277 = vpop.f32.mrf.mxu0
        %v4278 = vpop.f32.mrf.mxu0
        %v4279 = vadd.f32 %v4118, %v4278
        %v4280 = vpop.f32.mrf.mxu0
        %4281 = vmatprep.mubr.bf16.mxu0 %v3103
        %4282 = vmatmul.mubr.bf16.gmra.mxu0 %v3100
        %v4283 = vpop.f32.mrf.mxu0
        %v4284 = vadd.f32 %v4123, %v4283
        %v4285 = vpop.f32.mrf.mxu0
        %v4286 = vpop.f32.mrf.mxu0
        %v4287 = vadd.f32 %v4126, %v4286
        %v4288 = vpop.f32.mrf.mxu0
        %4289 = vmatprep.mubr.bf16.mxu0 %v3106
        %4290 = vmatmul.mubr.bf16.gmra.mxu0 %v3103
        %v4291 = vpop.f32.mrf.mxu0
        %v4292 = vadd.f32 %v4131, %v4291
        %v4293 = vpop.f32.mrf.mxu0
        %v4294 = vpop.f32.mrf.mxu0
        %v4295 = vadd.f32 %v4134, %v4294
        %v4296 = vpop.f32.mrf.mxu0
        %4297 = vmatprep.mubr.bf16.mxu0 %v3109
        %4298 = vmatmul.mubr.bf16.gmra.mxu0 %v3106
        %v4299 = vpop.f32.mrf.mxu0
        %v4300 = vadd.f32 %v4139, %v4299
        %v4301 = vpop.f32.mrf.mxu0
        %v4302 = vpop.f32.mrf.mxu0
        %v4303 = vadd.f32 %v4142, %v4302
        %v4304 = vpop.f32.mrf.mxu0
        %4305 = vmatprep.mubr.bf16.mxu0 %v3112
        %4306 = vmatmul.mubr.bf16.gmra.mxu0 %v3109
        %v4307 = vpop.f32.mrf.mxu0
        %v4308 = vadd.f32 %v4147, %v4307
        %v4309 = vpop.f32.mrf.mxu0
        %v4310 = vpop.f32.mrf.mxu0
        %v4311 = vadd.f32 %v4150, %v4310
        %v4312 = vpop.f32.mrf.mxu0
        %4313 = vmatprep.mubr.bf16.mxu0 %v3115
        %4314 = vmatmul.mubr.bf16.gmra.mxu0 %v3112
        %v4315 = vpop.f32.mrf.mxu0
        %v4316 = vadd.f32 %v4155, %v4315
        %v4317 = vpop.f32.mrf.mxu0
        %v4318 = vpop.f32.mrf.mxu0
        %v4319 = vadd.f32 %v4158, %v4318
        %v4320 = vpop.f32.mrf.mxu0
        %4321 = vmatprep.mubr.bf16.mxu0 %v3118
        %4322 = vmatmul.mubr.bf16.gmra.mxu0 %v3115
        %v4323 = vpop.f32.mrf.mxu0
        %v4324 = vadd.f32 %v4163, %v4323
        %v4325 = vpop.f32.mrf.mxu0
        %v4326 = vpop.f32.mrf.mxu0
        %v4327 = vadd.f32 %v4166, %v4326
        %v4328 = vpop.f32.mrf.mxu0
        %4329 = vmatprep.mubr.bf16.mxu0 %v3121
        %4330 = vmatmul.mubr.bf16.gmra.mxu0 %v3118
        %v4331 = vpop.f32.mrf.mxu0
        %v4332 = vadd.f32 %v4171, %v4331
        %v4333 = vpop.f32.mrf.mxu0
        %v4334 = vpop.f32.mrf.mxu0
        %v4335 = vadd.f32 %v4174, %v4334
        %v4336 = vpop.f32.mrf.mxu0
        %4337 = vmatprep.mubr.bf16.mxu0 %v3124
        %4338 = vmatmul.mubr.bf16.gmra.mxu0 %v3121
        %v4339 = vpop.f32.mrf.mxu0
        %v4340 = vadd.f32 %v4179, %v4339
        %v4341 = vpop.f32.mrf.mxu0
        %v4342 = vpop.f32.mrf.mxu0
        %v4343 = vadd.f32 %v4182, %v4342
        %v4344 = vpop.f32.mrf.mxu0
        %4345 = vmatprep.mubr.bf16.mxu0 %v3127
        %4346 = vmatmul.mubr.bf16.gmra.mxu0 %v3124
        %v4347 = vpop.f32.mrf.mxu0
        %v4348 = vadd.f32 %v4187, %v4347
        %v4349 = vpop.f32.mrf.mxu0
        %v4350 = vpop.f32.mrf.mxu0
        %v4351 = vadd.f32 %v4190, %v4350
        %v4352 = vpop.f32.mrf.mxu0
        %4353 = vmatprep.mubr.bf16.mxu0 %v3130
        %4354 = vmatmul.mubr.bf16.gmra.mxu0 %v3127
        %v4355 = vpop.f32.mrf.mxu0
        %v4356 = vadd.f32 %v4195, %v4355
        %v4357 = vpop.f32.mrf.mxu0
        %v4358 = vpop.f32.mrf.mxu0
        %v4359 = vadd.f32 %v4198, %v4358
        %v4360 = vpop.f32.mrf.mxu0
        %4361 = vmatprep.mubr.bf16.mxu0 %v3133
        %4362 = vmatmul.mubr.bf16.gmra.mxu0 %v3130
        %v4363 = vpop.f32.mrf.mxu0
        %v4364 = vadd.f32 %v4203, %v4363
        %v4365 = vpop.f32.mrf.mxu0
        %v4366 = vpop.f32.mrf.mxu0
        %v4367 = vadd.f32 %v4206, %v4366
        %v4368 = vpop.f32.mrf.mxu0
        %4369 = vmatprep.mubr.bf16.mxu0 %v3136
        %4370 = vmatmul.mubr.bf16.gmra.mxu0 %v3133
        %v4371 = vpop.f32.mrf.mxu0
        %v4372 = vadd.f32 %v4211, %v4371
        %v4373 = vpop.f32.mrf.mxu0
        %v4374 = vpop.f32.mrf.mxu0
        %v4375 = vadd.f32 %v4214, %v4374
        %v4376 = vpop.f32.mrf.mxu0
        %4377 = vmatprep.mubr.bf16.mxu0 %v3157
        %4378 = vmatmul.mubr.bf16.gmra.mxu0 %v3136
        %v4379 = vpop.f32.mrf.mxu0
        %v4380 = vadd.f32 %v4219, %v4379
        %v4381 = vpop.f32.mrf.mxu0
        %v4382 = vpop.f32.mrf.mxu0
        %v4383 = vadd.f32 %v4222, %v4382
        %v4384 = vpop.f32.mrf.mxu0
        %4385 = vdwg.mxu0
        %4386 = vmatprep.subr.bf16.mxu0 0
        %4387 = vmatpush1.bf16.msra.mxu0 %v3669
        %4388 = vmatprep.subr.bf16.mxu0 0
        %4389 = vmatpush1.bf16.msra.mxu0 %v3668
        %4390 = vmatprep.subr.bf16.mxu0 0
        %4391 = vmatpush1.bf16.msra.mxu0 %v3667
        %4392 = vmatprep.subr.bf16.mxu0 0
        %4393 = vmatpush1.bf16.msra.mxu0 %v3666
        %4394 = vmatprep.subr.bf16.mxu0 0
        %4395 = vmatpush1.bf16.msra.mxu0 %v3665
        %4396 = vmatprep.subr.bf16.mxu0 0
        %4397 = vmatpush1.bf16.msra.mxu0 %v3664
        %4398 = vmatprep.subr.bf16.mxu0 0
        %4399 = vmatpush1.bf16.msra.mxu0 %v3663
        %4400 = vmatprep.subr.bf16.mxu0 0
        %4401 = vmatpush1.bf16.msra.mxu0 %v3662
        %4402 = vmatprep.subr.bf16.mxu0 0
        %4403 = vmatpush2.bf16.msra.mxu0 0
        %4404 = vmatprep.subr.bf16.mxu0 0
        %4405 = vmatpush2.bf16.msra.mxu0 0
        %4406 = vmatprep.subr.bf16.mxu0 0
        %4407 = vmatpush2.bf16.msra.mxu0 0
        %4408 = vmatprep.subr.bf16.mxu0 0
        %4409 = vmatpush2.bf16.msra.mxu0 0
        %4410 = vmatprep.subr.bf16.mxu0 0
        %4411 = vmatpush2.bf16.msra.mxu0 0
        %4412 = vmatprep.subr.bf16.mxu0 0
        %4413 = vmatpush2.bf16.msra.mxu0 0
        %4414 = vmatprep.subr.bf16.mxu0 0
        %4415 = vmatpush2.bf16.msra.mxu0 0
        %4416 = vmatprep.subr.bf16.mxu0 0
        %4417 = vmatpush2.bf16.msra.mxu0 0
        %4418 = vmatprep.mubr.bf16.mxu0 0
        %4419 = vmatmul.mubr.bf16.gmra.mxu0 %v3097
        %v4420 = vpop.f32.mrf.mxu0
        %v4421 = vadd.f32 %v4260, %v4420
        %v4422 = vpop.f32.mrf.mxu0
        %v4423 = vpop.f32.mrf.mxu0
        %v4424 = vadd.f32 %v4263, %v4423
        %v4425 = vpop.f32.mrf.mxu0
        %4426 = vmatprep.mubr.bf16.mxu0 0
        %4427 = vmatmul.mubr.bf16.gmra.mxu0 %v3100
        %v4428 = vpop.f32.mrf.mxu0
        %v4429 = vadd.f32 %v4268, %v4428
        %v4430 = vpop.f32.mrf.mxu0
        %v4431 = vpop.f32.mrf.mxu0
        %v4432 = vadd.f32 %v4271, %v4431
        %v4433 = vpop.f32.mrf.mxu0
        %4434 = vmatprep.mubr.bf16.mxu0 0
        %4435 = vmatmul.mubr.bf16.gmra.mxu0 %v3103
        %v4436 = vpop.f32.mrf.mxu0
        %v4437 = vadd.f32 %v4276, %v4436
        %v4438 = vpop.f32.mrf.mxu0
        %v4439 = vpop.f32.mrf.mxu0
        %v4440 = vadd.f32 %v4279, %v4439
        %v4441 = vpop.f32.mrf.mxu0
        %4442 = vmatprep.mubr.bf16.mxu0 0
        %4443 = vmatmul.mubr.bf16.gmra.mxu0 %v3106
        %v4444 = vpop.f32.mrf.mxu0
        %v4445 = vadd.f32 %v4284, %v4444
        %v4446 = vpop.f32.mrf.mxu0
        %v4447 = vpop.f32.mrf.mxu0
        %v4448 = vadd.f32 %v4287, %v4447
        %v4449 = vpop.f32.mrf.mxu0
        %4450 = vmatprep.mubr.bf16.mxu0 0
        %4451 = vmatmul.mubr.bf16.gmra.mxu0 %v3109
        %v4452 = vpop.f32.mrf.mxu0
        %v4453 = vadd.f32 %v4292, %v4452
        %v4454 = vpop.f32.mrf.mxu0
        %v4455 = vpop.f32.mrf.mxu0
        %v4456 = vadd.f32 %v4295, %v4455
        %v4457 = vpop.f32.mrf.mxu0
        %4458 = vmatprep.mubr.bf16.mxu0 0
        %4459 = vmatmul.mubr.bf16.gmra.mxu0 %v3112
        %v4460 = vpop.f32.mrf.mxu0
        %v4461 = vadd.f32 %v4300, %v4460
        %v4462 = vpop.f32.mrf.mxu0
        %v4463 = vpop.f32.mrf.mxu0
        %v4464 = vadd.f32 %v4303, %v4463
        %v4465 = vpop.f32.mrf.mxu0
        %4466 = vmatprep.mubr.bf16.mxu0 0
        %4467 = vmatmul.mubr.bf16.gmra.mxu0 %v3115
        %v4468 = vpop.f32.mrf.mxu0
        %v4469 = vadd.f32 %v4308, %v4468
        %v4470 = vpop.f32.mrf.mxu0
        %v4471 = vpop.f32.mrf.mxu0
        %v4472 = vadd.f32 %v4311, %v4471
        %v4473 = vpop.f32.mrf.mxu0
        %4474 = vmatprep.mubr.bf16.mxu0 0
        %4475 = vmatmul.mubr.bf16.gmra.mxu0 %v3118
        %v4476 = vpop.f32.mrf.mxu0
        %v4477 = vadd.f32 %v4316, %v4476
        %v4478 = vpop.f32.mrf.mxu0
        %v4479 = vpop.f32.mrf.mxu0
        %v4480 = vadd.f32 %v4319, %v4479
        %v4481 = vpop.f32.mrf.mxu0
        %4482 = vmatprep.mubr.bf16.mxu0 0
        %4483 = vmatmul.mubr.bf16.gmra.mxu0 %v3121
        %v4484 = vpop.f32.mrf.mxu0
        %v4485 = vadd.f32 %v4324, %v4484
        %v4486 = vpop.f32.mrf.mxu0
        %v4487 = vpop.f32.mrf.mxu0
        %v4488 = vadd.f32 %v4327, %v4487
        %v4489 = vpop.f32.mrf.mxu0
        %4490 = vmatprep.mubr.bf16.mxu0 0
        %4491 = vmatmul.mubr.bf16.gmra.mxu0 %v3124
        %v4492 = vpop.f32.mrf.mxu0
        %v4493 = vadd.f32 %v4332, %v4492
        %v4494 = vpop.f32.mrf.mxu0
        %v4495 = vpop.f32.mrf.mxu0
        %v4496 = vadd.f32 %v4335, %v4495
        %v4497 = vpop.f32.mrf.mxu0
        %4498 = vmatprep.mubr.bf16.mxu0 0
        %4499 = vmatmul.mubr.bf16.gmra.mxu0 %v3127
        %v4500 = vpop.f32.mrf.mxu0
        %v4501 = vadd.f32 %v4340, %v4500
        %v4502 = vpop.f32.mrf.mxu0
        %v4503 = vpop.f32.mrf.mxu0
        %v4504 = vadd.f32 %v4343, %v4503
        %v4505 = vpop.f32.mrf.mxu0
        %4506 = vmatprep.mubr.bf16.mxu0 0
        %4507 = vmatmul.mubr.bf16.gmra.mxu0 %v3130
        %v4508 = vpop.f32.mrf.mxu0
        %v4509 = vadd.f32 %v4348, %v4508
        %v4510 = vpop.f32.mrf.mxu0
        %v4511 = vpop.f32.mrf.mxu0
        %v4512 = vadd.f32 %v4351, %v4511
        %v4513 = vpop.f32.mrf.mxu0
        %4514 = vmatprep.mubr.bf16.mxu0 0
        %4515 = vmatmul.mubr.bf16.gmra.mxu0 %v3133
        %v4516 = vpop.f32.mrf.mxu0
        %v4517 = vadd.f32 %v4356, %v4516
        %v4518 = vpop.f32.mrf.mxu0
        %v4519 = vpop.f32.mrf.mxu0
        %v4520 = vadd.f32 %v4359, %v4519
        %v4521 = vpop.f32.mrf.mxu0
        %4522 = vmatprep.mubr.bf16.mxu0 0
        %4523 = vmatmul.mubr.bf16.gmra.mxu0 %v3136
        %v4524 = vpop.f32.mrf.mxu0
        %v4525 = vadd.f32 %v4364, %v4524
        %v4526 = vpop.f32.mrf.mxu0
        %v4527 = vpop.f32.mrf.mxu0
        %v4528 = vadd.f32 %v4367, %v4527
        %v4529 = vpop.f32.mrf.mxu0
        %4530 = vmatprep.mubr.bf16.mxu0 0
        %4531 = vmatmul.mubr.bf16.gmra.mxu0 %v3157
        %v4532 = vpop.f32.mrf.mxu0
        %v4533 = vadd.f32 %v4372, %v4532
        %v4534 = vpop.f32.mrf.mxu0
        %v4535 = vpop.f32.mrf.mxu0
        %v4536 = vadd.f32 %v4375, %v4535
        %v4537 = vpop.f32.mrf.mxu0
        %4538 = vmatprep.mubr.bf16.mxu0 0
        %4539 = vmatmul.mubr.bf16.gmra.mxu0 %v1218
        %v4540 = vpop.f32.mrf.mxu0
        %v4541 = vadd.f32 %v4380, %v4540
        %v4542 = vpop.f32.mrf.mxu0
        %v4543 = vpop.f32.mrf.mxu0
        %v4544 = vadd.f32 %v4383, %v4543
        %v4545 = vpop.f32.mrf.mxu0
        %4546 = vdwg.mxu0
        %v4547 = vpack.c.bf16 %v351, %v350
        %v4548 = vpack.c.bf16 %v353, %v352
        %v4549 = vpack.c.bf16 %v355, %v354
        %v4550 = vpack.c.bf16 %v357, %v356
        %v4551 = vpack.c.bf16 %v359, %v358
        %v4552 = vpack.c.bf16 %v361, %v360
        %v4553 = vpack.c.bf16 %v363, %v362
        %v4554 = vpack.c.bf16 %v365, %v364
        %v4555 = vpack.c.bf16 %v367, %v366
        %v4556 = vpack.c.bf16 %v369, %v368
        %v4557 = vpack.c.bf16 %v371, %v370
        %v4558 = vpack.c.bf16 %v373, %v372
        %v4559 = vpack.c.bf16 %v375, %v374
        %v4560 = vpack.c.bf16 %v377, %v376
        %v4561 = vpack.c.bf16 %v379, %v378
        %v4562 = vpack.c.bf16 %v381, %v380
        %v4563 = vld [vmem:[%s6] sm:$0xf]
        %v4564 = vld [vmem:[%s6 + $0x4] sm:$0xf]
        %v4565 = vld [vmem:[%s6 + $0x8] sm:$0xf]
        %v4566 = vld [vmem:[%s6 + $0xc] sm:$0xf]
        %v4567 = vld [vmem:[%s6 + $0x10] sm:$0xf]
        %v4568 = vld [vmem:[%s6 + $0x14] sm:$0xf]
        %v4569 = vld [vmem:[%s6 + $0x18] sm:$0xf]
        %v4570 = vld [vmem:[%s6 + $0x1c] sm:$0xf]
        %v4571 = vld [vmem:[%s7] sm:$0x1]
        %v4573 = vlaneseq
        %v4574 = vshrl.u32 %v4573, 7
        %v4575 = vsub.s32 0, %v4574
        %v4576 = vrot.slane %v4571, %v4575
        %v4586 = vunpack.c.l.b16 %v4563
        %v4587 = vunpack.c.l.b16 %v4564
        %v4588 = vunpack.c.l.b16 %v4565
        %v4589 = vunpack.c.l.b16 %v4566
        %v4590 = vunpack.c.l.b16 %v4567
        %v4591 = vunpack.c.l.b16 %v4568
        %v4592 = vunpack.c.l.b16 %v4569
        %v4593 = vunpack.c.l.b16 %v4570
        %v4594 = vpack.c.b16 %v4587, %v4586
        %v4595 = vpack.c.b16 %v4589, %v4588
        %v4596 = vpack.c.b16 %v4591, %v4590
        %v4597 = vpack.c.b16 %v4593, %v4592
        %v4603 = vsel %vm1300, %v4547, 0
        %v4606 = vsel %vm1300, %v4548, 0
        %v4609 = vsel %vm1300, %v4549, 0
        %v4612 = vsel %vm1300, %v4550, 0
        %v4615 = vsel %vm1300, %v4551, 0
        %v4618 = vsel %vm1300, %v4552, 0
        %v4621 = vsel %vm1300, %v4553, 0
        %v4624 = vsel %vm1300, %v4554, 0
        %v4627 = vsel %vm1300, %v4555, 0
        %v4630 = vsel %vm1300, %v4556, 0
        %v4633 = vsel %vm1300, %v4557, 0
        %v4636 = vsel %vm1300, %v4558, 0
        %v4639 = vsel %vm1300, %v4559, 0
        %v4642 = vsel %vm1300, %v4560, 0
        %v4645 = vsel %vm1300, %v4561, 0
        %v4648 = vsel %vm1300, %v4562, 0
        %4650 = vmatprep.subr.bf16.mxu0 0
        %4651 = vmatpush1.bf16.msra.mxu0 0
        %4652 = vmatprep.subr.bf16.mxu0 0
        %4653 = vmatpush1.bf16.msra.mxu0 0
        %4654 = vmatprep.subr.bf16.mxu0 0
        %4655 = vmatpush1.bf16.msra.mxu0 0
        %4656 = vmatprep.subr.bf16.mxu0 0
        %4657 = vmatpush1.bf16.msra.mxu0 0
        %4658 = vmatprep.subr.bf16.mxu0 0
        %4659 = vmatpush1.bf16.msra.mxu0 %v4597
        %4660 = vmatprep.subr.bf16.mxu0 0
        %4661 = vmatpush1.bf16.msra.mxu0 %v4596
        %4662 = vmatprep.subr.bf16.mxu0 0
        %4663 = vmatpush1.bf16.msra.mxu0 %v4595
        %4664 = vmatprep.subr.bf16.mxu0 0
        %4665 = vmatpush1.bf16.msra.mxu0 %v4594
        %4666 = vmatprep.subr.bf16.mxu0 0
        %4667 = vmatpush2.bf16.msra.mxu0 0
        %4668 = vmatprep.subr.bf16.mxu0 0
        %4669 = vmatpush2.bf16.msra.mxu0 0
        %4670 = vmatprep.subr.bf16.mxu0 0
        %4671 = vmatpush2.bf16.msra.mxu0 0
        %4672 = vmatprep.subr.bf16.mxu0 0
        %4673 = vmatpush2.bf16.msra.mxu0 0
        %4674 = vmatprep.subr.bf16.mxu0 0
        %4675 = vmatpush2.bf16.msra.mxu0 0
        %4676 = vmatprep.subr.bf16.mxu0 0
        %4677 = vmatpush2.bf16.msra.mxu0 0
        %4678 = vmatprep.subr.bf16.mxu0 0
        %4679 = vmatpush2.bf16.msra.mxu0 0
        %4680 = vmatprep.subr.bf16.mxu0 0
        %4681 = vmatpush2.bf16.msra.mxu0 0
        %4682 = vmatprep.mubr.bf16.mxu0 0
        %4683 = vmatmul.mubr.bf16.gmra.mxu0 %v4603
        %v4684 = vpop.f32.mrf.mxu0
        %v4685 = vadd.f32 %v4576, %v4684
        %v4686 = vpop.f32.mrf.mxu0
        %v4687 = vpop.f32.mrf.mxu0
        %v4688 = vadd.f32 %v4576, %v4687
        %v4689 = vpop.f32.mrf.mxu0
        %4690 = vmatprep.mubr.bf16.mxu0 0
        %4691 = vmatmul.mubr.bf16.gmra.mxu0 %v4606
        %v4692 = vpop.f32.mrf.mxu0
        %v4693 = vadd.f32 %v4576, %v4692
        %v4694 = vpop.f32.mrf.mxu0
        %v4695 = vpop.f32.mrf.mxu0
        %v4696 = vadd.f32 %v4576, %v4695
        %v4697 = vpop.f32.mrf.mxu0
        %4698 = vmatprep.mubr.bf16.mxu0 0
        %4699 = vmatmul.mubr.bf16.gmra.mxu0 %v4609
        %v4700 = vpop.f32.mrf.mxu0
        %v4701 = vadd.f32 %v4576, %v4700
        %v4702 = vpop.f32.mrf.mxu0
        %v4703 = vpop.f32.mrf.mxu0
        %v4704 = vadd.f32 %v4576, %v4703
        %v4705 = vpop.f32.mrf.mxu0
        %4706 = vmatprep.mubr.bf16.mxu0 0
        %4707 = vmatmul.mubr.bf16.gmra.mxu0 %v4612
        %v4708 = vpop.f32.mrf.mxu0
        %v4709 = vadd.f32 %v4576, %v4708
        %v4710 = vpop.f32.mrf.mxu0
        %v4711 = vpop.f32.mrf.mxu0
        %v4712 = vadd.f32 %v4576, %v4711
        %v4713 = vpop.f32.mrf.mxu0
        %4714 = vmatprep.mubr.bf16.mxu0 0
        %4715 = vmatmul.mubr.bf16.gmra.mxu0 %v4615
        %v4716 = vpop.f32.mrf.mxu0
        %v4717 = vadd.f32 %v4576, %v4716
        %v4718 = vpop.f32.mrf.mxu0
        %v4719 = vpop.f32.mrf.mxu0
        %v4720 = vadd.f32 %v4576, %v4719
        %v4721 = vpop.f32.mrf.mxu0
        %4722 = vmatprep.mubr.bf16.mxu0 0
        %4723 = vmatmul.mubr.bf16.gmra.mxu0 %v4618
        %v4724 = vpop.f32.mrf.mxu0
        %v4725 = vadd.f32 %v4576, %v4724
        %v4726 = vpop.f32.mrf.mxu0
        %v4727 = vpop.f32.mrf.mxu0
        %v4728 = vadd.f32 %v4576, %v4727
        %v4729 = vpop.f32.mrf.mxu0
        %4730 = vmatprep.mubr.bf16.mxu0 0
        %4731 = vmatmul.mubr.bf16.gmra.mxu0 %v4621
        %v4732 = vpop.f32.mrf.mxu0
        %v4733 = vadd.f32 %v4576, %v4732
        %v4734 = vpop.f32.mrf.mxu0
        %v4735 = vpop.f32.mrf.mxu0
        %v4736 = vadd.f32 %v4576, %v4735
        %v4737 = vpop.f32.mrf.mxu0
        %4738 = vmatprep.mubr.bf16.mxu0 0
        %4739 = vmatmul.mubr.bf16.gmra.mxu0 %v4624
        %v4740 = vpop.f32.mrf.mxu0
        %v4741 = vadd.f32 %v4576, %v4740
        %v4742 = vpop.f32.mrf.mxu0
        %v4743 = vpop.f32.mrf.mxu0
        %v4744 = vadd.f32 %v4576, %v4743
        %v4745 = vpop.f32.mrf.mxu0
        %4746 = vmatprep.mubr.bf16.mxu0 0
        %4747 = vmatmul.mubr.bf16.gmra.mxu0 %v4627
        %v4748 = vpop.f32.mrf.mxu0
        %v4749 = vadd.f32 %v4576, %v4748
        %v4750 = vpop.f32.mrf.mxu0
        %v4751 = vpop.f32.mrf.mxu0
        %v4752 = vadd.f32 %v4576, %v4751
        %v4753 = vpop.f32.mrf.mxu0
        %4754 = vmatprep.mubr.bf16.mxu0 0
        %4755 = vmatmul.mubr.bf16.gmra.mxu0 %v4630
        %v4756 = vpop.f32.mrf.mxu0
        %v4757 = vadd.f32 %v4576, %v4756
        %v4758 = vpop.f32.mrf.mxu0
        %v4759 = vpop.f32.mrf.mxu0
        %v4760 = vadd.f32 %v4576, %v4759
        %v4761 = vpop.f32.mrf.mxu0
        %4762 = vmatprep.mubr.bf16.mxu0 0
        %4763 = vmatmul.mubr.bf16.gmra.mxu0 %v4633
        %v4764 = vpop.f32.mrf.mxu0
        %v4765 = vadd.f32 %v4576, %v4764
        %v4766 = vpop.f32.mrf.mxu0
        %v4767 = vpop.f32.mrf.mxu0
        %v4768 = vadd.f32 %v4576, %v4767
        %v4769 = vpop.f32.mrf.mxu0
        %4770 = vmatprep.mubr.bf16.mxu0 0
        %4771 = vmatmul.mubr.bf16.gmra.mxu0 %v4636
        %v4772 = vpop.f32.mrf.mxu0
        %v4773 = vadd.f32 %v4576, %v4772
        %v4774 = vpop.f32.mrf.mxu0
        %v4775 = vpop.f32.mrf.mxu0
        %v4776 = vadd.f32 %v4576, %v4775
        %v4777 = vpop.f32.mrf.mxu0
        %4778 = vmatprep.mubr.bf16.mxu0 0
        %4779 = vmatmul.mubr.bf16.gmra.mxu0 %v4639
        %v4780 = vpop.f32.mrf.mxu0
        %v4781 = vadd.f32 %v4576, %v4780
        %v4782 = vpop.f32.mrf.mxu0
        %v4783 = vpop.f32.mrf.mxu0
        %v4784 = vadd.f32 %v4576, %v4783
        %v4785 = vpop.f32.mrf.mxu0
        %4786 = vmatprep.mubr.bf16.mxu0 0
        %4787 = vmatmul.mubr.bf16.gmra.mxu0 %v4642
        %v4788 = vpop.f32.mrf.mxu0
        %v4789 = vadd.f32 %v4576, %v4788
        %v4790 = vpop.f32.mrf.mxu0
        %v4791 = vpop.f32.mrf.mxu0
        %v4792 = vadd.f32 %v4576, %v4791
        %v4793 = vpop.f32.mrf.mxu0
        %4794 = vmatprep.mubr.bf16.mxu0 0
        %4795 = vmatmul.mubr.bf16.gmra.mxu0 %v4645
        %v4796 = vpop.f32.mrf.mxu0
        %v4797 = vadd.f32 %v4576, %v4796
        %v4798 = vpop.f32.mrf.mxu0
        %v4799 = vpop.f32.mrf.mxu0
        %v4800 = vadd.f32 %v4576, %v4799
        %v4801 = vpop.f32.mrf.mxu0
        %4802 = vmatprep.mubr.bf16.mxu0 0
        %4803 = vmatmul.mubr.bf16.gmra.mxu0 %v4648
        %v4804 = vpop.f32.mrf.mxu0
        %v4805 = vadd.f32 %v4576, %v4804
        %v4806 = vpop.f32.mrf.mxu0
        %v4807 = vpop.f32.mrf.mxu0
        %v4808 = vadd.f32 %v4576, %v4807
        %v4809 = vpop.f32.mrf.mxu0
        %4810 = vdwg.mxu0
        %s4811 = sld [smem:[#allocation2]]
        %v4812 = vstv %s4811
        %v4813 = vmul.f32 %v4812, %v4421
        %v4814 = vmul.f32 %v4812, %v4424
        %v4815 = vmul.f32 %v4812, %v4429
        %v4816 = vmul.f32 %v4812, %v4432
        %v4817 = vmul.f32 %v4812, %v4437
        %v4818 = vmul.f32 %v4812, %v4440
        %v4819 = vmul.f32 %v4812, %v4445
        %v4820 = vmul.f32 %v4812, %v4448
        %v4821 = vmul.f32 %v4812, %v4453
        %v4822 = vmul.f32 %v4812, %v4456
        %v4823 = vmul.f32 %v4812, %v4461
        %v4824 = vmul.f32 %v4812, %v4464
        %v4825 = vmul.f32 %v4812, %v4469
        %v4826 = vmul.f32 %v4812, %v4472
        %v4827 = vmul.f32 %v4812, %v4477
        %v4828 = vmul.f32 %v4812, %v4480
        %v4829 = vmul.f32 %v4812, %v4485
        %v4830 = vmul.f32 %v4812, %v4488
        %v4831 = vmul.f32 %v4812, %v4493
        %v4832 = vmul.f32 %v4812, %v4496
        %v4833 = vmul.f32 %v4812, %v4501
        %v4834 = vmul.f32 %v4812, %v4504
        %v4835 = vmul.f32 %v4812, %v4509
        %v4836 = vmul.f32 %v4812, %v4512
        %v4837 = vmul.f32 %v4812, %v4517
        %v4838 = vmul.f32 %v4812, %v4520
        %v4839 = vmul.f32 %v4812, %v4525
        %v4840 = vmul.f32 %v4812, %v4528
        %v4841 = vmul.f32 %v4812, %v4533
        %v4842 = vmul.f32 %v4812, %v4536
        %v4843 = vmul.f32 %v4812, %v4541
        %v4844 = vmul.f32 %v4812, %v4544
        %v4845 = vadd.f32 %v4685, %v4813
        %v4846 = vadd.f32 %v4688, %v4814
        %v4847 = vadd.f32 %v4693, %v4815
        %v4848 = vadd.f32 %v4696, %v4816
        %v4849 = vadd.f32 %v4701, %v4817
        %v4850 = vadd.f32 %v4704, %v4818
        %v4851 = vadd.f32 %v4709, %v4819
        %v4852 = vadd.f32 %v4712, %v4820
        %v4853 = vadd.f32 %v4717, %v4821
        %v4854 = vadd.f32 %v4720, %v4822
        %v4855 = vadd.f32 %v4725, %v4823
        %v4856 = vadd.f32 %v4728, %v4824
        %v4857 = vadd.f32 %v4733, %v4825
        %v4858 = vadd.f32 %v4736, %v4826
        %v4859 = vadd.f32 %v4741, %v4827
        %v4860 = vadd.f32 %v4744, %v4828
        %v4861 = vadd.f32 %v4749, %v4829
        %v4862 = vadd.f32 %v4752, %v4830
        %v4863 = vadd.f32 %v4757, %v4831
        %v4864 = vadd.f32 %v4760, %v4832
        %v4865 = vadd.f32 %v4765, %v4833
        %v4866 = vadd.f32 %v4768, %v4834
        %v4867 = vadd.f32 %v4773, %v4835
        %v4868 = vadd.f32 %v4776, %v4836
        %v4869 = vadd.f32 %v4781, %v4837
        %v4870 = vadd.f32 %v4784, %v4838
        %v4871 = vadd.f32 %v4789, %v4839
        %v4872 = vadd.f32 %v4792, %v4840
        %v4873 = vadd.f32 %v4797, %v4841
        %v4874 = vadd.f32 %v4800, %v4842
        %v4875 = vadd.f32 %v4805, %v4843
        %v4876 = vadd.f32 %v4808, %v4844
        %4877 = vst [vmem:[%s339] sm:$0xff] %v4845
        %4878 = vst [vmem:[%s339 + $0x8] sm:$0xff] %v4846
        %4879 = vst [vmem:[%s339 + $0x10] sm:$0xff] %v4847
        %4880 = vst [vmem:[%s339 + $0x18] sm:$0xff] %v4848
        %4881 = vst [vmem:[%s339 + $0x20] sm:$0xff] %v4849
        %4882 = vst [vmem:[%s339 + $0x28] sm:$0xff] %v4850
        %4883 = vst [vmem:[%s339 + $0x30] sm:$0xff] %v4851
        %4884 = vst [vmem:[%s339 + $0x38] sm:$0xff] %v4852
        %4885 = vst [vmem:[%s339 + $0x40] sm:$0xff] %v4853
        %4886 = vst [vmem:[%s339 + $0x48] sm:$0xff] %v4854
        %4887 = vst [vmem:[%s339 + $0x50] sm:$0xff] %v4855
        %4888 = vst [vmem:[%s339 + $0x58] sm:$0xff] %v4856
        %4889 = vst [vmem:[%s339 + $0x60] sm:$0xff] %v4857
        %4890 = vst [vmem:[%s339 + $0x68] sm:$0xff] %v4858
        %4891 = vst [vmem:[%s339 + $0x70] sm:$0xff] %v4859
        %4892 = vst [vmem:[%s339 + $0x78] sm:$0xff] %v4860
        %4893 = vst [vmem:[%s339 + $0x80] sm:$0xff] %v4861
        %4894 = vst [vmem:[%s339 + $0x88] sm:$0xff] %v4862
        %4895 = vst [vmem:[%s339 + $0x90] sm:$0xff] %v4863
        %4896 = vst [vmem:[%s339 + $0x98] sm:$0xff] %v4864
        %4897 = vst [vmem:[%s339 + $0xa0] sm:$0xff] %v4865
        %4898 = vst [vmem:[%s339 + $0xa8] sm:$0xff] %v4866
        %4899 = vst [vmem:[%s339 + $0xb0] sm:$0xff] %v4867
        %4900 = vst [vmem:[%s339 + $0xb8] sm:$0xff] %v4868
        %4901 = vst [vmem:[%s339 + $0xc0] sm:$0xff] %v4869
        %4902 = vst [vmem:[%s339 + $0xc8] sm:$0xff] %v4870
        %4903 = vst [vmem:[%s339 + $0xd0] sm:$0xff] %v4871
        %4904 = vst [vmem:[%s339 + $0xd8] sm:$0xff] %v4872
        %4905 = vst [vmem:[%s339 + $0xe0] sm:$0xff] %v4873
        %4906 = vst [vmem:[%s339 + $0xe8] sm:$0xff] %v4874
        %4907 = vst [vmem:[%s339 + $0xf0] sm:$0xff] %v4875
        %4908 = vst [vmem:[%s339 + $0xf8] sm:$0xff] %v4876
        %s4909 = sand.u32 %s231, 1
        %s4910 = scalar_lea.sflag [#allocation4], %s4909
        %s4911 = sand.u32 %s231, 1
        %s4912 = smul.addr %s4911, 256
        %s4913 = scalar_lea.vmem [#allocation3], %s4912
        // Predicated region
        $region57: #{g_block_pallas.3} parent=55 // pred_check
          %p4914 = pneg %p241
        $region58: #{g_block_pallas.3} parent=55 // pred_check_branch
          %4916 = sbr.rel (%p4914) target = $region60
        $region59: #{g_block_pallas.3} parent=55 // pred_region
          %s4918 = ssub.s32 4096, 4096
          %4919 = vsyncadd %s4910, %s4918
          %s4920 = smul.addr %s24, 32
          %s4921 = smul.addr %s4920, 128
          %s4922 = scalar_lea.hbm %s9, %s4921
          %s4923 = sshll.u32 %s4913, 4
          %s4924 = int_to_ptr.vmem [resolvable:$true] %s4923
          %4929 = dma.vmem_to_hbm [thread:$0]  %s4924, 4096, %s4922, %s4910, 128, 128, 8
        $region60: #{g_block_pallas.3} parent=55 // pred_fallthru
          _
      $region56: #{g_block_pallas.3} parent=5 // pred_fallthru
        _
      %p4930 = scmp.le.s32.totalorder 2, %s19
      // Predicated region
      $region61: #{g_block_pallas.3} parent=5 // pred_check
        %p4931 = pneg %p4930
      $region62: #{g_block_pallas.3} parent=5 // pred_check_branch
        %4933 = sbr.rel (%p4931) target = $region64
      $region63: #{g_block_pallas.3} parent=5 // pred_region
        %s4934 = ssub.s32 %s19, 2
        // Predicated region
        $region65: #{g_block_pallas.3} parent=63 // pred_check
          %p4935 = pneg %p247
        $region66: #{g_block_pallas.3} parent=63 // pred_check_branch
          %4937 = sbr.rel (%p4935) target = $region68
        $region67: #{g_block_pallas.3} parent=63 // pred_region
          %s4938 = sand.u32 %s232, 1
          %s4939 = scalar_lea.sflag [#allocation4], %s4938
          %s4940 = sand.u32 %s232, 1
          %s4941 = smul.addr %s4940, 256
          %s4942 = scalar_lea.vmem [#allocation3], %s4941
          %4943 = dma.done %s4939, 4096
        $region68: #{g_block_pallas.3} parent=63 // pred_fallthru
          _
      $region64: #{g_block_pallas.3} parent=5 // pred_fallthru
        _
    $region6: #{g_block_pallas.3} parent=1 // loop_footer
      %s23 = sadd.s32 1, %s19
    $region7: #{g_block_pallas.3} parent=1 // loop_footer_branch
      %18 = sbr.rel target = $region3
    $region8: #{g_block_pallas.3} parent=1 // loop_exit
      _
    %4944 = vsyncpa [#allocation4], 1
    %s4945 = scalar_lea.sflag [#allocation4], 1
    %4946 = vsyncpa %s4945, 1

// kernel: g_block_pallas.2
$region0: #{g_block_pallas.2}
  #allocation0 [shape = 'u32[]', space=smem, size = 0x4, offset = 0x4, fixed_abs, tag = 'smem constant byte address 0x4 - core index']
  #allocation1 [shape = 'u32[144,128]{1,0:T(1,128)}', space=vmem, size = 0x12000, scoped, tag = 'internal scratch']
  %s0 = inlined_call_operand.vmem [shape: f32[2,256], index: 0, kind: input, shape index: {}]
  %s1 = inlined_call_operand.hbm [shape: bf16[256,2048], index: 1, kind: input, shape index: {}]
  %s2 = inlined_call_operand.hbm [shape: f32[1,2048], index: 2, kind: input, shape index: {}]
  %s3 = inlined_call_operand.hbm [shape: bf16[8,256,128], index: 3, kind: input, shape index: {}]
  %s4 = inlined_call_operand.hbm [shape: f32[8,128], index: 4, kind: input, shape index: {}]
  %s5 = inlined_call_operand.vmem [shape: f32[2,8,128], index: 5, kind: output, shape index: {}]
  %s6 = sld [smem:[#allocation0]]
  $region46: #{g_block_pallas.2} parent=0
    _
  %s8 = ssub.s32 1, %s6
  %s9 = scalar_select 0, %s8, %s6
  $region1: #{g_block_pallas.2} parent=0
    #allocation2 [shape = 'u8[1048576]{0}', space=vmem, size = 0x100000, scoped, tag = 'input window, operand 1, single buffered']
    #allocation3 [shape = 's32[1]{0}', space=sflag, size = 0x4, scoped, tag = 'scoped memory for g_block_pallas.2']
    #allocation4 [shape = 'u8[8192]{0}', space=vmem, size = 0x2000, scoped, tag = 'input window, operand 2, single buffered']
    #allocation5 [shape = 's32[1]{0}', space=sflag, size = 0x4, scoped, tag = 'scoped memory for g_block_pallas.2']
    #allocation6 [shape = 'u8[524288]{0}', space=vmem, size = 0x80000, scoped, tag = 'input window, operand 3, single buffered']
    #allocation7 [shape = 'u8[4096]{0}', space=vmem, size = 0x1000, scoped, tag = 'input window, operand 4, single buffered']
    #allocation8 [shape = 's32[1]{0}', space=sflag, size = 0x4, scoped, tag = 'scoped memory for g_block_pallas.2']
    %10 = vsyncpa [#allocation3], 0
    %11 = vsyncpa [#allocation5], 0
    %12 = vsyncpa [#allocation8], 0
    // Predicated region
    $region2: #{g_block_pallas.2} parent=1 // pred_check
      _
    $region3: #{g_block_pallas.2} parent=1 // pred_check_branch
      %14 = sbr.rel (0) target = $region5
    $region4: #{g_block_pallas.2} parent=1 // pred_region
      _
    $region5: #{g_block_pallas.2} parent=1 // pred_fallthru
      _
    // Predicated region
    $region6: #{g_block_pallas.2} parent=1 // pred_check
      _
    $region7: #{g_block_pallas.2} parent=1 // pred_check_branch
      %16 = sbr.rel (0) target = $region9
    $region8: #{g_block_pallas.2} parent=1 // pred_region
      %s18 = ssub.s32 32768, 32768
      %19 = vsyncadd [#allocation3], %s18
      %s20 = sshll.u32 [#allocation2], 4
      %s21 = int_to_ptr.vmem [resolvable:$true] %s20
      %26 = dma.hbm_to_vmem [thread:$0]  %s1, 32768, %s21, [#allocation3], 1024, 1024, 64
    $region9: #{g_block_pallas.2} parent=1 // pred_fallthru
      _
    // Predicated region
    $region10: #{g_block_pallas.2} parent=1 // pred_check
      _
    $region11: #{g_block_pallas.2} parent=1 // pred_check_branch
      %28 = sbr.rel (0) target = $region13
    $region12: #{g_block_pallas.2} parent=1 // pred_region
      %s30 = ssub.s32 256, 256
      %31 = vsyncadd [#allocation5], %s30
      %s33 = sshll.u32 [#allocation4], 4
      %s34 = int_to_ptr.vmem [resolvable:$true] %s33
      %36 = dma.hbm_to_vmem [thread:$0]  %s2, 256, %s34, [#allocation5]
    $region13: #{g_block_pallas.2} parent=1 // pred_fallthru
      _
    // Predicated region
    $region14: #{g_block_pallas.2} parent=1 // pred_check
      _
    $region15: #{g_block_pallas.2} parent=1 // pred_check_branch
      %38 = sbr.rel (0) target = $region17
    $region16: #{g_block_pallas.2} parent=1 // pred_region
      %s40 = ssub.s32 16384, 16384
      %41 = vsyncadd [#allocation5], %s40
      %s42 = sshll.u32 [#allocation6], 4
      %s43 = int_to_ptr.vmem [resolvable:$true] %s42
      %48 = dma.hbm_to_vmem [thread:$0]  %s3, 16384, %s43, [#allocation5], 64, 64, 4
    $region17: #{g_block_pallas.2} parent=1 // pred_fallthru
      _
    // Predicated region
    $region18: #{g_block_pallas.2} parent=1 // pred_check
      _
    $region19: #{g_block_pallas.2} parent=1 // pred_check_branch
      %50 = sbr.rel (0) target = $region21
    $region20: #{g_block_pallas.2} parent=1 // pred_region
      %s52 = ssub.s32 128, 128
      %53 = vsyncadd [#allocation8], %s52
      %s55 = sshll.u32 [#allocation7], 4
      %s56 = int_to_ptr.vmem [resolvable:$true] %s55
      %58 = dma.hbm_to_vmem [thread:$0]  %s4, 128, %s56, [#allocation8]
    $region21: #{g_block_pallas.2} parent=1 // pred_fallthru
      _
    // Predicated region
    $region22: #{g_block_pallas.2} parent=1 // pred_check
      _
    $region23: #{g_block_pallas.2} parent=1 // pred_check_branch
      %60 = sbr.rel (0) target = $region25
    $region24: #{g_block_pallas.2} parent=1 // pred_region
      %61 = dma.done [#allocation3], 32768
    $region25: #{g_block_pallas.2} parent=1 // pred_fallthru
      _
    // Predicated region
    $region26: #{g_block_pallas.2} parent=1 // pred_check
      _
    $region27: #{g_block_pallas.2} parent=1 // pred_check_branch
      %63 = sbr.rel (0) target = $region29
    $region28: #{g_block_pallas.2} parent=1 // pred_region
      %64 = dma.done [#allocation5], 256
    $region29: #{g_block_pallas.2} parent=1 // pred_fallthru
      _
    // Predicated region
    $region30: #{g_block_pallas.2} parent=1 // pred_check
      _
    $region31: #{g_block_pallas.2} parent=1 // pred_check_branch
      %66 = sbr.rel (0) target = $region33
    $region32: #{g_block_pallas.2} parent=1 // pred_region
      %67 = dma.done [#allocation5], 16384
    $region33: #{g_block_pallas.2} parent=1 // pred_fallthru
      _
    // Predicated region
    $region34: #{g_block_pallas.2} parent=1 // pred_check
      _
    $region35: #{g_block_pallas.2} parent=1 // pred_check_branch
      %69 = sbr.rel (0) target = $region37
    $region36: #{g_block_pallas.2} parent=1 // pred_region
      %70 = dma.done [#allocation8], 128
    $region37: #{g_block_pallas.2} parent=1 // pred_fallthru
      _
    %v72 = vld [vmem:[%s0] sm:$0xf]
    %v75 = vunpack.c.l.s4 1983009808
    %v76 = vunpack.c.0.s8 %v75
    %v77 = vlaneseq
    %v78 = vshrl.u32 %v77, 7
    %v79 = vsub.s32 %v76, %v78
    %v80 = vrot.slane %v72, %v79
    %v81 = vcombine.high %v80, %v80
    %v84 = vpack.c.bf16 %v80, %v80
    %v85 = vpack.c.bf16 %v81, %v81
    %v86 = vld [vmem:[#allocation2] sm:$0xff]
    %v87 = vld [vmem:[#allocation2 + $0x8] sm:$0xff]
    %v88 = vld [vmem:[#allocation2 + $0x10] sm:$0xff]
    %v89 = vld [vmem:[#allocation2 + $0x18] sm:$0xff]
    %v90 = vld [vmem:[#allocation2 + $0x20] sm:$0xff]
    %v91 = vld [vmem:[#allocation2 + $0x28] sm:$0xff]
    %v92 = vld [vmem:[#allocation2 + $0x30] sm:$0xff]
    %v93 = vld [vmem:[#allocation2 + $0x38] sm:$0xff]
    %v94 = vld [vmem:[#allocation2 + $0x40] sm:$0xff]
    %v95 = vld [vmem:[#allocation2 + $0x48] sm:$0xff]
    %v96 = vld [vmem:[#allocation2 + $0x50] sm:$0xff]
    %v97 = vld [vmem:[#allocation2 + $0x58] sm:$0xff]
    %v98 = vld [vmem:[#allocation2 + $0x60] sm:$0xff]
    %v99 = vld [vmem:[#allocation2 + $0x68] sm:$0xff]
    %v100 = vld [vmem:[#allocation2 + $0x70] sm:$0xff]
    %v101 = vld [vmem:[#allocation2 + $0x78] sm:$0xff]
    %v102 = vld [vmem:[#allocation2 + $0x80] sm:$0xff]
    %v103 = vld [vmem:[#allocation2 + $0x88] sm:$0xff]
    %v104 = vld [vmem:[#allocation2 + $0x90] sm:$0xff]
    %v105 = vld [vmem:[#allocation2 + $0x98] sm:$0xff]
    %v106 = vld [vmem:[#allocation2 + $0xa0] sm:$0xff]
    %v107 = vld [vmem:[#allocation2 + $0xa8] sm:$0xff]
    %v108 = vld [vmem:[#allocation2 + $0xb0] sm:$0xff]
    %v109 = vld [vmem:[#allocation2 + $0xb8] sm:$0xff]
    %v110 = vld [vmem:[#allocation2 + $0xc0] sm:$0xff]
    %v111 = vld [vmem:[#allocation2 + $0xc8] sm:$0xff]
    %v112 = vld [vmem:[#allocation2 + $0xd0] sm:$0xff]
    %v113 = vld [vmem:[#allocation2 + $0xd8] sm:$0xff]
    %v114 = vld [vmem:[#allocation2 + $0xe0] sm:$0xff]
    %v115 = vld [vmem:[#allocation2 + $0xe8] sm:$0xff]
    %v116 = vld [vmem:[#allocation2 + $0xf0] sm:$0xff]
    %v117 = vld [vmem:[#allocation2 + $0xf8] sm:$0xff]
    %v118 = vld [vmem:[#allocation2 + $0x100] sm:$0xff]
    %v119 = vld [vmem:[#allocation2 + $0x108] sm:$0xff]
    %v120 = vld [vmem:[#allocation2 + $0x110] sm:$0xff]
    %v121 = vld [vmem:[#allocation2 + $0x118] sm:$0xff]
    %v122 = vld [vmem:[#allocation2 + $0x120] sm:$0xff]
    %v123 = vld [vmem:[#allocation2 + $0x128] sm:$0xff]
    %v124 = vld [vmem:[#allocation2 + $0x130] sm:$0xff]
    %v125 = vld [vmem:[#allocation2 + $0x138] sm:$0xff]
    %v126 = vld [vmem:[#allocation2 + $0x140] sm:$0xff]
    %v127 = vld [vmem:[#allocation2 + $0x148] sm:$0xff]
    %v128 = vld [vmem:[#allocation2 + $0x150] sm:$0xff]
    %v129 = vld [vmem:[#allocation2 + $0x158] sm:$0xff]
    %v130 = vld [vmem:[#allocation2 + $0x160] sm:$0xff]
    %v131 = vld [vmem:[#allocation2 + $0x168] sm:$0xff]
    %v132 = vld [vmem:[#allocation2 + $0x170] sm:$0xff]
    %v133 = vld [vmem:[#allocation2 + $0x178] sm:$0xff]
    %v134 = vld [vmem:[#allocation2 + $0x180] sm:$0xff]
    %v135 = vld [vmem:[#allocation2 + $0x188] sm:$0xff]
    %v136 = vld [vmem:[#allocation2 + $0x190] sm:$0xff]
    %v137 = vld [vmem:[#allocation2 + $0x198] sm:$0xff]
    %v138 = vld [vmem:[#allocation2 + $0x1a0] sm:$0xff]
    %v139 = vld [vmem:[#allocation2 + $0x1a8] sm:$0xff]
    %v140 = vld [vmem:[#allocation2 + $0x1b0] sm:$0xff]
    %v141 = vld [vmem:[#allocation2 + $0x1b8] sm:$0xff]
    %v142 = vld [vmem:[#allocation2 + $0x1c0] sm:$0xff]
    %v143 = vld [vmem:[#allocation2 + $0x1c8] sm:$0xff]
    %v144 = vld [vmem:[#allocation2 + $0x1d0] sm:$0xff]
    %v145 = vld [vmem:[#allocation2 + $0x1d8] sm:$0xff]
    %v146 = vld [vmem:[#allocation2 + $0x1e0] sm:$0xff]
    %v147 = vld [vmem:[#allocation2 + $0x1e8] sm:$0xff]
    %v148 = vld [vmem:[#allocation2 + $0x1f0] sm:$0xff]
    %v149 = vld [vmem:[#allocation2 + $0x1f8] sm:$0xff]
    %v150 = vld [vmem:[#allocation2 + $0x200] sm:$0xff]
    %v151 = vld [vmem:[#allocation2 + $0x208] sm:$0xff]
    %v152 = vld [vmem:[#allocation2 + $0x210] sm:$0xff]
    %v153 = vld [vmem:[#allocation2 + $0x218] sm:$0xff]
    %v154 = vld [vmem:[#allocation2 + $0x220] sm:$0xff]
    %v155 = vld [vmem:[#allocation2 + $0x228] sm:$0xff]
    %v156 = vld [vmem:[#allocation2 + $0x230] sm:$0xff]
    %v157 = vld [vmem:[#allocation2 + $0x238] sm:$0xff]
    %v158 = vld [vmem:[#allocation2 + $0x240] sm:$0xff]
    %v159 = vld [vmem:[#allocation2 + $0x248] sm:$0xff]
    %v160 = vld [vmem:[#allocation2 + $0x250] sm:$0xff]
    %v161 = vld [vmem:[#allocation2 + $0x258] sm:$0xff]
    %v162 = vld [vmem:[#allocation2 + $0x260] sm:$0xff]
    %v163 = vld [vmem:[#allocation2 + $0x268] sm:$0xff]
    %v164 = vld [vmem:[#allocation2 + $0x270] sm:$0xff]
    %v165 = vld [vmem:[#allocation2 + $0x278] sm:$0xff]
    %v166 = vld [vmem:[#allocation2 + $0x280] sm:$0xff]
    %v167 = vld [vmem:[#allocation2 + $0x288] sm:$0xff]
    %v168 = vld [vmem:[#allocation2 + $0x290] sm:$0xff]
    %v169 = vld [vmem:[#allocation2 + $0x298] sm:$0xff]
    %v170 = vld [vmem:[#allocation2 + $0x2a0] sm:$0xff]
    %v171 = vld [vmem:[#allocation2 + $0x2a8] sm:$0xff]
    %v172 = vld [vmem:[#allocation2 + $0x2b0] sm:$0xff]
    %v173 = vld [vmem:[#allocation2 + $0x2b8] sm:$0xff]
    %v174 = vld [vmem:[#allocation2 + $0x2c0] sm:$0xff]
    %v175 = vld [vmem:[#allocation2 + $0x2c8] sm:$0xff]
    %v176 = vld [vmem:[#allocation2 + $0x2d0] sm:$0xff]
    %v177 = vld [vmem:[#allocation2 + $0x2d8] sm:$0xff]
    %v178 = vld [vmem:[#allocation2 + $0x2e0] sm:$0xff]
    %v179 = vld [vmem:[#allocation2 + $0x2e8] sm:$0xff]
    %v180 = vld [vmem:[#allocation2 + $0x2f0] sm:$0xff]
    %v181 = vld [vmem:[#allocation2 + $0x2f8] sm:$0xff]
    %v182 = vld [vmem:[#allocation2 + $0x300] sm:$0xff]
    %v183 = vld [vmem:[#allocation2 + $0x308] sm:$0xff]
    %v184 = vld [vmem:[#allocation2 + $0x310] sm:$0xff]
    %v185 = vld [vmem:[#allocation2 + $0x318] sm:$0xff]
    %v186 = vld [vmem:[#allocation2 + $0x320] sm:$0xff]
    %v187 = vld [vmem:[#allocation2 + $0x328] sm:$0xff]
    %v188 = vld [vmem:[#allocation2 + $0x330] sm:$0xff]
    %v189 = vld [vmem:[#allocation2 + $0x338] sm:$0xff]
    %v190 = vld [vmem:[#allocation2 + $0x340] sm:$0xff]
    %v191 = vld [vmem:[#allocation2 + $0x348] sm:$0xff]
    %v192 = vld [vmem:[#allocation2 + $0x350] sm:$0xff]
    %v193 = vld [vmem:[#allocation2 + $0x358] sm:$0xff]
    %v194 = vld [vmem:[#allocation2 + $0x360] sm:$0xff]
    %v195 = vld [vmem:[#allocation2 + $0x368] sm:$0xff]
    %v196 = vld [vmem:[#allocation2 + $0x370] sm:$0xff]
    %v197 = vld [vmem:[#allocation2 + $0x378] sm:$0xff]
    %v198 = vld [vmem:[#allocation2 + $0x380] sm:$0xff]
    %v199 = vld [vmem:[#allocation2 + $0x388] sm:$0xff]
    %v200 = vld [vmem:[#allocation2 + $0x390] sm:$0xff]
    %v201 = vld [vmem:[#allocation2 + $0x398] sm:$0xff]
    %v202 = vld [vmem:[#allocation2 + $0x3a0] sm:$0xff]
    %v203 = vld [vmem:[#allocation2 + $0x3a8] sm:$0xff]
    %v204 = vld [vmem:[#allocation2 + $0x3b0] sm:$0xff]
    %v205 = vld [vmem:[#allocation2 + $0x3b8] sm:$0xff]
    %v206 = vld [vmem:[#allocation2 + $0x3c0] sm:$0xff]
    %v207 = vld [vmem:[#allocation2 + $0x3c8] sm:$0xff]
    %v208 = vld [vmem:[#allocation2 + $0x3d0] sm:$0xff]
    %v209 = vld [vmem:[#allocation2 + $0x3d8] sm:$0xff]
    %v210 = vld [vmem:[#allocation2 + $0x3e0] sm:$0xff]
    %v211 = vld [vmem:[#allocation2 + $0x3e8] sm:$0xff]
    %v212 = vld [vmem:[#allocation2 + $0x3f0] sm:$0xff]
    %v213 = vld [vmem:[#allocation2 + $0x3f8] sm:$0xff]
    %v214 = vld [vmem:[#allocation2 + $0x400] sm:$0xff]
    %v215 = vld [vmem:[#allocation2 + $0x408] sm:$0xff]
    %v216 = vld [vmem:[#allocation2 + $0x410] sm:$0xff]
    %v217 = vld [vmem:[#allocation2 + $0x418] sm:$0xff]
    %v218 = vld [vmem:[#allocation2 + $0x420] sm:$0xff]
    %v219 = vld [vmem:[#allocation2 + $0x428] sm:$0xff]
    %v220 = vld [vmem:[#allocation2 + $0x430] sm:$0xff]
    %v221 = vld [vmem:[#allocation2 + $0x438] sm:$0xff]
    %v222 = vld [vmem:[#allocation2 + $0x440] sm:$0xff]
    %v223 = vld [vmem:[#allocation2 + $0x448] sm:$0xff]
    %v224 = vld [vmem:[#allocation2 + $0x450] sm:$0xff]
    %v225 = vld [vmem:[#allocation2 + $0x458] sm:$0xff]
    %v226 = vld [vmem:[#allocation2 + $0x460] sm:$0xff]
    %v227 = vld [vmem:[#allocation2 + $0x468] sm:$0xff]
    %v228 = vld [vmem:[#allocation2 + $0x470] sm:$0xff]
    %v229 = vld [vmem:[#allocation2 + $0x478] sm:$0xff]
    %v230 = vld [vmem:[#allocation2 + $0x480] sm:$0xff]
    %v231 = vld [vmem:[#allocation2 + $0x488] sm:$0xff]
    %v232 = vld [vmem:[#allocation2 + $0x490] sm:$0xff]
    %v233 = vld [vmem:[#allocation2 + $0x498] sm:$0xff]
    %v234 = vld [vmem:[#allocation2 + $0x4a0] sm:$0xff]
    %v235 = vld [vmem:[#allocation2 + $0x4a8] sm:$0xff]
    %v236 = vld [vmem:[#allocation2 + $0x4b0] sm:$0xff]
    %v237 = vld [vmem:[#allocation2 + $0x4b8] sm:$0xff]
    %v238 = vld [vmem:[#allocation2 + $0x4c0] sm:$0xff]
    %v239 = vld [vmem:[#allocation2 + $0x4c8] sm:$0xff]
    %v240 = vld [vmem:[#allocation2 + $0x4d0] sm:$0xff]
    %v241 = vld [vmem:[#allocation2 + $0x4d8] sm:$0xff]
    %v242 = vld [vmem:[#allocation2 + $0x4e0] sm:$0xff]
    %v243 = vld [vmem:[#allocation2 + $0x4e8] sm:$0xff]
    %v244 = vld [vmem:[#allocation2 + $0x4f0] sm:$0xff]
    %v245 = vld [vmem:[#allocation2 + $0x4f8] sm:$0xff]
    %v246 = vld [vmem:[#allocation2 + $0x500] sm:$0xff]
    %v247 = vld [vmem:[#allocation2 + $0x508] sm:$0xff]
    %v248 = vld [vmem:[#allocation2 + $0x510] sm:$0xff]
    %v249 = vld [vmem:[#allocation2 + $0x518] sm:$0xff]
    %v250 = vld [vmem:[#allocation2 + $0x520] sm:$0xff]
    %v251 = vld [vmem:[#allocation2 + $0x528] sm:$0xff]
    %v252 = vld [vmem:[#allocation2 + $0x530] sm:$0xff]
    %v253 = vld [vmem:[#allocation2 + $0x538] sm:$0xff]
    %v254 = vld [vmem:[#allocation2 + $0x540] sm:$0xff]
    %v255 = vld [vmem:[#allocation2 + $0x548] sm:$0xff]
    %v256 = vld [vmem:[#allocation2 + $0x550] sm:$0xff]
    %v257 = vld [vmem:[#allocation2 + $0x558] sm:$0xff]
    %v258 = vld [vmem:[#allocation2 + $0x560] sm:$0xff]
    %v259 = vld [vmem:[#allocation2 + $0x568] sm:$0xff]
    %v260 = vld [vmem:[#allocation2 + $0x570] sm:$0xff]
    %v261 = vld [vmem:[#allocation2 + $0x578] sm:$0xff]
    %v262 = vld [vmem:[#allocation2 + $0x580] sm:$0xff]
    %v263 = vld [vmem:[#allocation2 + $0x588] sm:$0xff]
    %v264 = vld [vmem:[#allocation2 + $0x590] sm:$0xff]
    %v265 = vld [vmem:[#allocation2 + $0x598] sm:$0xff]
    %v266 = vld [vmem:[#allocation2 + $0x5a0] sm:$0xff]
    %v267 = vld [vmem:[#allocation2 + $0x5a8] sm:$0xff]
    %v268 = vld [vmem:[#allocation2 + $0x5b0] sm:$0xff]
    %v269 = vld [vmem:[#allocation2 + $0x5b8] sm:$0xff]
    %v270 = vld [vmem:[#allocation2 + $0x5c0] sm:$0xff]
    %v271 = vld [vmem:[#allocation2 + $0x5c8] sm:$0xff]
    %v272 = vld [vmem:[#allocation2 + $0x5d0] sm:$0xff]
    %v273 = vld [vmem:[#allocation2 + $0x5d8] sm:$0xff]
    %v274 = vld [vmem:[#allocation2 + $0x5e0] sm:$0xff]
    %v275 = vld [vmem:[#allocation2 + $0x5e8] sm:$0xff]
    %v276 = vld [vmem:[#allocation2 + $0x5f0] sm:$0xff]
    %v277 = vld [vmem:[#allocation2 + $0x5f8] sm:$0xff]
    %v278 = vld [vmem:[#allocation2 + $0x600] sm:$0xff]
    %v279 = vld [vmem:[#allocation2 + $0x608] sm:$0xff]
    %v280 = vld [vmem:[#allocation2 + $0x610] sm:$0xff]
    %v281 = vld [vmem:[#allocation2 + $0x618] sm:$0xff]
    %v282 = vld [vmem:[#allocation2 + $0x620] sm:$0xff]
    %v283 = vld [vmem:[#allocation2 + $0x628] sm:$0xff]
    %v284 = vld [vmem:[#allocation2 + $0x630] sm:$0xff]
    %v285 = vld [vmem:[#allocation2 + $0x638] sm:$0xff]
    %v286 = vld [vmem:[#allocation2 + $0x640] sm:$0xff]
    %v287 = vld [vmem:[#allocation2 + $0x648] sm:$0xff]
    %v288 = vld [vmem:[#allocation2 + $0x650] sm:$0xff]
    %v289 = vld [vmem:[#allocation2 + $0x658] sm:$0xff]
    %v290 = vld [vmem:[#allocation2 + $0x660] sm:$0xff]
    %v291 = vld [vmem:[#allocation2 + $0x668] sm:$0xff]
    %v292 = vld [vmem:[#allocation2 + $0x670] sm:$0xff]
    %v293 = vld [vmem:[#allocation2 + $0x678] sm:$0xff]
    %v294 = vld [vmem:[#allocation2 + $0x680] sm:$0xff]
    %v295 = vld [vmem:[#allocation2 + $0x688] sm:$0xff]
    %v296 = vld [vmem:[#allocation2 + $0x690] sm:$0xff]
    %v297 = vld [vmem:[#allocation2 + $0x698] sm:$0xff]
    %v298 = vld [vmem:[#allocation2 + $0x6a0] sm:$0xff]
    %v299 = vld [vmem:[#allocation2 + $0x6a8] sm:$0xff]
    %v300 = vld [vmem:[#allocation2 + $0x6b0] sm:$0xff]
    %v301 = vld [vmem:[#allocation2 + $0x6b8] sm:$0xff]
    %v302 = vld [vmem:[#allocation2 + $0x6c0] sm:$0xff]
    %v303 = vld [vmem:[#allocation2 + $0x6c8] sm:$0xff]
    %v304 = vld [vmem:[#allocation2 + $0x6d0] sm:$0xff]
    %v305 = vld [vmem:[#allocation2 + $0x6d8] sm:$0xff]
    %v306 = vld [vmem:[#allocation2 + $0x6e0] sm:$0xff]
    %v307 = vld [vmem:[#allocation2 + $0x6e8] sm:$0xff]
    %v308 = vld [vmem:[#allocation2 + $0x6f0] sm:$0xff]
    %v309 = vld [vmem:[#allocation2 + $0x6f8] sm:$0xff]
    %v310 = vld [vmem:[#allocation2 + $0x700] sm:$0xff]
    %v311 = vld [vmem:[#allocation2 + $0x708] sm:$0xff]
    %v312 = vld [vmem:[#allocation2 + $0x710] sm:$0xff]
    %v313 = vld [vmem:[#allocation2 + $0x718] sm:$0xff]
    %v314 = vld [vmem:[#allocation2 + $0x720] sm:$0xff]
    %v315 = vld [vmem:[#allocation2 + $0x728] sm:$0xff]
    %v316 = vld [vmem:[#allocation2 + $0x730] sm:$0xff]
    %v317 = vld [vmem:[#allocation2 + $0x738] sm:$0xff]
    %v318 = vld [vmem:[#allocation2 + $0x740] sm:$0xff]
    %v319 = vld [vmem:[#allocation2 + $0x748] sm:$0xff]
    %v320 = vld [vmem:[#allocation2 + $0x750] sm:$0xff]
    %v321 = vld [vmem:[#allocation2 + $0x758] sm:$0xff]
    %v322 = vld [vmem:[#allocation2 + $0x760] sm:$0xff]
    %v323 = vld [vmem:[#allocation2 + $0x768] sm:$0xff]
    %v324 = vld [vmem:[#allocation2 + $0x770] sm:$0xff]
    %v325 = vld [vmem:[#allocation2 + $0x778] sm:$0xff]
    %v326 = vld [vmem:[#allocation2 + $0x780] sm:$0xff]
    %v327 = vld [vmem:[#allocation2 + $0x788] sm:$0xff]
    %v328 = vld [vmem:[#allocation2 + $0x790] sm:$0xff]
    %v329 = vld [vmem:[#allocation2 + $0x798] sm:$0xff]
    %v330 = vld [vmem:[#allocation2 + $0x7a0] sm:$0xff]
    %v331 = vld [vmem:[#allocation2 + $0x7a8] sm:$0xff]
    %v332 = vld [vmem:[#allocation2 + $0x7b0] sm:$0xff]
    %v333 = vld [vmem:[#allocation2 + $0x7b8] sm:$0xff]
    %v334 = vld [vmem:[#allocation2 + $0x7c0] sm:$0xff]
    %v335 = vld [vmem:[#allocation2 + $0x7c8] sm:$0xff]
    %v336 = vld [vmem:[#allocation2 + $0x7d0] sm:$0xff]
    %v337 = vld [vmem:[#allocation2 + $0x7d8] sm:$0xff]
    %v338 = vld [vmem:[#allocation2 + $0x7e0] sm:$0xff]
    %v339 = vld [vmem:[#allocation2 + $0x7e8] sm:$0xff]
    %v340 = vld [vmem:[#allocation2 + $0x7f0] sm:$0xff]
    %v341 = vld [vmem:[#allocation2 + $0x7f8] sm:$0xff]
    %v342 = vld [vmem:[#allocation4] sm:$0xff]
    %v343 = vld [vmem:[#allocation4 + $0x8] sm:$0xff]
    %v346 = vlaneseq
    %v347 = vshrl.u32 %v346, 7
    %v348 = vsub.s32 0, %v347
    %v349 = vrot.slane %v342, %v348
    %v350 = vlaneseq
    %v351 = vshrl.u32 %v350, 7
    %v352 = vsub.s32 1, %v351
    %v353 = vrot.slane %v342, %v352
    %v354 = vlaneseq
    %v355 = vshrl.u32 %v354, 7
    %v356 = vsub.s32 2, %v355
    %v357 = vrot.slane %v342, %v356
    %v358 = vlaneseq
    %v359 = vshrl.u32 %v358, 7
    %v360 = vsub.s32 3, %v359
    %v361 = vrot.slane %v342, %v360
    %v362 = vlaneseq
    %v363 = vshrl.u32 %v362, 7
    %v364 = vsub.s32 4, %v363
    %v365 = vrot.slane %v342, %v364
    %v366 = vlaneseq
    %v367 = vshrl.u32 %v366, 7
    %v368 = vsub.s32 5, %v367
    %v369 = vrot.slane %v342, %v368
    %v370 = vlaneseq
    %v371 = vshrl.u32 %v370, 7
    %v372 = vsub.s32 6, %v371
    %v373 = vrot.slane %v342, %v372
    %v374 = vlaneseq
    %v375 = vshrl.u32 %v374, 7
    %v376 = vsub.s32 7, %v375
    %v377 = vrot.slane %v342, %v376
    %v378 = vlaneseq
    %v379 = vshrl.u32 %v378, 7
    %v380 = vsub.s32 0, %v379
    %v381 = vrot.slane %v343, %v380
    %v382 = vlaneseq
    %v383 = vshrl.u32 %v382, 7
    %v384 = vsub.s32 1, %v383
    %v385 = vrot.slane %v343, %v384
    %v386 = vlaneseq
    %v387 = vshrl.u32 %v386, 7
    %v388 = vsub.s32 2, %v387
    %v389 = vrot.slane %v343, %v388
    %v390 = vlaneseq
    %v391 = vshrl.u32 %v390, 7
    %v392 = vsub.s32 3, %v391
    %v393 = vrot.slane %v343, %v392
    %v394 = vlaneseq
    %v395 = vshrl.u32 %v394, 7
    %v396 = vsub.s32 4, %v395
    %v397 = vrot.slane %v343, %v396
    %v398 = vlaneseq
    %v399 = vshrl.u32 %v398, 7
    %v400 = vsub.s32 5, %v399
    %v401 = vrot.slane %v343, %v400
    %v402 = vlaneseq
    %v403 = vshrl.u32 %v402, 7
    %v404 = vsub.s32 6, %v403
    %v405 = vrot.slane %v343, %v404
    %v406 = vlaneseq
    %v407 = vshrl.u32 %v406, 7
    %v408 = vsub.s32 7, %v407
    %v409 = vrot.slane %v343, %v408
    %v682 = vunpack.c.l.b16 %v86
    %v683 = vunpack.c.h.b16 %v86
    %v684 = vunpack.c.l.b16 %v87
    %v685 = vunpack.c.h.b16 %v87
    %v686 = vunpack.c.l.b16 %v88
    %v687 = vunpack.c.h.b16 %v88
    %v688 = vunpack.c.l.b16 %v89
    %v689 = vunpack.c.h.b16 %v89
    %v690 = vunpack.c.l.b16 %v90
    %v691 = vunpack.c.h.b16 %v90
    %v692 = vunpack.c.l.b16 %v91
    %v693 = vunpack.c.h.b16 %v91
    %v694 = vunpack.c.l.b16 %v92
    %v695 = vunpack.c.h.b16 %v92
    %v696 = vunpack.c.l.b16 %v93
    %v697 = vunpack.c.h.b16 %v93
    %v698 = vunpack.c.l.b16 %v94
    %v699 = vunpack.c.h.b16 %v94
    %v700 = vunpack.c.l.b16 %v95
    %v701 = vunpack.c.h.b16 %v95
    %v702 = vunpack.c.l.b16 %v96
    %v703 = vunpack.c.h.b16 %v96
    %v704 = vunpack.c.l.b16 %v97
    %v705 = vunpack.c.h.b16 %v97
    %v706 = vunpack.c.l.b16 %v98
    %v707 = vunpack.c.h.b16 %v98
    %v708 = vunpack.c.l.b16 %v99
    %v709 = vunpack.c.h.b16 %v99
    %v710 = vunpack.c.l.b16 %v100
    %v711 = vunpack.c.h.b16 %v100
    %v712 = vunpack.c.l.b16 %v101
    %v713 = vunpack.c.h.b16 %v101
    %v714 = vunpack.c.l.b16 %v102
    %v715 = vunpack.c.h.b16 %v102
    %v716 = vunpack.c.l.b16 %v103
    %v717 = vunpack.c.h.b16 %v103
    %v718 = vunpack.c.l.b16 %v104
    %v719 = vunpack.c.h.b16 %v104
    %v720 = vunpack.c.l.b16 %v105
    %v721 = vunpack.c.h.b16 %v105
    %v722 = vunpack.c.l.b16 %v106
    %v723 = vunpack.c.h.b16 %v106
    %v724 = vunpack.c.l.b16 %v107
    %v725 = vunpack.c.h.b16 %v107
    %v726 = vunpack.c.l.b16 %v108
    %v727 = vunpack.c.h.b16 %v108
    %v728 = vunpack.c.l.b16 %v109
    %v729 = vunpack.c.h.b16 %v109
    %v730 = vunpack.c.l.b16 %v110
    %v731 = vunpack.c.h.b16 %v110
    %v732 = vunpack.c.l.b16 %v111
    %v733 = vunpack.c.h.b16 %v111
    %v734 = vunpack.c.l.b16 %v112
    %v735 = vunpack.c.h.b16 %v112
    %v736 = vunpack.c.l.b16 %v113
    %v737 = vunpack.c.h.b16 %v113
    %v738 = vunpack.c.l.b16 %v114
    %v739 = vunpack.c.h.b16 %v114
    %v740 = vunpack.c.l.b16 %v115
    %v741 = vunpack.c.h.b16 %v115
    %v742 = vunpack.c.l.b16 %v116
    %v743 = vunpack.c.h.b16 %v116
    %v744 = vunpack.c.l.b16 %v117
    %v745 = vunpack.c.h.b16 %v117
    %v746 = vunpack.c.l.b16 %v118
    %v747 = vunpack.c.h.b16 %v118
    %v748 = vunpack.c.l.b16 %v119
    %v749 = vunpack.c.h.b16 %v119
    %v750 = vunpack.c.l.b16 %v120
    %v751 = vunpack.c.h.b16 %v120
    %v752 = vunpack.c.l.b16 %v121
    %v753 = vunpack.c.h.b16 %v121
    %v754 = vunpack.c.l.b16 %v122
    %v755 = vunpack.c.h.b16 %v122
    %v756 = vunpack.c.l.b16 %v123
    %v757 = vunpack.c.h.b16 %v123
    %v758 = vunpack.c.l.b16 %v124
    %v759 = vunpack.c.h.b16 %v124
    %v760 = vunpack.c.l.b16 %v125
    %v761 = vunpack.c.h.b16 %v125
    %v762 = vunpack.c.l.b16 %v126
    %v763 = vunpack.c.h.b16 %v126
    %v764 = vunpack.c.l.b16 %v127
    %v765 = vunpack.c.h.b16 %v127
    %v766 = vunpack.c.l.b16 %v128
    %v767 = vunpack.c.h.b16 %v128
    %v768 = vunpack.c.l.b16 %v129
    %v769 = vunpack.c.h.b16 %v129
    %v770 = vunpack.c.l.b16 %v130
    %v771 = vunpack.c.h.b16 %v130
    %v772 = vunpack.c.l.b16 %v131
    %v773 = vunpack.c.h.b16 %v131
    %v774 = vunpack.c.l.b16 %v132
    %v775 = vunpack.c.h.b16 %v132
    %v776 = vunpack.c.l.b16 %v133
    %v777 = vunpack.c.h.b16 %v133
    %v778 = vunpack.c.l.b16 %v134
    %v779 = vunpack.c.h.b16 %v134
    %v780 = vunpack.c.l.b16 %v135
    %v781 = vunpack.c.h.b16 %v135
    %v782 = vunpack.c.l.b16 %v136
    %v783 = vunpack.c.h.b16 %v136
    %v784 = vunpack.c.l.b16 %v137
    %v785 = vunpack.c.h.b16 %v137
    %v786 = vunpack.c.l.b16 %v138
    %v787 = vunpack.c.h.b16 %v138
    %v788 = vunpack.c.l.b16 %v139
    %v789 = vunpack.c.h.b16 %v139
    %v790 = vunpack.c.l.b16 %v140
    %v791 = vunpack.c.h.b16 %v140
    %v792 = vunpack.c.l.b16 %v141
    %v793 = vunpack.c.h.b16 %v141
    %v794 = vunpack.c.l.b16 %v142
    %v795 = vunpack.c.h.b16 %v142
    %v796 = vunpack.c.l.b16 %v143
    %v797 = vunpack.c.h.b16 %v143
    %v798 = vunpack.c.l.b16 %v144
    %v799 = vunpack.c.h.b16 %v144
    %v800 = vunpack.c.l.b16 %v145
    %v801 = vunpack.c.h.b16 %v145
    %v802 = vunpack.c.l.b16 %v146
    %v803 = vunpack.c.h.b16 %v146
    %v804 = vunpack.c.l.b16 %v147
    %v805 = vunpack.c.h.b16 %v147
    %v806 = vunpack.c.l.b16 %v148
    %v807 = vunpack.c.h.b16 %v148
    %v808 = vunpack.c.l.b16 %v149
    %v809 = vunpack.c.h.b16 %v149
    %v810 = vunpack.c.l.b16 %v150
    %v811 = vunpack.c.h.b16 %v150
    %v812 = vunpack.c.l.b16 %v151
    %v813 = vunpack.c.h.b16 %v151
    %v814 = vunpack.c.l.b16 %v152
    %v815 = vunpack.c.h.b16 %v152
    %v816 = vunpack.c.l.b16 %v153
    %v817 = vunpack.c.h.b16 %v153
    %v818 = vunpack.c.l.b16 %v154
    %v819 = vunpack.c.h.b16 %v154
    %v820 = vunpack.c.l.b16 %v155
    %v821 = vunpack.c.h.b16 %v155
    %v822 = vunpack.c.l.b16 %v156
    %v823 = vunpack.c.h.b16 %v156
    %v824 = vunpack.c.l.b16 %v157
    %v825 = vunpack.c.h.b16 %v157
    %v826 = vunpack.c.l.b16 %v158
    %v827 = vunpack.c.h.b16 %v158
    %v828 = vunpack.c.l.b16 %v159
    %v829 = vunpack.c.h.b16 %v159
    %v830 = vunpack.c.l.b16 %v160
    %v831 = vunpack.c.h.b16 %v160
    %v832 = vunpack.c.l.b16 %v161
    %v833 = vunpack.c.h.b16 %v161
    %v834 = vunpack.c.l.b16 %v162
    %v835 = vunpack.c.h.b16 %v162
    %v836 = vunpack.c.l.b16 %v163
    %v837 = vunpack.c.h.b16 %v163
    %v838 = vunpack.c.l.b16 %v164
    %v839 = vunpack.c.h.b16 %v164
    %v840 = vunpack.c.l.b16 %v165
    %v841 = vunpack.c.h.b16 %v165
    %v842 = vunpack.c.l.b16 %v166
    %v843 = vunpack.c.h.b16 %v166
    %v844 = vunpack.c.l.b16 %v167
    %v845 = vunpack.c.h.b16 %v167
    %v846 = vunpack.c.l.b16 %v168
    %v847 = vunpack.c.h.b16 %v168
    %v848 = vunpack.c.l.b16 %v169
    %v849 = vunpack.c.h.b16 %v169
    %v850 = vunpack.c.l.b16 %v170
    %v851 = vunpack.c.h.b16 %v170
    %v852 = vunpack.c.l.b16 %v171
    %v853 = vunpack.c.h.b16 %v171
    %v854 = vunpack.c.l.b16 %v172
    %v855 = vunpack.c.h.b16 %v172
    %v856 = vunpack.c.l.b16 %v173
    %v857 = vunpack.c.h.b16 %v173
    %v858 = vunpack.c.l.b16 %v174
    %v859 = vunpack.c.h.b16 %v174
    %v860 = vunpack.c.l.b16 %v175
    %v861 = vunpack.c.h.b16 %v175
    %v862 = vunpack.c.l.b16 %v176
    %v863 = vunpack.c.h.b16 %v176
    %v864 = vunpack.c.l.b16 %v177
    %v865 = vunpack.c.h.b16 %v177
    %v866 = vunpack.c.l.b16 %v178
    %v867 = vunpack.c.h.b16 %v178
    %v868 = vunpack.c.l.b16 %v179
    %v869 = vunpack.c.h.b16 %v179
    %v870 = vunpack.c.l.b16 %v180
    %v871 = vunpack.c.h.b16 %v180
    %v872 = vunpack.c.l.b16 %v181
    %v873 = vunpack.c.h.b16 %v181
    %v874 = vunpack.c.l.b16 %v182
    %v875 = vunpack.c.h.b16 %v182
    %v876 = vunpack.c.l.b16 %v183
    %v877 = vunpack.c.h.b16 %v183
    %v878 = vunpack.c.l.b16 %v184
    %v879 = vunpack.c.h.b16 %v184
    %v880 = vunpack.c.l.b16 %v185
    %v881 = vunpack.c.h.b16 %v185
    %v882 = vunpack.c.l.b16 %v186
    %v883 = vunpack.c.h.b16 %v186
    %v884 = vunpack.c.l.b16 %v187
    %v885 = vunpack.c.h.b16 %v187
    %v886 = vunpack.c.l.b16 %v188
    %v887 = vunpack.c.h.b16 %v188
    %v888 = vunpack.c.l.b16 %v189
    %v889 = vunpack.c.h.b16 %v189
    %v890 = vunpack.c.l.b16 %v190
    %v891 = vunpack.c.h.b16 %v190
    %v892 = vunpack.c.l.b16 %v191
    %v893 = vunpack.c.h.b16 %v191
    %v894 = vunpack.c.l.b16 %v192
    %v895 = vunpack.c.h.b16 %v192
    %v896 = vunpack.c.l.b16 %v193
    %v897 = vunpack.c.h.b16 %v193
    %v898 = vunpack.c.l.b16 %v194
    %v899 = vunpack.c.h.b16 %v194
    %v900 = vunpack.c.l.b16 %v195
    %v901 = vunpack.c.h.b16 %v195
    %v902 = vunpack.c.l.b16 %v196
    %v903 = vunpack.c.h.b16 %v196
    %v904 = vunpack.c.l.b16 %v197
    %v905 = vunpack.c.h.b16 %v197
    %v906 = vunpack.c.l.b16 %v198
    %v907 = vunpack.c.h.b16 %v198
    %v908 = vunpack.c.l.b16 %v199
    %v909 = vunpack.c.h.b16 %v199
    %v910 = vunpack.c.l.b16 %v200
    %v911 = vunpack.c.h.b16 %v200
    %v912 = vunpack.c.l.b16 %v201
    %v913 = vunpack.c.h.b16 %v201
    %v914 = vunpack.c.l.b16 %v202
    %v915 = vunpack.c.h.b16 %v202
    %v916 = vunpack.c.l.b16 %v203
    %v917 = vunpack.c.h.b16 %v203
    %v918 = vunpack.c.l.b16 %v204
    %v919 = vunpack.c.h.b16 %v204
    %v920 = vunpack.c.l.b16 %v205
    %v921 = vunpack.c.h.b16 %v205
    %v922 = vunpack.c.l.b16 %v206
    %v923 = vunpack.c.h.b16 %v206
    %v924 = vunpack.c.l.b16 %v207
    %v925 = vunpack.c.h.b16 %v207
    %v926 = vunpack.c.l.b16 %v208
    %v927 = vunpack.c.h.b16 %v208
    %v928 = vunpack.c.l.b16 %v209
    %v929 = vunpack.c.h.b16 %v209
    %v930 = vunpack.c.l.b16 %v210
    %v931 = vunpack.c.h.b16 %v210
    %v932 = vunpack.c.l.b16 %v211
    %v933 = vunpack.c.h.b16 %v211
    %v934 = vunpack.c.l.b16 %v212
    %v935 = vunpack.c.h.b16 %v212
    %v936 = vunpack.c.l.b16 %v213
    %v937 = vunpack.c.h.b16 %v213
    %v938 = vunpack.c.l.b16 %v214
    %v939 = vunpack.c.h.b16 %v214
    %v940 = vunpack.c.l.b16 %v215
    %v941 = vunpack.c.h.b16 %v215
    %v942 = vunpack.c.l.b16 %v216
    %v943 = vunpack.c.h.b16 %v216
    %v944 = vunpack.c.l.b16 %v217
    %v945 = vunpack.c.h.b16 %v217
    %v946 = vunpack.c.l.b16 %v218
    %v947 = vunpack.c.h.b16 %v218
    %v948 = vunpack.c.l.b16 %v219
    %v949 = vunpack.c.h.b16 %v219
    %v950 = vunpack.c.l.b16 %v220
    %v951 = vunpack.c.h.b16 %v220
    %v952 = vunpack.c.l.b16 %v221
    %v953 = vunpack.c.h.b16 %v221
    %v954 = vunpack.c.l.b16 %v222
    %v955 = vunpack.c.h.b16 %v222
    %v956 = vunpack.c.l.b16 %v223
    %v957 = vunpack.c.h.b16 %v223
    %v958 = vunpack.c.l.b16 %v224
    %v959 = vunpack.c.h.b16 %v224
    %v960 = vunpack.c.l.b16 %v225
    %v961 = vunpack.c.h.b16 %v225
    %v962 = vunpack.c.l.b16 %v226
    %v963 = vunpack.c.h.b16 %v226
    %v964 = vunpack.c.l.b16 %v227
    %v965 = vunpack.c.h.b16 %v227
    %v966 = vunpack.c.l.b16 %v228
    %v967 = vunpack.c.h.b16 %v228
    %v968 = vunpack.c.l.b16 %v229
    %v969 = vunpack.c.h.b16 %v229
    %v970 = vunpack.c.l.b16 %v230
    %v971 = vunpack.c.h.b16 %v230
    %v972 = vunpack.c.l.b16 %v231
    %v973 = vunpack.c.h.b16 %v231
    %v974 = vunpack.c.l.b16 %v232
    %v975 = vunpack.c.h.b16 %v232
    %v976 = vunpack.c.l.b16 %v233
    %v977 = vunpack.c.h.b16 %v233
    %v978 = vunpack.c.l.b16 %v234
    %v979 = vunpack.c.h.b16 %v234
    %v980 = vunpack.c.l.b16 %v235
    %v981 = vunpack.c.h.b16 %v235
    %v982 = vunpack.c.l.b16 %v236
    %v983 = vunpack.c.h.b16 %v236
    %v984 = vunpack.c.l.b16 %v237
    %v985 = vunpack.c.h.b16 %v237
    %v986 = vunpack.c.l.b16 %v238
    %v987 = vunpack.c.h.b16 %v238
    %v988 = vunpack.c.l.b16 %v239
    %v989 = vunpack.c.h.b16 %v239
    %v990 = vunpack.c.l.b16 %v240
    %v991 = vunpack.c.h.b16 %v240
    %v992 = vunpack.c.l.b16 %v241
    %v993 = vunpack.c.h.b16 %v241
    %v994 = vunpack.c.l.b16 %v242
    %v995 = vunpack.c.h.b16 %v242
    %v996 = vunpack.c.l.b16 %v243
    %v997 = vunpack.c.h.b16 %v243
    %v998 = vunpack.c.l.b16 %v244
    %v999 = vunpack.c.h.b16 %v244
    %v1000 = vunpack.c.l.b16 %v245
    %v1001 = vunpack.c.h.b16 %v245
    %v1002 = vunpack.c.l.b16 %v246
    %v1003 = vunpack.c.h.b16 %v246
    %v1004 = vunpack.c.l.b16 %v247
    %v1005 = vunpack.c.h.b16 %v247
    %v1006 = vunpack.c.l.b16 %v248
    %v1007 = vunpack.c.h.b16 %v248
    %v1008 = vunpack.c.l.b16 %v249
    %v1009 = vunpack.c.h.b16 %v249
    %v1010 = vunpack.c.l.b16 %v250
    %v1011 = vunpack.c.h.b16 %v250
    %v1012 = vunpack.c.l.b16 %v251
    %v1013 = vunpack.c.h.b16 %v251
    %v1014 = vunpack.c.l.b16 %v252
    %v1015 = vunpack.c.h.b16 %v252
    %v1016 = vunpack.c.l.b16 %v253
    %v1017 = vunpack.c.h.b16 %v253
    %v1018 = vunpack.c.l.b16 %v254
    %v1019 = vunpack.c.h.b16 %v254
    %v1020 = vunpack.c.l.b16 %v255
    %v1021 = vunpack.c.h.b16 %v255
    %v1022 = vunpack.c.l.b16 %v256
    %v1023 = vunpack.c.h.b16 %v256
    %v1024 = vunpack.c.l.b16 %v257
    %v1025 = vunpack.c.h.b16 %v257
    %v1026 = vunpack.c.l.b16 %v258
    %v1027 = vunpack.c.h.b16 %v258
    %v1028 = vunpack.c.l.b16 %v259
    %v1029 = vunpack.c.h.b16 %v259
    %v1030 = vunpack.c.l.b16 %v260
    %v1031 = vunpack.c.h.b16 %v260
    %v1032 = vunpack.c.l.b16 %v261
    %v1033 = vunpack.c.h.b16 %v261
    %v1034 = vunpack.c.l.b16 %v262
    %v1035 = vunpack.c.h.b16 %v262
    %v1036 = vunpack.c.l.b16 %v263
    %v1037 = vunpack.c.h.b16 %v263
    %v1038 = vunpack.c.l.b16 %v264
    %v1039 = vunpack.c.h.b16 %v264
    %v1040 = vunpack.c.l.b16 %v265
    %v1041 = vunpack.c.h.b16 %v265
    %v1042 = vunpack.c.l.b16 %v266
    %v1043 = vunpack.c.h.b16 %v266
    %v1044 = vunpack.c.l.b16 %v267
    %v1045 = vunpack.c.h.b16 %v267
    %v1046 = vunpack.c.l.b16 %v268
    %v1047 = vunpack.c.h.b16 %v268
    %v1048 = vunpack.c.l.b16 %v269
    %v1049 = vunpack.c.h.b16 %v269
    %v1050 = vunpack.c.l.b16 %v270
    %v1051 = vunpack.c.h.b16 %v270
    %v1052 = vunpack.c.l.b16 %v271
    %v1053 = vunpack.c.h.b16 %v271
    %v1054 = vunpack.c.l.b16 %v272
    %v1055 = vunpack.c.h.b16 %v272
    %v1056 = vunpack.c.l.b16 %v273
    %v1057 = vunpack.c.h.b16 %v273
    %v1058 = vunpack.c.l.b16 %v274
    %v1059 = vunpack.c.h.b16 %v274
    %v1060 = vunpack.c.l.b16 %v275
    %v1061 = vunpack.c.h.b16 %v275
    %v1062 = vunpack.c.l.b16 %v276
    %v1063 = vunpack.c.h.b16 %v276
    %v1064 = vunpack.c.l.b16 %v277
    %v1065 = vunpack.c.h.b16 %v277
    %v1066 = vunpack.c.l.b16 %v278
    %v1067 = vunpack.c.h.b16 %v278
    %v1068 = vunpack.c.l.b16 %v279
    %v1069 = vunpack.c.h.b16 %v279
    %v1070 = vunpack.c.l.b16 %v280
    %v1071 = vunpack.c.h.b16 %v280
    %v1072 = vunpack.c.l.b16 %v281
    %v1073 = vunpack.c.h.b16 %v281
    %v1074 = vunpack.c.l.b16 %v282
    %v1075 = vunpack.c.h.b16 %v282
    %v1076 = vunpack.c.l.b16 %v283
    %v1077 = vunpack.c.h.b16 %v283
    %v1078 = vunpack.c.l.b16 %v284
    %v1079 = vunpack.c.h.b16 %v284
    %v1080 = vunpack.c.l.b16 %v285
    %v1081 = vunpack.c.h.b16 %v285
    %v1082 = vunpack.c.l.b16 %v286
    %v1083 = vunpack.c.h.b16 %v286
    %v1084 = vunpack.c.l.b16 %v287
    %v1085 = vunpack.c.h.b16 %v287
    %v1086 = vunpack.c.l.b16 %v288
    %v1087 = vunpack.c.h.b16 %v288
    %v1088 = vunpack.c.l.b16 %v289
    %v1089 = vunpack.c.h.b16 %v289
    %v1090 = vunpack.c.l.b16 %v290
    %v1091 = vunpack.c.h.b16 %v290
    %v1092 = vunpack.c.l.b16 %v291
    %v1093 = vunpack.c.h.b16 %v291
    %v1094 = vunpack.c.l.b16 %v292
    %v1095 = vunpack.c.h.b16 %v292
    %v1096 = vunpack.c.l.b16 %v293
    %v1097 = vunpack.c.h.b16 %v293
    %v1098 = vunpack.c.l.b16 %v294
    %v1099 = vunpack.c.h.b16 %v294
    %v1100 = vunpack.c.l.b16 %v295
    %v1101 = vunpack.c.h.b16 %v295
    %v1102 = vunpack.c.l.b16 %v296
    %v1103 = vunpack.c.h.b16 %v296
    %v1104 = vunpack.c.l.b16 %v297
    %v1105 = vunpack.c.h.b16 %v297
    %v1106 = vunpack.c.l.b16 %v298
    %v1107 = vunpack.c.h.b16 %v298
    %v1108 = vunpack.c.l.b16 %v299
    %v1109 = vunpack.c.h.b16 %v299
    %v1110 = vunpack.c.l.b16 %v300
    %v1111 = vunpack.c.h.b16 %v300
    %v1112 = vunpack.c.l.b16 %v301
    %v1113 = vunpack.c.h.b16 %v301
    %v1114 = vunpack.c.l.b16 %v302
    %v1115 = vunpack.c.h.b16 %v302
    %v1116 = vunpack.c.l.b16 %v303
    %v1117 = vunpack.c.h.b16 %v303
    %v1118 = vunpack.c.l.b16 %v304
    %v1119 = vunpack.c.h.b16 %v304
    %v1120 = vunpack.c.l.b16 %v305
    %v1121 = vunpack.c.h.b16 %v305
    %v1122 = vunpack.c.l.b16 %v306
    %v1123 = vunpack.c.h.b16 %v306
    %v1124 = vunpack.c.l.b16 %v307
    %v1125 = vunpack.c.h.b16 %v307
    %v1126 = vunpack.c.l.b16 %v308
    %v1127 = vunpack.c.h.b16 %v308
    %v1128 = vunpack.c.l.b16 %v309
    %v1129 = vunpack.c.h.b16 %v309
    %v1130 = vunpack.c.l.b16 %v310
    %v1131 = vunpack.c.h.b16 %v310
    %v1132 = vunpack.c.l.b16 %v311
    %v1133 = vunpack.c.h.b16 %v311
    %v1134 = vunpack.c.l.b16 %v312
    %v1135 = vunpack.c.h.b16 %v312
    %v1136 = vunpack.c.l.b16 %v313
    %v1137 = vunpack.c.h.b16 %v313
    %v1138 = vunpack.c.l.b16 %v314
    %v1139 = vunpack.c.h.b16 %v314
    %v1140 = vunpack.c.l.b16 %v315
    %v1141 = vunpack.c.h.b16 %v315
    %v1142 = vunpack.c.l.b16 %v316
    %v1143 = vunpack.c.h.b16 %v316
    %v1144 = vunpack.c.l.b16 %v317
    %v1145 = vunpack.c.h.b16 %v317
    %v1146 = vunpack.c.l.b16 %v318
    %v1147 = vunpack.c.h.b16 %v318
    %v1148 = vunpack.c.l.b16 %v319
    %v1149 = vunpack.c.h.b16 %v319
    %v1150 = vunpack.c.l.b16 %v320
    %v1151 = vunpack.c.h.b16 %v320
    %v1152 = vunpack.c.l.b16 %v321
    %v1153 = vunpack.c.h.b16 %v321
    %v1154 = vunpack.c.l.b16 %v322
    %v1155 = vunpack.c.h.b16 %v322
    %v1156 = vunpack.c.l.b16 %v323
    %v1157 = vunpack.c.h.b16 %v323
    %v1158 = vunpack.c.l.b16 %v324
    %v1159 = vunpack.c.h.b16 %v324
    %v1160 = vunpack.c.l.b16 %v325
    %v1161 = vunpack.c.h.b16 %v325
    %v1162 = vunpack.c.l.b16 %v326
    %v1163 = vunpack.c.h.b16 %v326
    %v1164 = vunpack.c.l.b16 %v327
    %v1165 = vunpack.c.h.b16 %v327
    %v1166 = vunpack.c.l.b16 %v328
    %v1167 = vunpack.c.h.b16 %v328
    %v1168 = vunpack.c.l.b16 %v329
    %v1169 = vunpack.c.h.b16 %v329
    %v1170 = vunpack.c.l.b16 %v330
    %v1171 = vunpack.c.h.b16 %v330
    %v1172 = vunpack.c.l.b16 %v331
    %v1173 = vunpack.c.h.b16 %v331
    %v1174 = vunpack.c.l.b16 %v332
    %v1175 = vunpack.c.h.b16 %v332
    %v1176 = vunpack.c.l.b16 %v333
    %v1177 = vunpack.c.h.b16 %v333
    %v1178 = vunpack.c.l.b16 %v334
    %v1179 = vunpack.c.h.b16 %v334
    %v1180 = vunpack.c.l.b16 %v335
    %v1181 = vunpack.c.h.b16 %v335
    %v1182 = vunpack.c.l.b16 %v336
    %v1183 = vunpack.c.h.b16 %v336
    %v1184 = vunpack.c.l.b16 %v337
    %v1185 = vunpack.c.h.b16 %v337
    %v1186 = vunpack.c.l.b16 %v338
    %v1187 = vunpack.c.h.b16 %v338
    %v1188 = vunpack.c.l.b16 %v339
    %v1189 = vunpack.c.h.b16 %v339
    %v1190 = vunpack.c.l.b16 %v340
    %v1191 = vunpack.c.h.b16 %v340
    %v1192 = vunpack.c.l.b16 %v341
    %v1193 = vunpack.c.h.b16 %v341
    %v1194 = vpack.c.b16 %v698, %v682
    %v1195 = vpack.c.b16 %v699, %v683
    %v1196 = vpack.c.b16 %v700, %v684
    %v1197 = vpack.c.b16 %v701, %v685
    %v1198 = vpack.c.b16 %v702, %v686
    %v1199 = vpack.c.b16 %v703, %v687
    %v1200 = vpack.c.b16 %v704, %v688
    %v1201 = vpack.c.b16 %v705, %v689
    %v1202 = vpack.c.b16 %v706, %v690
    %v1203 = vpack.c.b16 %v707, %v691
    %v1204 = vpack.c.b16 %v708, %v692
    %v1205 = vpack.c.b16 %v709, %v693
    %v1206 = vpack.c.b16 %v710, %v694
    %v1207 = vpack.c.b16 %v711, %v695
    %v1208 = vpack.c.b16 %v712, %v696
    %v1209 = vpack.c.b16 %v713, %v697
    %v1210 = vpack.c.b16 %v730, %v714
    %v1211 = vpack.c.b16 %v731, %v715
    %v1212 = vpack.c.b16 %v732, %v716
    %v1213 = vpack.c.b16 %v733, %v717
    %v1214 = vpack.c.b16 %v734, %v718
    %v1215 = vpack.c.b16 %v735, %v719
    %v1216 = vpack.c.b16 %v736, %v720
    %v1217 = vpack.c.b16 %v737, %v721
    %v1218 = vpack.c.b16 %v738, %v722
    %v1219 = vpack.c.b16 %v739, %v723
    %v1220 = vpack.c.b16 %v740, %v724
    %v1221 = vpack.c.b16 %v741, %v725
    %v1222 = vpack.c.b16 %v742, %v726
    %v1223 = vpack.c.b16 %v743, %v727
    %v1224 = vpack.c.b16 %v744, %v728
    %v1225 = vpack.c.b16 %v745, %v729
    %v1226 = vpack.c.b16 %v762, %v746
    %v1227 = vpack.c.b16 %v763, %v747
    %v1228 = vpack.c.b16 %v764, %v748
    %v1229 = vpack.c.b16 %v765, %v749
    %v1230 = vpack.c.b16 %v766, %v750
    %v1231 = vpack.c.b16 %v767, %v751
    %v1232 = vpack.c.b16 %v768, %v752
    %v1233 = vpack.c.b16 %v769, %v753
    %v1234 = vpack.c.b16 %v770, %v754
    %v1235 = vpack.c.b16 %v771, %v755
    %v1236 = vpack.c.b16 %v772, %v756
    %v1237 = vpack.c.b16 %v773, %v757
    %v1238 = vpack.c.b16 %v774, %v758
    %v1239 = vpack.c.b16 %v775, %v759
    %v1240 = vpack.c.b16 %v776, %v760
    %v1241 = vpack.c.b16 %v777, %v761
    %v1242 = vpack.c.b16 %v794, %v778
    %v1243 = vpack.c.b16 %v795, %v779
    %v1244 = vpack.c.b16 %v796, %v780
    %v1245 = vpack.c.b16 %v797, %v781
    %v1246 = vpack.c.b16 %v798, %v782
    %v1247 = vpack.c.b16 %v799, %v783
    %v1248 = vpack.c.b16 %v800, %v784
    %v1249 = vpack.c.b16 %v801, %v785
    %v1250 = vpack.c.b16 %v802, %v786
    %v1251 = vpack.c.b16 %v803, %v787
    %v1252 = vpack.c.b16 %v804, %v788
    %v1253 = vpack.c.b16 %v805, %v789
    %v1254 = vpack.c.b16 %v806, %v790
    %v1255 = vpack.c.b16 %v807, %v791
    %v1256 = vpack.c.b16 %v808, %v792
    %v1257 = vpack.c.b16 %v809, %v793
    %v1258 = vpack.c.b16 %v826, %v810
    %v1259 = vpack.c.b16 %v827, %v811
    %v1260 = vpack.c.b16 %v828, %v812
    %v1261 = vpack.c.b16 %v829, %v813
    %v1262 = vpack.c.b16 %v830, %v814
    %v1263 = vpack.c.b16 %v831, %v815
    %v1264 = vpack.c.b16 %v832, %v816
    %v1265 = vpack.c.b16 %v833, %v817
    %v1266 = vpack.c.b16 %v834, %v818
    %v1267 = vpack.c.b16 %v835, %v819
    %v1268 = vpack.c.b16 %v836, %v820
    %v1269 = vpack.c.b16 %v837, %v821
    %v1270 = vpack.c.b16 %v838, %v822
    %v1271 = vpack.c.b16 %v839, %v823
    %v1272 = vpack.c.b16 %v840, %v824
    %v1273 = vpack.c.b16 %v841, %v825
    %v1274 = vpack.c.b16 %v858, %v842
    %v1275 = vpack.c.b16 %v859, %v843
    %v1276 = vpack.c.b16 %v860, %v844
    %v1277 = vpack.c.b16 %v861, %v845
    %v1278 = vpack.c.b16 %v862, %v846
    %v1279 = vpack.c.b16 %v863, %v847
    %v1280 = vpack.c.b16 %v864, %v848
    %v1281 = vpack.c.b16 %v865, %v849
    %v1282 = vpack.c.b16 %v866, %v850
    %v1283 = vpack.c.b16 %v867, %v851
    %v1284 = vpack.c.b16 %v868, %v852
    %v1285 = vpack.c.b16 %v869, %v853
    %v1286 = vpack.c.b16 %v870, %v854
    %v1287 = vpack.c.b16 %v871, %v855
    %v1288 = vpack.c.b16 %v872, %v856
    %v1289 = vpack.c.b16 %v873, %v857
    %v1290 = vpack.c.b16 %v890, %v874
    %v1291 = vpack.c.b16 %v891, %v875
    %v1292 = vpack.c.b16 %v892, %v876
    %v1293 = vpack.c.b16 %v893, %v877
    %v1294 = vpack.c.b16 %v894, %v878
    %v1295 = vpack.c.b16 %v895, %v879
    %v1296 = vpack.c.b16 %v896, %v880
    %v1297 = vpack.c.b16 %v897, %v881
    %v1298 = vpack.c.b16 %v898, %v882
    %v1299 = vpack.c.b16 %v899, %v883
    %v1300 = vpack.c.b16 %v900, %v884
    %v1301 = vpack.c.b16 %v901, %v885
    %v1302 = vpack.c.b16 %v902, %v886
    %v1303 = vpack.c.b16 %v903, %v887
    %v1304 = vpack.c.b16 %v904, %v888
    %v1305 = vpack.c.b16 %v905, %v889
    %v1306 = vpack.c.b16 %v922, %v906
    %v1307 = vpack.c.b16 %v923, %v907
    %v1308 = vpack.c.b16 %v924, %v908
    %v1309 = vpack.c.b16 %v925, %v909
    %v1310 = vpack.c.b16 %v926, %v910
    %v1311 = vpack.c.b16 %v927, %v911
    %v1312 = vpack.c.b16 %v928, %v912
    %v1313 = vpack.c.b16 %v929, %v913
    %v1314 = vpack.c.b16 %v930, %v914
    %v1315 = vpack.c.b16 %v931, %v915
    %v1316 = vpack.c.b16 %v932, %v916
    %v1317 = vpack.c.b16 %v933, %v917
    %v1318 = vpack.c.b16 %v934, %v918
    %v1319 = vpack.c.b16 %v935, %v919
    %v1320 = vpack.c.b16 %v936, %v920
    %v1321 = vpack.c.b16 %v937, %v921
    %v1322 = vpack.c.b16 %v954, %v938
    %v1323 = vpack.c.b16 %v955, %v939
    %v1324 = vpack.c.b16 %v956, %v940
    %v1325 = vpack.c.b16 %v957, %v941
    %v1326 = vpack.c.b16 %v958, %v942
    %v1327 = vpack.c.b16 %v959, %v943
    %v1328 = vpack.c.b16 %v960, %v944
    %v1329 = vpack.c.b16 %v961, %v945
    %v1330 = vpack.c.b16 %v962, %v946
    %v1331 = vpack.c.b16 %v963, %v947
    %v1332 = vpack.c.b16 %v964, %v948
    %v1333 = vpack.c.b16 %v965, %v949
    %v1334 = vpack.c.b16 %v966, %v950
    %v1335 = vpack.c.b16 %v967, %v951
    %v1336 = vpack.c.b16 %v968, %v952
    %v1337 = vpack.c.b16 %v969, %v953
    %v1338 = vpack.c.b16 %v986, %v970
    %v1339 = vpack.c.b16 %v987, %v971
    %v1340 = vpack.c.b16 %v988, %v972
    %v1341 = vpack.c.b16 %v989, %v973
    %v1342 = vpack.c.b16 %v990, %v974
    %v1343 = vpack.c.b16 %v991, %v975
    %v1344 = vpack.c.b16 %v992, %v976
    %v1345 = vpack.c.b16 %v993, %v977
    %v1346 = vpack.c.b16 %v994, %v978
    %v1347 = vpack.c.b16 %v995, %v979
    %v1348 = vpack.c.b16 %v996, %v980
    %v1349 = vpack.c.b16 %v997, %v981
    %v1350 = vpack.c.b16 %v998, %v982
    %v1351 = vpack.c.b16 %v999, %v983
    %v1352 = vpack.c.b16 %v1000, %v984
    %v1353 = vpack.c.b16 %v1001, %v985
    %v1354 = vpack.c.b16 %v1018, %v1002
    %v1355 = vpack.c.b16 %v1019, %v1003
    %v1356 = vpack.c.b16 %v1020, %v1004
    %v1357 = vpack.c.b16 %v1021, %v1005
    %v1358 = vpack.c.b16 %v1022, %v1006
    %v1359 = vpack.c.b16 %v1023, %v1007
    %v1360 = vpack.c.b16 %v1024, %v1008
    %v1361 = vpack.c.b16 %v1025, %v1009
    %v1362 = vpack.c.b16 %v1026, %v1010
    %v1363 = vpack.c.b16 %v1027, %v1011
    %v1364 = vpack.c.b16 %v1028, %v1012
    %v1365 = vpack.c.b16 %v1029, %v1013
    %v1366 = vpack.c.b16 %v1030, %v1014
    %v1367 = vpack.c.b16 %v1031, %v1015
    %v1368 = vpack.c.b16 %v1032, %v1016
    %v1369 = vpack.c.b16 %v1033, %v1017
    %v1370 = vpack.c.b16 %v1050, %v1034
    %v1371 = vpack.c.b16 %v1051, %v1035
    %v1372 = vpack.c.b16 %v1052, %v1036
    %v1373 = vpack.c.b16 %v1053, %v1037
    %v1374 = vpack.c.b16 %v1054, %v1038
    %v1375 = vpack.c.b16 %v1055, %v1039
    %v1376 = vpack.c.b16 %v1056, %v1040
    %v1377 = vpack.c.b16 %v1057, %v1041
    %v1378 = vpack.c.b16 %v1058, %v1042
    %v1379 = vpack.c.b16 %v1059, %v1043
    %v1380 = vpack.c.b16 %v1060, %v1044
    %v1381 = vpack.c.b16 %v1061, %v1045
    %v1382 = vpack.c.b16 %v1062, %v1046
    %v1383 = vpack.c.b16 %v1063, %v1047
    %v1384 = vpack.c.b16 %v1064, %v1048
    %v1385 = vpack.c.b16 %v1065, %v1049
    %v1386 = vpack.c.b16 %v1082, %v1066
    %v1387 = vpack.c.b16 %v1083, %v1067
    %v1388 = vpack.c.b16 %v1084, %v1068
    %v1389 = vpack.c.b16 %v1085, %v1069
    %v1390 = vpack.c.b16 %v1086, %v1070
    %v1391 = vpack.c.b16 %v1087, %v1071
    %v1392 = vpack.c.b16 %v1088, %v1072
    %v1393 = vpack.c.b16 %v1089, %v1073
    %v1394 = vpack.c.b16 %v1090, %v1074
    %v1395 = vpack.c.b16 %v1091, %v1075
    %v1396 = vpack.c.b16 %v1092, %v1076
    %v1397 = vpack.c.b16 %v1093, %v1077
    %v1398 = vpack.c.b16 %v1094, %v1078
    %v1399 = vpack.c.b16 %v1095, %v1079
    %v1400 = vpack.c.b16 %v1096, %v1080
    %v1401 = vpack.c.b16 %v1097, %v1081
    %v1402 = vpack.c.b16 %v1114, %v1098
    %v1403 = vpack.c.b16 %v1115, %v1099
    %v1404 = vpack.c.b16 %v1116, %v1100
    %v1405 = vpack.c.b16 %v1117, %v1101
    %v1406 = vpack.c.b16 %v1118, %v1102
    %v1407 = vpack.c.b16 %v1119, %v1103
    %v1408 = vpack.c.b16 %v1120, %v1104
    %v1409 = vpack.c.b16 %v1121, %v1105
    %v1410 = vpack.c.b16 %v1122, %v1106
    %v1411 = vpack.c.b16 %v1123, %v1107
    %v1412 = vpack.c.b16 %v1124, %v1108
    %v1413 = vpack.c.b16 %v1125, %v1109
    %v1414 = vpack.c.b16 %v1126, %v1110
    %v1415 = vpack.c.b16 %v1127, %v1111
    %v1416 = vpack.c.b16 %v1128, %v1112
    %v1417 = vpack.c.b16 %v1129, %v1113
    %v1418 = vpack.c.b16 %v1146, %v1130
    %v1419 = vpack.c.b16 %v1147, %v1131
    %v1420 = vpack.c.b16 %v1148, %v1132
    %v1421 = vpack.c.b16 %v1149, %v1133
    %v1422 = vpack.c.b16 %v1150, %v1134
    %v1423 = vpack.c.b16 %v1151, %v1135
    %v1424 = vpack.c.b16 %v1152, %v1136
    %v1425 = vpack.c.b16 %v1153, %v1137
    %v1426 = vpack.c.b16 %v1154, %v1138
    %v1427 = vpack.c.b16 %v1155, %v1139
    %v1428 = vpack.c.b16 %v1156, %v1140
    %v1429 = vpack.c.b16 %v1157, %v1141
    %v1430 = vpack.c.b16 %v1158, %v1142
    %v1431 = vpack.c.b16 %v1159, %v1143
    %v1432 = vpack.c.b16 %v1160, %v1144
    %v1433 = vpack.c.b16 %v1161, %v1145
    %v1434 = vpack.c.b16 %v1178, %v1162
    %v1435 = vpack.c.b16 %v1179, %v1163
    %v1436 = vpack.c.b16 %v1180, %v1164
    %v1437 = vpack.c.b16 %v1181, %v1165
    %v1438 = vpack.c.b16 %v1182, %v1166
    %v1439 = vpack.c.b16 %v1183, %v1167
    %v1440 = vpack.c.b16 %v1184, %v1168
    %v1441 = vpack.c.b16 %v1185, %v1169
    %v1442 = vpack.c.b16 %v1186, %v1170
    %v1443 = vpack.c.b16 %v1187, %v1171
    %v1444 = vpack.c.b16 %v1188, %v1172
    %v1445 = vpack.c.b16 %v1189, %v1173
    %v1446 = vpack.c.b16 %v1190, %v1174
    %v1447 = vpack.c.b16 %v1191, %v1175
    %v1448 = vpack.c.b16 %v1192, %v1176
    %v1449 = vpack.c.b16 %v1193, %v1177
    %1706 = vmatprep.subr.bf16.mxu0 %v1307
    %1707 = vmatpush1.bf16.msra.mxu0 %v1306
    %1708 = vmatprep.subr.bf16.mxu0 %v1291
    %1709 = vmatpush1.bf16.msra.mxu0 %v1290
    %1710 = vmatprep.subr.bf16.mxu0 %v1275
    %1711 = vmatpush1.bf16.msra.mxu0 %v1274
    %1712 = vmatprep.subr.bf16.mxu0 %v1259
    %1713 = vmatpush1.bf16.msra.mxu0 %v1258
    %1714 = vmatprep.subr.bf16.mxu0 %v1243
    %1715 = vmatpush1.bf16.msra.mxu0 %v1242
    %1716 = vmatprep.subr.bf16.mxu0 %v1227
    %1717 = vmatpush1.bf16.msra.mxu0 %v1226
    %1718 = vmatprep.subr.bf16.mxu0 %v1211
    %1719 = vmatpush1.bf16.msra.mxu0 %v1210
    %1720 = vmatprep.subr.bf16.mxu0 %v1195
    %1721 = vmatpush1.bf16.msra.mxu0 %v1194
    %1722 = vmatprep.subr.bf16.mxu0 %v1435
    %1723 = vmatpush2.bf16.msra.mxu0 %v1434
    %1724 = vmatprep.subr.bf16.mxu0 %v1419
    %1725 = vmatpush2.bf16.msra.mxu0 %v1418
    %1726 = vmatprep.subr.bf16.mxu0 %v1403
    %1727 = vmatpush2.bf16.msra.mxu0 %v1402
    %1728 = vmatprep.subr.bf16.mxu0 %v1387
    %1729 = vmatpush2.bf16.msra.mxu0 %v1386
    %1730 = vmatprep.subr.bf16.mxu0 %v1371
    %1731 = vmatpush2.bf16.msra.mxu0 %v1370
    %1732 = vmatprep.subr.bf16.mxu0 %v1355
    %1733 = vmatpush2.bf16.msra.mxu0 %v1354
    %1734 = vmatprep.subr.bf16.mxu0 %v1339
    %1735 = vmatpush2.bf16.msra.mxu0 %v1338
    %1736 = vmatprep.subr.bf16.mxu0 %v1323
    %1737 = vmatpush2.bf16.msra.mxu0 %v1322
    %1738 = vmatprep.mubr.bf16.mxu0 %v85
    %1739 = vmatmul.mubr.bf16.gmra.mxu0 %v84
    %v1740 = vpop.f32.mrf.mxu0
    %v1741 = vadd.f32 %v349, %v1740
    %v1742 = vpop.f32.mrf.mxu0
    %v1743 = vadd.f32 %v353, %v1742
    %v1744 = vpop.f32.mrf.mxu0
    %v1745 = vpop.f32.mrf.mxu0
    %1746 = vdwg.mxu0
    %1747 = vmatprep.subr.bf16.mxu0 %v1309
    %1748 = vmatpush1.bf16.msra.mxu0 %v1308
    %1749 = vmatprep.subr.bf16.mxu0 %v1293
    %1750 = vmatpush1.bf16.msra.mxu0 %v1292
    %1751 = vmatprep.subr.bf16.mxu0 %v1277
    %1752 = vmatpush1.bf16.msra.mxu0 %v1276
    %1753 = vmatprep.subr.bf16.mxu0 %v1261
    %1754 = vmatpush1.bf16.msra.mxu0 %v1260
    %1755 = vmatprep.subr.bf16.mxu0 %v1245
    %1756 = vmatpush1.bf16.msra.mxu0 %v1244
    %1757 = vmatprep.subr.bf16.mxu0 %v1229
    %1758 = vmatpush1.bf16.msra.mxu0 %v1228
    %1759 = vmatprep.subr.bf16.mxu0 %v1213
    %1760 = vmatpush1.bf16.msra.mxu0 %v1212
    %1761 = vmatprep.subr.bf16.mxu0 %v1197
    %1762 = vmatpush1.bf16.msra.mxu0 %v1196
    %1763 = vmatprep.subr.bf16.mxu0 %v1437
    %1764 = vmatpush2.bf16.msra.mxu0 %v1436
    %1765 = vmatprep.subr.bf16.mxu0 %v1421
    %1766 = vmatpush2.bf16.msra.mxu0 %v1420
    %1767 = vmatprep.subr.bf16.mxu0 %v1405
    %1768 = vmatpush2.bf16.msra.mxu0 %v1404
    %1769 = vmatprep.subr.bf16.mxu0 %v1389
    %1770 = vmatpush2.bf16.msra.mxu0 %v1388
    %1771 = vmatprep.subr.bf16.mxu0 %v1373
    %1772 = vmatpush2.bf16.msra.mxu0 %v1372
    %1773 = vmatprep.subr.bf16.mxu0 %v1357
    %1774 = vmatpush2.bf16.msra.mxu0 %v1356
    %1775 = vmatprep.subr.bf16.mxu0 %v1341
    %1776 = vmatpush2.bf16.msra.mxu0 %v1340
    %1777 = vmatprep.subr.bf16.mxu0 %v1325
    %1778 = vmatpush2.bf16.msra.mxu0 %v1324
    %1779 = vmatprep.mubr.bf16.mxu0 %v85
    %1780 = vmatmul.mubr.bf16.gmra.mxu0 %v84
    %v1781 = vpop.f32.mrf.mxu0
    %v1782 = vadd.f32 %v357, %v1781
    %v1783 = vpop.f32.mrf.mxu0
    %v1784 = vadd.f32 %v361, %v1783
    %v1785 = vpop.f32.mrf.mxu0
    %v1786 = vpop.f32.mrf.mxu0
    %1787 = vdwg.mxu0
    %1788 = vmatprep.subr.bf16.mxu0 %v1311
    %1789 = vmatpush1.bf16.msra.mxu0 %v1310
    %1790 = vmatprep.subr.bf16.mxu0 %v1295
    %1791 = vmatpush1.bf16.msra.mxu0 %v1294
    %1792 = vmatprep.subr.bf16.mxu0 %v1279
    %1793 = vmatpush1.bf16.msra.mxu0 %v1278
    %1794 = vmatprep.subr.bf16.mxu0 %v1263
    %1795 = vmatpush1.bf16.msra.mxu0 %v1262
    %1796 = vmatprep.subr.bf16.mxu0 %v1247
    %1797 = vmatpush1.bf16.msra.mxu0 %v1246
    %1798 = vmatprep.subr.bf16.mxu0 %v1231
    %1799 = vmatpush1.bf16.msra.mxu0 %v1230
    %1800 = vmatprep.subr.bf16.mxu0 %v1215
    %1801 = vmatpush1.bf16.msra.mxu0 %v1214
    %1802 = vmatprep.subr.bf16.mxu0 %v1199
    %1803 = vmatpush1.bf16.msra.mxu0 %v1198
    %1804 = vmatprep.subr.bf16.mxu0 %v1439
    %1805 = vmatpush2.bf16.msra.mxu0 %v1438
    %1806 = vmatprep.subr.bf16.mxu0 %v1423
    %1807 = vmatpush2.bf16.msra.mxu0 %v1422
    %1808 = vmatprep.subr.bf16.mxu0 %v1407
    %1809 = vmatpush2.bf16.msra.mxu0 %v1406
    %1810 = vmatprep.subr.bf16.mxu0 %v1391
    %1811 = vmatpush2.bf16.msra.mxu0 %v1390
    %1812 = vmatprep.subr.bf16.mxu0 %v1375
    %1813 = vmatpush2.bf16.msra.mxu0 %v1374
    %1814 = vmatprep.subr.bf16.mxu0 %v1359
    %1815 = vmatpush2.bf16.msra.mxu0 %v1358
    %1816 = vmatprep.subr.bf16.mxu0 %v1343
    %1817 = vmatpush2.bf16.msra.mxu0 %v1342
    %1818 = vmatprep.subr.bf16.mxu0 %v1327
    %1819 = vmatpush2.bf16.msra.mxu0 %v1326
    %1820 = vmatprep.mubr.bf16.mxu0 %v85
    %1821 = vmatmul.mubr.bf16.gmra.mxu0 %v84
    %v1822 = vpop.f32.mrf.mxu0
    %v1823 = vadd.f32 %v365, %v1822
    %v1824 = vpop.f32.mrf.mxu0
    %v1825 = vadd.f32 %v369, %v1824
    %v1826 = vpop.f32.mrf.mxu0
    %v1827 = vpop.f32.mrf.mxu0
    %1828 = vdwg.mxu0
    %1829 = vmatprep.subr.bf16.mxu0 %v1313
    %1830 = vmatpush1.bf16.msra.mxu0 %v1312
    %1831 = vmatprep.subr.bf16.mxu0 %v1297
    %1832 = vmatpush1.bf16.msra.mxu0 %v1296
    %1833 = vmatprep.subr.bf16.mxu0 %v1281
    %1834 = vmatpush1.bf16.msra.mxu0 %v1280
    %1835 = vmatprep.subr.bf16.mxu0 %v1265
    %1836 = vmatpush1.bf16.msra.mxu0 %v1264
    %1837 = vmatprep.subr.bf16.mxu0 %v1249
    %1838 = vmatpush1.bf16.msra.mxu0 %v1248
    %1839 = vmatprep.subr.bf16.mxu0 %v1233
    %1840 = vmatpush1.bf16.msra.mxu0 %v1232
    %1841 = vmatprep.subr.bf16.mxu0 %v1217
    %1842 = vmatpush1.bf16.msra.mxu0 %v1216
    %1843 = vmatprep.subr.bf16.mxu0 %v1201
    %1844 = vmatpush1.bf16.msra.mxu0 %v1200
    %1845 = vmatprep.subr.bf16.mxu0 %v1441
    %1846 = vmatpush2.bf16.msra.mxu0 %v1440
    %1847 = vmatprep.subr.bf16.mxu0 %v1425
    %1848 = vmatpush2.bf16.msra.mxu0 %v1424
    %1849 = vmatprep.subr.bf16.mxu0 %v1409
    %1850 = vmatpush2.bf16.msra.mxu0 %v1408
    %1851 = vmatprep.subr.bf16.mxu0 %v1393
    %1852 = vmatpush2.bf16.msra.mxu0 %v1392
    %1853 = vmatprep.subr.bf16.mxu0 %v1377
    %1854 = vmatpush2.bf16.msra.mxu0 %v1376
    %1855 = vmatprep.subr.bf16.mxu0 %v1361
    %1856 = vmatpush2.bf16.msra.mxu0 %v1360
    %1857 = vmatprep.subr.bf16.mxu0 %v1345
    %1858 = vmatpush2.bf16.msra.mxu0 %v1344
    %1859 = vmatprep.subr.bf16.mxu0 %v1329
    %1860 = vmatpush2.bf16.msra.mxu0 %v1328
    %1861 = vmatprep.mubr.bf16.mxu0 %v85
    %1862 = vmatmul.mubr.bf16.gmra.mxu0 %v84
    %v1863 = vpop.f32.mrf.mxu0
    %v1864 = vadd.f32 %v373, %v1863
    %v1865 = vpop.f32.mrf.mxu0
    %v1866 = vadd.f32 %v377, %v1865
    %v1867 = vpop.f32.mrf.mxu0
    %v1868 = vpop.f32.mrf.mxu0
    %1869 = vdwg.mxu0
    %1870 = vmatprep.subr.bf16.mxu0 %v1315
    %1871 = vmatpush1.bf16.msra.mxu0 %v1314
    %1872 = vmatprep.subr.bf16.mxu0 %v1299
    %1873 = vmatpush1.bf16.msra.mxu0 %v1298
    %1874 = vmatprep.subr.bf16.mxu0 %v1283
    %1875 = vmatpush1.bf16.msra.mxu0 %v1282
    %1876 = vmatprep.subr.bf16.mxu0 %v1267
    %1877 = vmatpush1.bf16.msra.mxu0 %v1266
    %1878 = vmatprep.subr.bf16.mxu0 %v1251
    %1879 = vmatpush1.bf16.msra.mxu0 %v1250
    %1880 = vmatprep.subr.bf16.mxu0 %v1235
    %1881 = vmatpush1.bf16.msra.mxu0 %v1234
    %1882 = vmatprep.subr.bf16.mxu0 %v1219
    %1883 = vmatpush1.bf16.msra.mxu0 %v1218
    %1884 = vmatprep.subr.bf16.mxu0 %v1203
    %1885 = vmatpush1.bf16.msra.mxu0 %v1202
    %1886 = vmatprep.subr.bf16.mxu0 %v1443
    %1887 = vmatpush2.bf16.msra.mxu0 %v1442
    %1888 = vmatprep.subr.bf16.mxu0 %v1427
    %1889 = vmatpush2.bf16.msra.mxu0 %v1426
    %1890 = vmatprep.subr.bf16.mxu0 %v1411
    %1891 = vmatpush2.bf16.msra.mxu0 %v1410
    %1892 = vmatprep.subr.bf16.mxu0 %v1395
    %1893 = vmatpush2.bf16.msra.mxu0 %v1394
    %1894 = vmatprep.subr.bf16.mxu0 %v1379
    %1895 = vmatpush2.bf16.msra.mxu0 %v1378
    %1896 = vmatprep.subr.bf16.mxu0 %v1363
    %1897 = vmatpush2.bf16.msra.mxu0 %v1362
    %1898 = vmatprep.subr.bf16.mxu0 %v1347
    %1899 = vmatpush2.bf16.msra.mxu0 %v1346
    %1900 = vmatprep.subr.bf16.mxu0 %v1331
    %1901 = vmatpush2.bf16.msra.mxu0 %v1330
    %1902 = vmatprep.mubr.bf16.mxu0 %v85
    %1903 = vmatmul.mubr.bf16.gmra.mxu0 %v84
    %v1904 = vpop.f32.mrf.mxu0
    %v1905 = vadd.f32 %v381, %v1904
    %v1906 = vpop.f32.mrf.mxu0
    %v1907 = vadd.f32 %v385, %v1906
    %v1908 = vpop.f32.mrf.mxu0
    %v1909 = vpop.f32.mrf.mxu0
    %1910 = vdwg.mxu0
    %1911 = vmatprep.subr.bf16.mxu0 %v1317
    %1912 = vmatpush1.bf16.msra.mxu0 %v1316
    %1913 = vmatprep.subr.bf16.mxu0 %v1301
    %1914 = vmatpush1.bf16.msra.mxu0 %v1300
    %1915 = vmatprep.subr.bf16.mxu0 %v1285
    %1916 = vmatpush1.bf16.msra.mxu0 %v1284
    %1917 = vmatprep.subr.bf16.mxu0 %v1269
    %1918 = vmatpush1.bf16.msra.mxu0 %v1268
    %1919 = vmatprep.subr.bf16.mxu0 %v1253
    %1920 = vmatpush1.bf16.msra.mxu0 %v1252
    %1921 = vmatprep.subr.bf16.mxu0 %v1237
    %1922 = vmatpush1.bf16.msra.mxu0 %v1236
    %1923 = vmatprep.subr.bf16.mxu0 %v1221
    %1924 = vmatpush1.bf16.msra.mxu0 %v1220
    %1925 = vmatprep.subr.bf16.mxu0 %v1205
    %1926 = vmatpush1.bf16.msra.mxu0 %v1204
    %1927 = vmatprep.subr.bf16.mxu0 %v1445
    %1928 = vmatpush2.bf16.msra.mxu0 %v1444
    %1929 = vmatprep.subr.bf16.mxu0 %v1429
    %1930 = vmatpush2.bf16.msra.mxu0 %v1428
    %1931 = vmatprep.subr.bf16.mxu0 %v1413
    %1932 = vmatpush2.bf16.msra.mxu0 %v1412
    %1933 = vmatprep.subr.bf16.mxu0 %v1397
    %1934 = vmatpush2.bf16.msra.mxu0 %v1396
    %1935 = vmatprep.subr.bf16.mxu0 %v1381
    %1936 = vmatpush2.bf16.msra.mxu0 %v1380
    %1937 = vmatprep.subr.bf16.mxu0 %v1365
    %1938 = vmatpush2.bf16.msra.mxu0 %v1364
    %1939 = vmatprep.subr.bf16.mxu0 %v1349
    %1940 = vmatpush2.bf16.msra.mxu0 %v1348
    %1941 = vmatprep.subr.bf16.mxu0 %v1333
    %1942 = vmatpush2.bf16.msra.mxu0 %v1332
    %1943 = vmatprep.mubr.bf16.mxu0 %v85
    %1944 = vmatmul.mubr.bf16.gmra.mxu0 %v84
    %v1945 = vpop.f32.mrf.mxu0
    %v1946 = vadd.f32 %v389, %v1945
    %v1947 = vpop.f32.mrf.mxu0
    %v1948 = vadd.f32 %v393, %v1947
    %v1949 = vpop.f32.mrf.mxu0
    %v1950 = vpop.f32.mrf.mxu0
    %1951 = vdwg.mxu0
    %1952 = vmatprep.subr.bf16.mxu0 %v1319
    %1953 = vmatpush1.bf16.msra.mxu0 %v1318
    %1954 = vmatprep.subr.bf16.mxu0 %v1303
    %1955 = vmatpush1.bf16.msra.mxu0 %v1302
    %1956 = vmatprep.subr.bf16.mxu0 %v1287
    %1957 = vmatpush1.bf16.msra.mxu0 %v1286
    %1958 = vmatprep.subr.bf16.mxu0 %v1271
    %1959 = vmatpush1.bf16.msra.mxu0 %v1270
    %1960 = vmatprep.subr.bf16.mxu0 %v1255
    %1961 = vmatpush1.bf16.msra.mxu0 %v1254
    %1962 = vmatprep.subr.bf16.mxu0 %v1239
    %1963 = vmatpush1.bf16.msra.mxu0 %v1238
    %1964 = vmatprep.subr.bf16.mxu0 %v1223
    %1965 = vmatpush1.bf16.msra.mxu0 %v1222
    %1966 = vmatprep.subr.bf16.mxu0 %v1207
    %1967 = vmatpush1.bf16.msra.mxu0 %v1206
    %1968 = vmatprep.subr.bf16.mxu0 %v1447
    %1969 = vmatpush2.bf16.msra.mxu0 %v1446
    %1970 = vmatprep.subr.bf16.mxu0 %v1431
    %1971 = vmatpush2.bf16.msra.mxu0 %v1430
    %1972 = vmatprep.subr.bf16.mxu0 %v1415
    %1973 = vmatpush2.bf16.msra.mxu0 %v1414
    %1974 = vmatprep.subr.bf16.mxu0 %v1399
    %1975 = vmatpush2.bf16.msra.mxu0 %v1398
    %1976 = vmatprep.subr.bf16.mxu0 %v1383
    %1977 = vmatpush2.bf16.msra.mxu0 %v1382
    %1978 = vmatprep.subr.bf16.mxu0 %v1367
    %1979 = vmatpush2.bf16.msra.mxu0 %v1366
    %1980 = vmatprep.subr.bf16.mxu0 %v1351
    %1981 = vmatpush2.bf16.msra.mxu0 %v1350
    %1982 = vmatprep.subr.bf16.mxu0 %v1335
    %1983 = vmatpush2.bf16.msra.mxu0 %v1334
    %1984 = vmatprep.mubr.bf16.mxu0 %v85
    %1985 = vmatmul.mubr.bf16.gmra.mxu0 %v84
    %v1986 = vpop.f32.mrf.mxu0
    %v1987 = vadd.f32 %v397, %v1986
    %v1988 = vpop.f32.mrf.mxu0
    %v1989 = vadd.f32 %v401, %v1988
    %v1990 = vpop.f32.mrf.mxu0
    %v1991 = vpop.f32.mrf.mxu0
    %1992 = vdwg.mxu0
    %1993 = vmatprep.subr.bf16.mxu0 %v1321
    %1994 = vmatpush1.bf16.msra.mxu0 %v1320
    %1995 = vmatprep.subr.bf16.mxu0 %v1305
    %1996 = vmatpush1.bf16.msra.mxu0 %v1304
    %1997 = vmatprep.subr.bf16.mxu0 %v1289
    %1998 = vmatpush1.bf16.msra.mxu0 %v1288
    %1999 = vmatprep.subr.bf16.mxu0 %v1273
    %2000 = vmatpush1.bf16.msra.mxu0 %v1272
    %2001 = vmatprep.subr.bf16.mxu0 %v1257
    %2002 = vmatpush1.bf16.msra.mxu0 %v1256
    %2003 = vmatprep.subr.bf16.mxu0 %v1241
    %2004 = vmatpush1.bf16.msra.mxu0 %v1240
    %2005 = vmatprep.subr.bf16.mxu0 %v1225
    %2006 = vmatpush1.bf16.msra.mxu0 %v1224
    %2007 = vmatprep.subr.bf16.mxu0 %v1209
    %2008 = vmatpush1.bf16.msra.mxu0 %v1208
    %2009 = vmatprep.subr.bf16.mxu0 %v1449
    %2010 = vmatpush2.bf16.msra.mxu0 %v1448
    %2011 = vmatprep.subr.bf16.mxu0 %v1433
    %2012 = vmatpush2.bf16.msra.mxu0 %v1432
    %2013 = vmatprep.subr.bf16.mxu0 %v1417
    %2014 = vmatpush2.bf16.msra.mxu0 %v1416
    %2015 = vmatprep.subr.bf16.mxu0 %v1401
    %2016 = vmatpush2.bf16.msra.mxu0 %v1400
    %2017 = vmatprep.subr.bf16.mxu0 %v1385
    %2018 = vmatpush2.bf16.msra.mxu0 %v1384
    %2019 = vmatprep.subr.bf16.mxu0 %v1369
    %2020 = vmatpush2.bf16.msra.mxu0 %v1368
    %2021 = vmatprep.subr.bf16.mxu0 %v1353
    %2022 = vmatpush2.bf16.msra.mxu0 %v1352
    %2023 = vmatprep.subr.bf16.mxu0 %v1337
    %2024 = vmatpush2.bf16.msra.mxu0 %v1336
    %2025 = vmatprep.mubr.bf16.mxu0 %v85
    %2026 = vmatmul.mubr.bf16.gmra.mxu0 %v84
    %v2027 = vpop.f32.mrf.mxu0
    %v2028 = vadd.f32 %v405, %v2027
    %v2029 = vpop.f32.mrf.mxu0
    %v2030 = vadd.f32 %v409, %v2029
    %v2031 = vpop.f32.mrf.mxu0
    %v2032 = vpop.f32.mrf.mxu0
    %2033 = vdwg.mxu0
    %v2034 = vmax.f32 %v1741, 0.0
    %v2035 = vmax.f32 %v1743, 0.0
    %v2036 = vmax.f32 %v1782, 0.0
    %v2037 = vmax.f32 %v1784, 0.0
    %v2038 = vmax.f32 %v1823, 0.0
    %v2039 = vmax.f32 %v1825, 0.0
    %v2040 = vmax.f32 %v1864, 0.0
    %v2041 = vmax.f32 %v1866, 0.0
    %v2042 = vmax.f32 %v1905, 0.0
    %v2043 = vmax.f32 %v1907, 0.0
    %v2044 = vmax.f32 %v1946, 0.0
    %v2045 = vmax.f32 %v1948, 0.0
    %v2046 = vmax.f32 %v1987, 0.0
    %v2047 = vmax.f32 %v1989, 0.0
    %v2048 = vmax.f32 %v2028, 0.0
    %v2049 = vmax.f32 %v2030, 0.0
    %v2050 = vpack.c.bf16 %v2034, %v2034
    %v2051 = vpack.c.bf16 %v2035, %v2035
    %v2052 = vpack.c.bf16 %v2036, %v2036
    %v2053 = vpack.c.bf16 %v2037, %v2037
    %v2054 = vpack.c.bf16 %v2038, %v2038
    %v2055 = vpack.c.bf16 %v2039, %v2039
    %v2056 = vpack.c.bf16 %v2040, %v2040
    %v2057 = vpack.c.bf16 %v2041, %v2041
    %v2058 = vpack.c.bf16 %v2042, %v2042
    %v2059 = vpack.c.bf16 %v2043, %v2043
    %v2060 = vpack.c.bf16 %v2044, %v2044
    %v2061 = vpack.c.bf16 %v2045, %v2045
    %v2062 = vpack.c.bf16 %v2046, %v2046
    %v2063 = vpack.c.bf16 %v2047, %v2047
    %v2064 = vpack.c.bf16 %v2048, %v2048
    %v2065 = vpack.c.bf16 %v2049, %v2049
    %v2066 = vld [vmem:[#allocation6] sm:$0xf]
    %v2067 = vld [vmem:[#allocation6 + $0x4] sm:$0xf]
    %v2068 = vld [vmem:[#allocation6 + $0x8] sm:$0xf]
    %v2069 = vld [vmem:[#allocation6 + $0xc] sm:$0xf]
    %v2070 = vld [vmem:[#allocation6 + $0x10] sm:$0xf]
    %v2071 = vld [vmem:[#allocation6 + $0x14] sm:$0xf]
    %v2072 = vld [vmem:[#allocation6 + $0x18] sm:$0xf]
    %v2073 = vld [vmem:[#allocation6 + $0x1c] sm:$0xf]
    %v2074 = vld [vmem:[#allocation6 + $0x20] sm:$0xf]
    %v2075 = vld [vmem:[#allocation6 + $0x24] sm:$0xf]
    %v2076 = vld [vmem:[#allocation6 + $0x28] sm:$0xf]
    %v2077 = vld [vmem:[#allocation6 + $0x2c] sm:$0xf]
    %v2078 = vld [vmem:[#allocation6 + $0x30] sm:$0xf]
    %v2079 = vld [vmem:[#allocation6 + $0x34] sm:$0xf]
    %v2080 = vld [vmem:[#allocation6 + $0x38] sm:$0xf]
    %v2081 = vld [vmem:[#allocation6 + $0x3c] sm:$0xf]
    %v2082 = vld [vmem:[#allocation6 + $0x40] sm:$0xf]
    %v2083 = vld [vmem:[#allocation6 + $0x44] sm:$0xf]
    %v2084 = vld [vmem:[#allocation6 + $0x48] sm:$0xf]
    %v2085 = vld [vmem:[#allocation6 + $0x4c] sm:$0xf]
    %v2086 = vld [vmem:[#allocation6 + $0x50] sm:$0xf]
    %v2087 = vld [vmem:[#allocation6 + $0x54] sm:$0xf]
    %v2088 = vld [vmem:[#allocation6 + $0x58] sm:$0xf]
    %v2089 = vld [vmem:[#allocation6 + $0x5c] sm:$0xf]
    %v2090 = vld [vmem:[#allocation6 + $0x60] sm:$0xf]
    %v2091 = vld [vmem:[#allocation6 + $0x64] sm:$0xf]
    %v2092 = vld [vmem:[#allocation6 + $0x68] sm:$0xf]
    %v2093 = vld [vmem:[#allocation6 + $0x6c] sm:$0xf]
    %v2094 = vld [vmem:[#allocation6 + $0x70] sm:$0xf]
    %v2095 = vld [vmem:[#allocation6 + $0x74] sm:$0xf]
    %v2096 = vld [vmem:[#allocation6 + $0x78] sm:$0xf]
    %v2097 = vld [vmem:[#allocation6 + $0x7c] sm:$0xf]
    %v2098 = vld [vmem:[#allocation7] sm:$0x1]
    %v2099 = vlaneseq
    %v2100 = vshrl.u32 %v2099, 7
    %v2101 = vsub.s32 0, %v2100
    %v2102 = vrot.slane %v2098, %v2101
    %v2135 = vunpack.c.l.b16 %v2066
    %v2136 = vunpack.c.l.b16 %v2067
    %v2137 = vunpack.c.l.b16 %v2068
    %v2138 = vunpack.c.l.b16 %v2069
    %v2139 = vunpack.c.l.b16 %v2070
    %v2140 = vunpack.c.l.b16 %v2071
    %v2141 = vunpack.c.l.b16 %v2072
    %v2142 = vunpack.c.l.b16 %v2073
    %v2143 = vunpack.c.l.b16 %v2074
    %v2144 = vunpack.c.l.b16 %v2075
    %v2145 = vunpack.c.l.b16 %v2076
    %v2146 = vunpack.c.l.b16 %v2077
    %v2147 = vunpack.c.l.b16 %v2078
    %v2148 = vunpack.c.l.b16 %v2079
    %v2149 = vunpack.c.l.b16 %v2080
    %v2150 = vunpack.c.l.b16 %v2081
    %v2151 = vunpack.c.l.b16 %v2082
    %v2152 = vunpack.c.l.b16 %v2083
    %v2153 = vunpack.c.l.b16 %v2084
    %v2154 = vunpack.c.l.b16 %v2085
    %v2155 = vunpack.c.l.b16 %v2086
    %v2156 = vunpack.c.l.b16 %v2087
    %v2157 = vunpack.c.l.b16 %v2088
    %v2158 = vunpack.c.l.b16 %v2089
    %v2159 = vunpack.c.l.b16 %v2090
    %v2160 = vunpack.c.l.b16 %v2091
    %v2161 = vunpack.c.l.b16 %v2092
    %v2162 = vunpack.c.l.b16 %v2093
    %v2163 = vunpack.c.l.b16 %v2094
    %v2164 = vunpack.c.l.b16 %v2095
    %v2165 = vunpack.c.l.b16 %v2096
    %v2166 = vunpack.c.l.b16 %v2097
    %v2167 = vpack.c.b16 %v2136, %v2135
    %v2168 = vpack.c.b16 %v2138, %v2137
    %v2169 = vpack.c.b16 %v2140, %v2139
    %v2170 = vpack.c.b16 %v2142, %v2141
    %v2171 = vpack.c.b16 %v2144, %v2143
    %v2172 = vpack.c.b16 %v2146, %v2145
    %v2173 = vpack.c.b16 %v2148, %v2147
    %v2174 = vpack.c.b16 %v2150, %v2149
    %v2175 = vpack.c.b16 %v2152, %v2151
    %v2176 = vpack.c.b16 %v2154, %v2153
    %v2177 = vpack.c.b16 %v2156, %v2155
    %v2178 = vpack.c.b16 %v2158, %v2157
    %v2179 = vpack.c.b16 %v2160, %v2159
    %v2180 = vpack.c.b16 %v2162, %v2161
    %v2181 = vpack.c.b16 %v2164, %v2163
    %v2182 = vpack.c.b16 %v2166, %v2165
    %2199 = vmatprep.subr.bf16.mxu0 0
    %2200 = vmatpush1.bf16.msra.mxu0 %v2174
    %2201 = vmatprep.subr.bf16.mxu0 0
    %2202 = vmatpush1.bf16.msra.mxu0 %v2173
    %2203 = vmatprep.subr.bf16.mxu0 0
    %2204 = vmatpush1.bf16.msra.mxu0 %v2172
    %2205 = vmatprep.subr.bf16.mxu0 0
    %2206 = vmatpush1.bf16.msra.mxu0 %v2171
    %2207 = vmatprep.subr.bf16.mxu0 0
    %2208 = vmatpush1.bf16.msra.mxu0 %v2170
    %2209 = vmatprep.subr.bf16.mxu0 0
    %2210 = vmatpush1.bf16.msra.mxu0 %v2169
    %2211 = vmatprep.subr.bf16.mxu0 0
    %2212 = vmatpush1.bf16.msra.mxu0 %v2168
    %2213 = vmatprep.subr.bf16.mxu0 0
    %2214 = vmatpush1.bf16.msra.mxu0 %v2167
    %2215 = vmatprep.subr.bf16.mxu0 0
    %2216 = vmatpush2.bf16.msra.mxu0 %v2182
    %2217 = vmatprep.subr.bf16.mxu0 0
    %2218 = vmatpush2.bf16.msra.mxu0 %v2181
    %2219 = vmatprep.subr.bf16.mxu0 0
    %2220 = vmatpush2.bf16.msra.mxu0 %v2180
    %2221 = vmatprep.subr.bf16.mxu0 0
    %2222 = vmatpush2.bf16.msra.mxu0 %v2179
    %2223 = vmatprep.subr.bf16.mxu0 0
    %2224 = vmatpush2.bf16.msra.mxu0 %v2178
    %2225 = vmatprep.subr.bf16.mxu0 0
    %2226 = vmatpush2.bf16.msra.mxu0 %v2177
    %2227 = vmatprep.subr.bf16.mxu0 0
    %2228 = vmatpush2.bf16.msra.mxu0 %v2176
    %2229 = vmatprep.subr.bf16.mxu0 0
    %2230 = vmatpush2.bf16.msra.mxu0 %v2175
    %2231 = vmatprep.mubr.bf16.mxu0 %v2051
    %2232 = vmatmul.mubr.bf16.gmra.mxu0 %v2050
    %v2233 = vpop.f32.mrf.mxu0
    %v2234 = vadd.f32 %v2102, %v2233
    %v2235 = vpop.f32.mrf.mxu0
    %v2236 = vpop.f32.mrf.mxu0
    %v2237 = vpop.f32.mrf.mxu0
    %2238 = vdwg.mxu0
    %s2239 = scalar_lea.vmem [#allocation6], 128
    %v2240 = vld [vmem:[%s2239] sm:$0xf]
    %v2241 = vld [vmem:[%s2239 + $0x4] sm:$0xf]
    %v2242 = vld [vmem:[%s2239 + $0x8] sm:$0xf]
    %v2243 = vld [vmem:[%s2239 + $0xc] sm:$0xf]
    %v2244 = vld [vmem:[%s2239 + $0x10] sm:$0xf]
    %v2245 = vld [vmem:[%s2239 + $0x14] sm:$0xf]
    %v2246 = vld [vmem:[%s2239 + $0x18] sm:$0xf]
    %v2247 = vld [vmem:[%s2239 + $0x1c] sm:$0xf]
    %v2248 = vld [vmem:[%s2239 + $0x20] sm:$0xf]
    %v2249 = vld [vmem:[%s2239 + $0x24] sm:$0xf]
    %v2250 = vld [vmem:[%s2239 + $0x28] sm:$0xf]
    %v2251 = vld [vmem:[%s2239 + $0x2c] sm:$0xf]
    %v2252 = vld [vmem:[%s2239 + $0x30] sm:$0xf]
    %v2253 = vld [vmem:[%s2239 + $0x34] sm:$0xf]
    %v2254 = vld [vmem:[%s2239 + $0x38] sm:$0xf]
    %v2255 = vld [vmem:[%s2239 + $0x3c] sm:$0xf]
    %v2256 = vld [vmem:[%s2239 + $0x40] sm:$0xf]
    %v2257 = vld [vmem:[%s2239 + $0x44] sm:$0xf]
    %v2258 = vld [vmem:[%s2239 + $0x48] sm:$0xf]
    %v2259 = vld [vmem:[%s2239 + $0x4c] sm:$0xf]
    %v2260 = vld [vmem:[%s2239 + $0x50] sm:$0xf]
    %v2261 = vld [vmem:[%s2239 + $0x54] sm:$0xf]
    %v2262 = vld [vmem:[%s2239 + $0x58] sm:$0xf]
    %v2263 = vld [vmem:[%s2239 + $0x5c] sm:$0xf]
    %v2264 = vld [vmem:[%s2239 + $0x60] sm:$0xf]
    %v2265 = vld [vmem:[%s2239 + $0x64] sm:$0xf]
    %v2266 = vld [vmem:[%s2239 + $0x68] sm:$0xf]
    %v2267 = vld [vmem:[%s2239 + $0x6c] sm:$0xf]
    %v2268 = vld [vmem:[%s2239 + $0x70] sm:$0xf]
    %v2269 = vld [vmem:[%s2239 + $0x74] sm:$0xf]
    %v2270 = vld [vmem:[%s2239 + $0x78] sm:$0xf]
    %v2271 = vld [vmem:[%s2239 + $0x7c] sm:$0xf]
    %v2272 = vld [vmem:[#allocation7 + $0x1] sm:$0x1]
    %v2273 = vlaneseq
    %v2274 = vshrl.u32 %v2273, 7
    %v2275 = vsub.s32 0, %v2274
    %v2276 = vrot.slane %v2272, %v2275
    %v2309 = vunpack.c.l.b16 %v2240
    %v2310 = vunpack.c.l.b16 %v2241
    %v2311 = vunpack.c.l.b16 %v2242
    %v2312 = vunpack.c.l.b16 %v2243
    %v2313 = vunpack.c.l.b16 %v2244
    %v2314 = vunpack.c.l.b16 %v2245
    %v2315 = vunpack.c.l.b16 %v2246
    %v2316 = vunpack.c.l.b16 %v2247
    %v2317 = vunpack.c.l.b16 %v2248
    %v2318 = vunpack.c.l.b16 %v2249
    %v2319 = vunpack.c.l.b16 %v2250
    %v2320 = vunpack.c.l.b16 %v2251
    %v2321 = vunpack.c.l.b16 %v2252
    %v2322 = vunpack.c.l.b16 %v2253
    %v2323 = vunpack.c.l.b16 %v2254
    %v2324 = vunpack.c.l.b16 %v2255
    %v2325 = vunpack.c.l.b16 %v2256
    %v2326 = vunpack.c.l.b16 %v2257
    %v2327 = vunpack.c.l.b16 %v2258
    %v2328 = vunpack.c.l.b16 %v2259
    %v2329 = vunpack.c.l.b16 %v2260
    %v2330 = vunpack.c.l.b16 %v2261
    %v2331 = vunpack.c.l.b16 %v2262
    %v2332 = vunpack.c.l.b16 %v2263
    %v2333 = vunpack.c.l.b16 %v2264
    %v2334 = vunpack.c.l.b16 %v2265
    %v2335 = vunpack.c.l.b16 %v2266
    %v2336 = vunpack.c.l.b16 %v2267
    %v2337 = vunpack.c.l.b16 %v2268
    %v2338 = vunpack.c.l.b16 %v2269
    %v2339 = vunpack.c.l.b16 %v2270
    %v2340 = vunpack.c.l.b16 %v2271
    %v2341 = vpack.c.b16 %v2310, %v2309
    %v2342 = vpack.c.b16 %v2312, %v2311
    %v2343 = vpack.c.b16 %v2314, %v2313
    %v2344 = vpack.c.b16 %v2316, %v2315
    %v2345 = vpack.c.b16 %v2318, %v2317
    %v2346 = vpack.c.b16 %v2320, %v2319
    %v2347 = vpack.c.b16 %v2322, %v2321
    %v2348 = vpack.c.b16 %v2324, %v2323
    %v2349 = vpack.c.b16 %v2326, %v2325
    %v2350 = vpack.c.b16 %v2328, %v2327
    %v2351 = vpack.c.b16 %v2330, %v2329
    %v2352 = vpack.c.b16 %v2332, %v2331
    %v2353 = vpack.c.b16 %v2334, %v2333
    %v2354 = vpack.c.b16 %v2336, %v2335
    %v2355 = vpack.c.b16 %v2338, %v2337
    %v2356 = vpack.c.b16 %v2340, %v2339
    %2373 = vmatprep.subr.bf16.mxu0 0
    %2374 = vmatpush1.bf16.msra.mxu0 %v2348
    %2375 = vmatprep.subr.bf16.mxu0 0
    %2376 = vmatpush1.bf16.msra.mxu0 %v2347
    %2377 = vmatprep.subr.bf16.mxu0 0
    %2378 = vmatpush1.bf16.msra.mxu0 %v2346
    %2379 = vmatprep.subr.bf16.mxu0 0
    %2380 = vmatpush1.bf16.msra.mxu0 %v2345
    %2381 = vmatprep.subr.bf16.mxu0 0
    %2382 = vmatpush1.bf16.msra.mxu0 %v2344
    %2383 = vmatprep.subr.bf16.mxu0 0
    %2384 = vmatpush1.bf16.msra.mxu0 %v2343
    %2385 = vmatprep.subr.bf16.mxu0 0
    %2386 = vmatpush1.bf16.msra.mxu0 %v2342
    %2387 = vmatprep.subr.bf16.mxu0 0
    %2388 = vmatpush1.bf16.msra.mxu0 %v2341
    %2389 = vmatprep.subr.bf16.mxu0 0
    %2390 = vmatpush2.bf16.msra.mxu0 %v2356
    %2391 = vmatprep.subr.bf16.mxu0 0
    %2392 = vmatpush2.bf16.msra.mxu0 %v2355
    %2393 = vmatprep.subr.bf16.mxu0 0
    %2394 = vmatpush2.bf16.msra.mxu0 %v2354
    %2395 = vmatprep.subr.bf16.mxu0 0
    %2396 = vmatpush2.bf16.msra.mxu0 %v2353
    %2397 = vmatprep.subr.bf16.mxu0 0
    %2398 = vmatpush2.bf16.msra.mxu0 %v2352
    %2399 = vmatprep.subr.bf16.mxu0 0
    %2400 = vmatpush2.bf16.msra.mxu0 %v2351
    %2401 = vmatprep.subr.bf16.mxu0 0
    %2402 = vmatpush2.bf16.msra.mxu0 %v2350
    %2403 = vmatprep.subr.bf16.mxu0 0
    %2404 = vmatpush2.bf16.msra.mxu0 %v2349
    %2405 = vmatprep.mubr.bf16.mxu0 %v2053
    %2406 = vmatmul.mubr.bf16.gmra.mxu0 %v2052
    %v2407 = vpop.f32.mrf.mxu0
    %v2408 = vadd.f32 %v2276, %v2407
    %v2409 = vpop.f32.mrf.mxu0
    %v2410 = vpop.f32.mrf.mxu0
    %v2411 = vpop.f32.mrf.mxu0
    %2412 = vdwg.mxu0
    %s2413 = scalar_lea.vmem [#allocation6], 256
    %v2414 = vld [vmem:[%s2413] sm:$0xf]
    %v2415 = vld [vmem:[%s2413 + $0x4] sm:$0xf]
    %v2416 = vld [vmem:[%s2413 + $0x8] sm:$0xf]
    %v2417 = vld [vmem:[%s2413 + $0xc] sm:$0xf]
    %v2418 = vld [vmem:[%s2413 + $0x10] sm:$0xf]
    %v2419 = vld [vmem:[%s2413 + $0x14] sm:$0xf]
    %v2420 = vld [vmem:[%s2413 + $0x18] sm:$0xf]
    %v2421 = vld [vmem:[%s2413 + $0x1c] sm:$0xf]
    %v2422 = vld [vmem:[%s2413 + $0x20] sm:$0xf]
    %v2423 = vld [vmem:[%s2413 + $0x24] sm:$0xf]
    %v2424 = vld [vmem:[%s2413 + $0x28] sm:$0xf]
    %v2425 = vld [vmem:[%s2413 + $0x2c] sm:$0xf]
    %v2426 = vld [vmem:[%s2413 + $0x30] sm:$0xf]
    %v2427 = vld [vmem:[%s2413 + $0x34] sm:$0xf]
    %v2428 = vld [vmem:[%s2413 + $0x38] sm:$0xf]
    %v2429 = vld [vmem:[%s2413 + $0x3c] sm:$0xf]
    %v2430 = vld [vmem:[%s2413 + $0x40] sm:$0xf]
    %v2431 = vld [vmem:[%s2413 + $0x44] sm:$0xf]
    %v2432 = vld [vmem:[%s2413 + $0x48] sm:$0xf]
    %v2433 = vld [vmem:[%s2413 + $0x4c] sm:$0xf]
    %v2434 = vld [vmem:[%s2413 + $0x50] sm:$0xf]
    %v2435 = vld [vmem:[%s2413 + $0x54] sm:$0xf]
    %v2436 = vld [vmem:[%s2413 + $0x58] sm:$0xf]
    %v2437 = vld [vmem:[%s2413 + $0x5c] sm:$0xf]
    %v2438 = vld [vmem:[%s2413 + $0x60] sm:$0xf]
    %v2439 = vld [vmem:[%s2413 + $0x64] sm:$0xf]
    %v2440 = vld [vmem:[%s2413 + $0x68] sm:$0xf]
    %v2441 = vld [vmem:[%s2413 + $0x6c] sm:$0xf]
    %v2442 = vld [vmem:[%s2413 + $0x70] sm:$0xf]
    %v2443 = vld [vmem:[%s2413 + $0x74] sm:$0xf]
    %v2444 = vld [vmem:[%s2413 + $0x78] sm:$0xf]
    %v2445 = vld [vmem:[%s2413 + $0x7c] sm:$0xf]
    %v2446 = vld [vmem:[#allocation7 + $0x2] sm:$0x1]
    %v2447 = vlaneseq
    %v2448 = vshrl.u32 %v2447, 7
    %v2449 = vsub.s32 0, %v2448
    %v2450 = vrot.slane %v2446, %v2449
    %v2483 = vunpack.c.l.b16 %v2414
    %v2484 = vunpack.c.l.b16 %v2415
    %v2485 = vunpack.c.l.b16 %v2416
    %v2486 = vunpack.c.l.b16 %v2417
    %v2487 = vunpack.c.l.b16 %v2418
    %v2488 = vunpack.c.l.b16 %v2419
    %v2489 = vunpack.c.l.b16 %v2420
    %v2490 = vunpack.c.l.b16 %v2421
    %v2491 = vunpack.c.l.b16 %v2422
    %v2492 = vunpack.c.l.b16 %v2423
    %v2493 = vunpack.c.l.b16 %v2424
    %v2494 = vunpack.c.l.b16 %v2425
    %v2495 = vunpack.c.l.b16 %v2426
    %v2496 = vunpack.c.l.b16 %v2427
    %v2497 = vunpack.c.l.b16 %v2428
    %v2498 = vunpack.c.l.b16 %v2429
    %v2499 = vunpack.c.l.b16 %v2430
    %v2500 = vunpack.c.l.b16 %v2431
    %v2501 = vunpack.c.l.b16 %v2432
    %v2502 = vunpack.c.l.b16 %v2433
    %v2503 = vunpack.c.l.b16 %v2434
    %v2504 = vunpack.c.l.b16 %v2435
    %v2505 = vunpack.c.l.b16 %v2436
    %v2506 = vunpack.c.l.b16 %v2437
    %v2507 = vunpack.c.l.b16 %v2438
    %v2508 = vunpack.c.l.b16 %v2439
    %v2509 = vunpack.c.l.b16 %v2440
    %v2510 = vunpack.c.l.b16 %v2441
    %v2511 = vunpack.c.l.b16 %v2442
    %v2512 = vunpack.c.l.b16 %v2443
    %v2513 = vunpack.c.l.b16 %v2444
    %v2514 = vunpack.c.l.b16 %v2445
    %v2515 = vpack.c.b16 %v2484, %v2483
    %v2516 = vpack.c.b16 %v2486, %v2485
    %v2517 = vpack.c.b16 %v2488, %v2487
    %v2518 = vpack.c.b16 %v2490, %v2489
    %v2519 = vpack.c.b16 %v2492, %v2491
    %v2520 = vpack.c.b16 %v2494, %v2493
    %v2521 = vpack.c.b16 %v2496, %v2495
    %v2522 = vpack.c.b16 %v2498, %v2497
    %v2523 = vpack.c.b16 %v2500, %v2499
    %v2524 = vpack.c.b16 %v2502, %v2501
    %v2525 = vpack.c.b16 %v2504, %v2503
    %v2526 = vpack.c.b16 %v2506, %v2505
    %v2527 = vpack.c.b16 %v2508, %v2507
    %v2528 = vpack.c.b16 %v2510, %v2509
    %v2529 = vpack.c.b16 %v2512, %v2511
    %v2530 = vpack.c.b16 %v2514, %v2513
    %2547 = vmatprep.subr.bf16.mxu0 0
    %2548 = vmatpush1.bf16.msra.mxu0 %v2522
    %2549 = vmatprep.subr.bf16.mxu0 0
    %2550 = vmatpush1.bf16.msra.mxu0 %v2521
    %2551 = vmatprep.subr.bf16.mxu0 0
    %2552 = vmatpush1.bf16.msra.mxu0 %v2520
    %2553 = vmatprep.subr.bf16.mxu0 0
    %2554 = vmatpush1.bf16.msra.mxu0 %v2519
    %2555 = vmatprep.subr.bf16.mxu0 0
    %2556 = vmatpush1.bf16.msra.mxu0 %v2518
    %2557 = vmatprep.subr.bf16.mxu0 0
    %2558 = vmatpush1.bf16.msra.mxu0 %v2517
    %2559 = vmatprep.subr.bf16.mxu0 0
    %2560 = vmatpush1.bf16.msra.mxu0 %v2516
    %2561 = vmatprep.subr.bf16.mxu0 0
    %2562 = vmatpush1.bf16.msra.mxu0 %v2515
    %2563 = vmatprep.subr.bf16.mxu0 0
    %2564 = vmatpush2.bf16.msra.mxu0 %v2530
    %2565 = vmatprep.subr.bf16.mxu0 0
    %2566 = vmatpush2.bf16.msra.mxu0 %v2529
    %2567 = vmatprep.subr.bf16.mxu0 0
    %2568 = vmatpush2.bf16.msra.mxu0 %v2528
    %2569 = vmatprep.subr.bf16.mxu0 0
    %2570 = vmatpush2.bf16.msra.mxu0 %v2527
    %2571 = vmatprep.subr.bf16.mxu0 0
    %2572 = vmatpush2.bf16.msra.mxu0 %v2526
    %2573 = vmatprep.subr.bf16.mxu0 0
    %2574 = vmatpush2.bf16.msra.mxu0 %v2525
    %2575 = vmatprep.subr.bf16.mxu0 0
    %2576 = vmatpush2.bf16.msra.mxu0 %v2524
    %2577 = vmatprep.subr.bf16.mxu0 0
    %2578 = vmatpush2.bf16.msra.mxu0 %v2523
    %2579 = vmatprep.mubr.bf16.mxu0 %v2055
    %2580 = vmatmul.mubr.bf16.gmra.mxu0 %v2054
    %v2581 = vpop.f32.mrf.mxu0
    %v2582 = vadd.f32 %v2450, %v2581
    %v2583 = vpop.f32.mrf.mxu0
    %v2584 = vpop.f32.mrf.mxu0
    %v2585 = vpop.f32.mrf.mxu0
    %2586 = vdwg.mxu0
    %s2587 = scalar_lea.vmem [#allocation6], 384
    %v2588 = vld [vmem:[%s2587] sm:$0xf]
    %v2589 = vld [vmem:[%s2587 + $0x4] sm:$0xf]
    %v2590 = vld [vmem:[%s2587 + $0x8] sm:$0xf]
    %v2591 = vld [vmem:[%s2587 + $0xc] sm:$0xf]
    %v2592 = vld [vmem:[%s2587 + $0x10] sm:$0xf]
    %v2593 = vld [vmem:[%s2587 + $0x14] sm:$0xf]
    %v2594 = vld [vmem:[%s2587 + $0x18] sm:$0xf]
    %v2595 = vld [vmem:[%s2587 + $0x1c] sm:$0xf]
    %v2596 = vld [vmem:[%s2587 + $0x20] sm:$0xf]
    %v2597 = vld [vmem:[%s2587 + $0x24] sm:$0xf]
    %v2598 = vld [vmem:[%s2587 + $0x28] sm:$0xf]
    %v2599 = vld [vmem:[%s2587 + $0x2c] sm:$0xf]
    %v2600 = vld [vmem:[%s2587 + $0x30] sm:$0xf]
    %v2601 = vld [vmem:[%s2587 + $0x34] sm:$0xf]
    %v2602 = vld [vmem:[%s2587 + $0x38] sm:$0xf]
    %v2603 = vld [vmem:[%s2587 + $0x3c] sm:$0xf]
    %v2604 = vld [vmem:[%s2587 + $0x40] sm:$0xf]
    %v2605 = vld [vmem:[%s2587 + $0x44] sm:$0xf]
    %v2606 = vld [vmem:[%s2587 + $0x48] sm:$0xf]
    %v2607 = vld [vmem:[%s2587 + $0x4c] sm:$0xf]
    %v2608 = vld [vmem:[%s2587 + $0x50] sm:$0xf]
    %v2609 = vld [vmem:[%s2587 + $0x54] sm:$0xf]
    %v2610 = vld [vmem:[%s2587 + $0x58] sm:$0xf]
    %v2611 = vld [vmem:[%s2587 + $0x5c] sm:$0xf]
    %v2612 = vld [vmem:[%s2587 + $0x60] sm:$0xf]
    %v2613 = vld [vmem:[%s2587 + $0x64] sm:$0xf]
    %v2614 = vld [vmem:[%s2587 + $0x68] sm:$0xf]
    %v2615 = vld [vmem:[%s2587 + $0x6c] sm:$0xf]
    %v2616 = vld [vmem:[%s2587 + $0x70] sm:$0xf]
    %v2617 = vld [vmem:[%s2587 + $0x74] sm:$0xf]
    %v2618 = vld [vmem:[%s2587 + $0x78] sm:$0xf]
    %v2619 = vld [vmem:[%s2587 + $0x7c] sm:$0xf]
    %v2620 = vld [vmem:[#allocation7 + $0x3] sm:$0x1]
    %v2621 = vlaneseq
    %v2622 = vshrl.u32 %v2621, 7
    %v2623 = vsub.s32 0, %v2622
    %v2624 = vrot.slane %v2620, %v2623
    %v2657 = vunpack.c.l.b16 %v2588
    %v2658 = vunpack.c.l.b16 %v2589
    %v2659 = vunpack.c.l.b16 %v2590
    %v2660 = vunpack.c.l.b16 %v2591
    %v2661 = vunpack.c.l.b16 %v2592
    %v2662 = vunpack.c.l.b16 %v2593
    %v2663 = vunpack.c.l.b16 %v2594
    %v2664 = vunpack.c.l.b16 %v2595
    %v2665 = vunpack.c.l.b16 %v2596
    %v2666 = vunpack.c.l.b16 %v2597
    %v2667 = vunpack.c.l.b16 %v2598
    %v2668 = vunpack.c.l.b16 %v2599
    %v2669 = vunpack.c.l.b16 %v2600
    %v2670 = vunpack.c.l.b16 %v2601
    %v2671 = vunpack.c.l.b16 %v2602
    %v2672 = vunpack.c.l.b16 %v2603
    %v2673 = vunpack.c.l.b16 %v2604
    %v2674 = vunpack.c.l.b16 %v2605
    %v2675 = vunpack.c.l.b16 %v2606
    %v2676 = vunpack.c.l.b16 %v2607
    %v2677 = vunpack.c.l.b16 %v2608
    %v2678 = vunpack.c.l.b16 %v2609
    %v2679 = vunpack.c.l.b16 %v2610
    %v2680 = vunpack.c.l.b16 %v2611
    %v2681 = vunpack.c.l.b16 %v2612
    %v2682 = vunpack.c.l.b16 %v2613
    %v2683 = vunpack.c.l.b16 %v2614
    %v2684 = vunpack.c.l.b16 %v2615
    %v2685 = vunpack.c.l.b16 %v2616
    %v2686 = vunpack.c.l.b16 %v2617
    %v2687 = vunpack.c.l.b16 %v2618
    %v2688 = vunpack.c.l.b16 %v2619
    %v2689 = vpack.c.b16 %v2658, %v2657
    %v2690 = vpack.c.b16 %v2660, %v2659
    %v2691 = vpack.c.b16 %v2662, %v2661
    %v2692 = vpack.c.b16 %v2664, %v2663
    %v2693 = vpack.c.b16 %v2666, %v2665
    %v2694 = vpack.c.b16 %v2668, %v2667
    %v2695 = vpack.c.b16 %v2670, %v2669
    %v2696 = vpack.c.b16 %v2672, %v2671
    %v2697 = vpack.c.b16 %v2674, %v2673
    %v2698 = vpack.c.b16 %v2676, %v2675
    %v2699 = vpack.c.b16 %v2678, %v2677
    %v2700 = vpack.c.b16 %v2680, %v2679
    %v2701 = vpack.c.b16 %v2682, %v2681
    %v2702 = vpack.c.b16 %v2684, %v2683
    %v2703 = vpack.c.b16 %v2686, %v2685
    %v2704 = vpack.c.b16 %v2688, %v2687
    %2721 = vmatprep.subr.bf16.mxu0 0
    %2722 = vmatpush1.bf16.msra.mxu0 %v2696
    %2723 = vmatprep.subr.bf16.mxu0 0
    %2724 = vmatpush1.bf16.msra.mxu0 %v2695
    %2725 = vmatprep.subr.bf16.mxu0 0
    %2726 = vmatpush1.bf16.msra.mxu0 %v2694
    %2727 = vmatprep.subr.bf16.mxu0 0
    %2728 = vmatpush1.bf16.msra.mxu0 %v2693
    %2729 = vmatprep.subr.bf16.mxu0 0
    %2730 = vmatpush1.bf16.msra.mxu0 %v2692
    %2731 = vmatprep.subr.bf16.mxu0 0
    %2732 = vmatpush1.bf16.msra.mxu0 %v2691
    %2733 = vmatprep.subr.bf16.mxu0 0
    %2734 = vmatpush1.bf16.msra.mxu0 %v2690
    %2735 = vmatprep.subr.bf16.mxu0 0
    %2736 = vmatpush1.bf16.msra.mxu0 %v2689
    %2737 = vmatprep.subr.bf16.mxu0 0
    %2738 = vmatpush2.bf16.msra.mxu0 %v2704
    %2739 = vmatprep.subr.bf16.mxu0 0
    %2740 = vmatpush2.bf16.msra.mxu0 %v2703
    %2741 = vmatprep.subr.bf16.mxu0 0
    %2742 = vmatpush2.bf16.msra.mxu0 %v2702
    %2743 = vmatprep.subr.bf16.mxu0 0
    %2744 = vmatpush2.bf16.msra.mxu0 %v2701
    %2745 = vmatprep.subr.bf16.mxu0 0
    %2746 = vmatpush2.bf16.msra.mxu0 %v2700
    %2747 = vmatprep.subr.bf16.mxu0 0
    %2748 = vmatpush2.bf16.msra.mxu0 %v2699
    %2749 = vmatprep.subr.bf16.mxu0 0
    %2750 = vmatpush2.bf16.msra.mxu0 %v2698
    %2751 = vmatprep.subr.bf16.mxu0 0
    %2752 = vmatpush2.bf16.msra.mxu0 %v2697
    %2753 = vmatprep.mubr.bf16.mxu0 %v2057
    %2754 = vmatmul.mubr.bf16.gmra.mxu0 %v2056
    %v2755 = vpop.f32.mrf.mxu0
    %v2756 = vadd.f32 %v2624, %v2755
    %v2757 = vpop.f32.mrf.mxu0
    %v2758 = vpop.f32.mrf.mxu0
    %v2759 = vpop.f32.mrf.mxu0
    %2760 = vdwg.mxu0
    %s2761 = scalar_lea.vmem [#allocation6], 512
    %v2762 = vld [vmem:[%s2761] sm:$0xf]
    %v2763 = vld [vmem:[%s2761 + $0x4] sm:$0xf]
    %v2764 = vld [vmem:[%s2761 + $0x8] sm:$0xf]
    %v2765 = vld [vmem:[%s2761 + $0xc] sm:$0xf]
    %v2766 = vld [vmem:[%s2761 + $0x10] sm:$0xf]
    %v2767 = vld [vmem:[%s2761 + $0x14] sm:$0xf]
    %v2768 = vld [vmem:[%s2761 + $0x18] sm:$0xf]
    %v2769 = vld [vmem:[%s2761 + $0x1c] sm:$0xf]
    %v2770 = vld [vmem:[%s2761 + $0x20] sm:$0xf]
    %v2771 = vld [vmem:[%s2761 + $0x24] sm:$0xf]
    %v2772 = vld [vmem:[%s2761 + $0x28] sm:$0xf]
    %v2773 = vld [vmem:[%s2761 + $0x2c] sm:$0xf]
    %v2774 = vld [vmem:[%s2761 + $0x30] sm:$0xf]
    %v2775 = vld [vmem:[%s2761 + $0x34] sm:$0xf]
    %v2776 = vld [vmem:[%s2761 + $0x38] sm:$0xf]
    %v2777 = vld [vmem:[%s2761 + $0x3c] sm:$0xf]
    %v2778 = vld [vmem:[%s2761 + $0x40] sm:$0xf]
    %v2779 = vld [vmem:[%s2761 + $0x44] sm:$0xf]
    %v2780 = vld [vmem:[%s2761 + $0x48] sm:$0xf]
    %v2781 = vld [vmem:[%s2761 + $0x4c] sm:$0xf]
    %v2782 = vld [vmem:[%s2761 + $0x50] sm:$0xf]
    %v2783 = vld [vmem:[%s2761 + $0x54] sm:$0xf]
    %v2784 = vld [vmem:[%s2761 + $0x58] sm:$0xf]
    %v2785 = vld [vmem:[%s2761 + $0x5c] sm:$0xf]
    %v2786 = vld [vmem:[%s2761 + $0x60] sm:$0xf]
    %v2787 = vld [vmem:[%s2761 + $0x64] sm:$0xf]
    %v2788 = vld [vmem:[%s2761 + $0x68] sm:$0xf]
    %v2789 = vld [vmem:[%s2761 + $0x6c] sm:$0xf]
    %v2790 = vld [vmem:[%s2761 + $0x70] sm:$0xf]
    %v2791 = vld [vmem:[%s2761 + $0x74] sm:$0xf]
    %v2792 = vld [vmem:[%s2761 + $0x78] sm:$0xf]
    %v2793 = vld [vmem:[%s2761 + $0x7c] sm:$0xf]
    %v2794 = vld [vmem:[#allocation7 + $0x4] sm:$0x1]
    %v2795 = vlaneseq
    %v2796 = vshrl.u32 %v2795, 7
    %v2797 = vsub.s32 0, %v2796
    %v2798 = vrot.slane %v2794, %v2797
    %v2831 = vunpack.c.l.b16 %v2762
    %v2832 = vunpack.c.l.b16 %v2763
    %v2833 = vunpack.c.l.b16 %v2764
    %v2834 = vunpack.c.l.b16 %v2765
    %v2835 = vunpack.c.l.b16 %v2766
    %v2836 = vunpack.c.l.b16 %v2767
    %v2837 = vunpack.c.l.b16 %v2768
    %v2838 = vunpack.c.l.b16 %v2769
    %v2839 = vunpack.c.l.b16 %v2770
    %v2840 = vunpack.c.l.b16 %v2771
    %v2841 = vunpack.c.l.b16 %v2772
    %v2842 = vunpack.c.l.b16 %v2773
    %v2843 = vunpack.c.l.b16 %v2774
    %v2844 = vunpack.c.l.b16 %v2775
    %v2845 = vunpack.c.l.b16 %v2776
    %v2846 = vunpack.c.l.b16 %v2777
    %v2847 = vunpack.c.l.b16 %v2778
    %v2848 = vunpack.c.l.b16 %v2779
    %v2849 = vunpack.c.l.b16 %v2780
    %v2850 = vunpack.c.l.b16 %v2781
    %v2851 = vunpack.c.l.b16 %v2782
    %v2852 = vunpack.c.l.b16 %v2783
    %v2853 = vunpack.c.l.b16 %v2784
    %v2854 = vunpack.c.l.b16 %v2785
    %v2855 = vunpack.c.l.b16 %v2786
    %v2856 = vunpack.c.l.b16 %v2787
    %v2857 = vunpack.c.l.b16 %v2788
    %v2858 = vunpack.c.l.b16 %v2789
    %v2859 = vunpack.c.l.b16 %v2790
    %v2860 = vunpack.c.l.b16 %v2791
    %v2861 = vunpack.c.l.b16 %v2792
    %v2862 = vunpack.c.l.b16 %v2793
    %v2863 = vpack.c.b16 %v2832, %v2831
    %v2864 = vpack.c.b16 %v2834, %v2833
    %v2865 = vpack.c.b16 %v2836, %v2835
    %v2866 = vpack.c.b16 %v2838, %v2837
    %v2867 = vpack.c.b16 %v2840, %v2839
    %v2868 = vpack.c.b16 %v2842, %v2841
    %v2869 = vpack.c.b16 %v2844, %v2843
    %v2870 = vpack.c.b16 %v2846, %v2845
    %v2871 = vpack.c.b16 %v2848, %v2847
    %v2872 = vpack.c.b16 %v2850, %v2849
    %v2873 = vpack.c.b16 %v2852, %v2851
    %v2874 = vpack.c.b16 %v2854, %v2853
    %v2875 = vpack.c.b16 %v2856, %v2855
    %v2876 = vpack.c.b16 %v2858, %v2857
    %v2877 = vpack.c.b16 %v2860, %v2859
    %v2878 = vpack.c.b16 %v2862, %v2861
    %2895 = vmatprep.subr.bf16.mxu0 0
    %2896 = vmatpush1.bf16.msra.mxu0 %v2870
    %2897 = vmatprep.subr.bf16.mxu0 0
    %2898 = vmatpush1.bf16.msra.mxu0 %v2869
    %2899 = vmatprep.subr.bf16.mxu0 0
    %2900 = vmatpush1.bf16.msra.mxu0 %v2868
    %2901 = vmatprep.subr.bf16.mxu0 0
    %2902 = vmatpush1.bf16.msra.mxu0 %v2867
    %2903 = vmatprep.subr.bf16.mxu0 0
    %2904 = vmatpush1.bf16.msra.mxu0 %v2866
    %2905 = vmatprep.subr.bf16.mxu0 0
    %2906 = vmatpush1.bf16.msra.mxu0 %v2865
    %2907 = vmatprep.subr.bf16.mxu0 0
    %2908 = vmatpush1.bf16.msra.mxu0 %v2864
    %2909 = vmatprep.subr.bf16.mxu0 0
    %2910 = vmatpush1.bf16.msra.mxu0 %v2863
    %2911 = vmatprep.subr.bf16.mxu0 0
    %2912 = vmatpush2.bf16.msra.mxu0 %v2878
    %2913 = vmatprep.subr.bf16.mxu0 0
    %2914 = vmatpush2.bf16.msra.mxu0 %v2877
    %2915 = vmatprep.subr.bf16.mxu0 0
    %2916 = vmatpush2.bf16.msra.mxu0 %v2876
    %2917 = vmatprep.subr.bf16.mxu0 0
    %2918 = vmatpush2.bf16.msra.mxu0 %v2875
    %2919 = vmatprep.subr.bf16.mxu0 0
    %2920 = vmatpush2.bf16.msra.mxu0 %v2874
    %2921 = vmatprep.subr.bf16.mxu0 0
    %2922 = vmatpush2.bf16.msra.mxu0 %v2873
    %2923 = vmatprep.subr.bf16.mxu0 0
    %2924 = vmatpush2.bf16.msra.mxu0 %v2872
    %2925 = vmatprep.subr.bf16.mxu0 0
    %2926 = vmatpush2.bf16.msra.mxu0 %v2871
    %2927 = vmatprep.mubr.bf16.mxu0 %v2059
    %2928 = vmatmul.mubr.bf16.gmra.mxu0 %v2058
    %v2929 = vpop.f32.mrf.mxu0
    %v2930 = vadd.f32 %v2798, %v2929
    %v2931 = vpop.f32.mrf.mxu0
    %v2932 = vpop.f32.mrf.mxu0
    %v2933 = vpop.f32.mrf.mxu0
    %2934 = vdwg.mxu0
    %s2935 = scalar_lea.vmem [#allocation6], 640
    %v2936 = vld [vmem:[%s2935] sm:$0xf]
    %v2937 = vld [vmem:[%s2935 + $0x4] sm:$0xf]
    %v2938 = vld [vmem:[%s2935 + $0x8] sm:$0xf]
    %v2939 = vld [vmem:[%s2935 + $0xc] sm:$0xf]
    %v2940 = vld [vmem:[%s2935 + $0x10] sm:$0xf]
    %v2941 = vld [vmem:[%s2935 + $0x14] sm:$0xf]
    %v2942 = vld [vmem:[%s2935 + $0x18] sm:$0xf]
    %v2943 = vld [vmem:[%s2935 + $0x1c] sm:$0xf]
    %v2944 = vld [vmem:[%s2935 + $0x20] sm:$0xf]
    %v2945 = vld [vmem:[%s2935 + $0x24] sm:$0xf]
    %v2946 = vld [vmem:[%s2935 + $0x28] sm:$0xf]
    %v2947 = vld [vmem:[%s2935 + $0x2c] sm:$0xf]
    %v2948 = vld [vmem:[%s2935 + $0x30] sm:$0xf]
    %v2949 = vld [vmem:[%s2935 + $0x34] sm:$0xf]
    %v2950 = vld [vmem:[%s2935 + $0x38] sm:$0xf]
    %v2951 = vld [vmem:[%s2935 + $0x3c] sm:$0xf]
    %v2952 = vld [vmem:[%s2935 + $0x40] sm:$0xf]
    %v2953 = vld [vmem:[%s2935 + $0x44] sm:$0xf]
    %v2954 = vld [vmem:[%s2935 + $0x48] sm:$0xf]
    %v2955 = vld [vmem:[%s2935 + $0x4c] sm:$0xf]
    %v2956 = vld [vmem:[%s2935 + $0x50] sm:$0xf]
    %v2957 = vld [vmem:[%s2935 + $0x54] sm:$0xf]
    %v2958 = vld [vmem:[%s2935 + $0x58] sm:$0xf]
    %v2959 = vld [vmem:[%s2935 + $0x5c] sm:$0xf]
    %v2960 = vld [vmem:[%s2935 + $0x60] sm:$0xf]
    %v2961 = vld [vmem:[%s2935 + $0x64] sm:$0xf]
    %v2962 = vld [vmem:[%s2935 + $0x68] sm:$0xf]
    %v2963 = vld [vmem:[%s2935 + $0x6c] sm:$0xf]
    %v2964 = vld [vmem:[%s2935 + $0x70] sm:$0xf]
    %v2965 = vld [vmem:[%s2935 + $0x74] sm:$0xf]
    %v2966 = vld [vmem:[%s2935 + $0x78] sm:$0xf]
    %v2967 = vld [vmem:[%s2935 + $0x7c] sm:$0xf]
    %v2968 = vld [vmem:[#allocation7 + $0x5] sm:$0x1]
    %v2969 = vlaneseq
    %v2970 = vshrl.u32 %v2969, 7
    %v2971 = vsub.s32 0, %v2970
    %v2972 = vrot.slane %v2968, %v2971
    %v3005 = vunpack.c.l.b16 %v2936
    %v3006 = vunpack.c.l.b16 %v2937
    %v3007 = vunpack.c.l.b16 %v2938
    %v3008 = vunpack.c.l.b16 %v2939
    %v3009 = vunpack.c.l.b16 %v2940
    %v3010 = vunpack.c.l.b16 %v2941
    %v3011 = vunpack.c.l.b16 %v2942
    %v3012 = vunpack.c.l.b16 %v2943
    %v3013 = vunpack.c.l.b16 %v2944
    %v3014 = vunpack.c.l.b16 %v2945
    %v3015 = vunpack.c.l.b16 %v2946
    %v3016 = vunpack.c.l.b16 %v2947
    %v3017 = vunpack.c.l.b16 %v2948
    %v3018 = vunpack.c.l.b16 %v2949
    %v3019 = vunpack.c.l.b16 %v2950
    %v3020 = vunpack.c.l.b16 %v2951
    %v3021 = vunpack.c.l.b16 %v2952
    %v3022 = vunpack.c.l.b16 %v2953
    %v3023 = vunpack.c.l.b16 %v2954
    %v3024 = vunpack.c.l.b16 %v2955
    %v3025 = vunpack.c.l.b16 %v2956
    %v3026 = vunpack.c.l.b16 %v2957
    %v3027 = vunpack.c.l.b16 %v2958
    %v3028 = vunpack.c.l.b16 %v2959
    %v3029 = vunpack.c.l.b16 %v2960
    %v3030 = vunpack.c.l.b16 %v2961
    %v3031 = vunpack.c.l.b16 %v2962
    %v3032 = vunpack.c.l.b16 %v2963
    %v3033 = vunpack.c.l.b16 %v2964
    %v3034 = vunpack.c.l.b16 %v2965
    %v3035 = vunpack.c.l.b16 %v2966
    %v3036 = vunpack.c.l.b16 %v2967
    %v3037 = vpack.c.b16 %v3006, %v3005
    %v3038 = vpack.c.b16 %v3008, %v3007
    %v3039 = vpack.c.b16 %v3010, %v3009
    %v3040 = vpack.c.b16 %v3012, %v3011
    %v3041 = vpack.c.b16 %v3014, %v3013
    %v3042 = vpack.c.b16 %v3016, %v3015
    %v3043 = vpack.c.b16 %v3018, %v3017
    %v3044 = vpack.c.b16 %v3020, %v3019
    %v3045 = vpack.c.b16 %v3022, %v3021
    %v3046 = vpack.c.b16 %v3024, %v3023
    %v3047 = vpack.c.b16 %v3026, %v3025
    %v3048 = vpack.c.b16 %v3028, %v3027
    %v3049 = vpack.c.b16 %v3030, %v3029
    %v3050 = vpack.c.b16 %v3032, %v3031
    %v3051 = vpack.c.b16 %v3034, %v3033
    %v3052 = vpack.c.b16 %v3036, %v3035
    %3069 = vmatprep.subr.bf16.mxu0 0
    %3070 = vmatpush1.bf16.msra.mxu0 %v3044
    %3071 = vmatprep.subr.bf16.mxu0 0
    %3072 = vmatpush1.bf16.msra.mxu0 %v3043
    %3073 = vmatprep.subr.bf16.mxu0 0
    %3074 = vmatpush1.bf16.msra.mxu0 %v3042
    %3075 = vmatprep.subr.bf16.mxu0 0
    %3076 = vmatpush1.bf16.msra.mxu0 %v3041
    %3077 = vmatprep.subr.bf16.mxu0 0
    %3078 = vmatpush1.bf16.msra.mxu0 %v3040
    %3079 = vmatprep.subr.bf16.mxu0 0
    %3080 = vmatpush1.bf16.msra.mxu0 %v3039
    %3081 = vmatprep.subr.bf16.mxu0 0
    %3082 = vmatpush1.bf16.msra.mxu0 %v3038
    %3083 = vmatprep.subr.bf16.mxu0 0
    %3084 = vmatpush1.bf16.msra.mxu0 %v3037
    %3085 = vmatprep.subr.bf16.mxu0 0
    %3086 = vmatpush2.bf16.msra.mxu0 %v3052
    %3087 = vmatprep.subr.bf16.mxu0 0
    %3088 = vmatpush2.bf16.msra.mxu0 %v3051
    %3089 = vmatprep.subr.bf16.mxu0 0
    %3090 = vmatpush2.bf16.msra.mxu0 %v3050
    %3091 = vmatprep.subr.bf16.mxu0 0
    %3092 = vmatpush2.bf16.msra.mxu0 %v3049
    %3093 = vmatprep.subr.bf16.mxu0 0
    %3094 = vmatpush2.bf16.msra.mxu0 %v3048
    %3095 = vmatprep.subr.bf16.mxu0 0
    %3096 = vmatpush2.bf16.msra.mxu0 %v3047
    %3097 = vmatprep.subr.bf16.mxu0 0
    %3098 = vmatpush2.bf16.msra.mxu0 %v3046
    %3099 = vmatprep.subr.bf16.mxu0 0
    %3100 = vmatpush2.bf16.msra.mxu0 %v3045
    %3101 = vmatprep.mubr.bf16.mxu0 %v2061
    %3102 = vmatmul.mubr.bf16.gmra.mxu0 %v2060
    %v3103 = vpop.f32.mrf.mxu0
    %v3104 = vadd.f32 %v2972, %v3103
    %v3105 = vpop.f32.mrf.mxu0
    %v3106 = vpop.f32.mrf.mxu0
    %v3107 = vpop.f32.mrf.mxu0
    %3108 = vdwg.mxu0
    %s3109 = scalar_lea.vmem [#allocation6], 768
    %v3110 = vld [vmem:[%s3109] sm:$0xf]
    %v3111 = vld [vmem:[%s3109 + $0x4] sm:$0xf]
    %v3112 = vld [vmem:[%s3109 + $0x8] sm:$0xf]
    %v3113 = vld [vmem:[%s3109 + $0xc] sm:$0xf]
    %v3114 = vld [vmem:[%s3109 + $0x10] sm:$0xf]
    %v3115 = vld [vmem:[%s3109 + $0x14] sm:$0xf]
    %v3116 = vld [vmem:[%s3109 + $0x18] sm:$0xf]
    %v3117 = vld [vmem:[%s3109 + $0x1c] sm:$0xf]
    %v3118 = vld [vmem:[%s3109 + $0x20] sm:$0xf]
    %v3119 = vld [vmem:[%s3109 + $0x24] sm:$0xf]
    %v3120 = vld [vmem:[%s3109 + $0x28] sm:$0xf]
    %v3121 = vld [vmem:[%s3109 + $0x2c] sm:$0xf]
    %v3122 = vld [vmem:[%s3109 + $0x30] sm:$0xf]
    %v3123 = vld [vmem:[%s3109 + $0x34] sm:$0xf]
    %v3124 = vld [vmem:[%s3109 + $0x38] sm:$0xf]
    %v3125 = vld [vmem:[%s3109 + $0x3c] sm:$0xf]
    %v3126 = vld [vmem:[%s3109 + $0x40] sm:$0xf]
    %v3127 = vld [vmem:[%s3109 + $0x44] sm:$0xf]
    %v3128 = vld [vmem:[%s3109 + $0x48] sm:$0xf]
    %v3129 = vld [vmem:[%s3109 + $0x4c] sm:$0xf]
    %v3130 = vld [vmem:[%s3109 + $0x50] sm:$0xf]
    %v3131 = vld [vmem:[%s3109 + $0x54] sm:$0xf]
    %v3132 = vld [vmem:[%s3109 + $0x58] sm:$0xf]
    %v3133 = vld [vmem:[%s3109 + $0x5c] sm:$0xf]
    %v3134 = vld [vmem:[%s3109 + $0x60] sm:$0xf]
    %v3135 = vld [vmem:[%s3109 + $0x64] sm:$0xf]
    %v3136 = vld [vmem:[%s3109 + $0x68] sm:$0xf]
    %v3137 = vld [vmem:[%s3109 + $0x6c] sm:$0xf]
    %v3138 = vld [vmem:[%s3109 + $0x70] sm:$0xf]
    %v3139 = vld [vmem:[%s3109 + $0x74] sm:$0xf]
    %v3140 = vld [vmem:[%s3109 + $0x78] sm:$0xf]
    %v3141 = vld [vmem:[%s3109 + $0x7c] sm:$0xf]
    %v3142 = vld [vmem:[#allocation7 + $0x6] sm:$0x1]
    %v3143 = vlaneseq
    %v3144 = vshrl.u32 %v3143, 7
    %v3145 = vsub.s32 0, %v3144
    %v3146 = vrot.slane %v3142, %v3145
    %v3179 = vunpack.c.l.b16 %v3110
    %v3180 = vunpack.c.l.b16 %v3111
    %v3181 = vunpack.c.l.b16 %v3112
    %v3182 = vunpack.c.l.b16 %v3113
    %v3183 = vunpack.c.l.b16 %v3114
    %v3184 = vunpack.c.l.b16 %v3115
    %v3185 = vunpack.c.l.b16 %v3116
    %v3186 = vunpack.c.l.b16 %v3117
    %v3187 = vunpack.c.l.b16 %v3118
    %v3188 = vunpack.c.l.b16 %v3119
    %v3189 = vunpack.c.l.b16 %v3120
    %v3190 = vunpack.c.l.b16 %v3121
    %v3191 = vunpack.c.l.b16 %v3122
    %v3192 = vunpack.c.l.b16 %v3123
    %v3193 = vunpack.c.l.b16 %v3124
    %v3194 = vunpack.c.l.b16 %v3125
    %v3195 = vunpack.c.l.b16 %v3126
    %v3196 = vunpack.c.l.b16 %v3127
    %v3197 = vunpack.c.l.b16 %v3128
    %v3198 = vunpack.c.l.b16 %v3129
    %v3199 = vunpack.c.l.b16 %v3130
    %v3200 = vunpack.c.l.b16 %v3131
    %v3201 = vunpack.c.l.b16 %v3132
    %v3202 = vunpack.c.l.b16 %v3133
    %v3203 = vunpack.c.l.b16 %v3134
    %v3204 = vunpack.c.l.b16 %v3135
    %v3205 = vunpack.c.l.b16 %v3136
    %v3206 = vunpack.c.l.b16 %v3137
    %v3207 = vunpack.c.l.b16 %v3138
    %v3208 = vunpack.c.l.b16 %v3139
    %v3209 = vunpack.c.l.b16 %v3140
    %v3210 = vunpack.c.l.b16 %v3141
    %v3211 = vpack.c.b16 %v3180, %v3179
    %v3212 = vpack.c.b16 %v3182, %v3181
    %v3213 = vpack.c.b16 %v3184, %v3183
    %v3214 = vpack.c.b16 %v3186, %v3185
    %v3215 = vpack.c.b16 %v3188, %v3187
    %v3216 = vpack.c.b16 %v3190, %v3189
    %v3217 = vpack.c.b16 %v3192, %v3191
    %v3218 = vpack.c.b16 %v3194, %v3193
    %v3219 = vpack.c.b16 %v3196, %v3195
    %v3220 = vpack.c.b16 %v3198, %v3197
    %v3221 = vpack.c.b16 %v3200, %v3199
    %v3222 = vpack.c.b16 %v3202, %v3201
    %v3223 = vpack.c.b16 %v3204, %v3203
    %v3224 = vpack.c.b16 %v3206, %v3205
    %v3225 = vpack.c.b16 %v3208, %v3207
    %v3226 = vpack.c.b16 %v3210, %v3209
    %3243 = vmatprep.subr.bf16.mxu0 0
    %3244 = vmatpush1.bf16.msra.mxu0 %v3218
    %3245 = vmatprep.subr.bf16.mxu0 0
    %3246 = vmatpush1.bf16.msra.mxu0 %v3217
    %3247 = vmatprep.subr.bf16.mxu0 0
    %3248 = vmatpush1.bf16.msra.mxu0 %v3216
    %3249 = vmatprep.subr.bf16.mxu0 0
    %3250 = vmatpush1.bf16.msra.mxu0 %v3215
    %3251 = vmatprep.subr.bf16.mxu0 0
    %3252 = vmatpush1.bf16.msra.mxu0 %v3214
    %3253 = vmatprep.subr.bf16.mxu0 0
    %3254 = vmatpush1.bf16.msra.mxu0 %v3213
    %3255 = vmatprep.subr.bf16.mxu0 0
    %3256 = vmatpush1.bf16.msra.mxu0 %v3212
    %3257 = vmatprep.subr.bf16.mxu0 0
    %3258 = vmatpush1.bf16.msra.mxu0 %v3211
    %3259 = vmatprep.subr.bf16.mxu0 0
    %3260 = vmatpush2.bf16.msra.mxu0 %v3226
    %3261 = vmatprep.subr.bf16.mxu0 0
    %3262 = vmatpush2.bf16.msra.mxu0 %v3225
    %3263 = vmatprep.subr.bf16.mxu0 0
    %3264 = vmatpush2.bf16.msra.mxu0 %v3224
    %3265 = vmatprep.subr.bf16.mxu0 0
    %3266 = vmatpush2.bf16.msra.mxu0 %v3223
    %3267 = vmatprep.subr.bf16.mxu0 0
    %3268 = vmatpush2.bf16.msra.mxu0 %v3222
    %3269 = vmatprep.subr.bf16.mxu0 0
    %3270 = vmatpush2.bf16.msra.mxu0 %v3221
    %3271 = vmatprep.subr.bf16.mxu0 0
    %3272 = vmatpush2.bf16.msra.mxu0 %v3220
    %3273 = vmatprep.subr.bf16.mxu0 0
    %3274 = vmatpush2.bf16.msra.mxu0 %v3219
    %3275 = vmatprep.mubr.bf16.mxu0 %v2063
    %3276 = vmatmul.mubr.bf16.gmra.mxu0 %v2062
    %v3277 = vpop.f32.mrf.mxu0
    %v3278 = vadd.f32 %v3146, %v3277
    %v3279 = vpop.f32.mrf.mxu0
    %v3280 = vpop.f32.mrf.mxu0
    %v3281 = vpop.f32.mrf.mxu0
    %3282 = vdwg.mxu0
    %s3283 = scalar_lea.vmem [#allocation6], 896
    %v3284 = vld [vmem:[%s3283] sm:$0xf]
    %v3285 = vld [vmem:[%s3283 + $0x4] sm:$0xf]
    %v3286 = vld [vmem:[%s3283 + $0x8] sm:$0xf]
    %v3287 = vld [vmem:[%s3283 + $0xc] sm:$0xf]
    %v3288 = vld [vmem:[%s3283 + $0x10] sm:$0xf]
    %v3289 = vld [vmem:[%s3283 + $0x14] sm:$0xf]
    %v3290 = vld [vmem:[%s3283 + $0x18] sm:$0xf]
    %v3291 = vld [vmem:[%s3283 + $0x1c] sm:$0xf]
    %v3292 = vld [vmem:[%s3283 + $0x20] sm:$0xf]
    %v3293 = vld [vmem:[%s3283 + $0x24] sm:$0xf]
    %v3294 = vld [vmem:[%s3283 + $0x28] sm:$0xf]
    %v3295 = vld [vmem:[%s3283 + $0x2c] sm:$0xf]
    %v3296 = vld [vmem:[%s3283 + $0x30] sm:$0xf]
    %v3297 = vld [vmem:[%s3283 + $0x34] sm:$0xf]
    %v3298 = vld [vmem:[%s3283 + $0x38] sm:$0xf]
    %v3299 = vld [vmem:[%s3283 + $0x3c] sm:$0xf]
    %v3300 = vld [vmem:[%s3283 + $0x40] sm:$0xf]
    %v3301 = vld [vmem:[%s3283 + $0x44] sm:$0xf]
    %v3302 = vld [vmem:[%s3283 + $0x48] sm:$0xf]
    %v3303 = vld [vmem:[%s3283 + $0x4c] sm:$0xf]
    %v3304 = vld [vmem:[%s3283 + $0x50] sm:$0xf]
    %v3305 = vld [vmem:[%s3283 + $0x54] sm:$0xf]
    %v3306 = vld [vmem:[%s3283 + $0x58] sm:$0xf]
    %v3307 = vld [vmem:[%s3283 + $0x5c] sm:$0xf]
    %v3308 = vld [vmem:[%s3283 + $0x60] sm:$0xf]
    %v3309 = vld [vmem:[%s3283 + $0x64] sm:$0xf]
    %v3310 = vld [vmem:[%s3283 + $0x68] sm:$0xf]
    %v3311 = vld [vmem:[%s3283 + $0x6c] sm:$0xf]
    %v3312 = vld [vmem:[%s3283 + $0x70] sm:$0xf]
    %v3313 = vld [vmem:[%s3283 + $0x74] sm:$0xf]
    %v3314 = vld [vmem:[%s3283 + $0x78] sm:$0xf]
    %v3315 = vld [vmem:[%s3283 + $0x7c] sm:$0xf]
    %v3316 = vld [vmem:[#allocation7 + $0x7] sm:$0x1]
    %v3317 = vlaneseq
    %v3318 = vshrl.u32 %v3317, 7
    %v3319 = vsub.s32 0, %v3318
    %v3320 = vrot.slane %v3316, %v3319
    %v3353 = vunpack.c.l.b16 %v3284
    %v3354 = vunpack.c.l.b16 %v3285
    %v3355 = vunpack.c.l.b16 %v3286
    %v3356 = vunpack.c.l.b16 %v3287
    %v3357 = vunpack.c.l.b16 %v3288
    %v3358 = vunpack.c.l.b16 %v3289
    %v3359 = vunpack.c.l.b16 %v3290
    %v3360 = vunpack.c.l.b16 %v3291
    %v3361 = vunpack.c.l.b16 %v3292
    %v3362 = vunpack.c.l.b16 %v3293
    %v3363 = vunpack.c.l.b16 %v3294
    %v3364 = vunpack.c.l.b16 %v3295
    %v3365 = vunpack.c.l.b16 %v3296
    %v3366 = vunpack.c.l.b16 %v3297
    %v3367 = vunpack.c.l.b16 %v3298
    %v3368 = vunpack.c.l.b16 %v3299
    %v3369 = vunpack.c.l.b16 %v3300
    %v3370 = vunpack.c.l.b16 %v3301
    %v3371 = vunpack.c.l.b16 %v3302
    %v3372 = vunpack.c.l.b16 %v3303
    %v3373 = vunpack.c.l.b16 %v3304
    %v3374 = vunpack.c.l.b16 %v3305
    %v3375 = vunpack.c.l.b16 %v3306
    %v3376 = vunpack.c.l.b16 %v3307
    %v3377 = vunpack.c.l.b16 %v3308
    %v3378 = vunpack.c.l.b16 %v3309
    %v3379 = vunpack.c.l.b16 %v3310
    %v3380 = vunpack.c.l.b16 %v3311
    %v3381 = vunpack.c.l.b16 %v3312
    %v3382 = vunpack.c.l.b16 %v3313
    %v3383 = vunpack.c.l.b16 %v3314
    %v3384 = vunpack.c.l.b16 %v3315
    %v3385 = vpack.c.b16 %v3354, %v3353
    %v3386 = vpack.c.b16 %v3356, %v3355
    %v3387 = vpack.c.b16 %v3358, %v3357
    %v3388 = vpack.c.b16 %v3360, %v3359
    %v3389 = vpack.c.b16 %v3362, %v3361
    %v3390 = vpack.c.b16 %v3364, %v3363
    %v3391 = vpack.c.b16 %v3366, %v3365
    %v3392 = vpack.c.b16 %v3368, %v3367
    %v3393 = vpack.c.b16 %v3370, %v3369
    %v3394 = vpack.c.b16 %v3372, %v3371
    %v3395 = vpack.c.b16 %v3374, %v3373
    %v3396 = vpack.c.b16 %v3376, %v3375
    %v3397 = vpack.c.b16 %v3378, %v3377
    %v3398 = vpack.c.b16 %v3380, %v3379
    %v3399 = vpack.c.b16 %v3382, %v3381
    %v3400 = vpack.c.b16 %v3384, %v3383
    %3417 = vmatprep.subr.bf16.mxu0 0
    %3418 = vmatpush1.bf16.msra.mxu0 %v3392
    %3419 = vmatprep.subr.bf16.mxu0 0
    %3420 = vmatpush1.bf16.msra.mxu0 %v3391
    %3421 = vmatprep.subr.bf16.mxu0 0
    %3422 = vmatpush1.bf16.msra.mxu0 %v3390
    %3423 = vmatprep.subr.bf16.mxu0 0
    %3424 = vmatpush1.bf16.msra.mxu0 %v3389
    %3425 = vmatprep.subr.bf16.mxu0 0
    %3426 = vmatpush1.bf16.msra.mxu0 %v3388
    %3427 = vmatprep.subr.bf16.mxu0 0
    %3428 = vmatpush1.bf16.msra.mxu0 %v3387
    %3429 = vmatprep.subr.bf16.mxu0 0
    %3430 = vmatpush1.bf16.msra.mxu0 %v3386
    %3431 = vmatprep.subr.bf16.mxu0 0
    %3432 = vmatpush1.bf16.msra.mxu0 %v3385
    %3433 = vmatprep.subr.bf16.mxu0 0
    %3434 = vmatpush2.bf16.msra.mxu0 %v3400
    %3435 = vmatprep.subr.bf16.mxu0 0
    %3436 = vmatpush2.bf16.msra.mxu0 %v3399
    %3437 = vmatprep.subr.bf16.mxu0 0
    %3438 = vmatpush2.bf16.msra.mxu0 %v3398
    %3439 = vmatprep.subr.bf16.mxu0 0
    %3440 = vmatpush2.bf16.msra.mxu0 %v3397
    %3441 = vmatprep.subr.bf16.mxu0 0
    %3442 = vmatpush2.bf16.msra.mxu0 %v3396
    %3443 = vmatprep.subr.bf16.mxu0 0
    %3444 = vmatpush2.bf16.msra.mxu0 %v3395
    %3445 = vmatprep.subr.bf16.mxu0 0
    %3446 = vmatpush2.bf16.msra.mxu0 %v3394
    %3447 = vmatprep.subr.bf16.mxu0 0
    %3448 = vmatpush2.bf16.msra.mxu0 %v3393
    %3449 = vmatprep.mubr.bf16.mxu0 %v2065
    %3450 = vmatmul.mubr.bf16.gmra.mxu0 %v2064
    %v3451 = vpop.f32.mrf.mxu0
    %v3452 = vadd.f32 %v3320, %v3451
    %v3453 = vpop.f32.mrf.mxu0
    %v3454 = vpop.f32.mrf.mxu0
    %v3455 = vpop.f32.mrf.mxu0
    %3456 = vdwg.mxu0
    %v3459 = vunpack.c.l.s4 1966171168
    %v3460 = vunpack.c.0.s8 %v3459
    %v3461 = vlaneseq
    %v3462 = vshrl.u32 %v3461, 7
    %v3463 = vsub.s32 %v3460, %v3462
    %v3464 = vrot.slane %v2234, %v3463
    %v3465 = vcombine.high %v3464, %v3464
    %v3467 = vunpack.c.l.s4 1966171168
    %v3468 = vunpack.c.0.s8 %v3467
    %v3469 = vlaneseq
    %v3470 = vshrl.u32 %v3469, 7
    %v3471 = vsub.s32 %v3468, %v3470
    %v3472 = vrot.slane %v3464, %v3471
    %v3474 = vunpack.c.l.s4 1966171168
    %v3475 = vunpack.c.0.s8 %v3474
    %v3476 = vlaneseq
    %v3477 = vshrl.u32 %v3476, 7
    %v3478 = vsub.s32 %v3475, %v3477
    %v3479 = vrot.slane %v3465, %v3478
    %v3484 = vunpack.c.l.s4 1966171168
    %v3485 = vunpack.c.0.s8 %v3484
    %v3486 = vlaneseq
    %v3487 = vshrl.u32 %v3486, 7
    %v3488 = vsub.s32 %v3485, %v3487
    %v3489 = vrot.slane %v2408, %v3488
    %v3490 = vcombine.high %v3489, %v3489
    %v3492 = vunpack.c.l.s4 1966171168
    %v3493 = vunpack.c.0.s8 %v3492
    %v3494 = vlaneseq
    %v3495 = vshrl.u32 %v3494, 7
    %v3496 = vsub.s32 %v3493, %v3495
    %v3497 = vrot.slane %v3489, %v3496
    %v3499 = vunpack.c.l.s4 1966171168
    %v3500 = vunpack.c.0.s8 %v3499
    %v3501 = vlaneseq
    %v3502 = vshrl.u32 %v3501, 7
    %v3503 = vsub.s32 %v3500, %v3502
    %v3504 = vrot.slane %v3490, %v3503
    %v3507 = vunpack.c.l.s4 1966171168
    %v3508 = vunpack.c.0.s8 %v3507
    %v3509 = vlaneseq
    %v3510 = vshrl.u32 %v3509, 7
    %v3511 = vsub.s32 %v3508, %v3510
    %v3512 = vrot.slane %v2582, %v3511
    %v3513 = vcombine.high %v3512, %v3512
    %v3515 = vunpack.c.l.s4 1966171168
    %v3516 = vunpack.c.0.s8 %v3515
    %v3517 = vlaneseq
    %v3518 = vshrl.u32 %v3517, 7
    %v3519 = vsub.s32 %v3516, %v3518
    %v3520 = vrot.slane %v3512, %v3519
    %v3522 = vunpack.c.l.s4 1966171168
    %v3523 = vunpack.c.0.s8 %v3522
    %v3524 = vlaneseq
    %v3525 = vshrl.u32 %v3524, 7
    %v3526 = vsub.s32 %v3523, %v3525
    %v3527 = vrot.slane %v3513, %v3526
    %v3530 = vunpack.c.l.s4 1966171168
    %v3531 = vunpack.c.0.s8 %v3530
    %v3532 = vlaneseq
    %v3533 = vshrl.u32 %v3532, 7
    %v3534 = vsub.s32 %v3531, %v3533
    %v3535 = vrot.slane %v2756, %v3534
    %v3536 = vcombine.high %v3535, %v3535
    %v3538 = vunpack.c.l.s4 1966171168
    %v3539 = vunpack.c.0.s8 %v3538
    %v3540 = vlaneseq
    %v3541 = vshrl.u32 %v3540, 7
    %v3542 = vsub.s32 %v3539, %v3541
    %v3543 = vrot.slane %v3535, %v3542
    %v3545 = vunpack.c.l.s4 1966171168
    %v3546 = vunpack.c.0.s8 %v3545
    %v3547 = vlaneseq
    %v3548 = vshrl.u32 %v3547, 7
    %v3549 = vsub.s32 %v3546, %v3548
    %v3550 = vrot.slane %v3536, %v3549
    %v3553 = vunpack.c.l.s4 1966171168
    %v3554 = vunpack.c.0.s8 %v3553
    %v3555 = vlaneseq
    %v3556 = vshrl.u32 %v3555, 7
    %v3557 = vsub.s32 %v3554, %v3556
    %v3558 = vrot.slane %v2930, %v3557
    %v3559 = vcombine.high %v3558, %v3558
    %v3561 = vunpack.c.l.s4 1966171168
    %v3562 = vunpack.c.0.s8 %v3561
    %v3563 = vlaneseq
    %v3564 = vshrl.u32 %v3563, 7
    %v3565 = vsub.s32 %v3562, %v3564
    %v3566 = vrot.slane %v3558, %v3565
    %v3568 = vunpack.c.l.s4 1966171168
    %v3569 = vunpack.c.0.s8 %v3568
    %v3570 = vlaneseq
    %v3571 = vshrl.u32 %v3570, 7
    %v3572 = vsub.s32 %v3569, %v3571
    %v3573 = vrot.slane %v3559, %v3572
    %v3576 = vunpack.c.l.s4 1966171168
    %v3577 = vunpack.c.0.s8 %v3576
    %v3578 = vlaneseq
    %v3579 = vshrl.u32 %v3578, 7
    %v3580 = vsub.s32 %v3577, %v3579
    %v3581 = vrot.slane %v3104, %v3580
    %v3582 = vcombine.high %v3581, %v3581
    %v3584 = vunpack.c.l.s4 1966171168
    %v3585 = vunpack.c.0.s8 %v3584
    %v3586 = vlaneseq
    %v3587 = vshrl.u32 %v3586, 7
    %v3588 = vsub.s32 %v3585, %v3587
    %v3589 = vrot.slane %v3581, %v3588
    %v3591 = vunpack.c.l.s4 1966171168
    %v3592 = vunpack.c.0.s8 %v3591
    %v3593 = vlaneseq
    %v3594 = vshrl.u32 %v3593, 7
    %v3595 = vsub.s32 %v3592, %v3594
    %v3596 = vrot.slane %v3582, %v3595
    %v3599 = vunpack.c.l.s4 1966171168
    %v3600 = vunpack.c.0.s8 %v3599
    %v3601 = vlaneseq
    %v3602 = vshrl.u32 %v3601, 7
    %v3603 = vsub.s32 %v3600, %v3602
    %v3604 = vrot.slane %v3278, %v3603
    %v3605 = vcombine.high %v3604, %v3604
    %v3607 = vunpack.c.l.s4 1966171168
    %v3608 = vunpack.c.0.s8 %v3607
    %v3609 = vlaneseq
    %v3610 = vshrl.u32 %v3609, 7
    %v3611 = vsub.s32 %v3608, %v3610
    %v3612 = vrot.slane %v3604, %v3611
    %v3614 = vunpack.c.l.s4 1966171168
    %v3615 = vunpack.c.0.s8 %v3614
    %v3616 = vlaneseq
    %v3617 = vshrl.u32 %v3616, 7
    %v3618 = vsub.s32 %v3615, %v3617
    %v3619 = vrot.slane %v3605, %v3618
    %v3622 = vunpack.c.l.s4 1966171168
    %v3623 = vunpack.c.0.s8 %v3622
    %v3624 = vlaneseq
    %v3625 = vshrl.u32 %v3624, 7
    %v3626 = vsub.s32 %v3623, %v3625
    %v3627 = vrot.slane %v3452, %v3626
    %v3628 = vcombine.high %v3627, %v3627
    %v3630 = vunpack.c.l.s4 1966171168
    %v3631 = vunpack.c.0.s8 %v3630
    %v3632 = vlaneseq
    %v3633 = vshrl.u32 %v3632, 7
    %v3634 = vsub.s32 %v3631, %v3633
    %v3635 = vrot.slane %v3627, %v3634
    %v3637 = vunpack.c.l.s4 1966171168
    %v3638 = vunpack.c.0.s8 %v3637
    %v3639 = vlaneseq
    %v3640 = vshrl.u32 %v3639, 7
    %v3641 = vsub.s32 %v3638, %v3640
    %v3642 = vrot.slane %v3628, %v3641
    %v3643 = vlaneseq
    %v3644 = vshrl.u32 %v3643, 7
    %v3645 = vsub.s32 0, %v3644
    %v3646 = vrot.slane %v3497, %v3645
    %v3647 = vlaneseq
    %v3648 = vshrl.u32 %v3647, 7
    %v3649 = vsub.s32 0, %v3648
    %v3650 = vrot.slane %v3504, %v3649
    %v3653 = vlaneseq
    %v3654 = vshrl.u32 %v3653, 7
    %v3655 = vsub.s32 0, %v3654
    %v3656 = vrot.slane %v3520, %v3655
    %v3657 = vlaneseq
    %v3658 = vshrl.u32 %v3657, 7
    %v3659 = vsub.s32 0, %v3658
    %v3660 = vrot.slane %v3527, %v3659
    %v3663 = vlaneseq
    %v3664 = vshrl.u32 %v3663, 7
    %v3665 = vsub.s32 0, %v3664
    %v3666 = vrot.slane %v3543, %v3665
    %v3667 = vlaneseq
    %v3668 = vshrl.u32 %v3667, 7
    %v3669 = vsub.s32 0, %v3668
    %v3670 = vrot.slane %v3550, %v3669
    %v3673 = vlaneseq
    %v3674 = vshrl.u32 %v3673, 7
    %v3675 = vsub.s32 0, %v3674
    %v3676 = vrot.slane %v3566, %v3675
    %v3677 = vlaneseq
    %v3678 = vshrl.u32 %v3677, 7
    %v3679 = vsub.s32 0, %v3678
    %v3680 = vrot.slane %v3573, %v3679
    %v3683 = vlaneseq
    %v3684 = vshrl.u32 %v3683, 7
    %v3685 = vsub.s32 0, %v3684
    %v3686 = vrot.slane %v3589, %v3685
    %v3687 = vlaneseq
    %v3688 = vshrl.u32 %v3687, 7
    %v3689 = vsub.s32 0, %v3688
    %v3690 = vrot.slane %v3596, %v3689
    %v3693 = vlaneseq
    %v3694 = vshrl.u32 %v3693, 7
    %v3695 = vsub.s32 0, %v3694
    %v3696 = vrot.slane %v3612, %v3695
    %v3697 = vlaneseq
    %v3698 = vshrl.u32 %v3697, 7
    %v3699 = vsub.s32 0, %v3698
    %v3700 = vrot.slane %v3619, %v3699
    %v3703 = vlaneseq
    %v3704 = vshrl.u32 %v3703, 7
    %v3705 = vsub.s32 0, %v3704
    %v3706 = vrot.slane %v3635, %v3705
    %v3707 = vlaneseq
    %v3708 = vshrl.u32 %v3707, 7
    %v3709 = vsub.s32 0, %v3708
    %v3710 = vrot.slane %v3642, %v3709
    %vm3713 = vcmask 1040384
    %v3714 = vsel %vm3713, %v3472, %v3646
    %v3715 = vsel %vm3713, %v3479, %v3650
    %vm3716 = vcmask 1041408
    %v3717 = vsel %vm3716, %v3714, %v3656
    %v3718 = vsel %vm3716, %v3715, %v3660
    %vm3719 = vcmask 1042432
    %v3720 = vsel %vm3719, %v3717, %v3666
    %v3721 = vsel %vm3719, %v3718, %v3670
    %vm3722 = vcmask 1043456
    %v3723 = vsel %vm3722, %v3720, %v3676
    %v3724 = vsel %vm3722, %v3721, %v3680
    %vm3725 = vcmask 1044480
    %v3726 = vsel %vm3725, %v3723, %v3686
    %v3727 = vsel %vm3725, %v3724, %v3690
    %vm3728 = vcmask 1045504
    %v3729 = vsel %vm3728, %v3726, %v3696
    %v3730 = vsel %vm3728, %v3727, %v3700
    %vm3731 = vcmask 1046528
    %v3732 = vsel %vm3731, %v3729, %v3706
    %v3733 = vsel %vm3731, %v3730, %v3710
    %3734 = vst [vmem:[%s5] sm:$0xff] %v3732
    %3735 = vst [vmem:[%s5 + $0x8] sm:$0xff] %v3733
    // Predicated region
    $region38: #{g_block_pallas.2} parent=1 // pred_check
      _
    $region39: #{g_block_pallas.2} parent=1 // pred_check_branch
      %3737 = sbr.rel (0) target = $region41
    $region40: #{g_block_pallas.2} parent=1 // pred_region
      _
    $region41: #{g_block_pallas.2} parent=1 // pred_fallthru
      _
    // Predicated region
    $region42: #{g_block_pallas.2} parent=1 // pred_check
      _
    $region43: #{g_block_pallas.2} parent=1 // pred_check_branch
      %3739 = sbr.rel (0) target = $region45
    $region44: #{g_block_pallas.2} parent=1 // pred_region
      _
    $region45: #{g_block_pallas.2} parent=1 // pred_fallthru
      _
    %3740 = vsyncpa [#allocation3], 1
    %3741 = vsyncpa [#allocation5], 1
    %3742 = vsyncpa [#allocation8], 1

</llo_original>
